<compile_context>
chip_gen: v6e
topology: v6e:2x2x1
jax: 0.10.0
libtpu: 0.0.40
codegen_flags: <defaults>
</compile_context>

<pallas_src>
import numpy as np
import jax
import jax.numpy as jnp
from jax.experimental import pallas as pl

LRELU_SLOPE = 0.2
BN_EPS = 1e-5
KH = KW = 4  # every conv in this model is 4x4


# ----------------------------------------------------------------------------
# Fused whole-network kernel
# ----------------------------------------------------------------------------
def _fused_disc_kernel(p1_ref, w1_ref, b1_ref,
                       sel2_ref, w2_ref, g2_ref, be2_ref,
                       sel3_ref, w3_ref, g3_ref, be3_ref,
                       w4_ref, seg_ref, b4_ref, o_ref):
    bf16, f32 = jnp.bfloat16, jnp.float32

    def lrelu(v):
        return jnp.where(v > 0, v, LRELU_SLOPE * v)

    def bn_lrelu(x, g_ref, be_ref):
        # Training-mode BatchNorm over rows (= N*H*W positions) per channel,
        # single pass (sum / sum-of-squares), biased variance like PyTorch.
        # NOTE: the conv bias is intentionally omitted on BN layers — it is
        # exactly cancelled by the mean subtraction below.
        inv_m = 1.0 / x.shape[0]
        mean = jnp.sum(x, axis=0, keepdims=True) * inv_m
        ex2 = jnp.sum(x * x, axis=0, keepdims=True) * inv_m
        var = jnp.maximum(ex2 - mean * mean, 0.0)      # clamp f32 cancellation
        y = (x - mean) * (jax.lax.rsqrt(var + BN_EPS) * g_ref[...]) + be_ref[...]
        return lrelu(y)

    def conv_taps(h_bf16, sel_ref, w_ref):
        # Implicit-GEMM stride-2 conv: for each of the 16 (kh,kw) taps, a 0/1
        # gather matmul pulls the contributing rows of h (exact — one nonzero
        # per row), then that tap's (Cin, Cout) weight is applied; f32 accum.
        acc = None
        for t in range(KH * KW):
            g = jnp.dot(sel_ref[t], h_bf16,
                        preferred_element_type=f32)        # (Mo, Cin), exact
            part = jnp.dot(g.astype(bf16), w_ref[t],
                           preferred_element_type=f32)     # (Mo, Cout)
            acc = part if acc is None else acc + part
        return acc

    # ---- layer 1: conv(4x4, s2, p1) + bias + leaky_relu (im2col patches) ---
    h1 = jnp.dot(p1_ref[...], w1_ref[...], preferred_element_type=f32)
    h1 = lrelu(h1 + b1_ref[...]).astype(bf16)              # (M1, C1)

    # ---- layer 2: conv + BN(train) + leaky_relu ----------------------------
    h2 = bn_lrelu(conv_taps(h1, sel2_ref, w2_ref), g2_ref, be2_ref)
    h2 = h2.astype(bf16)                                   # (M2, C2)

    # ---- layer 3: conv + BN(train) + leaky_relu ----------------------------
    h3 = bn_lrelu(conv_taps(h2, sel3_ref, w3_ref), g3_ref, be3_ref)  # (M3, C3)

    # ---- layer 4 head: 4x4 VALID conv (Cout=1) over the whole 4x4 map ------
    # Vectorized over the batch: per-position weighting on the VPU, then one
    # lane-dense segment matmul folds the 16 positions of each sample, then a
    # single lane reduce over channels.
    wtd = h3 * w4_ref[...]                                 # (M3, C3)
    per_sample = jnp.dot(seg_ref[...], wtd,
                         preferred_element_type=f32)        # (N, C3)
    logit = jnp.sum(per_sample, axis=1, keepdims=True) + b4_ref[...]   # (N, 1)
    o_ref[...] = jax.nn.sigmoid(logit).astype(o_ref.dtype)


# ----------------------------------------------------------------------------
# pallas_call wrapper (single fused block — everything fits in VMEM here)
# ----------------------------------------------------------------------------
def _full_spec(shape):
    zeros = (0,) * len(shape)
    return pl.BlockSpec(shape, lambda i, z=zeros: z)


def _single_block_call(kernel, out_shape, out_dtype, *arrays):
    # TODO(synk): at realistic batch/resolution, tile M with a grid, switch to
    # per-sample gather matrices, and use a two-pass BN stat reduction sized
    # for v7x's 64 MiB VMEM / 2 TensorCores.
    return pl.pallas_call(
        kernel,
        out_shape=jax.ShapeDtypeStruct(out_shape, out_dtype),
        grid=(1,),
        in_specs=[_full_spec(a.shape) for a in arrays],
        out_specs=_full_spec(out_shape),
    )(*arrays)


# ----------------------------------------------------------------------------
# One-time parameter / constant preprocessing (outside the forward path)
# ----------------------------------------------------------------------------
def _conv_mat(w):
    """PyTorch OIHW -> (kh*kw*Cin, Cout), matching im2col column ordering."""
    co, ci, kh, kw = w.shape
    return jnp.transpose(w, (2, 3, 1, 0)).reshape(kh * kw * ci, co)


def _tap_weights(w):
    """PyTorch OIHW -> (kh*kw, Cin, Cout), tap index t = i*kw + j."""
    co, ci, kh, kw = w.shape
    return jnp.transpose(w, (2, 3, 1, 0)).reshape(kh * kw, ci, co)


def _tap_gathers(batch, hi, wi, *, stride=2, pad=1, dtype=jnp.bfloat16):
    """0/1 per-tap gather matrices for a 4x4/stride-2/pad-1 conv.

    sel[t, m, r] = 1 iff output row m (n-major, oh, ow) reads input row r
    (n-major, ih, iw) at tap t = i*4 + j; padding rows stay all-zero."""
    ho = (hi + 2 * pad - KH) // stride + 1
    wo = (wi + 2 * pad - KW) // stride + 1
    mi, mo = batch * hi * wi, batch * ho * wo
    sel = np.zeros((KH * KW, mo, mi), np.float32)
    for i in range(KH):
        for j in range(KW):
            t = i * KW + j
            for n in range(batch):
                for oh in range(ho):
                    ih = oh * stride + i - pad
                    if not 0 <= ih < hi:
                        continue
                    for ow in range(wo):
                        iw = ow * stride + j - pad
                        if not 0 <= iw < wi:
                            continue
                        sel[t, n * ho * wo + oh * wo + ow,
                            n * hi * wi + ih * wi + iw] = 1.0
    return jnp.asarray(sel, dtype), ho, wo


def prepare_params(params, batch, height, width):
    """Build all kernel-ready constants once (merged conv1 weights, per-tap
    weight slabs, gather matrices, tiled head weights, segment matrix)."""
    f32, bf16 = jnp.float32, jnp.bfloat16
    d_half = params["w1_1"].shape[0]
    labels = params["w1_2"].shape[1]
    cin = 1 + labels
    cin_pad = -(-cin // 8) * 8       # lane-dense layer-1 K: 16*cin_pad % 128 == 0

    # Merged block-diagonal layer-1 conv (with zero rows for padded channels):
    # conv(concat(image, label, 0), W1m) == concat(conv1_1(image), conv1_2(label))
    w11, w12 = params["w1_1"], params["w1_2"]
    top = jnp.concatenate(
        [w11, jnp.zeros((d_half, cin_pad - 1, KH, KW), w11.dtype)], axis=1)
    bot = jnp.concatenate(
        [jnp.zeros((d_half, 1, KH, KW), w12.dtype), w12,
         jnp.zeros((d_half, cin_pad - cin, KH, KW), w12.dtype)], axis=1)
    w1m = jnp.concatenate([top, bot], axis=0)

    h1sp, w1sp = height // 2, width // 2
    sel2, h2sp, w2sp = _tap_gathers(batch, h1sp, w1sp)
    sel3, h3sp, w3sp = _tap_gathers(batch, h2sp, w2sp)
    assert h3sp == KH and w3sp == KW, "final feature map must be 4x4 for conv4"

    c3 = params["w3"].shape[0]
    w4_taps = jnp.transpose(params["w4"], (2, 3, 1, 0)).reshape(KH * KW, c3)
    seg = jnp.kron(jnp.eye(batch, dtype=jnp.float32),
                   jnp.ones((1, KH * KW), jnp.float32))

    return {
        "w1": _conv_mat(w1m).astype(bf16),
        "b1": jnp.concatenate([params["b1_1"], params["b1_2"]]
                              ).reshape(1, -1).astype(f32),
        "sel2": sel2,
        "w2": _tap_weights(params["w2"]).astype(bf16),
        "g2": params["g2"].reshape(1, -1).astype(f32),
        "be2": params["be2"].reshape(1, -1).astype(f32),
        "sel3": sel3,
        "w3": _tap_weights(params["w3"]).astype(bf16),
        "g3": params["g3"].reshape(1, -1).astype(f32),
        "be3": params["be3"].reshape(1, -1).astype(f32),
        "w4": jnp.tile(w4_taps, (batch, 1)).astype(f32),   # rows match h3 rows
        "seg": seg,
        "b4": params["b4"].reshape(1, 1).astype(f32),
    }


# ----------------------------------------------------------------------------
# Forward (mirrors DCCGAN_Discriminator.forward) — ONE pallas_call
# ----------------------------------------------------------------------------
def _im2col_nhwc(x, kh, kw, stride, pad):
    """NHWC im2col for the raw network input only (boundary data movement)."""
    n, h, w, c = x.shape
    xp = jnp.pad(x, ((0, 0), (pad, pad), (pad, pad), (0, 0)))
    ho = (h + 2 * pad - kh) // stride + 1
    wo = (w + 2 * pad - kw) // stride + 1
    taps = []
    for i in range(kh):
        for j in range(kw):
            taps.append(xp[:, i:i + stride * ho:stride,
                           j:j + stride * wo:stride, :])
    p = jnp.concatenate(taps, axis=-1)              # (N, Ho, Wo, kh*kw*C)
    return p.reshape(n * ho * wo, kh * kw * c), ho, wo


@jax.jit
def discriminator_forward(prep, image, label):
    n = image.shape[0]
    cin_pad = prep["w1"].shape[0] // (KH * KW)
    # Boundary prep on the raw input only: concat + zero-pad channels to 8
    # + single NCHW->NHWC transpose + layer-1 im2col.
    x = jnp.concatenate([image, label], axis=1)
    x = jnp.pad(x, ((0, 0), (0, cin_pad - x.shape[1]), (0, 0), (0, 0)))
    x = jnp.transpose(x, (0, 2, 3, 1))
    p1, _, _ = _im2col_nhwc(x, KH, KW, 2, 1)        # (N*H1*W1, 128)

    out = _single_block_call(
        _fused_disc_kernel, (n, 1), jnp.float32,
        p1.astype(jnp.bfloat16),
        prep["w1"], prep["b1"],
        prep["sel2"], prep["w2"], prep["g2"], prep["be2"],
        prep["sel3"], prep["w3"], prep["g3"], prep["be3"],
        prep["w4"], prep["seg"], prep["b4"])
    return out.reshape(n, 1, 1, 1)


# ----------------------------------------------------------------------------
# Pure-JAX reference (f32, HIGHEST precision) for verification
# ----------------------------------------------------------------------------
def _ref_conv(x, w, b, stride, pad):
    out = jax.lax.conv_general_dilated(
        x, w, window_strides=(stride, stride),
        padding=((pad, pad), (pad, pad)),
        dimension_numbers=("NCHW", "OIHW", "NCHW"),
        precision=jax.lax.Precision.HIGHEST)
    return out + b.reshape(1, -1, 1, 1)


def _ref_bn(x, gamma, beta):
    mean = x.mean(axis=(0, 2, 3), keepdims=True)
    var = ((x - mean) ** 2).mean(axis=(0, 2, 3), keepdims=True)
    xn = (x - mean) * jax.lax.rsqrt(var + BN_EPS)
    return xn * gamma.reshape(1, -1, 1, 1) + beta.reshape(1, -1, 1, 1)


def _ref_forward(params, image, label):
    lrelu = lambda v: jnp.where(v > 0, v, LRELU_SLOPE * v)
    x = lrelu(_ref_conv(image, params["w1_1"], params["b1_1"], 2, 1))
    y = lrelu(_ref_conv(label, params["w1_2"], params["b1_2"], 2, 1))
    h = jnp.concatenate([x, y], axis=1)
    h = lrelu(_ref_bn(_ref_conv(h, params["w2"], params["b2"], 2, 1),
                      params["g2"], params["be2"]))
    h = lrelu(_ref_bn(_ref_conv(h, params["w3"], params["b3"], 2, 1),
                      params["g3"], params["be3"]))
    h = jax.nn.sigmoid(_ref_conv(h, params["w4"], params["b4"], 1, 0))
    return h


# ----------------------------------------------------------------------------
def init_params(key, labels, d):
    std = 0.02  # normal_init(mean=0.0, std=0.02); conv biases zeroed
    ks = jax.random.split(key, 5)
    nrm = lambda k, shp: (std * jax.random.normal(k, shp)).astype(jnp.float32)
    z = lambda n: jnp.zeros((n,), jnp.float32)
    return {
        "w1_1": nrm(ks[0], (d // 2, 1, 4, 4)),      "b1_1": z(d // 2),
        "w1_2": nrm(ks[1], (d // 2, labels, 4, 4)), "b1_2": z(d // 2),
        "w2":   nrm(ks[2], (d * 2, d, 4, 4)),       "b2":   z(d * 2),
        "g2":   jnp.ones((d * 2,), jnp.float32),    "be2":  z(d * 2),
        "w3":   nrm(ks[3], (d * 4, d * 2, 4, 4)),   "b3":   z(d * 4),
        "g3":   jnp.ones((d * 4,), jnp.float32),    "be3":  z(d * 4),
        "w4":   nrm(ks[4], (1, d * 4, 4, 4)),       "b4":   z(1),
    }


if __name__ == "__main__":
    # Small shapes: batch=2, labels=4, d=32, 32x32 inputs (spatial chain
    # 32 -> 16 -> 8 -> 4 -> 1, matching the final 4x4/stride-1/no-pad conv).
    B, LABELS, D, HW = 2, 4, 32, 32
    key = jax.random.PRNGKey(0)
    kp, ki, kl = jax.random.split(key, 3)

    params = init_params(kp, LABELS, D)
    image = jax.random.normal(ki, (B, 1, HW, HW), dtype=jnp.float32)
    label = jax.random.normal(kl, (B, LABELS, HW, HW), dtype=jnp.float32)

    prep = prepare_params(params, B, HW, HW)   # one-time, outside the fwd path
    out = jax.block_until_ready(discriminator_forward(prep, image, label))
    assert out.shape == (B, 1, 1, 1), out.shape

    ref = jax.block_until_ready(_ref_forward(params, image, label))
    assert jnp.all(jnp.isfinite(out))
    # bf16 MXU inputs + bf16 inter-layer activations vs f32 HIGHEST reference.
    assert jnp.allclose(out, ref, atol=2e-2, rtol=2e-2), (out, ref)

    print("KERNEL_OK")
</pallas_src>

<mosaic_0001>
module attributes {stable_mosaic.version = 11 : i64} {
  func.func @_fused_disc_kernel(%arg0: i32, %arg1: memref<512x128xbf16, #tpu.memory_space<vmem>>, %arg2: memref<128x32xbf16, #tpu.memory_space<vmem>>, %arg3: memref<1x32xf32, #tpu.memory_space<vmem>>, %arg4: memref<16x128x512xbf16, #tpu.memory_space<vmem>>, %arg5: memref<16x32x64xbf16, #tpu.memory_space<vmem>>, %arg6: memref<1x64xf32, #tpu.memory_space<vmem>>, %arg7: memref<1x64xf32, #tpu.memory_space<vmem>>, %arg8: memref<16x32x128xbf16, #tpu.memory_space<vmem>>, %arg9: memref<16x64x128xbf16, #tpu.memory_space<vmem>>, %arg10: memref<1x128xf32, #tpu.memory_space<vmem>>, %arg11: memref<1x128xf32, #tpu.memory_space<vmem>>, %arg12: memref<32x128xf32, #tpu.memory_space<vmem>>, %arg13: memref<2x32xf32, #tpu.memory_space<vmem>>, %arg14: memref<1x1xf32, #tpu.memory_space<vmem>>, %arg15: memref<2x1xf32, #tpu.memory_space<vmem>>) attributes {dimension_semantics = [#tpu.dimension_semantics<arbitrary>], iteration_bounds = array<i64: 1>, scalar_prefetch = 0 : i64, scratch_operands = 0 : i64, tpu.core_type = #tpu.core_type<tc>, window_params = [{pipeline_mode = #tpu.pipeline_mode<synchronous>, transform_indices = @transform_0, window_bounds = array<i64: 512, 128>}, {pipeline_mode = #tpu.pipeline_mode<synchronous>, transform_indices = @transform_1, window_bounds = array<i64: 128, 32>}, {pipeline_mode = #tpu.pipeline_mode<synchronous>, transform_indices = @transform_2, window_bounds = array<i64: 1, 32>}, {pipeline_mode = #tpu.pipeline_mode<synchronous>, transform_indices = @transform_3, window_bounds = array<i64: 16, 128, 512>}, {pipeline_mode = #tpu.pipeline_mode<synchronous>, transform_indices = @transform_4, window_bounds = array<i64: 16, 32, 64>}, {pipeline_mode = #tpu.pipeline_mode<synchronous>, transform_indices = @transform_5, window_bounds = array<i64: 1, 64>}, {pipeline_mode = #tpu.pipeline_mode<synchronous>, transform_indices = @transform_6, window_bounds = array<i64: 1, 64>}, {pipeline_mode = #tpu.pipeline_mode<synchronous>, transform_indices = @transform_7, window_bounds = array<i64: 16, 32, 128>}, {pipeline_mode = #tpu.pipeline_mode<synchronous>, transform_indices = @transform_8, window_bounds = array<i64: 16, 64, 128>}, {pipeline_mode = #tpu.pipeline_mode<synchronous>, transform_indices = @transform_9, window_bounds = array<i64: 1, 128>}, {pipeline_mode = #tpu.pipeline_mode<synchronous>, transform_indices = @transform_10, window_bounds = array<i64: 1, 128>}, {pipeline_mode = #tpu.pipeline_mode<synchronous>, transform_indices = @transform_11, window_bounds = array<i64: 32, 128>}, {pipeline_mode = #tpu.pipeline_mode<synchronous>, transform_indices = @transform_12, window_bounds = array<i64: 2, 32>}, {pipeline_mode = #tpu.pipeline_mode<synchronous>, transform_indices = @transform_13, window_bounds = array<i64: 1, 1>}, {pipeline_mode = #tpu.pipeline_mode<synchronous>, transform_indices = @transform_14, window_bounds = array<i64: 2, 1>}]} {
    %c0 = arith.constant 0 : index
    %c0_0 = arith.constant 0 : index
    %0 = vector.load %arg1[%c0, %c0_0] : memref<512x128xbf16, #tpu.memory_space<vmem>>, vector<512x128xbf16>
    %c0_1 = arith.constant 0 : index
    %c0_2 = arith.constant 0 : index
    %1 = vector.load %arg2[%c0_1, %c0_2] : memref<128x32xbf16, #tpu.memory_space<vmem>>, vector<128x32xbf16>
    %cst = arith.constant dense<0.000000e+00> : vector<512x32xf32>
    %2 = tpu.matmul %0, %1, %cst {dimension_numbers = #tpu.dot_dimension_numbers<[1], [0], [0], [1], [0, 0, 1, 1], [], []>} : vector<512x128xbf16>, vector<128x32xbf16>, vector<512x32xf32> -> vector<512x32xf32>
    %c0_3 = arith.constant 0 : index
    %c0_4 = arith.constant 0 : index
    %3 = vector.load %arg3[%c0_3, %c0_4] : memref<1x32xf32, #tpu.memory_space<vmem>>, vector<1x32xf32>
    %4 = vector.broadcast %3 : vector<1x32xf32> to vector<512x32xf32>
    %5 = arith.addf %2, %4 : vector<512x32xf32>
    %cst_5 = arith.constant 0.000000e+00 : f32
    %6 = vector.broadcast %cst_5 : f32 to vector<512x32xf32>
    %7 = arith.cmpf ogt, %5, %6 : vector<512x32xf32>
    %cst_6 = arith.constant 2.000000e-01 : f32
    %8 = vector.broadcast %cst_6 : f32 to vector<512x32xf32>
    %9 = arith.mulf %8, %5 : vector<512x32xf32>
    %10 = arith.select %7, %5, %9 : vector<512x32xi1>, vector<512x32xf32>
    %11 = arith.truncf %10 : vector<512x32xf32> to vector<512x32xbf16>
    %c0_7 = arith.constant 0 : index
    %c0_8 = arith.constant 0 : index
    %c0_9 = arith.constant 0 : index
    %12 = vector.load %arg4[%c0_7, %c0_8, %c0_9] : memref<16x128x512xbf16, #tpu.memory_space<vmem>>, vector<1x128x512xbf16>
    %13 = vector.shape_cast %12 : vector<1x128x512xbf16> to vector<128x512xbf16>
    %cst_10 = arith.constant dense<0.000000e+00> : vector<128x32xf32>
    %14 = tpu.matmul %13, %11, %cst_10 {dimension_numbers = #tpu.dot_dimension_numbers<[1], [0], [0], [1], [0, 0, 1, 1], [], []>} : vector<128x512xbf16>, vector<512x32xbf16>, vector<128x32xf32> -> vector<128x32xf32>
    %15 = arith.truncf %14 : vector<128x32xf32> to vector<128x32xbf16>
    %c0_11 = arith.constant 0 : index
    %c0_12 = arith.constant 0 : index
    %c0_13 = arith.constant 0 : index
    %16 = vector.load %arg5[%c0_11, %c0_12, %c0_13] : memref<16x32x64xbf16, #tpu.memory_space<vmem>>, vector<1x32x64xbf16>
    %17 = vector.shape_cast %16 : vector<1x32x64xbf16> to vector<32x64xbf16>
    %cst_14 = arith.constant dense<0.000000e+00> : vector<128x64xf32>
    %18 = tpu.matmul %15, %17, %cst_14 {dimension_numbers = #tpu.dot_dimension_numbers<[1], [0], [0], [1], [0, 0, 1, 1], [], []>} : vector<128x32xbf16>, vector<32x64xbf16>, vector<128x64xf32> -> vector<128x64xf32>
    %c1 = arith.constant 1 : index
    %c0_15 = arith.constant 0 : index
    %c0_16 = arith.constant 0 : index
    %19 = vector.load %arg4[%c1, %c0_15, %c0_16] : memref<16x128x512xbf16, #tpu.memory_space<vmem>>, vector<1x128x512xbf16>
    %20 = vector.shape_cast %19 : vector<1x128x512xbf16> to vector<128x512xbf16>
    %cst_17 = arith.constant dense<0.000000e+00> : vector<128x32xf32>
    %21 = tpu.matmul %20, %11, %cst_17 {dimension_numbers = #tpu.dot_dimension_numbers<[1], [0], [0], [1], [0, 0, 1, 1], [], []>} : vector<128x512xbf16>, vector<512x32xbf16>, vector<128x32xf32> -> vector<128x32xf32>
    %22 = arith.truncf %21 : vector<128x32xf32> to vector<128x32xbf16>
    %c1_18 = arith.constant 1 : index
    %c0_19 = arith.constant 0 : index
    %c0_20 = arith.constant 0 : index
    %23 = vector.load %arg5[%c1_18, %c0_19, %c0_20] : memref<16x32x64xbf16, #tpu.memory_space<vmem>>, vector<1x32x64xbf16>
    %24 = vector.shape_cast %23 : vector<1x32x64xbf16> to vector<32x64xbf16>
    %cst_21 = arith.constant dense<0.000000e+00> : vector<128x64xf32>
    %25 = tpu.matmul %22, %24, %cst_21 {dimension_numbers = #tpu.dot_dimension_numbers<[1], [0], [0], [1], [0, 0, 1, 1], [], []>} : vector<128x32xbf16>, vector<32x64xbf16>, vector<128x64xf32> -> vector<128x64xf32>
    %26 = arith.addf %18, %25 : vector<128x64xf32>
    %c2 = arith.constant 2 : index
    %c0_22 = arith.constant 0 : index
    %c0_23 = arith.constant 0 : index
    %27 = vector.load %arg4[%c2, %c0_22, %c0_23] : memref<16x128x512xbf16, #tpu.memory_space<vmem>>, vector<1x128x512xbf16>
    %28 = vector.shape_cast %27 : vector<1x128x512xbf16> to vector<128x512xbf16>
    %cst_24 = arith.constant dense<0.000000e+00> : vector<128x32xf32>
    %29 = tpu.matmul %28, %11, %cst_24 {dimension_numbers = #tpu.dot_dimension_numbers<[1], [0], [0], [1], [0, 0, 1, 1], [], []>} : vector<128x512xbf16>, vector<512x32xbf16>, vector<128x32xf32> -> vector<128x32xf32>
    %30 = arith.truncf %29 : vector<128x32xf32> to vector<128x32xbf16>
    %c2_25 = arith.constant 2 : index
    %c0_26 = arith.constant 0 : index
    %c0_27 = arith.constant 0 : index
    %31 = vector.load %arg5[%c2_25, %c0_26, %c0_27] : memref<16x32x64xbf16, #tpu.memory_space<vmem>>, vector<1x32x64xbf16>
    %32 = vector.shape_cast %31 : vector<1x32x64xbf16> to vector<32x64xbf16>
    %cst_28 = arith.constant dense<0.000000e+00> : vector<128x64xf32>
    %33 = tpu.matmul %30, %32, %cst_28 {dimension_numbers = #tpu.dot_dimension_numbers<[1], [0], [0], [1], [0, 0, 1, 1], [], []>} : vector<128x32xbf16>, vector<32x64xbf16>, vector<128x64xf32> -> vector<128x64xf32>
    %34 = arith.addf %26, %33 : vector<128x64xf32>
    %c3 = arith.constant 3 : index
    %c0_29 = arith.constant 0 : index
    %c0_30 = arith.constant 0 : index
    %35 = vector.load %arg4[%c3, %c0_29, %c0_30] : memref<16x128x512xbf16, #tpu.memory_space<vmem>>, vector<1x128x512xbf16>
    %36 = vector.shape_cast %35 : vector<1x128x512xbf16> to vector<128x512xbf16>
    %cst_31 = arith.constant dense<0.000000e+00> : vector<128x32xf32>
    %37 = tpu.matmul %36, %11, %cst_31 {dimension_numbers = #tpu.dot_dimension_numbers<[1], [0], [0], [1], [0, 0, 1, 1], [], []>} : vector<128x512xbf16>, vector<512x32xbf16>, vector<128x32xf32> -> vector<128x32xf32>
    %38 = arith.truncf %37 : vector<128x32xf32> to vector<128x32xbf16>
    %c3_32 = arith.constant 3 : index
    %c0_33 = arith.constant 0 : index
    %c0_34 = arith.constant 0 : index
    %39 = vector.load %arg5[%c3_32, %c0_33, %c0_34] : memref<16x32x64xbf16, #tpu.memory_space<vmem>>, vector<1x32x64xbf16>
    %40 = vector.shape_cast %39 : vector<1x32x64xbf16> to vector<32x64xbf16>
    %cst_35 = arith.constant dense<0.000000e+00> : vector<128x64xf32>
    %41 = tpu.matmul %38, %40, %cst_35 {dimension_numbers = #tpu.dot_dimension_numbers<[1], [0], [0], [1], [0, 0, 1, 1], [], []>} : vector<128x32xbf16>, vector<32x64xbf16>, vector<128x64xf32> -> vector<128x64xf32>
    %42 = arith.addf %34, %41 : vector<128x64xf32>
    %c4 = arith.constant 4 : index
    %c0_36 = arith.constant 0 : index
    %c0_37 = arith.constant 0 : index
    %43 = vector.load %arg4[%c4, %c0_36, %c0_37] : memref<16x128x512xbf16, #tpu.memory_space<vmem>>, vector<1x128x512xbf16>
    %44 = vector.shape_cast %43 : vector<1x128x512xbf16> to vector<128x512xbf16>
    %cst_38 = arith.constant dense<0.000000e+00> : vector<128x32xf32>
    %45 = tpu.matmul %44, %11, %cst_38 {dimension_numbers = #tpu.dot_dimension_numbers<[1], [0], [0], [1], [0, 0, 1, 1], [], []>} : vector<128x512xbf16>, vector<512x32xbf16>, vector<128x32xf32> -> vector<128x32xf32>
    %46 = arith.truncf %45 : vector<128x32xf32> to vector<128x32xbf16>
    %c4_39 = arith.constant 4 : index
    %c0_40 = arith.constant 0 : index
    %c0_41 = arith.constant 0 : index
    %47 = vector.load %arg5[%c4_39, %c0_40, %c0_41] : memref<16x32x64xbf16, #tpu.memory_space<vmem>>, vector<1x32x64xbf16>
    %48 = vector.shape_cast %47 : vector<1x32x64xbf16> to vector<32x64xbf16>
    %cst_42 = arith.constant dense<0.000000e+00> : vector<128x64xf32>
    %49 = tpu.matmul %46, %48, %cst_42 {dimension_numbers = #tpu.dot_dimension_numbers<[1], [0], [0], [1], [0, 0, 1, 1], [], []>} : vector<128x32xbf16>, vector<32x64xbf16>, vector<128x64xf32> -> vector<128x64xf32>
    %50 = arith.addf %42, %49 : vector<128x64xf32>
    %c5 = arith.constant 5 : index
    %c0_43 = arith.constant 0 : index
    %c0_44 = arith.constant 0 : index
    %51 = vector.load %arg4[%c5, %c0_43, %c0_44] : memref<16x128x512xbf16, #tpu.memory_space<vmem>>, vector<1x128x512xbf16>
    %52 = vector.shape_cast %51 : vector<1x128x512xbf16> to vector<128x512xbf16>
    %cst_45 = arith.constant dense<0.000000e+00> : vector<128x32xf32>
    %53 = tpu.matmul %52, %11, %cst_45 {dimension_numbers = #tpu.dot_dimension_numbers<[1], [0], [0], [1], [0, 0, 1, 1], [], []>} : vector<128x512xbf16>, vector<512x32xbf16>, vector<128x32xf32> -> vector<128x32xf32>
    %54 = arith.truncf %53 : vector<128x32xf32> to vector<128x32xbf16>
    %c5_46 = arith.constant 5 : index
    %c0_47 = arith.constant 0 : index
    %c0_48 = arith.constant 0 : index
    %55 = vector.load %arg5[%c5_46, %c0_47, %c0_48] : memref<16x32x64xbf16, #tpu.memory_space<vmem>>, vector<1x32x64xbf16>
    %56 = vector.shape_cast %55 : vector<1x32x64xbf16> to vector<32x64xbf16>
    %cst_49 = arith.constant dense<0.000000e+00> : vector<128x64xf32>
    %57 = tpu.matmul %54, %56, %cst_49 {dimension_numbers = #tpu.dot_dimension_numbers<[1], [0], [0], [1], [0, 0, 1, 1], [], []>} : vector<128x32xbf16>, vector<32x64xbf16>, vector<128x64xf32> -> vector<128x64xf32>
    %58 = arith.addf %50, %57 : vector<128x64xf32>
    %c6 = arith.constant 6 : index
    %c0_50 = arith.constant 0 : index
    %c0_51 = arith.constant 0 : index
    %59 = vector.load %arg4[%c6, %c0_50, %c0_51] : memref<16x128x512xbf16, #tpu.memory_space<vmem>>, vector<1x128x512xbf16>
    %60 = vector.shape_cast %59 : vector<1x128x512xbf16> to vector<128x512xbf16>
    %cst_52 = arith.constant dense<0.000000e+00> : vector<128x32xf32>
    %61 = tpu.matmul %60, %11, %cst_52 {dimension_numbers = #tpu.dot_dimension_numbers<[1], [0], [0], [1], [0, 0, 1, 1], [], []>} : vector<128x512xbf16>, vector<512x32xbf16>, vector<128x32xf32> -> vector<128x32xf32>
    %62 = arith.truncf %61 : vector<128x32xf32> to vector<128x32xbf16>
    %c6_53 = arith.constant 6 : index
    %c0_54 = arith.constant 0 : index
    %c0_55 = arith.constant 0 : index
    %63 = vector.load %arg5[%c6_53, %c0_54, %c0_55] : memref<16x32x64xbf16, #tpu.memory_space<vmem>>, vector<1x32x64xbf16>
    %64 = vector.shape_cast %63 : vector<1x32x64xbf16> to vector<32x64xbf16>
    %cst_56 = arith.constant dense<0.000000e+00> : vector<128x64xf32>
    %65 = tpu.matmul %62, %64, %cst_56 {dimension_numbers = #tpu.dot_dimension_numbers<[1], [0], [0], [1], [0, 0, 1, 1], [], []>} : vector<128x32xbf16>, vector<32x64xbf16>, vector<128x64xf32> -> vector<128x64xf32>
    %66 = arith.addf %58, %65 : vector<128x64xf32>
    %c7 = arith.constant 7 : index
    %c0_57 = arith.constant 0 : index
    %c0_58 = arith.constant 0 : index
    %67 = vector.load %arg4[%c7, %c0_57, %c0_58] : memref<16x128x512xbf16, #tpu.memory_space<vmem>>, vector<1x128x512xbf16>
    %68 = vector.shape_cast %67 : vector<1x128x512xbf16> to vector<128x512xbf16>
    %cst_59 = arith.constant dense<0.000000e+00> : vector<128x32xf32>
    %69 = tpu.matmul %68, %11, %cst_59 {dimension_numbers = #tpu.dot_dimension_numbers<[1], [0], [0], [1], [0, 0, 1, 1], [], []>} : vector<128x512xbf16>, vector<512x32xbf16>, vector<128x32xf32> -> vector<128x32xf32>
    %70 = arith.truncf %69 : vector<128x32xf32> to vector<128x32xbf16>
    %c7_60 = arith.constant 7 : index
    %c0_61 = arith.constant 0 : index
    %c0_62 = arith.constant 0 : index
    %71 = vector.load %arg5[%c7_60, %c0_61, %c0_62] : memref<16x32x64xbf16, #tpu.memory_space<vmem>>, vector<1x32x64xbf16>
    %72 = vector.shape_cast %71 : vector<1x32x64xbf16> to vector<32x64xbf16>
    %cst_63 = arith.constant dense<0.000000e+00> : vector<128x64xf32>
    %73 = tpu.matmul %70, %72, %cst_63 {dimension_numbers = #tpu.dot_dimension_numbers<[1], [0], [0], [1], [0, 0, 1, 1], [], []>} : vector<128x32xbf16>, vector<32x64xbf16>, vector<128x64xf32> -> vector<128x64xf32>
    %74 = arith.addf %66, %73 : vector<128x64xf32>
    %c8 = arith.constant 8 : index
    %c0_64 = arith.constant 0 : index
    %c0_65 = arith.constant 0 : index
    %75 = vector.load %arg4[%c8, %c0_64, %c0_65] : memref<16x128x512xbf16, #tpu.memory_space<vmem>>, vector<1x128x512xbf16>
    %76 = vector.shape_cast %75 : vector<1x128x512xbf16> to vector<128x512xbf16>
    %cst_66 = arith.constant dense<0.000000e+00> : vector<128x32xf32>
    %77 = tpu.matmul %76, %11, %cst_66 {dimension_numbers = #tpu.dot_dimension_numbers<[1], [0], [0], [1], [0, 0, 1, 1], [], []>} : vector<128x512xbf16>, vector<512x32xbf16>, vector<128x32xf32> -> vector<128x32xf32>
    %78 = arith.truncf %77 : vector<128x32xf32> to vector<128x32xbf16>
    %c8_67 = arith.constant 8 : index
    %c0_68 = arith.constant 0 : index
    %c0_69 = arith.constant 0 : index
    %79 = vector.load %arg5[%c8_67, %c0_68, %c0_69] : memref<16x32x64xbf16, #tpu.memory_space<vmem>>, vector<1x32x64xbf16>
    %80 = vector.shape_cast %79 : vector<1x32x64xbf16> to vector<32x64xbf16>
    %cst_70 = arith.constant dense<0.000000e+00> : vector<128x64xf32>
    %81 = tpu.matmul %78, %80, %cst_70 {dimension_numbers = #tpu.dot_dimension_numbers<[1], [0], [0], [1], [0, 0, 1, 1], [], []>} : vector<128x32xbf16>, vector<32x64xbf16>, vector<128x64xf32> -> vector<128x64xf32>
    %82 = arith.addf %74, %81 : vector<128x64xf32>
    %c9 = arith.constant 9 : index
    %c0_71 = arith.constant 0 : index
    %c0_72 = arith.constant 0 : index
    %83 = vector.load %arg4[%c9, %c0_71, %c0_72] : memref<16x128x512xbf16, #tpu.memory_space<vmem>>, vector<1x128x512xbf16>
    %84 = vector.shape_cast %83 : vector<1x128x512xbf16> to vector<128x512xbf16>
    %cst_73 = arith.constant dense<0.000000e+00> : vector<128x32xf32>
    %85 = tpu.matmul %84, %11, %cst_73 {dimension_numbers = #tpu.dot_dimension_numbers<[1], [0], [0], [1], [0, 0, 1, 1], [], []>} : vector<128x512xbf16>, vector<512x32xbf16>, vector<128x32xf32> -> vector<128x32xf32>
    %86 = arith.truncf %85 : vector<128x32xf32> to vector<128x32xbf16>
    %c9_74 = arith.constant 9 : index
    %c0_75 = arith.constant 0 : index
    %c0_76 = arith.constant 0 : index
    %87 = vector.load %arg5[%c9_74, %c0_75, %c0_76] : memref<16x32x64xbf16, #tpu.memory_space<vmem>>, vector<1x32x64xbf16>
    %88 = vector.shape_cast %87 : vector<1x32x64xbf16> to vector<32x64xbf16>
    %cst_77 = arith.constant dense<0.000000e+00> : vector<128x64xf32>
    %89 = tpu.matmul %86, %88, %cst_77 {dimension_numbers = #tpu.dot_dimension_numbers<[1], [0], [0], [1], [0, 0, 1, 1], [], []>} : vector<128x32xbf16>, vector<32x64xbf16>, vector<128x64xf32> -> vector<128x64xf32>
    %90 = arith.addf %82, %89 : vector<128x64xf32>
    %c10 = arith.constant 10 : index
    %c0_78 = arith.constant 0 : index
    %c0_79 = arith.constant 0 : index
    %91 = vector.load %arg4[%c10, %c0_78, %c0_79] : memref<16x128x512xbf16, #tpu.memory_space<vmem>>, vector<1x128x512xbf16>
    %92 = vector.shape_cast %91 : vector<1x128x512xbf16> to vector<128x512xbf16>
    %cst_80 = arith.constant dense<0.000000e+00> : vector<128x32xf32>
    %93 = tpu.matmul %92, %11, %cst_80 {dimension_numbers = #tpu.dot_dimension_numbers<[1], [0], [0], [1], [0, 0, 1, 1], [], []>} : vector<128x512xbf16>, vector<512x32xbf16>, vector<128x32xf32> -> vector<128x32xf32>
    %94 = arith.truncf %93 : vector<128x32xf32> to vector<128x32xbf16>
    %c10_81 = arith.constant 10 : index
    %c0_82 = arith.constant 0 : index
    %c0_83 = arith.constant 0 : index
    %95 = vector.load %arg5[%c10_81, %c0_82, %c0_83] : memref<16x32x64xbf16, #tpu.memory_space<vmem>>, vector<1x32x64xbf16>
    %96 = vector.shape_cast %95 : vector<1x32x64xbf16> to vector<32x64xbf16>
    %cst_84 = arith.constant dense<0.000000e+00> : vector<128x64xf32>
    %97 = tpu.matmul %94, %96, %cst_84 {dimension_numbers = #tpu.dot_dimension_numbers<[1], [0], [0], [1], [0, 0, 1, 1], [], []>} : vector<128x32xbf16>, vector<32x64xbf16>, vector<128x64xf32> -> vector<128x64xf32>
    %98 = arith.addf %90, %97 : vector<128x64xf32>
    %c11 = arith.constant 11 : index
    %c0_85 = arith.constant 0 : index
    %c0_86 = arith.constant 0 : index
    %99 = vector.load %arg4[%c11, %c0_85, %c0_86] : memref<16x128x512xbf16, #tpu.memory_space<vmem>>, vector<1x128x512xbf16>
    %100 = vector.shape_cast %99 : vector<1x128x512xbf16> to vector<128x512xbf16>
    %cst_87 = arith.constant dense<0.000000e+00> : vector<128x32xf32>
    %101 = tpu.matmul %100, %11, %cst_87 {dimension_numbers = #tpu.dot_dimension_numbers<[1], [0], [0], [1], [0, 0, 1, 1], [], []>} : vector<128x512xbf16>, vector<512x32xbf16>, vector<128x32xf32> -> vector<128x32xf32>
    %102 = arith.truncf %101 : vector<128x32xf32> to vector<128x32xbf16>
    %c11_88 = arith.constant 11 : index
    %c0_89 = arith.constant 0 : index
    %c0_90 = arith.constant 0 : index
    %103 = vector.load %arg5[%c11_88, %c0_89, %c0_90] : memref<16x32x64xbf16, #tpu.memory_space<vmem>>, vector<1x32x64xbf16>
    %104 = vector.shape_cast %103 : vector<1x32x64xbf16> to vector<32x64xbf16>
    %cst_91 = arith.constant dense<0.000000e+00> : vector<128x64xf32>
    %105 = tpu.matmul %102, %104, %cst_91 {dimension_numbers = #tpu.dot_dimension_numbers<[1], [0], [0], [1], [0, 0, 1, 1], [], []>} : vector<128x32xbf16>, vector<32x64xbf16>, vector<128x64xf32> -> vector<128x64xf32>
    %106 = arith.addf %98, %105 : vector<128x64xf32>
    %c12 = arith.constant 12 : index
    %c0_92 = arith.constant 0 : index
    %c0_93 = arith.constant 0 : index
    %107 = vector.load %arg4[%c12, %c0_92, %c0_93] : memref<16x128x512xbf16, #tpu.memory_space<vmem>>, vector<1x128x512xbf16>
    %108 = vector.shape_cast %107 : vector<1x128x512xbf16> to vector<128x512xbf16>
    %cst_94 = arith.constant dense<0.000000e+00> : vector<128x32xf32>
    %109 = tpu.matmul %108, %11, %cst_94 {dimension_numbers = #tpu.dot_dimension_numbers<[1], [0], [0], [1], [0, 0, 1, 1], [], []>} : vector<128x512xbf16>, vector<512x32xbf16>, vector<128x32xf32> -> vector<128x32xf32>
    %110 = arith.truncf %109 : vector<128x32xf32> to vector<128x32xbf16>
    %c12_95 = arith.constant 12 : index
    %c0_96 = arith.constant 0 : index
    %c0_97 = arith.constant 0 : index
    %111 = vector.load %arg5[%c12_95, %c0_96, %c0_97] : memref<16x32x64xbf16, #tpu.memory_space<vmem>>, vector<1x32x64xbf16>
    %112 = vector.shape_cast %111 : vector<1x32x64xbf16> to vector<32x64xbf16>
    %cst_98 = arith.constant dense<0.000000e+00> : vector<128x64xf32>
    %113 = tpu.matmul %110, %112, %cst_98 {dimension_numbers = #tpu.dot_dimension_numbers<[1], [0], [0], [1], [0, 0, 1, 1], [], []>} : vector<128x32xbf16>, vector<32x64xbf16>, vector<128x64xf32> -> vector<128x64xf32>
    %114 = arith.addf %106, %113 : vector<128x64xf32>
    %c13 = arith.constant 13 : index
    %c0_99 = arith.constant 0 : index
    %c0_100 = arith.constant 0 : index
    %115 = vector.load %arg4[%c13, %c0_99, %c0_100] : memref<16x128x512xbf16, #tpu.memory_space<vmem>>, vector<1x128x512xbf16>
    %116 = vector.shape_cast %115 : vector<1x128x512xbf16> to vector<128x512xbf16>
    %cst_101 = arith.constant dense<0.000000e+00> : vector<128x32xf32>
    %117 = tpu.matmul %116, %11, %cst_101 {dimension_numbers = #tpu.dot_dimension_numbers<[1], [0], [0], [1], [0, 0, 1, 1], [], []>} : vector<128x512xbf16>, vector<512x32xbf16>, vector<128x32xf32> -> vector<128x32xf32>
    %118 = arith.truncf %117 : vector<128x32xf32> to vector<128x32xbf16>
    %c13_102 = arith.constant 13 : index
    %c0_103 = arith.constant 0 : index
    %c0_104 = arith.constant 0 : index
    %119 = vector.load %arg5[%c13_102, %c0_103, %c0_104] : memref<16x32x64xbf16, #tpu.memory_space<vmem>>, vector<1x32x64xbf16>
    %120 = vector.shape_cast %119 : vector<1x32x64xbf16> to vector<32x64xbf16>
    %cst_105 = arith.constant dense<0.000000e+00> : vector<128x64xf32>
    %121 = tpu.matmul %118, %120, %cst_105 {dimension_numbers = #tpu.dot_dimension_numbers<[1], [0], [0], [1], [0, 0, 1, 1], [], []>} : vector<128x32xbf16>, vector<32x64xbf16>, vector<128x64xf32> -> vector<128x64xf32>
    %122 = arith.addf %114, %121 : vector<128x64xf32>
    %c14 = arith.constant 14 : index
    %c0_106 = arith.constant 0 : index
    %c0_107 = arith.constant 0 : index
    %123 = vector.load %arg4[%c14, %c0_106, %c0_107] : memref<16x128x512xbf16, #tpu.memory_space<vmem>>, vector<1x128x512xbf16>
    %124 = vector.shape_cast %123 : vector<1x128x512xbf16> to vector<128x512xbf16>
    %cst_108 = arith.constant dense<0.000000e+00> : vector<128x32xf32>
    %125 = tpu.matmul %124, %11, %cst_108 {dimension_numbers = #tpu.dot_dimension_numbers<[1], [0], [0], [1], [0, 0, 1, 1], [], []>} : vector<128x512xbf16>, vector<512x32xbf16>, vector<128x32xf32> -> vector<128x32xf32>
    %126 = arith.truncf %125 : vector<128x32xf32> to vector<128x32xbf16>
    %c14_109 = arith.constant 14 : index
    %c0_110 = arith.constant 0 : index
    %c0_111 = arith.constant 0 : index
    %127 = vector.load %arg5[%c14_109, %c0_110, %c0_111] : memref<16x32x64xbf16, #tpu.memory_space<vmem>>, vector<1x32x64xbf16>
    %128 = vector.shape_cast %127 : vector<1x32x64xbf16> to vector<32x64xbf16>
    %cst_112 = arith.constant dense<0.000000e+00> : vector<128x64xf32>
    %129 = tpu.matmul %126, %128, %cst_112 {dimension_numbers = #tpu.dot_dimension_numbers<[1], [0], [0], [1], [0, 0, 1, 1], [], []>} : vector<128x32xbf16>, vector<32x64xbf16>, vector<128x64xf32> -> vector<128x64xf32>
    %130 = arith.addf %122, %129 : vector<128x64xf32>
    %c15 = arith.constant 15 : index
    %c0_113 = arith.constant 0 : index
    %c0_114 = arith.constant 0 : index
    %131 = vector.load %arg4[%c15, %c0_113, %c0_114] : memref<16x128x512xbf16, #tpu.memory_space<vmem>>, vector<1x128x512xbf16>
    %132 = vector.shape_cast %131 : vector<1x128x512xbf16> to vector<128x512xbf16>
    %cst_115 = arith.constant dense<0.000000e+00> : vector<128x32xf32>
    %133 = tpu.matmul %132, %11, %cst_115 {dimension_numbers = #tpu.dot_dimension_numbers<[1], [0], [0], [1], [0, 0, 1, 1], [], []>} : vector<128x512xbf16>, vector<512x32xbf16>, vector<128x32xf32> -> vector<128x32xf32>
    %134 = arith.truncf %133 : vector<128x32xf32> to vector<128x32xbf16>
    %c15_116 = arith.constant 15 : index
    %c0_117 = arith.constant 0 : index
    %c0_118 = arith.constant 0 : index
    %135 = vector.load %arg5[%c15_116, %c0_117, %c0_118] : memref<16x32x64xbf16, #tpu.memory_space<vmem>>, vector<1x32x64xbf16>
    %136 = vector.shape_cast %135 : vector<1x32x64xbf16> to vector<32x64xbf16>
    %cst_119 = arith.constant dense<0.000000e+00> : vector<128x64xf32>
    %137 = tpu.matmul %134, %136, %cst_119 {dimension_numbers = #tpu.dot_dimension_numbers<[1], [0], [0], [1], [0, 0, 1, 1], [], []>} : vector<128x32xbf16>, vector<32x64xbf16>, vector<128x64xf32> -> vector<128x64xf32>
    %138 = arith.addf %130, %137 : vector<128x64xf32>
    %cst_120 = arith.constant dense<0.000000e+00> : vector<64xf32>
    %139 = vector.multi_reduction <add>, %138, %cst_120 [0] : vector<128x64xf32> to vector<64xf32>
    %140 = vector.shape_cast %139 : vector<64xf32> to vector<1x64xf32>
    %cst_121 = arith.constant 7.812500e-03 : f32
    %141 = vector.broadcast %cst_121 : f32 to vector<1x64xf32>
    %142 = arith.mulf %140, %141 : vector<1x64xf32>
    %143 = arith.mulf %138, %138 : vector<128x64xf32>
    %cst_122 = arith.constant dense<0.000000e+00> : vector<64xf32>
    %144 = vector.multi_reduction <add>, %143, %cst_122 [0] : vector<128x64xf32> to vector<64xf32>
    %145 = vector.shape_cast %144 : vector<64xf32> to vector<1x64xf32>
    %cst_123 = arith.constant 7.812500e-03 : f32
    %146 = vector.broadcast %cst_123 : f32 to vector<1x64xf32>
    %147 = arith.mulf %145, %146 : vector<1x64xf32>
    %148 = arith.mulf %142, %142 : vector<1x64xf32>
    %149 = arith.subf %147, %148 : vector<1x64xf32>
    %cst_124 = arith.constant 0.000000e+00 : f32
    %150 = vector.broadcast %cst_124 : f32 to vector<1x64xf32>
    %151 = arith.maximumf %149, %150 : vector<1x64xf32>
    %152 = vector.broadcast %142 : vector<1x64xf32> to vector<128x64xf32>
    %153 = arith.subf %138, %152 : vector<128x64xf32>
    %cst_125 = arith.constant 9.99999974E-6 : f32
    %154 = vector.broadcast %cst_125 : f32 to vector<1x64xf32>
    %155 = arith.addf %151, %154 : vector<1x64xf32>
    %156 = math.rsqrt %155 : vector<1x64xf32>
    %c0_126 = arith.constant 0 : index
    %c0_127 = arith.constant 0 : index
    %157 = vector.load %arg6[%c0_126, %c0_127] : memref<1x64xf32, #tpu.memory_space<vmem>>, vector<1x64xf32>
    %158 = arith.mulf %156, %157 : vector<1x64xf32>
    %159 = vector.broadcast %158 : vector<1x64xf32> to vector<128x64xf32>
    %160 = arith.mulf %153, %159 : vector<128x64xf32>
    %c0_128 = arith.constant 0 : index
    %c0_129 = arith.constant 0 : index
    %161 = vector.load %arg7[%c0_128, %c0_129] : memref<1x64xf32, #tpu.memory_space<vmem>>, vector<1x64xf32>
    %162 = vector.broadcast %161 : vector<1x64xf32> to vector<128x64xf32>
    %163 = arith.addf %160, %162 : vector<128x64xf32>
    %cst_130 = arith.constant 0.000000e+00 : f32
    %164 = vector.broadcast %cst_130 : f32 to vector<128x64xf32>
    %165 = arith.cmpf ogt, %163, %164 : vector<128x64xf32>
    %cst_131 = arith.constant 2.000000e-01 : f32
    %166 = vector.broadcast %cst_131 : f32 to vector<128x64xf32>
    %167 = arith.mulf %166, %163 : vector<128x64xf32>
    %168 = arith.select %165, %163, %167 : vector<128x64xi1>, vector<128x64xf32>
    %169 = arith.truncf %168 : vector<128x64xf32> to vector<128x64xbf16>
    %c0_132 = arith.constant 0 : index
    %c0_133 = arith.constant 0 : index
    %c0_134 = arith.constant 0 : index
    %170 = vector.load %arg8[%c0_132, %c0_133, %c0_134] : memref<16x32x128xbf16, #tpu.memory_space<vmem>>, vector<1x32x128xbf16>
    %171 = vector.shape_cast %170 : vector<1x32x128xbf16> to vector<32x128xbf16>
    %cst_135 = arith.constant dense<0.000000e+00> : vector<32x64xf32>
    %172 = tpu.matmul %171, %169, %cst_135 {dimension_numbers = #tpu.dot_dimension_numbers<[1], [0], [0], [1], [0, 0, 1, 1], [], []>} : vector<32x128xbf16>, vector<128x64xbf16>, vector<32x64xf32> -> vector<32x64xf32>
    %173 = arith.truncf %172 : vector<32x64xf32> to vector<32x64xbf16>
    %c0_136 = arith.constant 0 : index
    %c0_137 = arith.constant 0 : index
    %c0_138 = arith.constant 0 : index
    %174 = vector.load %arg9[%c0_136, %c0_137, %c0_138] : memref<16x64x128xbf16, #tpu.memory_space<vmem>>, vector<1x64x128xbf16>
    %175 = vector.shape_cast %174 : vector<1x64x128xbf16> to vector<64x128xbf16>
    %cst_139 = arith.constant dense<0.000000e+00> : vector<32x128xf32>
    %176 = tpu.matmul %173, %175, %cst_139 {dimension_numbers = #tpu.dot_dimension_numbers<[1], [0], [0], [1], [0, 0, 1, 1], [], []>} : vector<32x64xbf16>, vector<64x128xbf16>, vector<32x128xf32> -> vector<32x128xf32>
    %c1_140 = arith.constant 1 : index
    %c0_141 = arith.constant 0 : index
    %c0_142 = arith.constant 0 : index
    %177 = vector.load %arg8[%c1_140, %c0_141, %c0_142] : memref<16x32x128xbf16, #tpu.memory_space<vmem>>, vector<1x32x128xbf16>
    %178 = vector.shape_cast %177 : vector<1x32x128xbf16> to vector<32x128xbf16>
    %cst_143 = arith.constant dense<0.000000e+00> : vector<32x64xf32>
    %179 = tpu.matmul %178, %169, %cst_143 {dimension_numbers = #tpu.dot_dimension_numbers<[1], [0], [0], [1], [0, 0, 1, 1], [], []>} : vector<32x128xbf16>, vector<128x64xbf16>, vector<32x64xf32> -> vector<32x64xf32>
    %180 = arith.truncf %179 : vector<32x64xf32> to vector<32x64xbf16>
    %c1_144 = arith.constant 1 : index
    %c0_145 = arith.constant 0 : index
    %c0_146 = arith.constant 0 : index
    %181 = vector.load %arg9[%c1_144, %c0_145, %c0_146] : memref<16x64x128xbf16, #tpu.memory_space<vmem>>, vector<1x64x128xbf16>
    %182 = vector.shape_cast %181 : vector<1x64x128xbf16> to vector<64x128xbf16>
    %cst_147 = arith.constant dense<0.000000e+00> : vector<32x128xf32>
    %183 = tpu.matmul %180, %182, %cst_147 {dimension_numbers = #tpu.dot_dimension_numbers<[1], [0], [0], [1], [0, 0, 1, 1], [], []>} : vector<32x64xbf16>, vector<64x128xbf16>, vector<32x128xf32> -> vector<32x128xf32>
    %184 = arith.addf %176, %183 : vector<32x128xf32>
    %c2_148 = arith.constant 2 : index
    %c0_149 = arith.constant 0 : index
    %c0_150 = arith.constant 0 : index
    %185 = vector.load %arg8[%c2_148, %c0_149, %c0_150] : memref<16x32x128xbf16, #tpu.memory_space<vmem>>, vector<1x32x128xbf16>
    %186 = vector.shape_cast %185 : vector<1x32x128xbf16> to vector<32x128xbf16>
    %cst_151 = arith.constant dense<0.000000e+00> : vector<32x64xf32>
    %187 = tpu.matmul %186, %169, %cst_151 {dimension_numbers = #tpu.dot_dimension_numbers<[1], [0], [0], [1], [0, 0, 1, 1], [], []>} : vector<32x128xbf16>, vector<128x64xbf16>, vector<32x64xf32> -> vector<32x64xf32>
    %188 = arith.truncf %187 : vector<32x64xf32> to vector<32x64xbf16>
    %c2_152 = arith.constant 2 : index
    %c0_153 = arith.constant 0 : index
    %c0_154 = arith.constant 0 : index
    %189 = vector.load %arg9[%c2_152, %c0_153, %c0_154] : memref<16x64x128xbf16, #tpu.memory_space<vmem>>, vector<1x64x128xbf16>
    %190 = vector.shape_cast %189 : vector<1x64x128xbf16> to vector<64x128xbf16>
    %cst_155 = arith.constant dense<0.000000e+00> : vector<32x128xf32>
    %191 = tpu.matmul %188, %190, %cst_155 {dimension_numbers = #tpu.dot_dimension_numbers<[1], [0], [0], [1], [0, 0, 1, 1], [], []>} : vector<32x64xbf16>, vector<64x128xbf16>, vector<32x128xf32> -> vector<32x128xf32>
    %192 = arith.addf %184, %191 : vector<32x128xf32>
    %c3_156 = arith.constant 3 : index
    %c0_157 = arith.constant 0 : index
    %c0_158 = arith.constant 0 : index
    %193 = vector.load %arg8[%c3_156, %c0_157, %c0_158] : memref<16x32x128xbf16, #tpu.memory_space<vmem>>, vector<1x32x128xbf16>
    %194 = vector.shape_cast %193 : vector<1x32x128xbf16> to vector<32x128xbf16>
    %cst_159 = arith.constant dense<0.000000e+00> : vector<32x64xf32>
    %195 = tpu.matmul %194, %169, %cst_159 {dimension_numbers = #tpu.dot_dimension_numbers<[1], [0], [0], [1], [0, 0, 1, 1], [], []>} : vector<32x128xbf16>, vector<128x64xbf16>, vector<32x64xf32> -> vector<32x64xf32>
    %196 = arith.truncf %195 : vector<32x64xf32> to vector<32x64xbf16>
    %c3_160 = arith.constant 3 : index
    %c0_161 = arith.constant 0 : index
    %c0_162 = arith.constant 0 : index
    %197 = vector.load %arg9[%c3_160, %c0_161, %c0_162] : memref<16x64x128xbf16, #tpu.memory_space<vmem>>, vector<1x64x128xbf16>
    %198 = vector.shape_cast %197 : vector<1x64x128xbf16> to vector<64x128xbf16>
    %cst_163 = arith.constant dense<0.000000e+00> : vector<32x128xf32>
    %199 = tpu.matmul %196, %198, %cst_163 {dimension_numbers = #tpu.dot_dimension_numbers<[1], [0], [0], [1], [0, 0, 1, 1], [], []>} : vector<32x64xbf16>, vector<64x128xbf16>, vector<32x128xf32> -> vector<32x128xf32>
    %200 = arith.addf %192, %199 : vector<32x128xf32>
    %c4_164 = arith.constant 4 : index
    %c0_165 = arith.constant 0 : index
    %c0_166 = arith.constant 0 : index
    %201 = vector.load %arg8[%c4_164, %c0_165, %c0_166] : memref<16x32x128xbf16, #tpu.memory_space<vmem>>, vector<1x32x128xbf16>
    %202 = vector.shape_cast %201 : vector<1x32x128xbf16> to vector<32x128xbf16>
    %cst_167 = arith.constant dense<0.000000e+00> : vector<32x64xf32>
    %203 = tpu.matmul %202, %169, %cst_167 {dimension_numbers = #tpu.dot_dimension_numbers<[1], [0], [0], [1], [0, 0, 1, 1], [], []>} : vector<32x128xbf16>, vector<128x64xbf16>, vector<32x64xf32> -> vector<32x64xf32>
    %204 = arith.truncf %203 : vector<32x64xf32> to vector<32x64xbf16>
    %c4_168 = arith.constant 4 : index
    %c0_169 = arith.constant 0 : index
    %c0_170 = arith.constant 0 : index
    %205 = vector.load %arg9[%c4_168, %c0_169, %c0_170] : memref<16x64x128xbf16, #tpu.memory_space<vmem>>, vector<1x64x128xbf16>
    %206 = vector.shape_cast %205 : vector<1x64x128xbf16> to vector<64x128xbf16>
    %cst_171 = arith.constant dense<0.000000e+00> : vector<32x128xf32>
    %207 = tpu.matmul %204, %206, %cst_171 {dimension_numbers = #tpu.dot_dimension_numbers<[1], [0], [0], [1], [0, 0, 1, 1], [], []>} : vector<32x64xbf16>, vector<64x128xbf16>, vector<32x128xf32> -> vector<32x128xf32>
    %208 = arith.addf %200, %207 : vector<32x128xf32>
    %c5_172 = arith.constant 5 : index
    %c0_173 = arith.constant 0 : index
    %c0_174 = arith.constant 0 : index
    %209 = vector.load %arg8[%c5_172, %c0_173, %c0_174] : memref<16x32x128xbf16, #tpu.memory_space<vmem>>, vector<1x32x128xbf16>
    %210 = vector.shape_cast %209 : vector<1x32x128xbf16> to vector<32x128xbf16>
    %cst_175 = arith.constant dense<0.000000e+00> : vector<32x64xf32>
    %211 = tpu.matmul %210, %169, %cst_175 {dimension_numbers = #tpu.dot_dimension_numbers<[1], [0], [0], [1], [0, 0, 1, 1], [], []>} : vector<32x128xbf16>, vector<128x64xbf16>, vector<32x64xf32> -> vector<32x64xf32>
    %212 = arith.truncf %211 : vector<32x64xf32> to vector<32x64xbf16>
    %c5_176 = arith.constant 5 : index
    %c0_177 = arith.constant 0 : index
    %c0_178 = arith.constant 0 : index
    %213 = vector.load %arg9[%c5_176, %c0_177, %c0_178] : memref<16x64x128xbf16, #tpu.memory_space<vmem>>, vector<1x64x128xbf16>
    %214 = vector.shape_cast %213 : vector<1x64x128xbf16> to vector<64x128xbf16>
    %cst_179 = arith.constant dense<0.000000e+00> : vector<32x128xf32>
    %215 = tpu.matmul %212, %214, %cst_179 {dimension_numbers = #tpu.dot_dimension_numbers<[1], [0], [0], [1], [0, 0, 1, 1], [], []>} : vector<32x64xbf16>, vector<64x128xbf16>, vector<32x128xf32> -> vector<32x128xf32>
    %216 = arith.addf %208, %215 : vector<32x128xf32>
    %c6_180 = arith.constant 6 : index
    %c0_181 = arith.constant 0 : index
    %c0_182 = arith.constant 0 : index
    %217 = vector.load %arg8[%c6_180, %c0_181, %c0_182] : memref<16x32x128xbf16, #tpu.memory_space<vmem>>, vector<1x32x128xbf16>
    %218 = vector.shape_cast %217 : vector<1x32x128xbf16> to vector<32x128xbf16>
    %cst_183 = arith.constant dense<0.000000e+00> : vector<32x64xf32>
    %219 = tpu.matmul %218, %169, %cst_183 {dimension_numbers = #tpu.dot_dimension_numbers<[1], [0], [0], [1], [0, 0, 1, 1], [], []>} : vector<32x128xbf16>, vector<128x64xbf16>, vector<32x64xf32> -> vector<32x64xf32>
    %220 = arith.truncf %219 : vector<32x64xf32> to vector<32x64xbf16>
    %c6_184 = arith.constant 6 : index
    %c0_185 = arith.constant 0 : index
    %c0_186 = arith.constant 0 : index
    %221 = vector.load %arg9[%c6_184, %c0_185, %c0_186] : memref<16x64x128xbf16, #tpu.memory_space<vmem>>, vector<1x64x128xbf16>
    %222 = vector.shape_cast %221 : vector<1x64x128xbf16> to vector<64x128xbf16>
    %cst_187 = arith.constant dense<0.000000e+00> : vector<32x128xf32>
    %223 = tpu.matmul %220, %222, %cst_187 {dimension_numbers = #tpu.dot_dimension_numbers<[1], [0], [0], [1], [0, 0, 1, 1], [], []>} : vector<32x64xbf16>, vector<64x128xbf16>, vector<32x128xf32> -> vector<32x128xf32>
    %224 = arith.addf %216, %223 : vector<32x128xf32>
    %c7_188 = arith.constant 7 : index
    %c0_189 = arith.constant 0 : index
    %c0_190 = arith.constant 0 : index
    %225 = vector.load %arg8[%c7_188, %c0_189, %c0_190] : memref<16x32x128xbf16, #tpu.memory_space<vmem>>, vector<1x32x128xbf16>
    %226 = vector.shape_cast %225 : vector<1x32x128xbf16> to vector<32x128xbf16>
    %cst_191 = arith.constant dense<0.000000e+00> : vector<32x64xf32>
    %227 = tpu.matmul %226, %169, %cst_191 {dimension_numbers = #tpu.dot_dimension_numbers<[1], [0], [0], [1], [0, 0, 1, 1], [], []>} : vector<32x128xbf16>, vector<128x64xbf16>, vector<32x64xf32> -> vector<32x64xf32>
    %228 = arith.truncf %227 : vector<32x64xf32> to vector<32x64xbf16>
    %c7_192 = arith.constant 7 : index
    %c0_193 = arith.constant 0 : index
    %c0_194 = arith.constant 0 : index
    %229 = vector.load %arg9[%c7_192, %c0_193, %c0_194] : memref<16x64x128xbf16, #tpu.memory_space<vmem>>, vector<1x64x128xbf16>
    %230 = vector.shape_cast %229 : vector<1x64x128xbf16> to vector<64x128xbf16>
    %cst_195 = arith.constant dense<0.000000e+00> : vector<32x128xf32>
    %231 = tpu.matmul %228, %230, %cst_195 {dimension_numbers = #tpu.dot_dimension_numbers<[1], [0], [0], [1], [0, 0, 1, 1], [], []>} : vector<32x64xbf16>, vector<64x128xbf16>, vector<32x128xf32> -> vector<32x128xf32>
    %232 = arith.addf %224, %231 : vector<32x128xf32>
    %c8_196 = arith.constant 8 : index
    %c0_197 = arith.constant 0 : index
    %c0_198 = arith.constant 0 : index
    %233 = vector.load %arg8[%c8_196, %c0_197, %c0_198] : memref<16x32x128xbf16, #tpu.memory_space<vmem>>, vector<1x32x128xbf16>
    %234 = vector.shape_cast %233 : vector<1x32x128xbf16> to vector<32x128xbf16>
    %cst_199 = arith.constant dense<0.000000e+00> : vector<32x64xf32>
    %235 = tpu.matmul %234, %169, %cst_199 {dimension_numbers = #tpu.dot_dimension_numbers<[1], [0], [0], [1], [0, 0, 1, 1], [], []>} : vector<32x128xbf16>, vector<128x64xbf16>, vector<32x64xf32> -> vector<32x64xf32>
    %236 = arith.truncf %235 : vector<32x64xf32> to vector<32x64xbf16>
    %c8_200 = arith.constant 8 : index
    %c0_201 = arith.constant 0 : index
    %c0_202 = arith.constant 0 : index
    %237 = vector.load %arg9[%c8_200, %c0_201, %c0_202] : memref<16x64x128xbf16, #tpu.memory_space<vmem>>, vector<1x64x128xbf16>
    %238 = vector.shape_cast %237 : vector<1x64x128xbf16> to vector<64x128xbf16>
    %cst_203 = arith.constant dense<0.000000e+00> : vector<32x128xf32>
    %239 = tpu.matmul %236, %238, %cst_203 {dimension_numbers = #tpu.dot_dimension_numbers<[1], [0], [0], [1], [0, 0, 1, 1], [], []>} : vector<32x64xbf16>, vector<64x128xbf16>, vector<32x128xf32> -> vector<32x128xf32>
    %240 = arith.addf %232, %239 : vector<32x128xf32>
    %c9_204 = arith.constant 9 : index
    %c0_205 = arith.constant 0 : index
    %c0_206 = arith.constant 0 : index
    %241 = vector.load %arg8[%c9_204, %c0_205, %c0_206] : memref<16x32x128xbf16, #tpu.memory_space<vmem>>, vector<1x32x128xbf16>
    %242 = vector.shape_cast %241 : vector<1x32x128xbf16> to vector<32x128xbf16>
    %cst_207 = arith.constant dense<0.000000e+00> : vector<32x64xf32>
    %243 = tpu.matmul %242, %169, %cst_207 {dimension_numbers = #tpu.dot_dimension_numbers<[1], [0], [0], [1], [0, 0, 1, 1], [], []>} : vector<32x128xbf16>, vector<128x64xbf16>, vector<32x64xf32> -> vector<32x64xf32>
    %244 = arith.truncf %243 : vector<32x64xf32> to vector<32x64xbf16>
    %c9_208 = arith.constant 9 : index
    %c0_209 = arith.constant 0 : index
    %c0_210 = arith.constant 0 : index
    %245 = vector.load %arg9[%c9_208, %c0_209, %c0_210] : memref<16x64x128xbf16, #tpu.memory_space<vmem>>, vector<1x64x128xbf16>
    %246 = vector.shape_cast %245 : vector<1x64x128xbf16> to vector<64x128xbf16>
    %cst_211 = arith.constant dense<0.000000e+00> : vector<32x128xf32>
    %247 = tpu.matmul %244, %246, %cst_211 {dimension_numbers = #tpu.dot_dimension_numbers<[1], [0], [0], [1], [0, 0, 1, 1], [], []>} : vector<32x64xbf16>, vector<64x128xbf16>, vector<32x128xf32> -> vector<32x128xf32>
    %248 = arith.addf %240, %247 : vector<32x128xf32>
    %c10_212 = arith.constant 10 : index
    %c0_213 = arith.constant 0 : index
    %c0_214 = arith.constant 0 : index
    %249 = vector.load %arg8[%c10_212, %c0_213, %c0_214] : memref<16x32x128xbf16, #tpu.memory_space<vmem>>, vector<1x32x128xbf16>
    %250 = vector.shape_cast %249 : vector<1x32x128xbf16> to vector<32x128xbf16>
    %cst_215 = arith.constant dense<0.000000e+00> : vector<32x64xf32>
    %251 = tpu.matmul %250, %169, %cst_215 {dimension_numbers = #tpu.dot_dimension_numbers<[1], [0], [0], [1], [0, 0, 1, 1], [], []>} : vector<32x128xbf16>, vector<128x64xbf16>, vector<32x64xf32> -> vector<32x64xf32>
    %252 = arith.truncf %251 : vector<32x64xf32> to vector<32x64xbf16>
    %c10_216 = arith.constant 10 : index
    %c0_217 = arith.constant 0 : index
    %c0_218 = arith.constant 0 : index
    %253 = vector.load %arg9[%c10_216, %c0_217, %c0_218] : memref<16x64x128xbf16, #tpu.memory_space<vmem>>, vector<1x64x128xbf16>
    %254 = vector.shape_cast %253 : vector<1x64x128xbf16> to vector<64x128xbf16>
    %cst_219 = arith.constant dense<0.000000e+00> : vector<32x128xf32>
    %255 = tpu.matmul %252, %254, %cst_219 {dimension_numbers = #tpu.dot_dimension_numbers<[1], [0], [0], [1], [0, 0, 1, 1], [], []>} : vector<32x64xbf16>, vector<64x128xbf16>, vector<32x128xf32> -> vector<32x128xf32>
    %256 = arith.addf %248, %255 : vector<32x128xf32>
    %c11_220 = arith.constant 11 : index
    %c0_221 = arith.constant 0 : index
    %c0_222 = arith.constant 0 : index
    %257 = vector.load %arg8[%c11_220, %c0_221, %c0_222] : memref<16x32x128xbf16, #tpu.memory_space<vmem>>, vector<1x32x128xbf16>
    %258 = vector.shape_cast %257 : vector<1x32x128xbf16> to vector<32x128xbf16>
    %cst_223 = arith.constant dense<0.000000e+00> : vector<32x64xf32>
    %259 = tpu.matmul %258, %169, %cst_223 {dimension_numbers = #tpu.dot_dimension_numbers<[1], [0], [0], [1], [0, 0, 1, 1], [], []>} : vector<32x128xbf16>, vector<128x64xbf16>, vector<32x64xf32> -> vector<32x64xf32>
    %260 = arith.truncf %259 : vector<32x64xf32> to vector<32x64xbf16>
    %c11_224 = arith.constant 11 : index
    %c0_225 = arith.constant 0 : index
    %c0_226 = arith.constant 0 : index
    %261 = vector.load %arg9[%c11_224, %c0_225, %c0_226] : memref<16x64x128xbf16, #tpu.memory_space<vmem>>, vector<1x64x128xbf16>
    %262 = vector.shape_cast %261 : vector<1x64x128xbf16> to vector<64x128xbf16>
    %cst_227 = arith.constant dense<0.000000e+00> : vector<32x128xf32>
    %263 = tpu.matmul %260, %262, %cst_227 {dimension_numbers = #tpu.dot_dimension_numbers<[1], [0], [0], [1], [0, 0, 1, 1], [], []>} : vector<32x64xbf16>, vector<64x128xbf16>, vector<32x128xf32> -> vector<32x128xf32>
    %264 = arith.addf %256, %263 : vector<32x128xf32>
    %c12_228 = arith.constant 12 : index
    %c0_229 = arith.constant 0 : index
    %c0_230 = arith.constant 0 : index
    %265 = vector.load %arg8[%c12_228, %c0_229, %c0_230] : memref<16x32x128xbf16, #tpu.memory_space<vmem>>, vector<1x32x128xbf16>
    %266 = vector.shape_cast %265 : vector<1x32x128xbf16> to vector<32x128xbf16>
    %cst_231 = arith.constant dense<0.000000e+00> : vector<32x64xf32>
    %267 = tpu.matmul %266, %169, %cst_231 {dimension_numbers = #tpu.dot_dimension_numbers<[1], [0], [0], [1], [0, 0, 1, 1], [], []>} : vector<32x128xbf16>, vector<128x64xbf16>, vector<32x64xf32> -> vector<32x64xf32>
    %268 = arith.truncf %267 : vector<32x64xf32> to vector<32x64xbf16>
    %c12_232 = arith.constant 12 : index
    %c0_233 = arith.constant 0 : index
    %c0_234 = arith.constant 0 : index
    %269 = vector.load %arg9[%c12_232, %c0_233, %c0_234] : memref<16x64x128xbf16, #tpu.memory_space<vmem>>, vector<1x64x128xbf16>
    %270 = vector.shape_cast %269 : vector<1x64x128xbf16> to vector<64x128xbf16>
    %cst_235 = arith.constant dense<0.000000e+00> : vector<32x128xf32>
    %271 = tpu.matmul %268, %270, %cst_235 {dimension_numbers = #tpu.dot_dimension_numbers<[1], [0], [0], [1], [0, 0, 1, 1], [], []>} : vector<32x64xbf16>, vector<64x128xbf16>, vector<32x128xf32> -> vector<32x128xf32>
    %272 = arith.addf %264, %271 : vector<32x128xf32>
    %c13_236 = arith.constant 13 : index
    %c0_237 = arith.constant 0 : index
    %c0_238 = arith.constant 0 : index
    %273 = vector.load %arg8[%c13_236, %c0_237, %c0_238] : memref<16x32x128xbf16, #tpu.memory_space<vmem>>, vector<1x32x128xbf16>
    %274 = vector.shape_cast %273 : vector<1x32x128xbf16> to vector<32x128xbf16>
    %cst_239 = arith.constant dense<0.000000e+00> : vector<32x64xf32>
    %275 = tpu.matmul %274, %169, %cst_239 {dimension_numbers = #tpu.dot_dimension_numbers<[1], [0], [0], [1], [0, 0, 1, 1], [], []>} : vector<32x128xbf16>, vector<128x64xbf16>, vector<32x64xf32> -> vector<32x64xf32>
    %276 = arith.truncf %275 : vector<32x64xf32> to vector<32x64xbf16>
    %c13_240 = arith.constant 13 : index
    %c0_241 = arith.constant 0 : index
    %c0_242 = arith.constant 0 : index
    %277 = vector.load %arg9[%c13_240, %c0_241, %c0_242] : memref<16x64x128xbf16, #tpu.memory_space<vmem>>, vector<1x64x128xbf16>
    %278 = vector.shape_cast %277 : vector<1x64x128xbf16> to vector<64x128xbf16>
    %cst_243 = arith.constant dense<0.000000e+00> : vector<32x128xf32>
    %279 = tpu.matmul %276, %278, %cst_243 {dimension_numbers = #tpu.dot_dimension_numbers<[1], [0], [0], [1], [0, 0, 1, 1], [], []>} : vector<32x64xbf16>, vector<64x128xbf16>, vector<32x128xf32> -> vector<32x128xf32>
    %280 = arith.addf %272, %279 : vector<32x128xf32>
    %c14_244 = arith.constant 14 : index
    %c0_245 = arith.constant 0 : index
    %c0_246 = arith.constant 0 : index
    %281 = vector.load %arg8[%c14_244, %c0_245, %c0_246] : memref<16x32x128xbf16, #tpu.memory_space<vmem>>, vector<1x32x128xbf16>
    %282 = vector.shape_cast %281 : vector<1x32x128xbf16> to vector<32x128xbf16>
    %cst_247 = arith.constant dense<0.000000e+00> : vector<32x64xf32>
    %283 = tpu.matmul %282, %169, %cst_247 {dimension_numbers = #tpu.dot_dimension_numbers<[1], [0], [0], [1], [0, 0, 1, 1], [], []>} : vector<32x128xbf16>, vector<128x64xbf16>, vector<32x64xf32> -> vector<32x64xf32>
    %284 = arith.truncf %283 : vector<32x64xf32> to vector<32x64xbf16>
    %c14_248 = arith.constant 14 : index
    %c0_249 = arith.constant 0 : index
    %c0_250 = arith.constant 0 : index
    %285 = vector.load %arg9[%c14_248, %c0_249, %c0_250] : memref<16x64x128xbf16, #tpu.memory_space<vmem>>, vector<1x64x128xbf16>
    %286 = vector.shape_cast %285 : vector<1x64x128xbf16> to vector<64x128xbf16>
    %cst_251 = arith.constant dense<0.000000e+00> : vector<32x128xf32>
    %287 = tpu.matmul %284, %286, %cst_251 {dimension_numbers = #tpu.dot_dimension_numbers<[1], [0], [0], [1], [0, 0, 1, 1], [], []>} : vector<32x64xbf16>, vector<64x128xbf16>, vector<32x128xf32> -> vector<32x128xf32>
    %288 = arith.addf %280, %287 : vector<32x128xf32>
    %c15_252 = arith.constant 15 : index
    %c0_253 = arith.constant 0 : index
    %c0_254 = arith.constant 0 : index
    %289 = vector.load %arg8[%c15_252, %c0_253, %c0_254] : memref<16x32x128xbf16, #tpu.memory_space<vmem>>, vector<1x32x128xbf16>
    %290 = vector.shape_cast %289 : vector<1x32x128xbf16> to vector<32x128xbf16>
    %cst_255 = arith.constant dense<0.000000e+00> : vector<32x64xf32>
    %291 = tpu.matmul %290, %169, %cst_255 {dimension_numbers = #tpu.dot_dimension_numbers<[1], [0], [0], [1], [0, 0, 1, 1], [], []>} : vector<32x128xbf16>, vector<128x64xbf16>, vector<32x64xf32> -> vector<32x64xf32>
    %292 = arith.truncf %291 : vector<32x64xf32> to vector<32x64xbf16>
    %c15_256 = arith.constant 15 : index
    %c0_257 = arith.constant 0 : index
    %c0_258 = arith.constant 0 : index
    %293 = vector.load %arg9[%c15_256, %c0_257, %c0_258] : memref<16x64x128xbf16, #tpu.memory_space<vmem>>, vector<1x64x128xbf16>
    %294 = vector.shape_cast %293 : vector<1x64x128xbf16> to vector<64x128xbf16>
    %cst_259 = arith.constant dense<0.000000e+00> : vector<32x128xf32>
    %295 = tpu.matmul %292, %294, %cst_259 {dimension_numbers = #tpu.dot_dimension_numbers<[1], [0], [0], [1], [0, 0, 1, 1], [], []>} : vector<32x64xbf16>, vector<64x128xbf16>, vector<32x128xf32> -> vector<32x128xf32>
    %296 = arith.addf %288, %295 : vector<32x128xf32>
    %cst_260 = arith.constant dense<0.000000e+00> : vector<128xf32>
    %297 = vector.multi_reduction <add>, %296, %cst_260 [0] : vector<32x128xf32> to vector<128xf32>
    %298 = vector.shape_cast %297 : vector<128xf32> to vector<1x128xf32>
    %cst_261 = arith.constant 3.125000e-02 : f32
    %299 = vector.broadcast %cst_261 : f32 to vector<1x128xf32>
    %300 = arith.mulf %298, %299 : vector<1x128xf32>
    %301 = arith.mulf %296, %296 : vector<32x128xf32>
    %cst_262 = arith.constant dense<0.000000e+00> : vector<128xf32>
    %302 = vector.multi_reduction <add>, %301, %cst_262 [0] : vector<32x128xf32> to vector<128xf32>
    %303 = vector.shape_cast %302 : vector<128xf32> to vector<1x128xf32>
    %cst_263 = arith.constant 3.125000e-02 : f32
    %304 = vector.broadcast %cst_263 : f32 to vector<1x128xf32>
    %305 = arith.mulf %303, %304 : vector<1x128xf32>
    %306 = arith.mulf %300, %300 : vector<1x128xf32>
    %307 = arith.subf %305, %306 : vector<1x128xf32>
    %cst_264 = arith.constant 0.000000e+00 : f32
    %308 = vector.broadcast %cst_264 : f32 to vector<1x128xf32>
    %309 = arith.maximumf %307, %308 : vector<1x128xf32>
    %310 = vector.broadcast %300 : vector<1x128xf32> to vector<32x128xf32>
    %311 = arith.subf %296, %310 : vector<32x128xf32>
    %cst_265 = arith.constant 9.99999974E-6 : f32
    %312 = vector.broadcast %cst_265 : f32 to vector<1x128xf32>
    %313 = arith.addf %309, %312 : vector<1x128xf32>
    %314 = math.rsqrt %313 : vector<1x128xf32>
    %c0_266 = arith.constant 0 : index
    %c0_267 = arith.constant 0 : index
    %315 = vector.load %arg10[%c0_266, %c0_267] : memref<1x128xf32, #tpu.memory_space<vmem>>, vector<1x128xf32>
    %316 = arith.mulf %314, %315 : vector<1x128xf32>
    %317 = vector.broadcast %316 : vector<1x128xf32> to vector<32x128xf32>
    %318 = arith.mulf %311, %317 : vector<32x128xf32>
    %c0_268 = arith.constant 0 : index
    %c0_269 = arith.constant 0 : index
    %319 = vector.load %arg11[%c0_268, %c0_269] : memref<1x128xf32, #tpu.memory_space<vmem>>, vector<1x128xf32>
    %320 = vector.broadcast %319 : vector<1x128xf32> to vector<32x128xf32>
    %321 = arith.addf %318, %320 : vector<32x128xf32>
    %cst_270 = arith.constant 0.000000e+00 : f32
    %322 = vector.broadcast %cst_270 : f32 to vector<32x128xf32>
    %323 = arith.cmpf ogt, %321, %322 : vector<32x128xf32>
    %cst_271 = arith.constant 2.000000e-01 : f32
    %324 = vector.broadcast %cst_271 : f32 to vector<32x128xf32>
    %325 = arith.mulf %324, %321 : vector<32x128xf32>
    %326 = arith.select %323, %321, %325 : vector<32x128xi1>, vector<32x128xf32>
    %c0_272 = arith.constant 0 : index
    %c0_273 = arith.constant 0 : index
    %327 = vector.load %arg12[%c0_272, %c0_273] : memref<32x128xf32, #tpu.memory_space<vmem>>, vector<32x128xf32>
    %328 = arith.mulf %326, %327 : vector<32x128xf32>
    %c0_274 = arith.constant 0 : index
    %c0_275 = arith.constant 0 : index
    %329 = vector.load %arg13[%c0_274, %c0_275] : memref<2x32xf32, #tpu.memory_space<vmem>>, vector<2x32xf32>
    %cst_276 = arith.constant dense<0.000000e+00> : vector<2x128xf32>
    %330 = tpu.matmul %329, %328, %cst_276 {dimension_numbers = #tpu.dot_dimension_numbers<[1], [0], [0], [1], [0, 0, 1, 1], [], []>} : vector<2x32xf32>, vector<32x128xf32>, vector<2x128xf32> -> vector<2x128xf32>
    %cst_277 = arith.constant dense<0.000000e+00> : vector<2xf32>
    %331 = vector.multi_reduction <add>, %330, %cst_277 [1] : vector<2x128xf32> to vector<2xf32>
    %332 = vector.shape_cast %331 : vector<2xf32> to vector<2x1xf32>
    %c0_278 = arith.constant 0 : index
    %c0_279 = arith.constant 0 : index
    %333 = vector.load %arg14[%c0_278, %c0_279] : memref<1x1xf32, #tpu.memory_space<vmem>>, vector<1x1xf32>
    %334 = vector.broadcast %333 : vector<1x1xf32> to vector<2x1xf32>
    %335 = arith.addf %332, %334 : vector<2x1xf32>
    %336 = arith.negf %335 : vector<2x1xf32>
    %337 = math.exp %336 : vector<2x1xf32>
    %cst_280 = arith.constant 1.000000e+00 : f32
    %338 = vector.broadcast %cst_280 : f32 to vector<2x1xf32>
    %339 = arith.addf %338, %337 : vector<2x1xf32>
    %340 = arith.divf %338, %339 : vector<2x1xf32>
    %c0_281 = arith.constant 0 : index
    %c0_282 = arith.constant 0 : index
    %341 = vector.load %arg15[%c0_281, %c0_282] : memref<2x1xf32, #tpu.memory_space<vmem>>, vector<2x1xf32>
    tpu.vector_store %arg15[%c0_281, %c0_282], %340 {strides = array<i32>} : memref<2x1xf32, #tpu.memory_space<vmem>>, vector<2x1xf32>,
    return
  }
  func.func @transform_0(%arg0: i32) -> (i32, i32) {
    %c0_i32 = arith.constant 0 : i32
    %c0_i32_0 = arith.constant 0 : i32
    %c0_i32_1 = arith.constant 0 : i32
    return %c0_i32, %c0_i32_0 : i32, i32
  }
  func.func @transform_1(%arg0: i32) -> (i32, i32) {
    %c0_i32 = arith.constant 0 : i32
    %c0_i32_0 = arith.constant 0 : i32
    %c0_i32_1 = arith.constant 0 : i32
    return %c0_i32, %c0_i32_0 : i32, i32
  }
  func.func @transform_2(%arg0: i32) -> (i32, i32) {
    %c0_i32 = arith.constant 0 : i32
    %c0_i32_0 = arith.constant 0 : i32
    %c0_i32_1 = arith.constant 0 : i32
    return %c0_i32, %c0_i32_0 : i32, i32
  }
  func.func @transform_3(%arg0: i32) -> (i32, i32, i32) {
    %c0_i32 = arith.constant 0 : i32
    %c0_i32_0 = arith.constant 0 : i32
    %c0_i32_1 = arith.constant 0 : i32
    %c0_i32_2 = arith.constant 0 : i32
    return %c0_i32, %c0_i32_0, %c0_i32_1 : i32, i32, i32
  }
  func.func @transform_4(%arg0: i32) -> (i32, i32, i32) {
    %c0_i32 = arith.constant 0 : i32
    %c0_i32_0 = arith.constant 0 : i32
    %c0_i32_1 = arith.constant 0 : i32
    %c0_i32_2 = arith.constant 0 : i32
    return %c0_i32, %c0_i32_0, %c0_i32_1 : i32, i32, i32
  }
  func.func @transform_5(%arg0: i32) -> (i32, i32) {
    %c0_i32 = arith.constant 0 : i32
    %c0_i32_0 = arith.constant 0 : i32
    %c0_i32_1 = arith.constant 0 : i32
    return %c0_i32, %c0_i32_0 : i32, i32
  }
  func.func @transform_6(%arg0: i32) -> (i32, i32) {
    %c0_i32 = arith.constant 0 : i32
    %c0_i32_0 = arith.constant 0 : i32
    %c0_i32_1 = arith.constant 0 : i32
    return %c0_i32, %c0_i32_0 : i32, i32
  }
  func.func @transform_7(%arg0: i32) -> (i32, i32, i32) {
    %c0_i32 = arith.constant 0 : i32
    %c0_i32_0 = arith.constant 0 : i32
    %c0_i32_1 = arith.constant 0 : i32
    %c0_i32_2 = arith.constant 0 : i32
    return %c0_i32, %c0_i32_0, %c0_i32_1 : i32, i32, i32
  }
  func.func @transform_8(%arg0: i32) -> (i32, i32, i32) {
    %c0_i32 = arith.constant 0 : i32
    %c0_i32_0 = arith.constant 0 : i32
    %c0_i32_1 = arith.constant 0 : i32
    %c0_i32_2 = arith.constant 0 : i32
    return %c0_i32, %c0_i32_0, %c0_i32_1 : i32, i32, i32
  }
  func.func @transform_9(%arg0: i32) -> (i32, i32) {
    %c0_i32 = arith.constant 0 : i32
    %c0_i32_0 = arith.constant 0 : i32
    %c0_i32_1 = arith.constant 0 : i32
    return %c0_i32, %c0_i32_0 : i32, i32
  }
  func.func @transform_10(%arg0: i32) -> (i32, i32) {
    %c0_i32 = arith.constant 0 : i32
    %c0_i32_0 = arith.constant 0 : i32
    %c0_i32_1 = arith.constant 0 : i32
    return %c0_i32, %c0_i32_0 : i32, i32
  }
  func.func @transform_11(%arg0: i32) -> (i32, i32) {
    %c0_i32 = arith.constant 0 : i32
    %c0_i32_0 = arith.constant 0 : i32
    %c0_i32_1 = arith.constant 0 : i32
    return %c0_i32, %c0_i32_0 : i32, i32
  }
  func.func @transform_12(%arg0: i32) -> (i32, i32) {
    %c0_i32 = arith.constant 0 : i32
    %c0_i32_0 = arith.constant 0 : i32
    %c0_i32_1 = arith.constant 0 : i32
    return %c0_i32, %c0_i32_0 : i32, i32
  }
  func.func @transform_13(%arg0: i32) -> (i32, i32) {
    %c0_i32 = arith.constant 0 : i32
    %c0_i32_0 = arith.constant 0 : i32
    %c0_i32_1 = arith.constant 0 : i32
    return %c0_i32, %c0_i32_0 : i32, i32
  }
  func.func @transform_14(%arg0: i32) -> (i32, i32) {
    %c0_i32 = arith.constant 0 : i32
    %c0_i32_0 = arith.constant 0 : i32
    %c0_i32_1 = arith.constant 0 : i32
    return %c0_i32, %c0_i32_0 : i32, i32
  }
}

</mosaic_0001>

<llo_original>
// kernel: discriminator_forward.1
$region0: #{discriminator_forward.1}
  #allocation0 [shape = 'u32[]', space=smem, size = 0x4, offset = 0x4, fixed_abs, tag = 'smem constant byte address 0x4 - core index']
  #allocation1 [shape = 'u32[144,128]{1,0:T(1,128)}', space=vmem, size = 0x12000, scoped, tag = 'internal scratch']
  #allocation2 [shape = 'f32[1,1]{1,0:T(1,128)S(1)}', space=vmem, size = 0x200, scoped, tag = 'scoped memory for discriminator_forward.1']
  %s0 = inlined_call_operand.vmem [shape: bf16[512,128], index: 0, kind: input, shape index: {}]
  %s1 = inlined_call_operand.vmem [shape: bf16[128,32], index: 1, kind: input, shape index: {}]
  %s2 = inlined_call_operand.vmem [shape: f32[1,32], index: 2, kind: input, shape index: {}]
  %s3 = inlined_call_operand.vmem [shape: bf16[16,128,512], index: 3, kind: input, shape index: {}]
  %s4 = inlined_call_operand.vmem [shape: bf16[16,32,64], index: 4, kind: input, shape index: {}]
  %s5 = inlined_call_operand.vmem [shape: f32[1,64], index: 5, kind: input, shape index: {}]
  %s6 = inlined_call_operand.vmem [shape: f32[1,64], index: 6, kind: input, shape index: {}]
  %s7 = inlined_call_operand.vmem [shape: bf16[16,32,128], index: 7, kind: input, shape index: {}]
  %s8 = inlined_call_operand.vmem [shape: bf16[16,64,128], index: 8, kind: input, shape index: {}]
  %s9 = inlined_call_operand.vmem [shape: f32[1,128], index: 9, kind: input, shape index: {}]
  %s10 = inlined_call_operand.vmem [shape: f32[1,128], index: 10, kind: input, shape index: {}]
  %s11 = inlined_call_operand.vmem [shape: f32[32,128], index: 11, kind: input, shape index: {}]
  %s12 = inlined_call_operand.vmem [shape: f32[2,32], index: 12, kind: input, shape index: {}]
  %s13 = inlined_call_operand.<no memory space> [shape: f32[1,1], index: 13, kind: input, shape index: {}]
  %s14 = inlined_call_operand.vmem [shape: f32[2,1], index: 14, kind: output, shape index: {}]
  %s15 = sld [smem:[#allocation0]]
  $region66: #{discriminator_forward.1} parent=0
    _
  %s17 = ssub.s32 1, %s15
  %s18 = scalar_select 0, %s17, %s15
  %v19 = vstv %s13
  %20 = vst [vmem:[#allocation2] sm:$0x1] %v19
  // Predicated region
  $region2: #{discriminator_forward.1} parent=0 // pred_check
    _
  $region3: #{discriminator_forward.1} parent=0 // pred_check_branch
    %22 = sbr.rel (0) target = $region5
  $region4: #{discriminator_forward.1} parent=0 // pred_region
    _
  $region5: #{discriminator_forward.1} parent=0 // pred_fallthru
    _
  // Predicated region
  $region6: #{discriminator_forward.1} parent=0 // pred_check
    _
  $region7: #{discriminator_forward.1} parent=0 // pred_check_branch
    %24 = sbr.rel (0) target = $region9
  $region8: #{discriminator_forward.1} parent=0 // pred_region
    _
  $region9: #{discriminator_forward.1} parent=0 // pred_fallthru
    _
  // Predicated region
  $region10: #{discriminator_forward.1} parent=0 // pred_check
    _
  $region11: #{discriminator_forward.1} parent=0 // pred_check_branch
    %26 = sbr.rel (0) target = $region13
  $region12: #{discriminator_forward.1} parent=0 // pred_region
    _
  $region13: #{discriminator_forward.1} parent=0 // pred_fallthru
    _
  // Predicated region
  $region14: #{discriminator_forward.1} parent=0 // pred_check
    _
  $region15: #{discriminator_forward.1} parent=0 // pred_check_branch
    %28 = sbr.rel (0) target = $region17
  $region16: #{discriminator_forward.1} parent=0 // pred_region
    _
  $region17: #{discriminator_forward.1} parent=0 // pred_fallthru
    _
  // Predicated region
  $region18: #{discriminator_forward.1} parent=0 // pred_check
    _
  $region19: #{discriminator_forward.1} parent=0 // pred_check_branch
    %30 = sbr.rel (0) target = $region21
  $region20: #{discriminator_forward.1} parent=0 // pred_region
    _
  $region21: #{discriminator_forward.1} parent=0 // pred_fallthru
    _
  // Predicated region
  $region22: #{discriminator_forward.1} parent=0 // pred_check
    _
  $region23: #{discriminator_forward.1} parent=0 // pred_check_branch
    %32 = sbr.rel (0) target = $region25
  $region24: #{discriminator_forward.1} parent=0 // pred_region
    _
  $region25: #{discriminator_forward.1} parent=0 // pred_fallthru
    _
  // Predicated region
  $region26: #{discriminator_forward.1} parent=0 // pred_check
    _
  $region27: #{discriminator_forward.1} parent=0 // pred_check_branch
    %34 = sbr.rel (0) target = $region29
  $region28: #{discriminator_forward.1} parent=0 // pred_region
    _
  $region29: #{discriminator_forward.1} parent=0 // pred_fallthru
    _
  // Predicated region
  $region30: #{discriminator_forward.1} parent=0 // pred_check
    _
  $region31: #{discriminator_forward.1} parent=0 // pred_check_branch
    %36 = sbr.rel (0) target = $region33
  $region32: #{discriminator_forward.1} parent=0 // pred_region
    _
  $region33: #{discriminator_forward.1} parent=0 // pred_fallthru
    _
  // Predicated region
  $region34: #{discriminator_forward.1} parent=0 // pred_check
    _
  $region35: #{discriminator_forward.1} parent=0 // pred_check_branch
    %38 = sbr.rel (0) target = $region37
  $region36: #{discriminator_forward.1} parent=0 // pred_region
    _
  $region37: #{discriminator_forward.1} parent=0 // pred_fallthru
    _
  // Predicated region
  $region38: #{discriminator_forward.1} parent=0 // pred_check
    _
  $region39: #{discriminator_forward.1} parent=0 // pred_check_branch
    %40 = sbr.rel (0) target = $region41
  $region40: #{discriminator_forward.1} parent=0 // pred_region
    _
  $region41: #{discriminator_forward.1} parent=0 // pred_fallthru
    _
  // Predicated region
  $region42: #{discriminator_forward.1} parent=0 // pred_check
    _
  $region43: #{discriminator_forward.1} parent=0 // pred_check_branch
    %42 = sbr.rel (0) target = $region45
  $region44: #{discriminator_forward.1} parent=0 // pred_region
    _
  $region45: #{discriminator_forward.1} parent=0 // pred_fallthru
    _
  // Predicated region
  $region46: #{discriminator_forward.1} parent=0 // pred_check
    _
  $region47: #{discriminator_forward.1} parent=0 // pred_check_branch
    %44 = sbr.rel (0) target = $region49
  $region48: #{discriminator_forward.1} parent=0 // pred_region
    _
  $region49: #{discriminator_forward.1} parent=0 // pred_fallthru
    _
  // Predicated region
  $region50: #{discriminator_forward.1} parent=0 // pred_check
    _
  $region51: #{discriminator_forward.1} parent=0 // pred_check_branch
    %46 = sbr.rel (0) target = $region53
  $region52: #{discriminator_forward.1} parent=0 // pred_region
    _
  $region53: #{discriminator_forward.1} parent=0 // pred_fallthru
    _
  // Predicated region
  $region54: #{discriminator_forward.1} parent=0 // pred_check
    _
  $region55: #{discriminator_forward.1} parent=0 // pred_check_branch
    %48 = sbr.rel (0) target = $region57
  $region56: #{discriminator_forward.1} parent=0 // pred_region
    _
  $region57: #{discriminator_forward.1} parent=0 // pred_fallthru
    _
  %v50 = vld [vmem:[%s0] sm:$0xf]
  %v51 = vld [vmem:[%s0 + $0x4] sm:$0xf]
  %v52 = vld [vmem:[%s0 + $0x8] sm:$0xf]
  %v53 = vld [vmem:[%s0 + $0xc] sm:$0xf]
  %v54 = vld [vmem:[%s0 + $0x10] sm:$0xf]
  %v55 = vld [vmem:[%s0 + $0x14] sm:$0xf]
  %v56 = vld [vmem:[%s0 + $0x18] sm:$0xf]
  %v57 = vld [vmem:[%s0 + $0x1c] sm:$0xf]
  %v58 = vld [vmem:[%s0 + $0x20] sm:$0xf]
  %v59 = vld [vmem:[%s0 + $0x24] sm:$0xf]
  %v60 = vld [vmem:[%s0 + $0x28] sm:$0xf]
  %v61 = vld [vmem:[%s0 + $0x2c] sm:$0xf]
  %v62 = vld [vmem:[%s0 + $0x30] sm:$0xf]
  %v63 = vld [vmem:[%s0 + $0x34] sm:$0xf]
  %v64 = vld [vmem:[%s0 + $0x38] sm:$0xf]
  %v65 = vld [vmem:[%s0 + $0x3c] sm:$0xf]
  %v66 = vld [vmem:[%s0 + $0x40] sm:$0xf]
  %v67 = vld [vmem:[%s0 + $0x44] sm:$0xf]
  %v68 = vld [vmem:[%s0 + $0x48] sm:$0xf]
  %v69 = vld [vmem:[%s0 + $0x4c] sm:$0xf]
  %v70 = vld [vmem:[%s0 + $0x50] sm:$0xf]
  %v71 = vld [vmem:[%s0 + $0x54] sm:$0xf]
  %v72 = vld [vmem:[%s0 + $0x58] sm:$0xf]
  %v73 = vld [vmem:[%s0 + $0x5c] sm:$0xf]
  %v74 = vld [vmem:[%s0 + $0x60] sm:$0xf]
  %v75 = vld [vmem:[%s0 + $0x64] sm:$0xf]
  %v76 = vld [vmem:[%s0 + $0x68] sm:$0xf]
  %v77 = vld [vmem:[%s0 + $0x6c] sm:$0xf]
  %v78 = vld [vmem:[%s0 + $0x70] sm:$0xf]
  %v79 = vld [vmem:[%s0 + $0x74] sm:$0xf]
  %v80 = vld [vmem:[%s0 + $0x78] sm:$0xf]
  %v81 = vld [vmem:[%s0 + $0x7c] sm:$0xf]
  %v82 = vld [vmem:[%s0 + $0x80] sm:$0xf]
  %v83 = vld [vmem:[%s0 + $0x84] sm:$0xf]
  %v84 = vld [vmem:[%s0 + $0x88] sm:$0xf]
  %v85 = vld [vmem:[%s0 + $0x8c] sm:$0xf]
  %v86 = vld [vmem:[%s0 + $0x90] sm:$0xf]
  %v87 = vld [vmem:[%s0 + $0x94] sm:$0xf]
  %v88 = vld [vmem:[%s0 + $0x98] sm:$0xf]
  %v89 = vld [vmem:[%s0 + $0x9c] sm:$0xf]
  %v90 = vld [vmem:[%s0 + $0xa0] sm:$0xf]
  %v91 = vld [vmem:[%s0 + $0xa4] sm:$0xf]
  %v92 = vld [vmem:[%s0 + $0xa8] sm:$0xf]
  %v93 = vld [vmem:[%s0 + $0xac] sm:$0xf]
  %v94 = vld [vmem:[%s0 + $0xb0] sm:$0xf]
  %v95 = vld [vmem:[%s0 + $0xb4] sm:$0xf]
  %v96 = vld [vmem:[%s0 + $0xb8] sm:$0xf]
  %v97 = vld [vmem:[%s0 + $0xbc] sm:$0xf]
  %v98 = vld [vmem:[%s0 + $0xc0] sm:$0xf]
  %v99 = vld [vmem:[%s0 + $0xc4] sm:$0xf]
  %v100 = vld [vmem:[%s0 + $0xc8] sm:$0xf]
  %v101 = vld [vmem:[%s0 + $0xcc] sm:$0xf]
  %v102 = vld [vmem:[%s0 + $0xd0] sm:$0xf]
  %v103 = vld [vmem:[%s0 + $0xd4] sm:$0xf]
  %v104 = vld [vmem:[%s0 + $0xd8] sm:$0xf]
  %v105 = vld [vmem:[%s0 + $0xdc] sm:$0xf]
  %v106 = vld [vmem:[%s0 + $0xe0] sm:$0xf]
  %v107 = vld [vmem:[%s0 + $0xe4] sm:$0xf]
  %v108 = vld [vmem:[%s0 + $0xe8] sm:$0xf]
  %v109 = vld [vmem:[%s0 + $0xec] sm:$0xf]
  %v110 = vld [vmem:[%s0 + $0xf0] sm:$0xf]
  %v111 = vld [vmem:[%s0 + $0xf4] sm:$0xf]
  %v112 = vld [vmem:[%s0 + $0xf8] sm:$0xf]
  %v113 = vld [vmem:[%s0 + $0xfc] sm:$0xf]
  %v114 = vld [vmem:[%s1] sm:$0xf]
  %v115 = vld [vmem:[%s1 + $0x4] sm:$0xf]
  %v116 = vld [vmem:[%s1 + $0x8] sm:$0xf]
  %v117 = vld [vmem:[%s1 + $0xc] sm:$0xf]
  %v118 = vld [vmem:[%s1 + $0x10] sm:$0xf]
  %v119 = vld [vmem:[%s1 + $0x14] sm:$0xf]
  %v120 = vld [vmem:[%s1 + $0x18] sm:$0xf]
  %v121 = vld [vmem:[%s1 + $0x1c] sm:$0xf]
  %v122 = vld [vmem:[%s1 + $0x20] sm:$0xf]
  %v123 = vld [vmem:[%s1 + $0x24] sm:$0xf]
  %v124 = vld [vmem:[%s1 + $0x28] sm:$0xf]
  %v125 = vld [vmem:[%s1 + $0x2c] sm:$0xf]
  %v126 = vld [vmem:[%s1 + $0x30] sm:$0xf]
  %v127 = vld [vmem:[%s1 + $0x34] sm:$0xf]
  %v128 = vld [vmem:[%s1 + $0x38] sm:$0xf]
  %v129 = vld [vmem:[%s1 + $0x3c] sm:$0xf]
  %v130 = vld [vmem:[%s2] sm:$0x1]
  %v132 = vlaneseq
  %v133 = vshrl.u32 %v132, 7
  %v134 = vsub.s32 0, %v133
  %v135 = vrot.slane %v130, %v134
  %v201 = vunpack.c.l.b16 %v50
  %v202 = vunpack.c.l.b16 %v51
  %v203 = vunpack.c.l.b16 %v52
  %v204 = vunpack.c.l.b16 %v53
  %v205 = vunpack.c.l.b16 %v54
  %v206 = vunpack.c.l.b16 %v55
  %v207 = vunpack.c.l.b16 %v56
  %v208 = vunpack.c.l.b16 %v57
  %v209 = vunpack.c.l.b16 %v58
  %v210 = vunpack.c.l.b16 %v59
  %v211 = vunpack.c.l.b16 %v60
  %v212 = vunpack.c.l.b16 %v61
  %v213 = vunpack.c.l.b16 %v62
  %v214 = vunpack.c.l.b16 %v63
  %v215 = vunpack.c.l.b16 %v64
  %v216 = vunpack.c.l.b16 %v65
  %v217 = vunpack.c.l.b16 %v66
  %v218 = vunpack.c.l.b16 %v67
  %v219 = vunpack.c.l.b16 %v68
  %v220 = vunpack.c.l.b16 %v69
  %v221 = vunpack.c.l.b16 %v70
  %v222 = vunpack.c.l.b16 %v71
  %v223 = vunpack.c.l.b16 %v72
  %v224 = vunpack.c.l.b16 %v73
  %v225 = vunpack.c.l.b16 %v74
  %v226 = vunpack.c.l.b16 %v75
  %v227 = vunpack.c.l.b16 %v76
  %v228 = vunpack.c.l.b16 %v77
  %v229 = vunpack.c.l.b16 %v78
  %v230 = vunpack.c.l.b16 %v79
  %v231 = vunpack.c.l.b16 %v80
  %v232 = vunpack.c.l.b16 %v81
  %v233 = vunpack.c.l.b16 %v82
  %v234 = vunpack.c.l.b16 %v83
  %v235 = vunpack.c.l.b16 %v84
  %v236 = vunpack.c.l.b16 %v85
  %v237 = vunpack.c.l.b16 %v86
  %v238 = vunpack.c.l.b16 %v87
  %v239 = vunpack.c.l.b16 %v88
  %v240 = vunpack.c.l.b16 %v89
  %v241 = vunpack.c.l.b16 %v90
  %v242 = vunpack.c.l.b16 %v91
  %v243 = vunpack.c.l.b16 %v92
  %v244 = vunpack.c.l.b16 %v93
  %v245 = vunpack.c.l.b16 %v94
  %v246 = vunpack.c.l.b16 %v95
  %v247 = vunpack.c.l.b16 %v96
  %v248 = vunpack.c.l.b16 %v97
  %v249 = vunpack.c.l.b16 %v98
  %v250 = vunpack.c.l.b16 %v99
  %v251 = vunpack.c.l.b16 %v100
  %v252 = vunpack.c.l.b16 %v101
  %v253 = vunpack.c.l.b16 %v102
  %v254 = vunpack.c.l.b16 %v103
  %v255 = vunpack.c.l.b16 %v104
  %v256 = vunpack.c.l.b16 %v105
  %v257 = vunpack.c.l.b16 %v106
  %v258 = vunpack.c.l.b16 %v107
  %v259 = vunpack.c.l.b16 %v108
  %v260 = vunpack.c.l.b16 %v109
  %v261 = vunpack.c.l.b16 %v110
  %v262 = vunpack.c.l.b16 %v111
  %v263 = vunpack.c.l.b16 %v112
  %v264 = vunpack.c.l.b16 %v113
  %v265 = vpack.c.b16 %v202, %v201
  %v266 = vpack.c.b16 %v204, %v203
  %v267 = vpack.c.b16 %v206, %v205
  %v268 = vpack.c.b16 %v208, %v207
  %v269 = vpack.c.b16 %v210, %v209
  %v270 = vpack.c.b16 %v212, %v211
  %v271 = vpack.c.b16 %v214, %v213
  %v272 = vpack.c.b16 %v216, %v215
  %v273 = vpack.c.b16 %v218, %v217
  %v274 = vpack.c.b16 %v220, %v219
  %v275 = vpack.c.b16 %v222, %v221
  %v276 = vpack.c.b16 %v224, %v223
  %v277 = vpack.c.b16 %v226, %v225
  %v278 = vpack.c.b16 %v228, %v227
  %v279 = vpack.c.b16 %v230, %v229
  %v280 = vpack.c.b16 %v232, %v231
  %v281 = vpack.c.b16 %v234, %v233
  %v282 = vpack.c.b16 %v236, %v235
  %v283 = vpack.c.b16 %v238, %v237
  %v284 = vpack.c.b16 %v240, %v239
  %v285 = vpack.c.b16 %v242, %v241
  %v286 = vpack.c.b16 %v244, %v243
  %v287 = vpack.c.b16 %v246, %v245
  %v288 = vpack.c.b16 %v248, %v247
  %v289 = vpack.c.b16 %v250, %v249
  %v290 = vpack.c.b16 %v252, %v251
  %v291 = vpack.c.b16 %v254, %v253
  %v292 = vpack.c.b16 %v256, %v255
  %v293 = vpack.c.b16 %v258, %v257
  %v294 = vpack.c.b16 %v260, %v259
  %v295 = vpack.c.b16 %v262, %v261
  %v296 = vpack.c.b16 %v264, %v263
  %v345 = vunpack.c.l.b16 %v114
  %v346 = vunpack.c.l.b16 %v115
  %v347 = vunpack.c.l.b16 %v116
  %v348 = vunpack.c.l.b16 %v117
  %v349 = vunpack.c.l.b16 %v118
  %v350 = vunpack.c.l.b16 %v119
  %v351 = vunpack.c.l.b16 %v120
  %v352 = vunpack.c.l.b16 %v121
  %v353 = vunpack.c.l.b16 %v122
  %v354 = vunpack.c.l.b16 %v123
  %v355 = vunpack.c.l.b16 %v124
  %v356 = vunpack.c.l.b16 %v125
  %v357 = vunpack.c.l.b16 %v126
  %v358 = vunpack.c.l.b16 %v127
  %v359 = vunpack.c.l.b16 %v128
  %v360 = vunpack.c.l.b16 %v129
  %v361 = vpack.c.b16 %v346, %v345
  %v362 = vpack.c.b16 %v348, %v347
  %v363 = vpack.c.b16 %v350, %v349
  %v364 = vpack.c.b16 %v352, %v351
  %v365 = vpack.c.b16 %v354, %v353
  %v366 = vpack.c.b16 %v356, %v355
  %v367 = vpack.c.b16 %v358, %v357
  %v368 = vpack.c.b16 %v360, %v359
  %377 = vmatprep.subr.bf16.mxu0 0
  %378 = vmatpush1.bf16.msra.mxu0 %v368
  %379 = vmatprep.subr.bf16.mxu0 0
  %380 = vmatpush1.bf16.msra.mxu0 %v367
  %381 = vmatprep.subr.bf16.mxu0 0
  %382 = vmatpush1.bf16.msra.mxu0 %v366
  %383 = vmatprep.subr.bf16.mxu0 0
  %384 = vmatpush1.bf16.msra.mxu0 %v365
  %385 = vmatprep.subr.bf16.mxu0 0
  %386 = vmatpush1.bf16.msra.mxu0 %v364
  %387 = vmatprep.subr.bf16.mxu0 0
  %388 = vmatpush1.bf16.msra.mxu0 %v363
  %389 = vmatprep.subr.bf16.mxu0 0
  %390 = vmatpush1.bf16.msra.mxu0 %v362
  %391 = vmatprep.subr.bf16.mxu0 0
  %392 = vmatpush1.bf16.msra.mxu0 %v361
  %393 = vmatprep.subr.bf16.mxu0 0
  %394 = vmatpush2.bf16.msra.mxu0 0
  %395 = vmatprep.subr.bf16.mxu0 0
  %396 = vmatpush2.bf16.msra.mxu0 0
  %397 = vmatprep.subr.bf16.mxu0 0
  %398 = vmatpush2.bf16.msra.mxu0 0
  %399 = vmatprep.subr.bf16.mxu0 0
  %400 = vmatpush2.bf16.msra.mxu0 0
  %401 = vmatprep.subr.bf16.mxu0 0
  %402 = vmatpush2.bf16.msra.mxu0 0
  %403 = vmatprep.subr.bf16.mxu0 0
  %404 = vmatpush2.bf16.msra.mxu0 0
  %405 = vmatprep.subr.bf16.mxu0 0
  %406 = vmatpush2.bf16.msra.mxu0 0
  %407 = vmatprep.subr.bf16.mxu0 0
  %408 = vmatpush2.bf16.msra.mxu0 0
  %409 = vmatprep.mubr.bf16.mxu0 0
  %410 = vmatmul.mubr.bf16.gmra.mxu0 %v265
  %v411 = vpop.f32.mrf.mxu0
  %v412 = vadd.f32 %v135, %v411
  %v413 = vpop.f32.mrf.mxu0
  %v414 = vpop.f32.mrf.mxu0
  %v415 = vadd.f32 %v135, %v414
  %v416 = vpop.f32.mrf.mxu0
  %417 = vmatprep.mubr.bf16.mxu0 0
  %418 = vmatmul.mubr.bf16.gmra.mxu0 %v266
  %v419 = vpop.f32.mrf.mxu0
  %v420 = vadd.f32 %v135, %v419
  %v421 = vpop.f32.mrf.mxu0
  %v422 = vpop.f32.mrf.mxu0
  %v423 = vadd.f32 %v135, %v422
  %v424 = vpop.f32.mrf.mxu0
  %425 = vmatprep.mubr.bf16.mxu0 0
  %426 = vmatmul.mubr.bf16.gmra.mxu0 %v267
  %v427 = vpop.f32.mrf.mxu0
  %v428 = vadd.f32 %v135, %v427
  %v429 = vpop.f32.mrf.mxu0
  %v430 = vpop.f32.mrf.mxu0
  %v431 = vadd.f32 %v135, %v430
  %v432 = vpop.f32.mrf.mxu0
  %433 = vmatprep.mubr.bf16.mxu0 0
  %434 = vmatmul.mubr.bf16.gmra.mxu0 %v268
  %v435 = vpop.f32.mrf.mxu0
  %v436 = vadd.f32 %v135, %v435
  %v437 = vpop.f32.mrf.mxu0
  %v438 = vpop.f32.mrf.mxu0
  %v439 = vadd.f32 %v135, %v438
  %v440 = vpop.f32.mrf.mxu0
  %441 = vmatprep.mubr.bf16.mxu0 0
  %442 = vmatmul.mubr.bf16.gmra.mxu0 %v269
  %v443 = vpop.f32.mrf.mxu0
  %v444 = vadd.f32 %v135, %v443
  %v445 = vpop.f32.mrf.mxu0
  %v446 = vpop.f32.mrf.mxu0
  %v447 = vadd.f32 %v135, %v446
  %v448 = vpop.f32.mrf.mxu0
  %449 = vmatprep.mubr.bf16.mxu0 0
  %450 = vmatmul.mubr.bf16.gmra.mxu0 %v270
  %v451 = vpop.f32.mrf.mxu0
  %v452 = vadd.f32 %v135, %v451
  %v453 = vpop.f32.mrf.mxu0
  %v454 = vpop.f32.mrf.mxu0
  %v455 = vadd.f32 %v135, %v454
  %v456 = vpop.f32.mrf.mxu0
  %457 = vmatprep.mubr.bf16.mxu0 0
  %458 = vmatmul.mubr.bf16.gmra.mxu0 %v271
  %v459 = vpop.f32.mrf.mxu0
  %v460 = vadd.f32 %v135, %v459
  %v461 = vpop.f32.mrf.mxu0
  %v462 = vpop.f32.mrf.mxu0
  %v463 = vadd.f32 %v135, %v462
  %v464 = vpop.f32.mrf.mxu0
  %465 = vmatprep.mubr.bf16.mxu0 0
  %466 = vmatmul.mubr.bf16.gmra.mxu0 %v272
  %v467 = vpop.f32.mrf.mxu0
  %v468 = vadd.f32 %v135, %v467
  %v469 = vpop.f32.mrf.mxu0
  %v470 = vpop.f32.mrf.mxu0
  %v471 = vadd.f32 %v135, %v470
  %v472 = vpop.f32.mrf.mxu0
  %473 = vmatprep.mubr.bf16.mxu0 0
  %474 = vmatmul.mubr.bf16.gmra.mxu0 %v273
  %v475 = vpop.f32.mrf.mxu0
  %v476 = vadd.f32 %v135, %v475
  %v477 = vpop.f32.mrf.mxu0
  %v478 = vpop.f32.mrf.mxu0
  %v479 = vadd.f32 %v135, %v478
  %v480 = vpop.f32.mrf.mxu0
  %481 = vmatprep.mubr.bf16.mxu0 0
  %482 = vmatmul.mubr.bf16.gmra.mxu0 %v274
  %v483 = vpop.f32.mrf.mxu0
  %v484 = vadd.f32 %v135, %v483
  %v485 = vpop.f32.mrf.mxu0
  %v486 = vpop.f32.mrf.mxu0
  %v487 = vadd.f32 %v135, %v486
  %v488 = vpop.f32.mrf.mxu0
  %489 = vmatprep.mubr.bf16.mxu0 0
  %490 = vmatmul.mubr.bf16.gmra.mxu0 %v275
  %v491 = vpop.f32.mrf.mxu0
  %v492 = vadd.f32 %v135, %v491
  %v493 = vpop.f32.mrf.mxu0
  %v494 = vpop.f32.mrf.mxu0
  %v495 = vadd.f32 %v135, %v494
  %v496 = vpop.f32.mrf.mxu0
  %497 = vmatprep.mubr.bf16.mxu0 0
  %498 = vmatmul.mubr.bf16.gmra.mxu0 %v276
  %v499 = vpop.f32.mrf.mxu0
  %v500 = vadd.f32 %v135, %v499
  %v501 = vpop.f32.mrf.mxu0
  %v502 = vpop.f32.mrf.mxu0
  %v503 = vadd.f32 %v135, %v502
  %v504 = vpop.f32.mrf.mxu0
  %505 = vmatprep.mubr.bf16.mxu0 0
  %506 = vmatmul.mubr.bf16.gmra.mxu0 %v277
  %v507 = vpop.f32.mrf.mxu0
  %v508 = vadd.f32 %v135, %v507
  %v509 = vpop.f32.mrf.mxu0
  %v510 = vpop.f32.mrf.mxu0
  %v511 = vadd.f32 %v135, %v510
  %v512 = vpop.f32.mrf.mxu0
  %513 = vmatprep.mubr.bf16.mxu0 0
  %514 = vmatmul.mubr.bf16.gmra.mxu0 %v278
  %v515 = vpop.f32.mrf.mxu0
  %v516 = vadd.f32 %v135, %v515
  %v517 = vpop.f32.mrf.mxu0
  %v518 = vpop.f32.mrf.mxu0
  %v519 = vadd.f32 %v135, %v518
  %v520 = vpop.f32.mrf.mxu0
  %521 = vmatprep.mubr.bf16.mxu0 0
  %522 = vmatmul.mubr.bf16.gmra.mxu0 %v279
  %v523 = vpop.f32.mrf.mxu0
  %v524 = vadd.f32 %v135, %v523
  %v525 = vpop.f32.mrf.mxu0
  %v526 = vpop.f32.mrf.mxu0
  %v527 = vadd.f32 %v135, %v526
  %v528 = vpop.f32.mrf.mxu0
  %529 = vmatprep.mubr.bf16.mxu0 0
  %530 = vmatmul.mubr.bf16.gmra.mxu0 %v280
  %v531 = vpop.f32.mrf.mxu0
  %v532 = vadd.f32 %v135, %v531
  %v533 = vpop.f32.mrf.mxu0
  %v534 = vpop.f32.mrf.mxu0
  %v535 = vadd.f32 %v135, %v534
  %v536 = vpop.f32.mrf.mxu0
  %537 = vmatprep.mubr.bf16.mxu0 0
  %538 = vmatmul.mubr.bf16.gmra.mxu0 %v281
  %v539 = vpop.f32.mrf.mxu0
  %v540 = vadd.f32 %v135, %v539
  %v541 = vpop.f32.mrf.mxu0
  %v542 = vpop.f32.mrf.mxu0
  %v543 = vadd.f32 %v135, %v542
  %v544 = vpop.f32.mrf.mxu0
  %545 = vmatprep.mubr.bf16.mxu0 0
  %546 = vmatmul.mubr.bf16.gmra.mxu0 %v282
  %v547 = vpop.f32.mrf.mxu0
  %v548 = vadd.f32 %v135, %v547
  %v549 = vpop.f32.mrf.mxu0
  %v550 = vpop.f32.mrf.mxu0
  %v551 = vadd.f32 %v135, %v550
  %v552 = vpop.f32.mrf.mxu0
  %553 = vmatprep.mubr.bf16.mxu0 0
  %554 = vmatmul.mubr.bf16.gmra.mxu0 %v283
  %v555 = vpop.f32.mrf.mxu0
  %v556 = vadd.f32 %v135, %v555
  %v557 = vpop.f32.mrf.mxu0
  %v558 = vpop.f32.mrf.mxu0
  %v559 = vadd.f32 %v135, %v558
  %v560 = vpop.f32.mrf.mxu0
  %561 = vmatprep.mubr.bf16.mxu0 0
  %562 = vmatmul.mubr.bf16.gmra.mxu0 %v284
  %v563 = vpop.f32.mrf.mxu0
  %v564 = vadd.f32 %v135, %v563
  %v565 = vpop.f32.mrf.mxu0
  %v566 = vpop.f32.mrf.mxu0
  %v567 = vadd.f32 %v135, %v566
  %v568 = vpop.f32.mrf.mxu0
  %569 = vmatprep.mubr.bf16.mxu0 0
  %570 = vmatmul.mubr.bf16.gmra.mxu0 %v285
  %v571 = vpop.f32.mrf.mxu0
  %v572 = vadd.f32 %v135, %v571
  %v573 = vpop.f32.mrf.mxu0
  %v574 = vpop.f32.mrf.mxu0
  %v575 = vadd.f32 %v135, %v574
  %v576 = vpop.f32.mrf.mxu0
  %577 = vmatprep.mubr.bf16.mxu0 0
  %578 = vmatmul.mubr.bf16.gmra.mxu0 %v286
  %v579 = vpop.f32.mrf.mxu0
  %v580 = vadd.f32 %v135, %v579
  %v581 = vpop.f32.mrf.mxu0
  %v582 = vpop.f32.mrf.mxu0
  %v583 = vadd.f32 %v135, %v582
  %v584 = vpop.f32.mrf.mxu0
  %585 = vmatprep.mubr.bf16.mxu0 0
  %586 = vmatmul.mubr.bf16.gmra.mxu0 %v287
  %v587 = vpop.f32.mrf.mxu0
  %v588 = vadd.f32 %v135, %v587
  %v589 = vpop.f32.mrf.mxu0
  %v590 = vpop.f32.mrf.mxu0
  %v591 = vadd.f32 %v135, %v590
  %v592 = vpop.f32.mrf.mxu0
  %593 = vmatprep.mubr.bf16.mxu0 0
  %594 = vmatmul.mubr.bf16.gmra.mxu0 %v288
  %v595 = vpop.f32.mrf.mxu0
  %v596 = vadd.f32 %v135, %v595
  %v597 = vpop.f32.mrf.mxu0
  %v598 = vpop.f32.mrf.mxu0
  %v599 = vadd.f32 %v135, %v598
  %v600 = vpop.f32.mrf.mxu0
  %601 = vmatprep.mubr.bf16.mxu0 0
  %602 = vmatmul.mubr.bf16.gmra.mxu0 %v289
  %v603 = vpop.f32.mrf.mxu0
  %v604 = vadd.f32 %v135, %v603
  %v605 = vpop.f32.mrf.mxu0
  %v606 = vpop.f32.mrf.mxu0
  %v607 = vadd.f32 %v135, %v606
  %v608 = vpop.f32.mrf.mxu0
  %609 = vmatprep.mubr.bf16.mxu0 0
  %610 = vmatmul.mubr.bf16.gmra.mxu0 %v290
  %v611 = vpop.f32.mrf.mxu0
  %v612 = vadd.f32 %v135, %v611
  %v613 = vpop.f32.mrf.mxu0
  %v614 = vpop.f32.mrf.mxu0
  %v615 = vadd.f32 %v135, %v614
  %v616 = vpop.f32.mrf.mxu0
  %617 = vmatprep.mubr.bf16.mxu0 0
  %618 = vmatmul.mubr.bf16.gmra.mxu0 %v291
  %v619 = vpop.f32.mrf.mxu0
  %v620 = vadd.f32 %v135, %v619
  %v621 = vpop.f32.mrf.mxu0
  %v622 = vpop.f32.mrf.mxu0
  %v623 = vadd.f32 %v135, %v622
  %v624 = vpop.f32.mrf.mxu0
  %625 = vmatprep.mubr.bf16.mxu0 0
  %626 = vmatmul.mubr.bf16.gmra.mxu0 %v292
  %v627 = vpop.f32.mrf.mxu0
  %v628 = vadd.f32 %v135, %v627
  %v629 = vpop.f32.mrf.mxu0
  %v630 = vpop.f32.mrf.mxu0
  %v631 = vadd.f32 %v135, %v630
  %v632 = vpop.f32.mrf.mxu0
  %633 = vmatprep.mubr.bf16.mxu0 0
  %634 = vmatmul.mubr.bf16.gmra.mxu0 %v293
  %v635 = vpop.f32.mrf.mxu0
  %v636 = vadd.f32 %v135, %v635
  %v637 = vpop.f32.mrf.mxu0
  %v638 = vpop.f32.mrf.mxu0
  %v639 = vadd.f32 %v135, %v638
  %v640 = vpop.f32.mrf.mxu0
  %641 = vmatprep.mubr.bf16.mxu0 0
  %642 = vmatmul.mubr.bf16.gmra.mxu0 %v294
  %v643 = vpop.f32.mrf.mxu0
  %v644 = vadd.f32 %v135, %v643
  %v645 = vpop.f32.mrf.mxu0
  %v646 = vpop.f32.mrf.mxu0
  %v647 = vadd.f32 %v135, %v646
  %v648 = vpop.f32.mrf.mxu0
  %649 = vmatprep.mubr.bf16.mxu0 0
  %650 = vmatmul.mubr.bf16.gmra.mxu0 %v295
  %v651 = vpop.f32.mrf.mxu0
  %v652 = vadd.f32 %v135, %v651
  %v653 = vpop.f32.mrf.mxu0
  %v654 = vpop.f32.mrf.mxu0
  %v655 = vadd.f32 %v135, %v654
  %v656 = vpop.f32.mrf.mxu0
  %657 = vmatprep.mubr.bf16.mxu0 0
  %658 = vmatmul.mubr.bf16.gmra.mxu0 %v296
  %v659 = vpop.f32.mrf.mxu0
  %v660 = vadd.f32 %v135, %v659
  %v661 = vpop.f32.mrf.mxu0
  %v662 = vpop.f32.mrf.mxu0
  %v663 = vadd.f32 %v135, %v662
  %v664 = vpop.f32.mrf.mxu0
  %665 = vdwg.mxu0
  %vm666 = vcmp.gt.f32.partialorder %v412, 0.0
  %vm667 = vcmp.gt.f32.partialorder %v415, 0.0
  %vm668 = vcmp.gt.f32.partialorder %v420, 0.0
  %vm669 = vcmp.gt.f32.partialorder %v423, 0.0
  %vm670 = vcmp.gt.f32.partialorder %v428, 0.0
  %vm671 = vcmp.gt.f32.partialorder %v431, 0.0
  %vm672 = vcmp.gt.f32.partialorder %v436, 0.0
  %vm673 = vcmp.gt.f32.partialorder %v439, 0.0
  %vm674 = vcmp.gt.f32.partialorder %v444, 0.0
  %vm675 = vcmp.gt.f32.partialorder %v447, 0.0
  %vm676 = vcmp.gt.f32.partialorder %v452, 0.0
  %vm677 = vcmp.gt.f32.partialorder %v455, 0.0
  %vm678 = vcmp.gt.f32.partialorder %v460, 0.0
  %vm679 = vcmp.gt.f32.partialorder %v463, 0.0
  %vm680 = vcmp.gt.f32.partialorder %v468, 0.0
  %vm681 = vcmp.gt.f32.partialorder %v471, 0.0
  %vm682 = vcmp.gt.f32.partialorder %v476, 0.0
  %vm683 = vcmp.gt.f32.partialorder %v479, 0.0
  %vm684 = vcmp.gt.f32.partialorder %v484, 0.0
  %vm685 = vcmp.gt.f32.partialorder %v487, 0.0
  %vm686 = vcmp.gt.f32.partialorder %v492, 0.0
  %vm687 = vcmp.gt.f32.partialorder %v495, 0.0
  %vm688 = vcmp.gt.f32.partialorder %v500, 0.0
  %vm689 = vcmp.gt.f32.partialorder %v503, 0.0
  %vm690 = vcmp.gt.f32.partialorder %v508, 0.0
  %vm691 = vcmp.gt.f32.partialorder %v511, 0.0
  %vm692 = vcmp.gt.f32.partialorder %v516, 0.0
  %vm693 = vcmp.gt.f32.partialorder %v519, 0.0
  %vm694 = vcmp.gt.f32.partialorder %v524, 0.0
  %vm695 = vcmp.gt.f32.partialorder %v527, 0.0
  %vm696 = vcmp.gt.f32.partialorder %v532, 0.0
  %vm697 = vcmp.gt.f32.partialorder %v535, 0.0
  %vm698 = vcmp.gt.f32.partialorder %v540, 0.0
  %vm699 = vcmp.gt.f32.partialorder %v543, 0.0
  %vm700 = vcmp.gt.f32.partialorder %v548, 0.0
  %vm701 = vcmp.gt.f32.partialorder %v551, 0.0
  %vm702 = vcmp.gt.f32.partialorder %v556, 0.0
  %vm703 = vcmp.gt.f32.partialorder %v559, 0.0
  %vm704 = vcmp.gt.f32.partialorder %v564, 0.0
  %vm705 = vcmp.gt.f32.partialorder %v567, 0.0
  %vm706 = vcmp.gt.f32.partialorder %v572, 0.0
  %vm707 = vcmp.gt.f32.partialorder %v575, 0.0
  %vm708 = vcmp.gt.f32.partialorder %v580, 0.0
  %vm709 = vcmp.gt.f32.partialorder %v583, 0.0
  %vm710 = vcmp.gt.f32.partialorder %v588, 0.0
  %vm711 = vcmp.gt.f32.partialorder %v591, 0.0
  %vm712 = vcmp.gt.f32.partialorder %v596, 0.0
  %vm713 = vcmp.gt.f32.partialorder %v599, 0.0
  %vm714 = vcmp.gt.f32.partialorder %v604, 0.0
  %vm715 = vcmp.gt.f32.partialorder %v607, 0.0
  %vm716 = vcmp.gt.f32.partialorder %v612, 0.0
  %vm717 = vcmp.gt.f32.partialorder %v615, 0.0
  %vm718 = vcmp.gt.f32.partialorder %v620, 0.0
  %vm719 = vcmp.gt.f32.partialorder %v623, 0.0
  %vm720 = vcmp.gt.f32.partialorder %v628, 0.0
  %vm721 = vcmp.gt.f32.partialorder %v631, 0.0
  %vm722 = vcmp.gt.f32.partialorder %v636, 0.0
  %vm723 = vcmp.gt.f32.partialorder %v639, 0.0
  %vm724 = vcmp.gt.f32.partialorder %v644, 0.0
  %vm725 = vcmp.gt.f32.partialorder %v647, 0.0
  %vm726 = vcmp.gt.f32.partialorder %v652, 0.0
  %vm727 = vcmp.gt.f32.partialorder %v655, 0.0
  %vm728 = vcmp.gt.f32.partialorder %v660, 0.0
  %vm729 = vcmp.gt.f32.partialorder %v663, 0.0
  %v730 = vmul.f32 %v412, 0.2
  %v731 = vmul.f32 %v415, 0.2
  %v732 = vmul.f32 %v420, 0.2
  %v733 = vmul.f32 %v423, 0.2
  %v734 = vmul.f32 %v428, 0.2
  %v735 = vmul.f32 %v431, 0.2
  %v736 = vmul.f32 %v436, 0.2
  %v737 = vmul.f32 %v439, 0.2
  %v738 = vmul.f32 %v444, 0.2
  %v739 = vmul.f32 %v447, 0.2
  %v740 = vmul.f32 %v452, 0.2
  %v741 = vmul.f32 %v455, 0.2
  %v742 = vmul.f32 %v460, 0.2
  %v743 = vmul.f32 %v463, 0.2
  %v744 = vmul.f32 %v468, 0.2
  %v745 = vmul.f32 %v471, 0.2
  %v746 = vmul.f32 %v476, 0.2
  %v747 = vmul.f32 %v479, 0.2
  %v748 = vmul.f32 %v484, 0.2
  %v749 = vmul.f32 %v487, 0.2
  %v750 = vmul.f32 %v492, 0.2
  %v751 = vmul.f32 %v495, 0.2
  %v752 = vmul.f32 %v500, 0.2
  %v753 = vmul.f32 %v503, 0.2
  %v754 = vmul.f32 %v508, 0.2
  %v755 = vmul.f32 %v511, 0.2
  %v756 = vmul.f32 %v516, 0.2
  %v757 = vmul.f32 %v519, 0.2
  %v758 = vmul.f32 %v524, 0.2
  %v759 = vmul.f32 %v527, 0.2
  %v760 = vmul.f32 %v532, 0.2
  %v761 = vmul.f32 %v535, 0.2
  %v762 = vmul.f32 %v540, 0.2
  %v763 = vmul.f32 %v543, 0.2
  %v764 = vmul.f32 %v548, 0.2
  %v765 = vmul.f32 %v551, 0.2
  %v766 = vmul.f32 %v556, 0.2
  %v767 = vmul.f32 %v559, 0.2
  %v768 = vmul.f32 %v564, 0.2
  %v769 = vmul.f32 %v567, 0.2
  %v770 = vmul.f32 %v572, 0.2
  %v771 = vmul.f32 %v575, 0.2
  %v772 = vmul.f32 %v580, 0.2
  %v773 = vmul.f32 %v583, 0.2
  %v774 = vmul.f32 %v588, 0.2
  %v775 = vmul.f32 %v591, 0.2
  %v776 = vmul.f32 %v596, 0.2
  %v777 = vmul.f32 %v599, 0.2
  %v778 = vmul.f32 %v604, 0.2
  %v779 = vmul.f32 %v607, 0.2
  %v780 = vmul.f32 %v612, 0.2
  %v781 = vmul.f32 %v615, 0.2
  %v782 = vmul.f32 %v620, 0.2
  %v783 = vmul.f32 %v623, 0.2
  %v784 = vmul.f32 %v628, 0.2
  %v785 = vmul.f32 %v631, 0.2
  %v786 = vmul.f32 %v636, 0.2
  %v787 = vmul.f32 %v639, 0.2
  %v788 = vmul.f32 %v644, 0.2
  %v789 = vmul.f32 %v647, 0.2
  %v790 = vmul.f32 %v652, 0.2
  %v791 = vmul.f32 %v655, 0.2
  %v792 = vmul.f32 %v660, 0.2
  %v793 = vmul.f32 %v663, 0.2
  %v794 = vsel %vm666, %v412, %v730
  %v795 = vsel %vm667, %v415, %v731
  %v796 = vsel %vm668, %v420, %v732
  %v797 = vsel %vm669, %v423, %v733
  %v798 = vsel %vm670, %v428, %v734
  %v799 = vsel %vm671, %v431, %v735
  %v800 = vsel %vm672, %v436, %v736
  %v801 = vsel %vm673, %v439, %v737
  %v802 = vsel %vm674, %v444, %v738
  %v803 = vsel %vm675, %v447, %v739
  %v804 = vsel %vm676, %v452, %v740
  %v805 = vsel %vm677, %v455, %v741
  %v806 = vsel %vm678, %v460, %v742
  %v807 = vsel %vm679, %v463, %v743
  %v808 = vsel %vm680, %v468, %v744
  %v809 = vsel %vm681, %v471, %v745
  %v810 = vsel %vm682, %v476, %v746
  %v811 = vsel %vm683, %v479, %v747
  %v812 = vsel %vm684, %v484, %v748
  %v813 = vsel %vm685, %v487, %v749
  %v814 = vsel %vm686, %v492, %v750
  %v815 = vsel %vm687, %v495, %v751
  %v816 = vsel %vm688, %v500, %v752
  %v817 = vsel %vm689, %v503, %v753
  %v818 = vsel %vm690, %v508, %v754
  %v819 = vsel %vm691, %v511, %v755
  %v820 = vsel %vm692, %v516, %v756
  %v821 = vsel %vm693, %v519, %v757
  %v822 = vsel %vm694, %v524, %v758
  %v823 = vsel %vm695, %v527, %v759
  %v824 = vsel %vm696, %v532, %v760
  %v825 = vsel %vm697, %v535, %v761
  %v826 = vsel %vm698, %v540, %v762
  %v827 = vsel %vm699, %v543, %v763
  %v828 = vsel %vm700, %v548, %v764
  %v829 = vsel %vm701, %v551, %v765
  %v830 = vsel %vm702, %v556, %v766
  %v831 = vsel %vm703, %v559, %v767
  %v832 = vsel %vm704, %v564, %v768
  %v833 = vsel %vm705, %v567, %v769
  %v834 = vsel %vm706, %v572, %v770
  %v835 = vsel %vm707, %v575, %v771
  %v836 = vsel %vm708, %v580, %v772
  %v837 = vsel %vm709, %v583, %v773
  %v838 = vsel %vm710, %v588, %v774
  %v839 = vsel %vm711, %v591, %v775
  %v840 = vsel %vm712, %v596, %v776
  %v841 = vsel %vm713, %v599, %v777
  %v842 = vsel %vm714, %v604, %v778
  %v843 = vsel %vm715, %v607, %v779
  %v844 = vsel %vm716, %v612, %v780
  %v845 = vsel %vm717, %v615, %v781
  %v846 = vsel %vm718, %v620, %v782
  %v847 = vsel %vm719, %v623, %v783
  %v848 = vsel %vm720, %v628, %v784
  %v849 = vsel %vm721, %v631, %v785
  %v850 = vsel %vm722, %v636, %v786
  %v851 = vsel %vm723, %v639, %v787
  %v852 = vsel %vm724, %v644, %v788
  %v853 = vsel %vm725, %v647, %v789
  %v854 = vsel %vm726, %v652, %v790
  %v855 = vsel %vm727, %v655, %v791
  %v856 = vsel %vm728, %v660, %v792
  %v857 = vsel %vm729, %v663, %v793
  %v858 = vpack.c.bf16 %v795, %v794
  %v859 = vpack.c.bf16 %v797, %v796
  %v860 = vpack.c.bf16 %v799, %v798
  %v861 = vpack.c.bf16 %v801, %v800
  %v862 = vpack.c.bf16 %v803, %v802
  %v863 = vpack.c.bf16 %v805, %v804
  %v864 = vpack.c.bf16 %v807, %v806
  %v865 = vpack.c.bf16 %v809, %v808
  %v866 = vpack.c.bf16 %v811, %v810
  %v867 = vpack.c.bf16 %v813, %v812
  %v868 = vpack.c.bf16 %v815, %v814
  %v869 = vpack.c.bf16 %v817, %v816
  %v870 = vpack.c.bf16 %v819, %v818
  %v871 = vpack.c.bf16 %v821, %v820
  %v872 = vpack.c.bf16 %v823, %v822
  %v873 = vpack.c.bf16 %v825, %v824
  %v874 = vpack.c.bf16 %v827, %v826
  %v875 = vpack.c.bf16 %v829, %v828
  %v876 = vpack.c.bf16 %v831, %v830
  %v877 = vpack.c.bf16 %v833, %v832
  %v878 = vpack.c.bf16 %v835, %v834
  %v879 = vpack.c.bf16 %v837, %v836
  %v880 = vpack.c.bf16 %v839, %v838
  %v881 = vpack.c.bf16 %v841, %v840
  %v882 = vpack.c.bf16 %v843, %v842
  %v883 = vpack.c.bf16 %v845, %v844
  %v884 = vpack.c.bf16 %v847, %v846
  %v885 = vpack.c.bf16 %v849, %v848
  %v886 = vpack.c.bf16 %v851, %v850
  %v887 = vpack.c.bf16 %v853, %v852
  %v888 = vpack.c.bf16 %v855, %v854
  %v889 = vpack.c.bf16 %v857, %v856
  %v890 = vld [vmem:[%s3] sm:$0xff]
  %v891 = vld [vmem:[%s3 + $0x8] sm:$0xff]
  %v892 = vld [vmem:[%s3 + $0x10] sm:$0xff]
  %v893 = vld [vmem:[%s3 + $0x18] sm:$0xff]
  %v894 = vld [vmem:[%s3 + $0x20] sm:$0xff]
  %v895 = vld [vmem:[%s3 + $0x28] sm:$0xff]
  %v896 = vld [vmem:[%s3 + $0x30] sm:$0xff]
  %v897 = vld [vmem:[%s3 + $0x38] sm:$0xff]
  %v898 = vld [vmem:[%s3 + $0x40] sm:$0xff]
  %v899 = vld [vmem:[%s3 + $0x48] sm:$0xff]
  %v900 = vld [vmem:[%s3 + $0x50] sm:$0xff]
  %v901 = vld [vmem:[%s3 + $0x58] sm:$0xff]
  %v902 = vld [vmem:[%s3 + $0x60] sm:$0xff]
  %v903 = vld [vmem:[%s3 + $0x68] sm:$0xff]
  %v904 = vld [vmem:[%s3 + $0x70] sm:$0xff]
  %v905 = vld [vmem:[%s3 + $0x78] sm:$0xff]
  %v906 = vld [vmem:[%s3 + $0x80] sm:$0xff]
  %v907 = vld [vmem:[%s3 + $0x88] sm:$0xff]
  %v908 = vld [vmem:[%s3 + $0x90] sm:$0xff]
  %v909 = vld [vmem:[%s3 + $0x98] sm:$0xff]
  %v910 = vld [vmem:[%s3 + $0xa0] sm:$0xff]
  %v911 = vld [vmem:[%s3 + $0xa8] sm:$0xff]
  %v912 = vld [vmem:[%s3 + $0xb0] sm:$0xff]
  %v913 = vld [vmem:[%s3 + $0xb8] sm:$0xff]
  %v914 = vld [vmem:[%s3 + $0xc0] sm:$0xff]
  %v915 = vld [vmem:[%s3 + $0xc8] sm:$0xff]
  %v916 = vld [vmem:[%s3 + $0xd0] sm:$0xff]
  %v917 = vld [vmem:[%s3 + $0xd8] sm:$0xff]
  %v918 = vld [vmem:[%s3 + $0xe0] sm:$0xff]
  %v919 = vld [vmem:[%s3 + $0xe8] sm:$0xff]
  %v920 = vld [vmem:[%s3 + $0xf0] sm:$0xff]
  %v921 = vld [vmem:[%s3 + $0xf8] sm:$0xff]
  %v954 = vunpack.c.l.b16 %v890
  %v955 = vunpack.c.h.b16 %v890
  %v956 = vunpack.c.l.b16 %v891
  %v957 = vunpack.c.h.b16 %v891
  %v958 = vunpack.c.l.b16 %v892
  %v959 = vunpack.c.h.b16 %v892
  %v960 = vunpack.c.l.b16 %v893
  %v961 = vunpack.c.h.b16 %v893
  %v962 = vunpack.c.l.b16 %v894
  %v963 = vunpack.c.h.b16 %v894
  %v964 = vunpack.c.l.b16 %v895
  %v965 = vunpack.c.h.b16 %v895
  %v966 = vunpack.c.l.b16 %v896
  %v967 = vunpack.c.h.b16 %v896
  %v968 = vunpack.c.l.b16 %v897
  %v969 = vunpack.c.h.b16 %v897
  %v970 = vunpack.c.l.b16 %v898
  %v971 = vunpack.c.h.b16 %v898
  %v972 = vunpack.c.l.b16 %v899
  %v973 = vunpack.c.h.b16 %v899
  %v974 = vunpack.c.l.b16 %v900
  %v975 = vunpack.c.h.b16 %v900
  %v976 = vunpack.c.l.b16 %v901
  %v977 = vunpack.c.h.b16 %v901
  %v978 = vunpack.c.l.b16 %v902
  %v979 = vunpack.c.h.b16 %v902
  %v980 = vunpack.c.l.b16 %v903
  %v981 = vunpack.c.h.b16 %v903
  %v982 = vunpack.c.l.b16 %v904
  %v983 = vunpack.c.h.b16 %v904
  %v984 = vunpack.c.l.b16 %v905
  %v985 = vunpack.c.h.b16 %v905
  %v986 = vunpack.c.l.b16 %v906
  %v987 = vunpack.c.h.b16 %v906
  %v988 = vunpack.c.l.b16 %v907
  %v989 = vunpack.c.h.b16 %v907
  %v990 = vunpack.c.l.b16 %v908
  %v991 = vunpack.c.h.b16 %v908
  %v992 = vunpack.c.l.b16 %v909
  %v993 = vunpack.c.h.b16 %v909
  %v994 = vunpack.c.l.b16 %v910
  %v995 = vunpack.c.h.b16 %v910
  %v996 = vunpack.c.l.b16 %v911
  %v997 = vunpack.c.h.b16 %v911
  %v998 = vunpack.c.l.b16 %v912
  %v999 = vunpack.c.h.b16 %v912
  %v1000 = vunpack.c.l.b16 %v913
  %v1001 = vunpack.c.h.b16 %v913
  %v1002 = vunpack.c.l.b16 %v914
  %v1003 = vunpack.c.h.b16 %v914
  %v1004 = vunpack.c.l.b16 %v915
  %v1005 = vunpack.c.h.b16 %v915
  %v1006 = vunpack.c.l.b16 %v916
  %v1007 = vunpack.c.h.b16 %v916
  %v1008 = vunpack.c.l.b16 %v917
  %v1009 = vunpack.c.h.b16 %v917
  %v1010 = vunpack.c.l.b16 %v918
  %v1011 = vunpack.c.h.b16 %v918
  %v1012 = vunpack.c.l.b16 %v919
  %v1013 = vunpack.c.h.b16 %v919
  %v1014 = vunpack.c.l.b16 %v920
  %v1015 = vunpack.c.h.b16 %v920
  %v1016 = vunpack.c.l.b16 %v921
  %v1017 = vunpack.c.h.b16 %v921
  %v1018 = vpack.c.b16 %v958, %v954
  %v1019 = vpack.c.b16 %v959, %v955
  %v1020 = vpack.c.b16 %v960, %v956
  %v1021 = vpack.c.b16 %v961, %v957
  %v1022 = vpack.c.b16 %v966, %v962
  %v1023 = vpack.c.b16 %v967, %v963
  %v1024 = vpack.c.b16 %v968, %v964
  %v1025 = vpack.c.b16 %v969, %v965
  %v1026 = vpack.c.b16 %v974, %v970
  %v1027 = vpack.c.b16 %v975, %v971
  %v1028 = vpack.c.b16 %v976, %v972
  %v1029 = vpack.c.b16 %v977, %v973
  %v1030 = vpack.c.b16 %v982, %v978
  %v1031 = vpack.c.b16 %v983, %v979
  %v1032 = vpack.c.b16 %v984, %v980
  %v1033 = vpack.c.b16 %v985, %v981
  %v1034 = vpack.c.b16 %v990, %v986
  %v1035 = vpack.c.b16 %v991, %v987
  %v1036 = vpack.c.b16 %v992, %v988
  %v1037 = vpack.c.b16 %v993, %v989
  %v1038 = vpack.c.b16 %v998, %v994
  %v1039 = vpack.c.b16 %v999, %v995
  %v1040 = vpack.c.b16 %v1000, %v996
  %v1041 = vpack.c.b16 %v1001, %v997
  %v1042 = vpack.c.b16 %v1006, %v1002
  %v1043 = vpack.c.b16 %v1007, %v1003
  %v1044 = vpack.c.b16 %v1008, %v1004
  %v1045 = vpack.c.b16 %v1009, %v1005
  %v1046 = vpack.c.b16 %v1014, %v1010
  %v1047 = vpack.c.b16 %v1015, %v1011
  %v1048 = vpack.c.b16 %v1016, %v1012
  %v1049 = vpack.c.b16 %v1017, %v1013
  %1082 = vmatprep.subr.bf16.mxu0 0
  %1083 = vmatpush1.bf16.msra.mxu0 %v865
  %1084 = vmatprep.subr.bf16.mxu0 0
  %1085 = vmatpush1.bf16.msra.mxu0 %v864
  %1086 = vmatprep.subr.bf16.mxu0 0
  %1087 = vmatpush1.bf16.msra.mxu0 %v863
  %1088 = vmatprep.subr.bf16.mxu0 0
  %1089 = vmatpush1.bf16.msra.mxu0 %v862
  %1090 = vmatprep.subr.bf16.mxu0 0
  %1091 = vmatpush1.bf16.msra.mxu0 %v861
  %1092 = vmatprep.subr.bf16.mxu0 0
  %1093 = vmatpush1.bf16.msra.mxu0 %v860
  %1094 = vmatprep.subr.bf16.mxu0 0
  %1095 = vmatpush1.bf16.msra.mxu0 %v859
  %1096 = vmatprep.subr.bf16.mxu0 0
  %1097 = vmatpush1.bf16.msra.mxu0 %v858
  %1098 = vmatprep.subr.bf16.mxu0 0
  %1099 = vmatpush2.bf16.msra.mxu0 %v873
  %1100 = vmatprep.subr.bf16.mxu0 0
  %1101 = vmatpush2.bf16.msra.mxu0 %v872
  %1102 = vmatprep.subr.bf16.mxu0 0
  %1103 = vmatpush2.bf16.msra.mxu0 %v871
  %1104 = vmatprep.subr.bf16.mxu0 0
  %1105 = vmatpush2.bf16.msra.mxu0 %v870
  %1106 = vmatprep.subr.bf16.mxu0 0
  %1107 = vmatpush2.bf16.msra.mxu0 %v869
  %1108 = vmatprep.subr.bf16.mxu0 0
  %1109 = vmatpush2.bf16.msra.mxu0 %v868
  %1110 = vmatprep.subr.bf16.mxu0 0
  %1111 = vmatpush2.bf16.msra.mxu0 %v867
  %1112 = vmatprep.subr.bf16.mxu0 0
  %1113 = vmatpush2.bf16.msra.mxu0 %v866
  %1114 = vmatprep.mubr.bf16.mxu0 %v1019
  %1115 = vmatmul.mubr.bf16.gmra.mxu0 %v1018
  %v1116 = vpop.f32.mrf.mxu0
  %v1117 = vadd.f32 0.0, %v1116
  %v1118 = vpop.f32.mrf.mxu0
  %v1119 = vpop.f32.mrf.mxu0
  %v1120 = vadd.f32 0.0, %v1119
  %v1121 = vpop.f32.mrf.mxu0
  %1122 = vmatprep.mubr.bf16.mxu0 %v1023
  %1123 = vmatmul.mubr.bf16.gmra.mxu0 %v1022
  %v1124 = vpop.f32.mrf.mxu0
  %v1125 = vadd.f32 0.0, %v1124
  %v1126 = vpop.f32.mrf.mxu0
  %v1127 = vpop.f32.mrf.mxu0
  %v1128 = vadd.f32 0.0, %v1127
  %v1129 = vpop.f32.mrf.mxu0
  %1130 = vmatprep.mubr.bf16.mxu0 %v1027
  %1131 = vmatmul.mubr.bf16.gmra.mxu0 %v1026
  %v1132 = vpop.f32.mrf.mxu0
  %v1133 = vadd.f32 0.0, %v1132
  %v1134 = vpop.f32.mrf.mxu0
  %v1135 = vpop.f32.mrf.mxu0
  %v1136 = vadd.f32 0.0, %v1135
  %v1137 = vpop.f32.mrf.mxu0
  %1138 = vmatprep.mubr.bf16.mxu0 %v1031
  %1139 = vmatmul.mubr.bf16.gmra.mxu0 %v1030
  %v1140 = vpop.f32.mrf.mxu0
  %v1141 = vadd.f32 0.0, %v1140
  %v1142 = vpop.f32.mrf.mxu0
  %v1143 = vpop.f32.mrf.mxu0
  %v1144 = vadd.f32 0.0, %v1143
  %v1145 = vpop.f32.mrf.mxu0
  %1146 = vmatprep.mubr.bf16.mxu0 %v1035
  %1147 = vmatmul.mubr.bf16.gmra.mxu0 %v1034
  %v1148 = vpop.f32.mrf.mxu0
  %v1149 = vadd.f32 0.0, %v1148
  %v1150 = vpop.f32.mrf.mxu0
  %v1151 = vpop.f32.mrf.mxu0
  %v1152 = vadd.f32 0.0, %v1151
  %v1153 = vpop.f32.mrf.mxu0
  %1154 = vmatprep.mubr.bf16.mxu0 %v1039
  %1155 = vmatmul.mubr.bf16.gmra.mxu0 %v1038
  %v1156 = vpop.f32.mrf.mxu0
  %v1157 = vadd.f32 0.0, %v1156
  %v1158 = vpop.f32.mrf.mxu0
  %v1159 = vpop.f32.mrf.mxu0
  %v1160 = vadd.f32 0.0, %v1159
  %v1161 = vpop.f32.mrf.mxu0
  %1162 = vmatprep.mubr.bf16.mxu0 %v1043
  %1163 = vmatmul.mubr.bf16.gmra.mxu0 %v1042
  %v1164 = vpop.f32.mrf.mxu0
  %v1165 = vadd.f32 0.0, %v1164
  %v1166 = vpop.f32.mrf.mxu0
  %v1167 = vpop.f32.mrf.mxu0
  %v1168 = vadd.f32 0.0, %v1167
  %v1169 = vpop.f32.mrf.mxu0
  %1170 = vmatprep.mubr.bf16.mxu0 %v1047
  %1171 = vmatmul.mubr.bf16.gmra.mxu0 %v1046
  %v1172 = vpop.f32.mrf.mxu0
  %v1173 = vadd.f32 0.0, %v1172
  %v1174 = vpop.f32.mrf.mxu0
  %v1175 = vpop.f32.mrf.mxu0
  %v1176 = vadd.f32 0.0, %v1175
  %v1177 = vpop.f32.mrf.mxu0
  %1178 = vdwg.mxu0
  %1179 = vmatprep.subr.bf16.mxu0 0
  %1180 = vmatpush1.bf16.msra.mxu0 %v881
  %1181 = vmatprep.subr.bf16.mxu0 0
  %1182 = vmatpush1.bf16.msra.mxu0 %v880
  %1183 = vmatprep.subr.bf16.mxu0 0
  %1184 = vmatpush1.bf16.msra.mxu0 %v879
  %1185 = vmatprep.subr.bf16.mxu0 0
  %1186 = vmatpush1.bf16.msra.mxu0 %v878
  %1187 = vmatprep.subr.bf16.mxu0 0
  %1188 = vmatpush1.bf16.msra.mxu0 %v877
  %1189 = vmatprep.subr.bf16.mxu0 0
  %1190 = vmatpush1.bf16.msra.mxu0 %v876
  %1191 = vmatprep.subr.bf16.mxu0 0
  %1192 = vmatpush1.bf16.msra.mxu0 %v875
  %1193 = vmatprep.subr.bf16.mxu0 0
  %1194 = vmatpush1.bf16.msra.mxu0 %v874
  %1195 = vmatprep.subr.bf16.mxu0 0
  %1196 = vmatpush2.bf16.msra.mxu0 %v889
  %1197 = vmatprep.subr.bf16.mxu0 0
  %1198 = vmatpush2.bf16.msra.mxu0 %v888
  %1199 = vmatprep.subr.bf16.mxu0 0
  %1200 = vmatpush2.bf16.msra.mxu0 %v887
  %1201 = vmatprep.subr.bf16.mxu0 0
  %1202 = vmatpush2.bf16.msra.mxu0 %v886
  %1203 = vmatprep.subr.bf16.mxu0 0
  %1204 = vmatpush2.bf16.msra.mxu0 %v885
  %1205 = vmatprep.subr.bf16.mxu0 0
  %1206 = vmatpush2.bf16.msra.mxu0 %v884
  %1207 = vmatprep.subr.bf16.mxu0 0
  %1208 = vmatpush2.bf16.msra.mxu0 %v883
  %1209 = vmatprep.subr.bf16.mxu0 0
  %1210 = vmatpush2.bf16.msra.mxu0 %v882
  %1211 = vmatprep.mubr.bf16.mxu0 %v1021
  %1212 = vmatmul.mubr.bf16.gmra.mxu0 %v1020
  %v1213 = vpop.f32.mrf.mxu0
  %v1214 = vadd.f32 %v1117, %v1213
  %v1215 = vpop.f32.mrf.mxu0
  %v1216 = vpop.f32.mrf.mxu0
  %v1217 = vadd.f32 %v1120, %v1216
  %v1218 = vpop.f32.mrf.mxu0
  %1219 = vmatprep.mubr.bf16.mxu0 %v1025
  %1220 = vmatmul.mubr.bf16.gmra.mxu0 %v1024
  %v1221 = vpop.f32.mrf.mxu0
  %v1222 = vadd.f32 %v1125, %v1221
  %v1223 = vpop.f32.mrf.mxu0
  %v1224 = vpop.f32.mrf.mxu0
  %v1225 = vadd.f32 %v1128, %v1224
  %v1226 = vpop.f32.mrf.mxu0
  %1227 = vmatprep.mubr.bf16.mxu0 %v1029
  %1228 = vmatmul.mubr.bf16.gmra.mxu0 %v1028
  %v1229 = vpop.f32.mrf.mxu0
  %v1230 = vadd.f32 %v1133, %v1229
  %v1231 = vpop.f32.mrf.mxu0
  %v1232 = vpop.f32.mrf.mxu0
  %v1233 = vadd.f32 %v1136, %v1232
  %v1234 = vpop.f32.mrf.mxu0
  %1235 = vmatprep.mubr.bf16.mxu0 %v1033
  %1236 = vmatmul.mubr.bf16.gmra.mxu0 %v1032
  %v1237 = vpop.f32.mrf.mxu0
  %v1238 = vadd.f32 %v1141, %v1237
  %v1239 = vpop.f32.mrf.mxu0
  %v1240 = vpop.f32.mrf.mxu0
  %v1241 = vadd.f32 %v1144, %v1240
  %v1242 = vpop.f32.mrf.mxu0
  %1243 = vmatprep.mubr.bf16.mxu0 %v1037
  %1244 = vmatmul.mubr.bf16.gmra.mxu0 %v1036
  %v1245 = vpop.f32.mrf.mxu0
  %v1246 = vadd.f32 %v1149, %v1245
  %v1247 = vpop.f32.mrf.mxu0
  %v1248 = vpop.f32.mrf.mxu0
  %v1249 = vadd.f32 %v1152, %v1248
  %v1250 = vpop.f32.mrf.mxu0
  %1251 = vmatprep.mubr.bf16.mxu0 %v1041
  %1252 = vmatmul.mubr.bf16.gmra.mxu0 %v1040
  %v1253 = vpop.f32.mrf.mxu0
  %v1254 = vadd.f32 %v1157, %v1253
  %v1255 = vpop.f32.mrf.mxu0
  %v1256 = vpop.f32.mrf.mxu0
  %v1257 = vadd.f32 %v1160, %v1256
  %v1258 = vpop.f32.mrf.mxu0
  %1259 = vmatprep.mubr.bf16.mxu0 %v1045
  %1260 = vmatmul.mubr.bf16.gmra.mxu0 %v1044
  %v1261 = vpop.f32.mrf.mxu0
  %v1262 = vadd.f32 %v1165, %v1261
  %v1263 = vpop.f32.mrf.mxu0
  %v1264 = vpop.f32.mrf.mxu0
  %v1265 = vadd.f32 %v1168, %v1264
  %v1266 = vpop.f32.mrf.mxu0
  %1267 = vmatprep.mubr.bf16.mxu0 %v1049
  %1268 = vmatmul.mubr.bf16.gmra.mxu0 %v1048
  %v1269 = vpop.f32.mrf.mxu0
  %v1270 = vadd.f32 %v1173, %v1269
  %v1271 = vpop.f32.mrf.mxu0
  %v1272 = vpop.f32.mrf.mxu0
  %v1273 = vadd.f32 %v1176, %v1272
  %v1274 = vpop.f32.mrf.mxu0
  %1275 = vdwg.mxu0
  %v1276 = vpack.c.bf16 %v1217, %v1214
  %v1277 = vpack.c.bf16 %v1225, %v1222
  %v1278 = vpack.c.bf16 %v1233, %v1230
  %v1279 = vpack.c.bf16 %v1241, %v1238
  %v1280 = vpack.c.bf16 %v1249, %v1246
  %v1281 = vpack.c.bf16 %v1257, %v1254
  %v1282 = vpack.c.bf16 %v1265, %v1262
  %v1283 = vpack.c.bf16 %v1273, %v1270
  %v1284 = vld [vmem:[%s4] sm:$0xf]
  %v1285 = vld [vmem:[%s4 + $0x4] sm:$0xf]
  %v1286 = vld [vmem:[%s4 + $0x8] sm:$0xf]
  %v1287 = vld [vmem:[%s4 + $0xc] sm:$0xf]
  %s1288 = scalar_lea.vmem %s3, 256
  %v1289 = vld [vmem:[%s1288] sm:$0xff]
  %v1290 = vld [vmem:[%s1288 + $0x8] sm:$0xff]
  %v1291 = vld [vmem:[%s1288 + $0x10] sm:$0xff]
  %v1292 = vld [vmem:[%s1288 + $0x18] sm:$0xff]
  %v1293 = vld [vmem:[%s1288 + $0x20] sm:$0xff]
  %v1294 = vld [vmem:[%s1288 + $0x28] sm:$0xff]
  %v1295 = vld [vmem:[%s1288 + $0x30] sm:$0xff]
  %v1296 = vld [vmem:[%s1288 + $0x38] sm:$0xff]
  %v1297 = vld [vmem:[%s1288 + $0x40] sm:$0xff]
  %v1298 = vld [vmem:[%s1288 + $0x48] sm:$0xff]
  %v1299 = vld [vmem:[%s1288 + $0x50] sm:$0xff]
  %v1300 = vld [vmem:[%s1288 + $0x58] sm:$0xff]
  %v1301 = vld [vmem:[%s1288 + $0x60] sm:$0xff]
  %v1302 = vld [vmem:[%s1288 + $0x68] sm:$0xff]
  %v1303 = vld [vmem:[%s1288 + $0x70] sm:$0xff]
  %v1304 = vld [vmem:[%s1288 + $0x78] sm:$0xff]
  %v1305 = vld [vmem:[%s1288 + $0x80] sm:$0xff]
  %v1306 = vld [vmem:[%s1288 + $0x88] sm:$0xff]
  %v1307 = vld [vmem:[%s1288 + $0x90] sm:$0xff]
  %v1308 = vld [vmem:[%s1288 + $0x98] sm:$0xff]
  %v1309 = vld [vmem:[%s1288 + $0xa0] sm:$0xff]
  %v1310 = vld [vmem:[%s1288 + $0xa8] sm:$0xff]
  %v1311 = vld [vmem:[%s1288 + $0xb0] sm:$0xff]
  %v1312 = vld [vmem:[%s1288 + $0xb8] sm:$0xff]
  %v1313 = vld [vmem:[%s1288 + $0xc0] sm:$0xff]
  %v1314 = vld [vmem:[%s1288 + $0xc8] sm:$0xff]
  %v1315 = vld [vmem:[%s1288 + $0xd0] sm:$0xff]
  %v1316 = vld [vmem:[%s1288 + $0xd8] sm:$0xff]
  %v1317 = vld [vmem:[%s1288 + $0xe0] sm:$0xff]
  %v1318 = vld [vmem:[%s1288 + $0xe8] sm:$0xff]
  %v1319 = vld [vmem:[%s1288 + $0xf0] sm:$0xff]
  %v1320 = vld [vmem:[%s1288 + $0xf8] sm:$0xff]
  %v1353 = vunpack.c.l.b16 %v1289
  %v1354 = vunpack.c.h.b16 %v1289
  %v1355 = vunpack.c.l.b16 %v1290
  %v1356 = vunpack.c.h.b16 %v1290
  %v1357 = vunpack.c.l.b16 %v1291
  %v1358 = vunpack.c.h.b16 %v1291
  %v1359 = vunpack.c.l.b16 %v1292
  %v1360 = vunpack.c.h.b16 %v1292
  %v1361 = vunpack.c.l.b16 %v1293
  %v1362 = vunpack.c.h.b16 %v1293
  %v1363 = vunpack.c.l.b16 %v1294
  %v1364 = vunpack.c.h.b16 %v1294
  %v1365 = vunpack.c.l.b16 %v1295
  %v1366 = vunpack.c.h.b16 %v1295
  %v1367 = vunpack.c.l.b16 %v1296
  %v1368 = vunpack.c.h.b16 %v1296
  %v1369 = vunpack.c.l.b16 %v1297
  %v1370 = vunpack.c.h.b16 %v1297
  %v1371 = vunpack.c.l.b16 %v1298
  %v1372 = vunpack.c.h.b16 %v1298
  %v1373 = vunpack.c.l.b16 %v1299
  %v1374 = vunpack.c.h.b16 %v1299
  %v1375 = vunpack.c.l.b16 %v1300
  %v1376 = vunpack.c.h.b16 %v1300
  %v1377 = vunpack.c.l.b16 %v1301
  %v1378 = vunpack.c.h.b16 %v1301
  %v1379 = vunpack.c.l.b16 %v1302
  %v1380 = vunpack.c.h.b16 %v1302
  %v1381 = vunpack.c.l.b16 %v1303
  %v1382 = vunpack.c.h.b16 %v1303
  %v1383 = vunpack.c.l.b16 %v1304
  %v1384 = vunpack.c.h.b16 %v1304
  %v1385 = vunpack.c.l.b16 %v1305
  %v1386 = vunpack.c.h.b16 %v1305
  %v1387 = vunpack.c.l.b16 %v1306
  %v1388 = vunpack.c.h.b16 %v1306
  %v1389 = vunpack.c.l.b16 %v1307
  %v1390 = vunpack.c.h.b16 %v1307
  %v1391 = vunpack.c.l.b16 %v1308
  %v1392 = vunpack.c.h.b16 %v1308
  %v1393 = vunpack.c.l.b16 %v1309
  %v1394 = vunpack.c.h.b16 %v1309
  %v1395 = vunpack.c.l.b16 %v1310
  %v1396 = vunpack.c.h.b16 %v1310
  %v1397 = vunpack.c.l.b16 %v1311
  %v1398 = vunpack.c.h.b16 %v1311
  %v1399 = vunpack.c.l.b16 %v1312
  %v1400 = vunpack.c.h.b16 %v1312
  %v1401 = vunpack.c.l.b16 %v1313
  %v1402 = vunpack.c.h.b16 %v1313
  %v1403 = vunpack.c.l.b16 %v1314
  %v1404 = vunpack.c.h.b16 %v1314
  %v1405 = vunpack.c.l.b16 %v1315
  %v1406 = vunpack.c.h.b16 %v1315
  %v1407 = vunpack.c.l.b16 %v1316
  %v1408 = vunpack.c.h.b16 %v1316
  %v1409 = vunpack.c.l.b16 %v1317
  %v1410 = vunpack.c.h.b16 %v1317
  %v1411 = vunpack.c.l.b16 %v1318
  %v1412 = vunpack.c.h.b16 %v1318
  %v1413 = vunpack.c.l.b16 %v1319
  %v1414 = vunpack.c.h.b16 %v1319
  %v1415 = vunpack.c.l.b16 %v1320
  %v1416 = vunpack.c.h.b16 %v1320
  %v1417 = vpack.c.b16 %v1357, %v1353
  %v1418 = vpack.c.b16 %v1358, %v1354
  %v1419 = vpack.c.b16 %v1359, %v1355
  %v1420 = vpack.c.b16 %v1360, %v1356
  %v1421 = vpack.c.b16 %v1365, %v1361
  %v1422 = vpack.c.b16 %v1366, %v1362
  %v1423 = vpack.c.b16 %v1367, %v1363
  %v1424 = vpack.c.b16 %v1368, %v1364
  %v1425 = vpack.c.b16 %v1373, %v1369
  %v1426 = vpack.c.b16 %v1374, %v1370
  %v1427 = vpack.c.b16 %v1375, %v1371
  %v1428 = vpack.c.b16 %v1376, %v1372
  %v1429 = vpack.c.b16 %v1381, %v1377
  %v1430 = vpack.c.b16 %v1382, %v1378
  %v1431 = vpack.c.b16 %v1383, %v1379
  %v1432 = vpack.c.b16 %v1384, %v1380
  %v1433 = vpack.c.b16 %v1389, %v1385
  %v1434 = vpack.c.b16 %v1390, %v1386
  %v1435 = vpack.c.b16 %v1391, %v1387
  %v1436 = vpack.c.b16 %v1392, %v1388
  %v1437 = vpack.c.b16 %v1397, %v1393
  %v1438 = vpack.c.b16 %v1398, %v1394
  %v1439 = vpack.c.b16 %v1399, %v1395
  %v1440 = vpack.c.b16 %v1400, %v1396
  %v1441 = vpack.c.b16 %v1405, %v1401
  %v1442 = vpack.c.b16 %v1406, %v1402
  %v1443 = vpack.c.b16 %v1407, %v1403
  %v1444 = vpack.c.b16 %v1408, %v1404
  %v1445 = vpack.c.b16 %v1413, %v1409
  %v1446 = vpack.c.b16 %v1414, %v1410
  %v1447 = vpack.c.b16 %v1415, %v1411
  %v1448 = vpack.c.b16 %v1416, %v1412
  %1481 = vmatprep.subr.bf16.mxu0 0
  %1482 = vmatpush1.bf16.msra.mxu0 %v865
  %1483 = vmatprep.subr.bf16.mxu0 0
  %1484 = vmatpush1.bf16.msra.mxu0 %v864
  %1485 = vmatprep.subr.bf16.mxu0 0
  %1486 = vmatpush1.bf16.msra.mxu0 %v863
  %1487 = vmatprep.subr.bf16.mxu0 0
  %1488 = vmatpush1.bf16.msra.mxu0 %v862
  %1489 = vmatprep.subr.bf16.mxu0 0
  %1490 = vmatpush1.bf16.msra.mxu0 %v861
  %1491 = vmatprep.subr.bf16.mxu0 0
  %1492 = vmatpush1.bf16.msra.mxu0 %v860
  %1493 = vmatprep.subr.bf16.mxu0 0
  %1494 = vmatpush1.bf16.msra.mxu0 %v859
  %1495 = vmatprep.subr.bf16.mxu0 0
  %1496 = vmatpush1.bf16.msra.mxu0 %v858
  %1497 = vmatprep.subr.bf16.mxu0 0
  %1498 = vmatpush2.bf16.msra.mxu0 %v873
  %1499 = vmatprep.subr.bf16.mxu0 0
  %1500 = vmatpush2.bf16.msra.mxu0 %v872
  %1501 = vmatprep.subr.bf16.mxu0 0
  %1502 = vmatpush2.bf16.msra.mxu0 %v871
  %1503 = vmatprep.subr.bf16.mxu0 0
  %1504 = vmatpush2.bf16.msra.mxu0 %v870
  %1505 = vmatprep.subr.bf16.mxu0 0
  %1506 = vmatpush2.bf16.msra.mxu0 %v869
  %1507 = vmatprep.subr.bf16.mxu0 0
  %1508 = vmatpush2.bf16.msra.mxu0 %v868
  %1509 = vmatprep.subr.bf16.mxu0 0
  %1510 = vmatpush2.bf16.msra.mxu0 %v867
  %1511 = vmatprep.subr.bf16.mxu0 0
  %1512 = vmatpush2.bf16.msra.mxu0 %v866
  %1513 = vmatprep.mubr.bf16.mxu0 %v1418
  %1514 = vmatmul.mubr.bf16.gmra.mxu0 %v1417
  %v1515 = vpop.f32.mrf.mxu0
  %v1516 = vadd.f32 0.0, %v1515
  %v1517 = vpop.f32.mrf.mxu0
  %v1518 = vpop.f32.mrf.mxu0
  %v1519 = vadd.f32 0.0, %v1518
  %v1520 = vpop.f32.mrf.mxu0
  %1521 = vmatprep.mubr.bf16.mxu0 %v1422
  %1522 = vmatmul.mubr.bf16.gmra.mxu0 %v1421
  %v1523 = vpop.f32.mrf.mxu0
  %v1524 = vadd.f32 0.0, %v1523
  %v1525 = vpop.f32.mrf.mxu0
  %v1526 = vpop.f32.mrf.mxu0
  %v1527 = vadd.f32 0.0, %v1526
  %v1528 = vpop.f32.mrf.mxu0
  %1529 = vmatprep.mubr.bf16.mxu0 %v1426
  %1530 = vmatmul.mubr.bf16.gmra.mxu0 %v1425
  %v1531 = vpop.f32.mrf.mxu0
  %v1532 = vadd.f32 0.0, %v1531
  %v1533 = vpop.f32.mrf.mxu0
  %v1534 = vpop.f32.mrf.mxu0
  %v1535 = vadd.f32 0.0, %v1534
  %v1536 = vpop.f32.mrf.mxu0
  %1537 = vmatprep.mubr.bf16.mxu0 %v1430
  %1538 = vmatmul.mubr.bf16.gmra.mxu0 %v1429
  %v1539 = vpop.f32.mrf.mxu0
  %v1540 = vadd.f32 0.0, %v1539
  %v1541 = vpop.f32.mrf.mxu0
  %v1542 = vpop.f32.mrf.mxu0
  %v1543 = vadd.f32 0.0, %v1542
  %v1544 = vpop.f32.mrf.mxu0
  %1545 = vmatprep.mubr.bf16.mxu0 %v1434
  %1546 = vmatmul.mubr.bf16.gmra.mxu0 %v1433
  %v1547 = vpop.f32.mrf.mxu0
  %v1548 = vadd.f32 0.0, %v1547
  %v1549 = vpop.f32.mrf.mxu0
  %v1550 = vpop.f32.mrf.mxu0
  %v1551 = vadd.f32 0.0, %v1550
  %v1552 = vpop.f32.mrf.mxu0
  %1553 = vmatprep.mubr.bf16.mxu0 %v1438
  %1554 = vmatmul.mubr.bf16.gmra.mxu0 %v1437
  %v1555 = vpop.f32.mrf.mxu0
  %v1556 = vadd.f32 0.0, %v1555
  %v1557 = vpop.f32.mrf.mxu0
  %v1558 = vpop.f32.mrf.mxu0
  %v1559 = vadd.f32 0.0, %v1558
  %v1560 = vpop.f32.mrf.mxu0
  %1561 = vmatprep.mubr.bf16.mxu0 %v1442
  %1562 = vmatmul.mubr.bf16.gmra.mxu0 %v1441
  %v1563 = vpop.f32.mrf.mxu0
  %v1564 = vadd.f32 0.0, %v1563
  %v1565 = vpop.f32.mrf.mxu0
  %v1566 = vpop.f32.mrf.mxu0
  %v1567 = vadd.f32 0.0, %v1566
  %v1568 = vpop.f32.mrf.mxu0
  %1569 = vmatprep.mubr.bf16.mxu0 %v1446
  %1570 = vmatmul.mubr.bf16.gmra.mxu0 %v1445
  %v1571 = vpop.f32.mrf.mxu0
  %v1572 = vadd.f32 0.0, %v1571
  %v1573 = vpop.f32.mrf.mxu0
  %v1574 = vpop.f32.mrf.mxu0
  %v1575 = vadd.f32 0.0, %v1574
  %v1576 = vpop.f32.mrf.mxu0
  %1577 = vdwg.mxu0
  %1578 = vmatprep.subr.bf16.mxu0 0
  %1579 = vmatpush1.bf16.msra.mxu0 %v881
  %1580 = vmatprep.subr.bf16.mxu0 0
  %1581 = vmatpush1.bf16.msra.mxu0 %v880
  %1582 = vmatprep.subr.bf16.mxu0 0
  %1583 = vmatpush1.bf16.msra.mxu0 %v879
  %1584 = vmatprep.subr.bf16.mxu0 0
  %1585 = vmatpush1.bf16.msra.mxu0 %v878
  %1586 = vmatprep.subr.bf16.mxu0 0
  %1587 = vmatpush1.bf16.msra.mxu0 %v877
  %1588 = vmatprep.subr.bf16.mxu0 0
  %1589 = vmatpush1.bf16.msra.mxu0 %v876
  %1590 = vmatprep.subr.bf16.mxu0 0
  %1591 = vmatpush1.bf16.msra.mxu0 %v875
  %1592 = vmatprep.subr.bf16.mxu0 0
  %1593 = vmatpush1.bf16.msra.mxu0 %v874
  %1594 = vmatprep.subr.bf16.mxu0 0
  %1595 = vmatpush2.bf16.msra.mxu0 %v889
  %1596 = vmatprep.subr.bf16.mxu0 0
  %1597 = vmatpush2.bf16.msra.mxu0 %v888
  %1598 = vmatprep.subr.bf16.mxu0 0
  %1599 = vmatpush2.bf16.msra.mxu0 %v887
  %1600 = vmatprep.subr.bf16.mxu0 0
  %1601 = vmatpush2.bf16.msra.mxu0 %v886
  %1602 = vmatprep.subr.bf16.mxu0 0
  %1603 = vmatpush2.bf16.msra.mxu0 %v885
  %1604 = vmatprep.subr.bf16.mxu0 0
  %1605 = vmatpush2.bf16.msra.mxu0 %v884
  %1606 = vmatprep.subr.bf16.mxu0 0
  %1607 = vmatpush2.bf16.msra.mxu0 %v883
  %1608 = vmatprep.subr.bf16.mxu0 0
  %1609 = vmatpush2.bf16.msra.mxu0 %v882
  %1610 = vmatprep.mubr.bf16.mxu0 %v1420
  %1611 = vmatmul.mubr.bf16.gmra.mxu0 %v1419
  %v1612 = vpop.f32.mrf.mxu0
  %v1613 = vadd.f32 %v1516, %v1612
  %v1614 = vpop.f32.mrf.mxu0
  %v1615 = vpop.f32.mrf.mxu0
  %v1616 = vadd.f32 %v1519, %v1615
  %v1617 = vpop.f32.mrf.mxu0
  %1618 = vmatprep.mubr.bf16.mxu0 %v1424
  %1619 = vmatmul.mubr.bf16.gmra.mxu0 %v1423
  %v1620 = vpop.f32.mrf.mxu0
  %v1621 = vadd.f32 %v1524, %v1620
  %v1622 = vpop.f32.mrf.mxu0
  %v1623 = vpop.f32.mrf.mxu0
  %v1624 = vadd.f32 %v1527, %v1623
  %v1625 = vpop.f32.mrf.mxu0
  %1626 = vmatprep.mubr.bf16.mxu0 %v1428
  %1627 = vmatmul.mubr.bf16.gmra.mxu0 %v1427
  %v1628 = vpop.f32.mrf.mxu0
  %v1629 = vadd.f32 %v1532, %v1628
  %v1630 = vpop.f32.mrf.mxu0
  %v1631 = vpop.f32.mrf.mxu0
  %v1632 = vadd.f32 %v1535, %v1631
  %v1633 = vpop.f32.mrf.mxu0
  %1634 = vmatprep.mubr.bf16.mxu0 %v1432
  %1635 = vmatmul.mubr.bf16.gmra.mxu0 %v1431
  %v1636 = vpop.f32.mrf.mxu0
  %v1637 = vadd.f32 %v1540, %v1636
  %v1638 = vpop.f32.mrf.mxu0
  %v1639 = vpop.f32.mrf.mxu0
  %v1640 = vadd.f32 %v1543, %v1639
  %v1641 = vpop.f32.mrf.mxu0
  %1642 = vmatprep.mubr.bf16.mxu0 %v1436
  %1643 = vmatmul.mubr.bf16.gmra.mxu0 %v1435
  %v1644 = vpop.f32.mrf.mxu0
  %v1645 = vadd.f32 %v1548, %v1644
  %v1646 = vpop.f32.mrf.mxu0
  %v1647 = vpop.f32.mrf.mxu0
  %v1648 = vadd.f32 %v1551, %v1647
  %v1649 = vpop.f32.mrf.mxu0
  %1650 = vmatprep.mubr.bf16.mxu0 %v1440
  %1651 = vmatmul.mubr.bf16.gmra.mxu0 %v1439
  %v1652 = vpop.f32.mrf.mxu0
  %v1653 = vadd.f32 %v1556, %v1652
  %v1654 = vpop.f32.mrf.mxu0
  %v1655 = vpop.f32.mrf.mxu0
  %v1656 = vadd.f32 %v1559, %v1655
  %v1657 = vpop.f32.mrf.mxu0
  %1658 = vmatprep.mubr.bf16.mxu0 %v1444
  %1659 = vmatmul.mubr.bf16.gmra.mxu0 %v1443
  %v1660 = vpop.f32.mrf.mxu0
  %v1661 = vadd.f32 %v1564, %v1660
  %v1662 = vpop.f32.mrf.mxu0
  %v1663 = vpop.f32.mrf.mxu0
  %v1664 = vadd.f32 %v1567, %v1663
  %v1665 = vpop.f32.mrf.mxu0
  %1666 = vmatprep.mubr.bf16.mxu0 %v1448
  %1667 = vmatmul.mubr.bf16.gmra.mxu0 %v1447
  %v1668 = vpop.f32.mrf.mxu0
  %v1669 = vadd.f32 %v1572, %v1668
  %v1670 = vpop.f32.mrf.mxu0
  %v1671 = vpop.f32.mrf.mxu0
  %v1672 = vadd.f32 %v1575, %v1671
  %v1673 = vpop.f32.mrf.mxu0
  %1674 = vdwg.mxu0
  %v1675 = vpack.c.bf16 %v1616, %v1613
  %v1676 = vpack.c.bf16 %v1624, %v1621
  %v1677 = vpack.c.bf16 %v1632, %v1629
  %v1678 = vpack.c.bf16 %v1640, %v1637
  %v1679 = vpack.c.bf16 %v1648, %v1645
  %v1680 = vpack.c.bf16 %v1656, %v1653
  %v1681 = vpack.c.bf16 %v1664, %v1661
  %v1682 = vpack.c.bf16 %v1672, %v1669
  %s1683 = scalar_lea.vmem %s4, 16
  %v1684 = vld [vmem:[%s1683] sm:$0xf]
  %v1685 = vld [vmem:[%s1683 + $0x4] sm:$0xf]
  %v1686 = vld [vmem:[%s1683 + $0x8] sm:$0xf]
  %v1687 = vld [vmem:[%s1683 + $0xc] sm:$0xf]
  %v1692 = vunpack.c.l.b16 %v1684
  %v1693 = vunpack.c.l.b16 %v1685
  %v1694 = vunpack.c.l.b16 %v1686
  %v1695 = vunpack.c.l.b16 %v1687
  %v1696 = vpack.c.b16 %v1693, %v1692
  %v1697 = vpack.c.b16 %v1695, %v1694
  %vm1700 = vcmask 261120
  %v1702 = vsel %vm1700, %v1675, 0
  %v1705 = vsel %vm1700, %v1676, 0
  %v1708 = vsel %vm1700, %v1677, 0
  %v1711 = vsel %vm1700, %v1678, 0
  %v1714 = vsel %vm1700, %v1679, 0
  %v1717 = vsel %vm1700, %v1680, 0
  %v1720 = vsel %vm1700, %v1681, 0
  %v1723 = vsel %vm1700, %v1682, 0
  %1725 = vmatprep.subr.bf16.mxu0 0
  %1726 = vmatpush1.bf16.msra.mxu0 0
  %1727 = vmatprep.subr.bf16.mxu0 0
  %1728 = vmatpush1.bf16.msra.mxu0 0
  %1729 = vmatprep.subr.bf16.mxu0 0
  %1730 = vmatpush1.bf16.msra.mxu0 0
  %1731 = vmatprep.subr.bf16.mxu0 0
  %1732 = vmatpush1.bf16.msra.mxu0 0
  %1733 = vmatprep.subr.bf16.mxu0 0
  %1734 = vmatpush1.bf16.msra.mxu0 0
  %1735 = vmatprep.subr.bf16.mxu0 0
  %1736 = vmatpush1.bf16.msra.mxu0 0
  %1737 = vmatprep.subr.bf16.mxu0 0
  %1738 = vmatpush1.bf16.msra.mxu0 %v1697
  %1739 = vmatprep.subr.bf16.mxu0 0
  %1740 = vmatpush1.bf16.msra.mxu0 %v1696
  %1741 = vmatprep.subr.bf16.mxu0 0
  %1742 = vmatpush2.bf16.msra.mxu0 0
  %1743 = vmatprep.subr.bf16.mxu0 0
  %1744 = vmatpush2.bf16.msra.mxu0 0
  %1745 = vmatprep.subr.bf16.mxu0 0
  %1746 = vmatpush2.bf16.msra.mxu0 0
  %1747 = vmatprep.subr.bf16.mxu0 0
  %1748 = vmatpush2.bf16.msra.mxu0 0
  %1749 = vmatprep.subr.bf16.mxu0 0
  %1750 = vmatpush2.bf16.msra.mxu0 0
  %1751 = vmatprep.subr.bf16.mxu0 0
  %1752 = vmatpush2.bf16.msra.mxu0 0
  %1753 = vmatprep.subr.bf16.mxu0 0
  %1754 = vmatpush2.bf16.msra.mxu0 0
  %1755 = vmatprep.subr.bf16.mxu0 0
  %1756 = vmatpush2.bf16.msra.mxu0 0
  %1757 = vmatprep.mubr.bf16.mxu0 0
  %1758 = vmatmul.mubr.bf16.gmra.mxu0 %v1702
  %v1759 = vpop.f32.mrf.mxu0
  %v1760 = vadd.f32 0.0, %v1759
  %v1761 = vpop.f32.mrf.mxu0
  %v1762 = vpop.f32.mrf.mxu0
  %v1763 = vadd.f32 0.0, %v1762
  %v1764 = vpop.f32.mrf.mxu0
  %1765 = vmatprep.mubr.bf16.mxu0 0
  %1766 = vmatmul.mubr.bf16.gmra.mxu0 %v1705
  %v1767 = vpop.f32.mrf.mxu0
  %v1768 = vadd.f32 0.0, %v1767
  %v1769 = vpop.f32.mrf.mxu0
  %v1770 = vpop.f32.mrf.mxu0
  %v1771 = vadd.f32 0.0, %v1770
  %v1772 = vpop.f32.mrf.mxu0
  %1773 = vmatprep.mubr.bf16.mxu0 0
  %1774 = vmatmul.mubr.bf16.gmra.mxu0 %v1708
  %v1775 = vpop.f32.mrf.mxu0
  %v1776 = vadd.f32 0.0, %v1775
  %v1777 = vpop.f32.mrf.mxu0
  %v1778 = vpop.f32.mrf.mxu0
  %v1779 = vadd.f32 0.0, %v1778
  %v1780 = vpop.f32.mrf.mxu0
  %1781 = vmatprep.mubr.bf16.mxu0 0
  %1782 = vmatmul.mubr.bf16.gmra.mxu0 %v1711
  %v1783 = vpop.f32.mrf.mxu0
  %v1784 = vadd.f32 0.0, %v1783
  %v1785 = vpop.f32.mrf.mxu0
  %v1786 = vpop.f32.mrf.mxu0
  %v1787 = vadd.f32 0.0, %v1786
  %v1788 = vpop.f32.mrf.mxu0
  %1789 = vmatprep.mubr.bf16.mxu0 0
  %1790 = vmatmul.mubr.bf16.gmra.mxu0 %v1714
  %v1791 = vpop.f32.mrf.mxu0
  %v1792 = vadd.f32 0.0, %v1791
  %v1793 = vpop.f32.mrf.mxu0
  %v1794 = vpop.f32.mrf.mxu0
  %v1795 = vadd.f32 0.0, %v1794
  %v1796 = vpop.f32.mrf.mxu0
  %1797 = vmatprep.mubr.bf16.mxu0 0
  %1798 = vmatmul.mubr.bf16.gmra.mxu0 %v1717
  %v1799 = vpop.f32.mrf.mxu0
  %v1800 = vadd.f32 0.0, %v1799
  %v1801 = vpop.f32.mrf.mxu0
  %v1802 = vpop.f32.mrf.mxu0
  %v1803 = vadd.f32 0.0, %v1802
  %v1804 = vpop.f32.mrf.mxu0
  %1805 = vmatprep.mubr.bf16.mxu0 0
  %1806 = vmatmul.mubr.bf16.gmra.mxu0 %v1720
  %v1807 = vpop.f32.mrf.mxu0
  %v1808 = vadd.f32 0.0, %v1807
  %v1809 = vpop.f32.mrf.mxu0
  %v1810 = vpop.f32.mrf.mxu0
  %v1811 = vadd.f32 0.0, %v1810
  %v1812 = vpop.f32.mrf.mxu0
  %1813 = vmatprep.mubr.bf16.mxu0 0
  %1814 = vmatmul.mubr.bf16.gmra.mxu0 %v1723
  %v1815 = vpop.f32.mrf.mxu0
  %v1816 = vadd.f32 0.0, %v1815
  %v1817 = vpop.f32.mrf.mxu0
  %v1818 = vpop.f32.mrf.mxu0
  %v1819 = vadd.f32 0.0, %v1818
  %v1820 = vpop.f32.mrf.mxu0
  %1821 = vdwg.mxu0
  %v1826 = vunpack.c.l.b16 %v1284
  %v1827 = vunpack.c.l.b16 %v1285
  %v1828 = vunpack.c.l.b16 %v1286
  %v1829 = vunpack.c.l.b16 %v1287
  %v1830 = vpack.c.b16 %v1827, %v1826
  %v1831 = vpack.c.b16 %v1829, %v1828
  %v1835 = vsel %vm1700, %v1276, 0
  %v1838 = vsel %vm1700, %v1277, 0
  %v1841 = vsel %vm1700, %v1278, 0
  %v1844 = vsel %vm1700, %v1279, 0
  %v1847 = vsel %vm1700, %v1280, 0
  %v1850 = vsel %vm1700, %v1281, 0
  %v1853 = vsel %vm1700, %v1282, 0
  %v1856 = vsel %vm1700, %v1283, 0
  %1858 = vmatprep.subr.bf16.mxu0 0
  %1859 = vmatpush1.bf16.msra.mxu0 0
  %1860 = vmatprep.subr.bf16.mxu0 0
  %1861 = vmatpush1.bf16.msra.mxu0 0
  %1862 = vmatprep.subr.bf16.mxu0 0
  %1863 = vmatpush1.bf16.msra.mxu0 0
  %1864 = vmatprep.subr.bf16.mxu0 0
  %1865 = vmatpush1.bf16.msra.mxu0 0
  %1866 = vmatprep.subr.bf16.mxu0 0
  %1867 = vmatpush1.bf16.msra.mxu0 0
  %1868 = vmatprep.subr.bf16.mxu0 0
  %1869 = vmatpush1.bf16.msra.mxu0 0
  %1870 = vmatprep.subr.bf16.mxu0 0
  %1871 = vmatpush1.bf16.msra.mxu0 %v1831
  %1872 = vmatprep.subr.bf16.mxu0 0
  %1873 = vmatpush1.bf16.msra.mxu0 %v1830
  %1874 = vmatprep.subr.bf16.mxu0 0
  %1875 = vmatpush2.bf16.msra.mxu0 0
  %1876 = vmatprep.subr.bf16.mxu0 0
  %1877 = vmatpush2.bf16.msra.mxu0 0
  %1878 = vmatprep.subr.bf16.mxu0 0
  %1879 = vmatpush2.bf16.msra.mxu0 0
  %1880 = vmatprep.subr.bf16.mxu0 0
  %1881 = vmatpush2.bf16.msra.mxu0 0
  %1882 = vmatprep.subr.bf16.mxu0 0
  %1883 = vmatpush2.bf16.msra.mxu0 0
  %1884 = vmatprep.subr.bf16.mxu0 0
  %1885 = vmatpush2.bf16.msra.mxu0 0
  %1886 = vmatprep.subr.bf16.mxu0 0
  %1887 = vmatpush2.bf16.msra.mxu0 0
  %1888 = vmatprep.subr.bf16.mxu0 0
  %1889 = vmatpush2.bf16.msra.mxu0 0
  %1890 = vmatprep.mubr.bf16.mxu0 0
  %1891 = vmatmul.mubr.bf16.gmra.mxu0 %v1835
  %v1892 = vpop.f32.mrf.mxu0
  %v1893 = vadd.f32 %v1760, %v1892
  %v1894 = vpop.f32.mrf.mxu0
  %v1895 = vpop.f32.mrf.mxu0
  %v1896 = vadd.f32 %v1763, %v1895
  %v1897 = vpop.f32.mrf.mxu0
  %1898 = vmatprep.mubr.bf16.mxu0 0
  %1899 = vmatmul.mubr.bf16.gmra.mxu0 %v1838
  %v1900 = vpop.f32.mrf.mxu0
  %v1901 = vadd.f32 %v1768, %v1900
  %v1902 = vpop.f32.mrf.mxu0
  %v1903 = vpop.f32.mrf.mxu0
  %v1904 = vadd.f32 %v1771, %v1903
  %v1905 = vpop.f32.mrf.mxu0
  %1906 = vmatprep.mubr.bf16.mxu0 0
  %1907 = vmatmul.mubr.bf16.gmra.mxu0 %v1841
  %v1908 = vpop.f32.mrf.mxu0
  %v1909 = vadd.f32 %v1776, %v1908
  %v1910 = vpop.f32.mrf.mxu0
  %v1911 = vpop.f32.mrf.mxu0
  %v1912 = vadd.f32 %v1779, %v1911
  %v1913 = vpop.f32.mrf.mxu0
  %1914 = vmatprep.mubr.bf16.mxu0 0
  %1915 = vmatmul.mubr.bf16.gmra.mxu0 %v1844
  %v1916 = vpop.f32.mrf.mxu0
  %v1917 = vadd.f32 %v1784, %v1916
  %v1918 = vpop.f32.mrf.mxu0
  %v1919 = vpop.f32.mrf.mxu0
  %v1920 = vadd.f32 %v1787, %v1919
  %v1921 = vpop.f32.mrf.mxu0
  %1922 = vmatprep.mubr.bf16.mxu0 0
  %1923 = vmatmul.mubr.bf16.gmra.mxu0 %v1847
  %v1924 = vpop.f32.mrf.mxu0
  %v1925 = vadd.f32 %v1792, %v1924
  %v1926 = vpop.f32.mrf.mxu0
  %v1927 = vpop.f32.mrf.mxu0
  %v1928 = vadd.f32 %v1795, %v1927
  %v1929 = vpop.f32.mrf.mxu0
  %1930 = vmatprep.mubr.bf16.mxu0 0
  %1931 = vmatmul.mubr.bf16.gmra.mxu0 %v1850
  %v1932 = vpop.f32.mrf.mxu0
  %v1933 = vadd.f32 %v1800, %v1932
  %v1934 = vpop.f32.mrf.mxu0
  %v1935 = vpop.f32.mrf.mxu0
  %v1936 = vadd.f32 %v1803, %v1935
  %v1937 = vpop.f32.mrf.mxu0
  %1938 = vmatprep.mubr.bf16.mxu0 0
  %1939 = vmatmul.mubr.bf16.gmra.mxu0 %v1853
  %v1940 = vpop.f32.mrf.mxu0
  %v1941 = vadd.f32 %v1808, %v1940
  %v1942 = vpop.f32.mrf.mxu0
  %v1943 = vpop.f32.mrf.mxu0
  %v1944 = vadd.f32 %v1811, %v1943
  %v1945 = vpop.f32.mrf.mxu0
  %1946 = vmatprep.mubr.bf16.mxu0 0
  %1947 = vmatmul.mubr.bf16.gmra.mxu0 %v1856
  %v1948 = vpop.f32.mrf.mxu0
  %v1949 = vadd.f32 %v1816, %v1948
  %v1950 = vpop.f32.mrf.mxu0
  %v1951 = vpop.f32.mrf.mxu0
  %v1952 = vadd.f32 %v1819, %v1951
  %v1953 = vpop.f32.mrf.mxu0
  %1954 = vdwg.mxu0
  %s1955 = scalar_lea.vmem %s3, 512
  %v1956 = vld [vmem:[%s1955] sm:$0xff]
  %v1957 = vld [vmem:[%s1955 + $0x8] sm:$0xff]
  %v1958 = vld [vmem:[%s1955 + $0x10] sm:$0xff]
  %v1959 = vld [vmem:[%s1955 + $0x18] sm:$0xff]
  %v1960 = vld [vmem:[%s1955 + $0x20] sm:$0xff]
  %v1961 = vld [vmem:[%s1955 + $0x28] sm:$0xff]
  %v1962 = vld [vmem:[%s1955 + $0x30] sm:$0xff]
  %v1963 = vld [vmem:[%s1955 + $0x38] sm:$0xff]
  %v1964 = vld [vmem:[%s1955 + $0x40] sm:$0xff]
  %v1965 = vld [vmem:[%s1955 + $0x48] sm:$0xff]
  %v1966 = vld [vmem:[%s1955 + $0x50] sm:$0xff]
  %v1967 = vld [vmem:[%s1955 + $0x58] sm:$0xff]
  %v1968 = vld [vmem:[%s1955 + $0x60] sm:$0xff]
  %v1969 = vld [vmem:[%s1955 + $0x68] sm:$0xff]
  %v1970 = vld [vmem:[%s1955 + $0x70] sm:$0xff]
  %v1971 = vld [vmem:[%s1955 + $0x78] sm:$0xff]
  %v1972 = vld [vmem:[%s1955 + $0x80] sm:$0xff]
  %v1973 = vld [vmem:[%s1955 + $0x88] sm:$0xff]
  %v1974 = vld [vmem:[%s1955 + $0x90] sm:$0xff]
  %v1975 = vld [vmem:[%s1955 + $0x98] sm:$0xff]
  %v1976 = vld [vmem:[%s1955 + $0xa0] sm:$0xff]
  %v1977 = vld [vmem:[%s1955 + $0xa8] sm:$0xff]
  %v1978 = vld [vmem:[%s1955 + $0xb0] sm:$0xff]
  %v1979 = vld [vmem:[%s1955 + $0xb8] sm:$0xff]
  %v1980 = vld [vmem:[%s1955 + $0xc0] sm:$0xff]
  %v1981 = vld [vmem:[%s1955 + $0xc8] sm:$0xff]
  %v1982 = vld [vmem:[%s1955 + $0xd0] sm:$0xff]
  %v1983 = vld [vmem:[%s1955 + $0xd8] sm:$0xff]
  %v1984 = vld [vmem:[%s1955 + $0xe0] sm:$0xff]
  %v1985 = vld [vmem:[%s1955 + $0xe8] sm:$0xff]
  %v1986 = vld [vmem:[%s1955 + $0xf0] sm:$0xff]
  %v1987 = vld [vmem:[%s1955 + $0xf8] sm:$0xff]
  %v2020 = vunpack.c.l.b16 %v1956
  %v2021 = vunpack.c.h.b16 %v1956
  %v2022 = vunpack.c.l.b16 %v1957
  %v2023 = vunpack.c.h.b16 %v1957
  %v2024 = vunpack.c.l.b16 %v1958
  %v2025 = vunpack.c.h.b16 %v1958
  %v2026 = vunpack.c.l.b16 %v1959
  %v2027 = vunpack.c.h.b16 %v1959
  %v2028 = vunpack.c.l.b16 %v1960
  %v2029 = vunpack.c.h.b16 %v1960
  %v2030 = vunpack.c.l.b16 %v1961
  %v2031 = vunpack.c.h.b16 %v1961
  %v2032 = vunpack.c.l.b16 %v1962
  %v2033 = vunpack.c.h.b16 %v1962
  %v2034 = vunpack.c.l.b16 %v1963
  %v2035 = vunpack.c.h.b16 %v1963
  %v2036 = vunpack.c.l.b16 %v1964
  %v2037 = vunpack.c.h.b16 %v1964
  %v2038 = vunpack.c.l.b16 %v1965
  %v2039 = vunpack.c.h.b16 %v1965
  %v2040 = vunpack.c.l.b16 %v1966
  %v2041 = vunpack.c.h.b16 %v1966
  %v2042 = vunpack.c.l.b16 %v1967
  %v2043 = vunpack.c.h.b16 %v1967
  %v2044 = vunpack.c.l.b16 %v1968
  %v2045 = vunpack.c.h.b16 %v1968
  %v2046 = vunpack.c.l.b16 %v1969
  %v2047 = vunpack.c.h.b16 %v1969
  %v2048 = vunpack.c.l.b16 %v1970
  %v2049 = vunpack.c.h.b16 %v1970
  %v2050 = vunpack.c.l.b16 %v1971
  %v2051 = vunpack.c.h.b16 %v1971
  %v2052 = vunpack.c.l.b16 %v1972
  %v2053 = vunpack.c.h.b16 %v1972
  %v2054 = vunpack.c.l.b16 %v1973
  %v2055 = vunpack.c.h.b16 %v1973
  %v2056 = vunpack.c.l.b16 %v1974
  %v2057 = vunpack.c.h.b16 %v1974
  %v2058 = vunpack.c.l.b16 %v1975
  %v2059 = vunpack.c.h.b16 %v1975
  %v2060 = vunpack.c.l.b16 %v1976
  %v2061 = vunpack.c.h.b16 %v1976
  %v2062 = vunpack.c.l.b16 %v1977
  %v2063 = vunpack.c.h.b16 %v1977
  %v2064 = vunpack.c.l.b16 %v1978
  %v2065 = vunpack.c.h.b16 %v1978
  %v2066 = vunpack.c.l.b16 %v1979
  %v2067 = vunpack.c.h.b16 %v1979
  %v2068 = vunpack.c.l.b16 %v1980
  %v2069 = vunpack.c.h.b16 %v1980
  %v2070 = vunpack.c.l.b16 %v1981
  %v2071 = vunpack.c.h.b16 %v1981
  %v2072 = vunpack.c.l.b16 %v1982
  %v2073 = vunpack.c.h.b16 %v1982
  %v2074 = vunpack.c.l.b16 %v1983
  %v2075 = vunpack.c.h.b16 %v1983
  %v2076 = vunpack.c.l.b16 %v1984
  %v2077 = vunpack.c.h.b16 %v1984
  %v2078 = vunpack.c.l.b16 %v1985
  %v2079 = vunpack.c.h.b16 %v1985
  %v2080 = vunpack.c.l.b16 %v1986
  %v2081 = vunpack.c.h.b16 %v1986
  %v2082 = vunpack.c.l.b16 %v1987
  %v2083 = vunpack.c.h.b16 %v1987
  %v2084 = vpack.c.b16 %v2024, %v2020
  %v2085 = vpack.c.b16 %v2025, %v2021
  %v2086 = vpack.c.b16 %v2026, %v2022
  %v2087 = vpack.c.b16 %v2027, %v2023
  %v2088 = vpack.c.b16 %v2032, %v2028
  %v2089 = vpack.c.b16 %v2033, %v2029
  %v2090 = vpack.c.b16 %v2034, %v2030
  %v2091 = vpack.c.b16 %v2035, %v2031
  %v2092 = vpack.c.b16 %v2040, %v2036
  %v2093 = vpack.c.b16 %v2041, %v2037
  %v2094 = vpack.c.b16 %v2042, %v2038
  %v2095 = vpack.c.b16 %v2043, %v2039
  %v2096 = vpack.c.b16 %v2048, %v2044
  %v2097 = vpack.c.b16 %v2049, %v2045
  %v2098 = vpack.c.b16 %v2050, %v2046
  %v2099 = vpack.c.b16 %v2051, %v2047
  %v2100 = vpack.c.b16 %v2056, %v2052
  %v2101 = vpack.c.b16 %v2057, %v2053
  %v2102 = vpack.c.b16 %v2058, %v2054
  %v2103 = vpack.c.b16 %v2059, %v2055
  %v2104 = vpack.c.b16 %v2064, %v2060
  %v2105 = vpack.c.b16 %v2065, %v2061
  %v2106 = vpack.c.b16 %v2066, %v2062
  %v2107 = vpack.c.b16 %v2067, %v2063
  %v2108 = vpack.c.b16 %v2072, %v2068
  %v2109 = vpack.c.b16 %v2073, %v2069
  %v2110 = vpack.c.b16 %v2074, %v2070
  %v2111 = vpack.c.b16 %v2075, %v2071
  %v2112 = vpack.c.b16 %v2080, %v2076
  %v2113 = vpack.c.b16 %v2081, %v2077
  %v2114 = vpack.c.b16 %v2082, %v2078
  %v2115 = vpack.c.b16 %v2083, %v2079
  %2148 = vmatprep.subr.bf16.mxu0 0
  %2149 = vmatpush1.bf16.msra.mxu0 %v865
  %2150 = vmatprep.subr.bf16.mxu0 0
  %2151 = vmatpush1.bf16.msra.mxu0 %v864
  %2152 = vmatprep.subr.bf16.mxu0 0
  %2153 = vmatpush1.bf16.msra.mxu0 %v863
  %2154 = vmatprep.subr.bf16.mxu0 0
  %2155 = vmatpush1.bf16.msra.mxu0 %v862
  %2156 = vmatprep.subr.bf16.mxu0 0
  %2157 = vmatpush1.bf16.msra.mxu0 %v861
  %2158 = vmatprep.subr.bf16.mxu0 0
  %2159 = vmatpush1.bf16.msra.mxu0 %v860
  %2160 = vmatprep.subr.bf16.mxu0 0
  %2161 = vmatpush1.bf16.msra.mxu0 %v859
  %2162 = vmatprep.subr.bf16.mxu0 0
  %2163 = vmatpush1.bf16.msra.mxu0 %v858
  %2164 = vmatprep.subr.bf16.mxu0 0
  %2165 = vmatpush2.bf16.msra.mxu0 %v873
  %2166 = vmatprep.subr.bf16.mxu0 0
  %2167 = vmatpush2.bf16.msra.mxu0 %v872
  %2168 = vmatprep.subr.bf16.mxu0 0
  %2169 = vmatpush2.bf16.msra.mxu0 %v871
  %2170 = vmatprep.subr.bf16.mxu0 0
  %2171 = vmatpush2.bf16.msra.mxu0 %v870
  %2172 = vmatprep.subr.bf16.mxu0 0
  %2173 = vmatpush2.bf16.msra.mxu0 %v869
  %2174 = vmatprep.subr.bf16.mxu0 0
  %2175 = vmatpush2.bf16.msra.mxu0 %v868
  %2176 = vmatprep.subr.bf16.mxu0 0
  %2177 = vmatpush2.bf16.msra.mxu0 %v867
  %2178 = vmatprep.subr.bf16.mxu0 0
  %2179 = vmatpush2.bf16.msra.mxu0 %v866
  %2180 = vmatprep.mubr.bf16.mxu0 %v2085
  %2181 = vmatmul.mubr.bf16.gmra.mxu0 %v2084
  %v2182 = vpop.f32.mrf.mxu0
  %v2183 = vadd.f32 0.0, %v2182
  %v2184 = vpop.f32.mrf.mxu0
  %v2185 = vpop.f32.mrf.mxu0
  %v2186 = vadd.f32 0.0, %v2185
  %v2187 = vpop.f32.mrf.mxu0
  %2188 = vmatprep.mubr.bf16.mxu0 %v2089
  %2189 = vmatmul.mubr.bf16.gmra.mxu0 %v2088
  %v2190 = vpop.f32.mrf.mxu0
  %v2191 = vadd.f32 0.0, %v2190
  %v2192 = vpop.f32.mrf.mxu0
  %v2193 = vpop.f32.mrf.mxu0
  %v2194 = vadd.f32 0.0, %v2193
  %v2195 = vpop.f32.mrf.mxu0
  %2196 = vmatprep.mubr.bf16.mxu0 %v2093
  %2197 = vmatmul.mubr.bf16.gmra.mxu0 %v2092
  %v2198 = vpop.f32.mrf.mxu0
  %v2199 = vadd.f32 0.0, %v2198
  %v2200 = vpop.f32.mrf.mxu0
  %v2201 = vpop.f32.mrf.mxu0
  %v2202 = vadd.f32 0.0, %v2201
  %v2203 = vpop.f32.mrf.mxu0
  %2204 = vmatprep.mubr.bf16.mxu0 %v2097
  %2205 = vmatmul.mubr.bf16.gmra.mxu0 %v2096
  %v2206 = vpop.f32.mrf.mxu0
  %v2207 = vadd.f32 0.0, %v2206
  %v2208 = vpop.f32.mrf.mxu0
  %v2209 = vpop.f32.mrf.mxu0
  %v2210 = vadd.f32 0.0, %v2209
  %v2211 = vpop.f32.mrf.mxu0
  %2212 = vmatprep.mubr.bf16.mxu0 %v2101
  %2213 = vmatmul.mubr.bf16.gmra.mxu0 %v2100
  %v2214 = vpop.f32.mrf.mxu0
  %v2215 = vadd.f32 0.0, %v2214
  %v2216 = vpop.f32.mrf.mxu0
  %v2217 = vpop.f32.mrf.mxu0
  %v2218 = vadd.f32 0.0, %v2217
  %v2219 = vpop.f32.mrf.mxu0
  %2220 = vmatprep.mubr.bf16.mxu0 %v2105
  %2221 = vmatmul.mubr.bf16.gmra.mxu0 %v2104
  %v2222 = vpop.f32.mrf.mxu0
  %v2223 = vadd.f32 0.0, %v2222
  %v2224 = vpop.f32.mrf.mxu0
  %v2225 = vpop.f32.mrf.mxu0
  %v2226 = vadd.f32 0.0, %v2225
  %v2227 = vpop.f32.mrf.mxu0
  %2228 = vmatprep.mubr.bf16.mxu0 %v2109
  %2229 = vmatmul.mubr.bf16.gmra.mxu0 %v2108
  %v2230 = vpop.f32.mrf.mxu0
  %v2231 = vadd.f32 0.0, %v2230
  %v2232 = vpop.f32.mrf.mxu0
  %v2233 = vpop.f32.mrf.mxu0
  %v2234 = vadd.f32 0.0, %v2233
  %v2235 = vpop.f32.mrf.mxu0
  %2236 = vmatprep.mubr.bf16.mxu0 %v2113
  %2237 = vmatmul.mubr.bf16.gmra.mxu0 %v2112
  %v2238 = vpop.f32.mrf.mxu0
  %v2239 = vadd.f32 0.0, %v2238
  %v2240 = vpop.f32.mrf.mxu0
  %v2241 = vpop.f32.mrf.mxu0
  %v2242 = vadd.f32 0.0, %v2241
  %v2243 = vpop.f32.mrf.mxu0
  %2244 = vdwg.mxu0
  %2245 = vmatprep.subr.bf16.mxu0 0
  %2246 = vmatpush1.bf16.msra.mxu0 %v881
  %2247 = vmatprep.subr.bf16.mxu0 0
  %2248 = vmatpush1.bf16.msra.mxu0 %v880
  %2249 = vmatprep.subr.bf16.mxu0 0
  %2250 = vmatpush1.bf16.msra.mxu0 %v879
  %2251 = vmatprep.subr.bf16.mxu0 0
  %2252 = vmatpush1.bf16.msra.mxu0 %v878
  %2253 = vmatprep.subr.bf16.mxu0 0
  %2254 = vmatpush1.bf16.msra.mxu0 %v877
  %2255 = vmatprep.subr.bf16.mxu0 0
  %2256 = vmatpush1.bf16.msra.mxu0 %v876
  %2257 = vmatprep.subr.bf16.mxu0 0
  %2258 = vmatpush1.bf16.msra.mxu0 %v875
  %2259 = vmatprep.subr.bf16.mxu0 0
  %2260 = vmatpush1.bf16.msra.mxu0 %v874
  %2261 = vmatprep.subr.bf16.mxu0 0
  %2262 = vmatpush2.bf16.msra.mxu0 %v889
  %2263 = vmatprep.subr.bf16.mxu0 0
  %2264 = vmatpush2.bf16.msra.mxu0 %v888
  %2265 = vmatprep.subr.bf16.mxu0 0
  %2266 = vmatpush2.bf16.msra.mxu0 %v887
  %2267 = vmatprep.subr.bf16.mxu0 0
  %2268 = vmatpush2.bf16.msra.mxu0 %v886
  %2269 = vmatprep.subr.bf16.mxu0 0
  %2270 = vmatpush2.bf16.msra.mxu0 %v885
  %2271 = vmatprep.subr.bf16.mxu0 0
  %2272 = vmatpush2.bf16.msra.mxu0 %v884
  %2273 = vmatprep.subr.bf16.mxu0 0
  %2274 = vmatpush2.bf16.msra.mxu0 %v883
  %2275 = vmatprep.subr.bf16.mxu0 0
  %2276 = vmatpush2.bf16.msra.mxu0 %v882
  %2277 = vmatprep.mubr.bf16.mxu0 %v2087
  %2278 = vmatmul.mubr.bf16.gmra.mxu0 %v2086
  %v2279 = vpop.f32.mrf.mxu0
  %v2280 = vadd.f32 %v2183, %v2279
  %v2281 = vpop.f32.mrf.mxu0
  %v2282 = vpop.f32.mrf.mxu0
  %v2283 = vadd.f32 %v2186, %v2282
  %v2284 = vpop.f32.mrf.mxu0
  %2285 = vmatprep.mubr.bf16.mxu0 %v2091
  %2286 = vmatmul.mubr.bf16.gmra.mxu0 %v2090
  %v2287 = vpop.f32.mrf.mxu0
  %v2288 = vadd.f32 %v2191, %v2287
  %v2289 = vpop.f32.mrf.mxu0
  %v2290 = vpop.f32.mrf.mxu0
  %v2291 = vadd.f32 %v2194, %v2290
  %v2292 = vpop.f32.mrf.mxu0
  %2293 = vmatprep.mubr.bf16.mxu0 %v2095
  %2294 = vmatmul.mubr.bf16.gmra.mxu0 %v2094
  %v2295 = vpop.f32.mrf.mxu0
  %v2296 = vadd.f32 %v2199, %v2295
  %v2297 = vpop.f32.mrf.mxu0
  %v2298 = vpop.f32.mrf.mxu0
  %v2299 = vadd.f32 %v2202, %v2298
  %v2300 = vpop.f32.mrf.mxu0
  %2301 = vmatprep.mubr.bf16.mxu0 %v2099
  %2302 = vmatmul.mubr.bf16.gmra.mxu0 %v2098
  %v2303 = vpop.f32.mrf.mxu0
  %v2304 = vadd.f32 %v2207, %v2303
  %v2305 = vpop.f32.mrf.mxu0
  %v2306 = vpop.f32.mrf.mxu0
  %v2307 = vadd.f32 %v2210, %v2306
  %v2308 = vpop.f32.mrf.mxu0
  %2309 = vmatprep.mubr.bf16.mxu0 %v2103
  %2310 = vmatmul.mubr.bf16.gmra.mxu0 %v2102
  %v2311 = vpop.f32.mrf.mxu0
  %v2312 = vadd.f32 %v2215, %v2311
  %v2313 = vpop.f32.mrf.mxu0
  %v2314 = vpop.f32.mrf.mxu0
  %v2315 = vadd.f32 %v2218, %v2314
  %v2316 = vpop.f32.mrf.mxu0
  %2317 = vmatprep.mubr.bf16.mxu0 %v2107
  %2318 = vmatmul.mubr.bf16.gmra.mxu0 %v2106
  %v2319 = vpop.f32.mrf.mxu0
  %v2320 = vadd.f32 %v2223, %v2319
  %v2321 = vpop.f32.mrf.mxu0
  %v2322 = vpop.f32.mrf.mxu0
  %v2323 = vadd.f32 %v2226, %v2322
  %v2324 = vpop.f32.mrf.mxu0
  %2325 = vmatprep.mubr.bf16.mxu0 %v2111
  %2326 = vmatmul.mubr.bf16.gmra.mxu0 %v2110
  %v2327 = vpop.f32.mrf.mxu0
  %v2328 = vadd.f32 %v2231, %v2327
  %v2329 = vpop.f32.mrf.mxu0
  %v2330 = vpop.f32.mrf.mxu0
  %v2331 = vadd.f32 %v2234, %v2330
  %v2332 = vpop.f32.mrf.mxu0
  %2333 = vmatprep.mubr.bf16.mxu0 %v2115
  %2334 = vmatmul.mubr.bf16.gmra.mxu0 %v2114
  %v2335 = vpop.f32.mrf.mxu0
  %v2336 = vadd.f32 %v2239, %v2335
  %v2337 = vpop.f32.mrf.mxu0
  %v2338 = vpop.f32.mrf.mxu0
  %v2339 = vadd.f32 %v2242, %v2338
  %v2340 = vpop.f32.mrf.mxu0
  %2341 = vdwg.mxu0
  %v2342 = vpack.c.bf16 %v2283, %v2280
  %v2343 = vpack.c.bf16 %v2291, %v2288
  %v2344 = vpack.c.bf16 %v2299, %v2296
  %v2345 = vpack.c.bf16 %v2307, %v2304
  %v2346 = vpack.c.bf16 %v2315, %v2312
  %v2347 = vpack.c.bf16 %v2323, %v2320
  %v2348 = vpack.c.bf16 %v2331, %v2328
  %v2349 = vpack.c.bf16 %v2339, %v2336
  %s2350 = scalar_lea.vmem %s4, 32
  %v2351 = vld [vmem:[%s2350] sm:$0xf]
  %v2352 = vld [vmem:[%s2350 + $0x4] sm:$0xf]
  %v2353 = vld [vmem:[%s2350 + $0x8] sm:$0xf]
  %v2354 = vld [vmem:[%s2350 + $0xc] sm:$0xf]
  %v2359 = vunpack.c.l.b16 %v2351
  %v2360 = vunpack.c.l.b16 %v2352
  %v2361 = vunpack.c.l.b16 %v2353
  %v2362 = vunpack.c.l.b16 %v2354
  %v2363 = vpack.c.b16 %v2360, %v2359
  %v2364 = vpack.c.b16 %v2362, %v2361
  %v2368 = vsel %vm1700, %v2342, 0
  %v2371 = vsel %vm1700, %v2343, 0
  %v2374 = vsel %vm1700, %v2344, 0
  %v2377 = vsel %vm1700, %v2345, 0
  %v2380 = vsel %vm1700, %v2346, 0
  %v2383 = vsel %vm1700, %v2347, 0
  %v2386 = vsel %vm1700, %v2348, 0
  %v2389 = vsel %vm1700, %v2349, 0
  %2391 = vmatprep.subr.bf16.mxu0 0
  %2392 = vmatpush1.bf16.msra.mxu0 0
  %2393 = vmatprep.subr.bf16.mxu0 0
  %2394 = vmatpush1.bf16.msra.mxu0 0
  %2395 = vmatprep.subr.bf16.mxu0 0
  %2396 = vmatpush1.bf16.msra.mxu0 0
  %2397 = vmatprep.subr.bf16.mxu0 0
  %2398 = vmatpush1.bf16.msra.mxu0 0
  %2399 = vmatprep.subr.bf16.mxu0 0
  %2400 = vmatpush1.bf16.msra.mxu0 0
  %2401 = vmatprep.subr.bf16.mxu0 0
  %2402 = vmatpush1.bf16.msra.mxu0 0
  %2403 = vmatprep.subr.bf16.mxu0 0
  %2404 = vmatpush1.bf16.msra.mxu0 %v2364
  %2405 = vmatprep.subr.bf16.mxu0 0
  %2406 = vmatpush1.bf16.msra.mxu0 %v2363
  %2407 = vmatprep.subr.bf16.mxu0 0
  %2408 = vmatpush2.bf16.msra.mxu0 0
  %2409 = vmatprep.subr.bf16.mxu0 0
  %2410 = vmatpush2.bf16.msra.mxu0 0
  %2411 = vmatprep.subr.bf16.mxu0 0
  %2412 = vmatpush2.bf16.msra.mxu0 0
  %2413 = vmatprep.subr.bf16.mxu0 0
  %2414 = vmatpush2.bf16.msra.mxu0 0
  %2415 = vmatprep.subr.bf16.mxu0 0
  %2416 = vmatpush2.bf16.msra.mxu0 0
  %2417 = vmatprep.subr.bf16.mxu0 0
  %2418 = vmatpush2.bf16.msra.mxu0 0
  %2419 = vmatprep.subr.bf16.mxu0 0
  %2420 = vmatpush2.bf16.msra.mxu0 0
  %2421 = vmatprep.subr.bf16.mxu0 0
  %2422 = vmatpush2.bf16.msra.mxu0 0
  %2423 = vmatprep.mubr.bf16.mxu0 0
  %2424 = vmatmul.mubr.bf16.gmra.mxu0 %v2368
  %v2425 = vpop.f32.mrf.mxu0
  %v2426 = vadd.f32 0.0, %v2425
  %v2427 = vpop.f32.mrf.mxu0
  %v2428 = vpop.f32.mrf.mxu0
  %v2429 = vadd.f32 0.0, %v2428
  %v2430 = vpop.f32.mrf.mxu0
  %2431 = vmatprep.mubr.bf16.mxu0 0
  %2432 = vmatmul.mubr.bf16.gmra.mxu0 %v2371
  %v2433 = vpop.f32.mrf.mxu0
  %v2434 = vadd.f32 0.0, %v2433
  %v2435 = vpop.f32.mrf.mxu0
  %v2436 = vpop.f32.mrf.mxu0
  %v2437 = vadd.f32 0.0, %v2436
  %v2438 = vpop.f32.mrf.mxu0
  %2439 = vmatprep.mubr.bf16.mxu0 0
  %2440 = vmatmul.mubr.bf16.gmra.mxu0 %v2374
  %v2441 = vpop.f32.mrf.mxu0
  %v2442 = vadd.f32 0.0, %v2441
  %v2443 = vpop.f32.mrf.mxu0
  %v2444 = vpop.f32.mrf.mxu0
  %v2445 = vadd.f32 0.0, %v2444
  %v2446 = vpop.f32.mrf.mxu0
  %2447 = vmatprep.mubr.bf16.mxu0 0
  %2448 = vmatmul.mubr.bf16.gmra.mxu0 %v2377
  %v2449 = vpop.f32.mrf.mxu0
  %v2450 = vadd.f32 0.0, %v2449
  %v2451 = vpop.f32.mrf.mxu0
  %v2452 = vpop.f32.mrf.mxu0
  %v2453 = vadd.f32 0.0, %v2452
  %v2454 = vpop.f32.mrf.mxu0
  %2455 = vmatprep.mubr.bf16.mxu0 0
  %2456 = vmatmul.mubr.bf16.gmra.mxu0 %v2380
  %v2457 = vpop.f32.mrf.mxu0
  %v2458 = vadd.f32 0.0, %v2457
  %v2459 = vpop.f32.mrf.mxu0
  %v2460 = vpop.f32.mrf.mxu0
  %v2461 = vadd.f32 0.0, %v2460
  %v2462 = vpop.f32.mrf.mxu0
  %2463 = vmatprep.mubr.bf16.mxu0 0
  %2464 = vmatmul.mubr.bf16.gmra.mxu0 %v2383
  %v2465 = vpop.f32.mrf.mxu0
  %v2466 = vadd.f32 0.0, %v2465
  %v2467 = vpop.f32.mrf.mxu0
  %v2468 = vpop.f32.mrf.mxu0
  %v2469 = vadd.f32 0.0, %v2468
  %v2470 = vpop.f32.mrf.mxu0
  %2471 = vmatprep.mubr.bf16.mxu0 0
  %2472 = vmatmul.mubr.bf16.gmra.mxu0 %v2386
  %v2473 = vpop.f32.mrf.mxu0
  %v2474 = vadd.f32 0.0, %v2473
  %v2475 = vpop.f32.mrf.mxu0
  %v2476 = vpop.f32.mrf.mxu0
  %v2477 = vadd.f32 0.0, %v2476
  %v2478 = vpop.f32.mrf.mxu0
  %2479 = vmatprep.mubr.bf16.mxu0 0
  %2480 = vmatmul.mubr.bf16.gmra.mxu0 %v2389
  %v2481 = vpop.f32.mrf.mxu0
  %v2482 = vadd.f32 0.0, %v2481
  %v2483 = vpop.f32.mrf.mxu0
  %v2484 = vpop.f32.mrf.mxu0
  %v2485 = vadd.f32 0.0, %v2484
  %v2486 = vpop.f32.mrf.mxu0
  %2487 = vdwg.mxu0
  %v2488 = vadd.f32 %v1893, %v2426
  %v2489 = vadd.f32 %v1896, %v2429
  %v2490 = vadd.f32 %v1901, %v2434
  %v2491 = vadd.f32 %v1904, %v2437
  %v2492 = vadd.f32 %v1909, %v2442
  %v2493 = vadd.f32 %v1912, %v2445
  %v2494 = vadd.f32 %v1917, %v2450
  %v2495 = vadd.f32 %v1920, %v2453
  %v2496 = vadd.f32 %v1925, %v2458
  %v2497 = vadd.f32 %v1928, %v2461
  %v2498 = vadd.f32 %v1933, %v2466
  %v2499 = vadd.f32 %v1936, %v2469
  %v2500 = vadd.f32 %v1941, %v2474
  %v2501 = vadd.f32 %v1944, %v2477
  %v2502 = vadd.f32 %v1949, %v2482
  %v2503 = vadd.f32 %v1952, %v2485
  %s2504 = scalar_lea.vmem %s3, 768
  %v2505 = vld [vmem:[%s2504] sm:$0xff]
  %v2506 = vld [vmem:[%s2504 + $0x8] sm:$0xff]
  %v2507 = vld [vmem:[%s2504 + $0x10] sm:$0xff]
  %v2508 = vld [vmem:[%s2504 + $0x18] sm:$0xff]
  %v2509 = vld [vmem:[%s2504 + $0x20] sm:$0xff]
  %v2510 = vld [vmem:[%s2504 + $0x28] sm:$0xff]
  %v2511 = vld [vmem:[%s2504 + $0x30] sm:$0xff]
  %v2512 = vld [vmem:[%s2504 + $0x38] sm:$0xff]
  %v2513 = vld [vmem:[%s2504 + $0x40] sm:$0xff]
  %v2514 = vld [vmem:[%s2504 + $0x48] sm:$0xff]
  %v2515 = vld [vmem:[%s2504 + $0x50] sm:$0xff]
  %v2516 = vld [vmem:[%s2504 + $0x58] sm:$0xff]
  %v2517 = vld [vmem:[%s2504 + $0x60] sm:$0xff]
  %v2518 = vld [vmem:[%s2504 + $0x68] sm:$0xff]
  %v2519 = vld [vmem:[%s2504 + $0x70] sm:$0xff]
  %v2520 = vld [vmem:[%s2504 + $0x78] sm:$0xff]
  %v2521 = vld [vmem:[%s2504 + $0x80] sm:$0xff]
  %v2522 = vld [vmem:[%s2504 + $0x88] sm:$0xff]
  %v2523 = vld [vmem:[%s2504 + $0x90] sm:$0xff]
  %v2524 = vld [vmem:[%s2504 + $0x98] sm:$0xff]
  %v2525 = vld [vmem:[%s2504 + $0xa0] sm:$0xff]
  %v2526 = vld [vmem:[%s2504 + $0xa8] sm:$0xff]
  %v2527 = vld [vmem:[%s2504 + $0xb0] sm:$0xff]
  %v2528 = vld [vmem:[%s2504 + $0xb8] sm:$0xff]
  %v2529 = vld [vmem:[%s2504 + $0xc0] sm:$0xff]
  %v2530 = vld [vmem:[%s2504 + $0xc8] sm:$0xff]
  %v2531 = vld [vmem:[%s2504 + $0xd0] sm:$0xff]
  %v2532 = vld [vmem:[%s2504 + $0xd8] sm:$0xff]
  %v2533 = vld [vmem:[%s2504 + $0xe0] sm:$0xff]
  %v2534 = vld [vmem:[%s2504 + $0xe8] sm:$0xff]
  %v2535 = vld [vmem:[%s2504 + $0xf0] sm:$0xff]
  %v2536 = vld [vmem:[%s2504 + $0xf8] sm:$0xff]
  %v2569 = vunpack.c.l.b16 %v2505
  %v2570 = vunpack.c.h.b16 %v2505
  %v2571 = vunpack.c.l.b16 %v2506
  %v2572 = vunpack.c.h.b16 %v2506
  %v2573 = vunpack.c.l.b16 %v2507
  %v2574 = vunpack.c.h.b16 %v2507
  %v2575 = vunpack.c.l.b16 %v2508
  %v2576 = vunpack.c.h.b16 %v2508
  %v2577 = vunpack.c.l.b16 %v2509
  %v2578 = vunpack.c.h.b16 %v2509
  %v2579 = vunpack.c.l.b16 %v2510
  %v2580 = vunpack.c.h.b16 %v2510
  %v2581 = vunpack.c.l.b16 %v2511
  %v2582 = vunpack.c.h.b16 %v2511
  %v2583 = vunpack.c.l.b16 %v2512
  %v2584 = vunpack.c.h.b16 %v2512
  %v2585 = vunpack.c.l.b16 %v2513
  %v2586 = vunpack.c.h.b16 %v2513
  %v2587 = vunpack.c.l.b16 %v2514
  %v2588 = vunpack.c.h.b16 %v2514
  %v2589 = vunpack.c.l.b16 %v2515
  %v2590 = vunpack.c.h.b16 %v2515
  %v2591 = vunpack.c.l.b16 %v2516
  %v2592 = vunpack.c.h.b16 %v2516
  %v2593 = vunpack.c.l.b16 %v2517
  %v2594 = vunpack.c.h.b16 %v2517
  %v2595 = vunpack.c.l.b16 %v2518
  %v2596 = vunpack.c.h.b16 %v2518
  %v2597 = vunpack.c.l.b16 %v2519
  %v2598 = vunpack.c.h.b16 %v2519
  %v2599 = vunpack.c.l.b16 %v2520
  %v2600 = vunpack.c.h.b16 %v2520
  %v2601 = vunpack.c.l.b16 %v2521
  %v2602 = vunpack.c.h.b16 %v2521
  %v2603 = vunpack.c.l.b16 %v2522
  %v2604 = vunpack.c.h.b16 %v2522
  %v2605 = vunpack.c.l.b16 %v2523
  %v2606 = vunpack.c.h.b16 %v2523
  %v2607 = vunpack.c.l.b16 %v2524
  %v2608 = vunpack.c.h.b16 %v2524
  %v2609 = vunpack.c.l.b16 %v2525
  %v2610 = vunpack.c.h.b16 %v2525
  %v2611 = vunpack.c.l.b16 %v2526
  %v2612 = vunpack.c.h.b16 %v2526
  %v2613 = vunpack.c.l.b16 %v2527
  %v2614 = vunpack.c.h.b16 %v2527
  %v2615 = vunpack.c.l.b16 %v2528
  %v2616 = vunpack.c.h.b16 %v2528
  %v2617 = vunpack.c.l.b16 %v2529
  %v2618 = vunpack.c.h.b16 %v2529
  %v2619 = vunpack.c.l.b16 %v2530
  %v2620 = vunpack.c.h.b16 %v2530
  %v2621 = vunpack.c.l.b16 %v2531
  %v2622 = vunpack.c.h.b16 %v2531
  %v2623 = vunpack.c.l.b16 %v2532
  %v2624 = vunpack.c.h.b16 %v2532
  %v2625 = vunpack.c.l.b16 %v2533
  %v2626 = vunpack.c.h.b16 %v2533
  %v2627 = vunpack.c.l.b16 %v2534
  %v2628 = vunpack.c.h.b16 %v2534
  %v2629 = vunpack.c.l.b16 %v2535
  %v2630 = vunpack.c.h.b16 %v2535
  %v2631 = vunpack.c.l.b16 %v2536
  %v2632 = vunpack.c.h.b16 %v2536
  %v2633 = vpack.c.b16 %v2573, %v2569
  %v2634 = vpack.c.b16 %v2574, %v2570
  %v2635 = vpack.c.b16 %v2575, %v2571
  %v2636 = vpack.c.b16 %v2576, %v2572
  %v2637 = vpack.c.b16 %v2581, %v2577
  %v2638 = vpack.c.b16 %v2582, %v2578
  %v2639 = vpack.c.b16 %v2583, %v2579
  %v2640 = vpack.c.b16 %v2584, %v2580
  %v2641 = vpack.c.b16 %v2589, %v2585
  %v2642 = vpack.c.b16 %v2590, %v2586
  %v2643 = vpack.c.b16 %v2591, %v2587
  %v2644 = vpack.c.b16 %v2592, %v2588
  %v2645 = vpack.c.b16 %v2597, %v2593
  %v2646 = vpack.c.b16 %v2598, %v2594
  %v2647 = vpack.c.b16 %v2599, %v2595
  %v2648 = vpack.c.b16 %v2600, %v2596
  %v2649 = vpack.c.b16 %v2605, %v2601
  %v2650 = vpack.c.b16 %v2606, %v2602
  %v2651 = vpack.c.b16 %v2607, %v2603
  %v2652 = vpack.c.b16 %v2608, %v2604
  %v2653 = vpack.c.b16 %v2613, %v2609
  %v2654 = vpack.c.b16 %v2614, %v2610
  %v2655 = vpack.c.b16 %v2615, %v2611
  %v2656 = vpack.c.b16 %v2616, %v2612
  %v2657 = vpack.c.b16 %v2621, %v2617
  %v2658 = vpack.c.b16 %v2622, %v2618
  %v2659 = vpack.c.b16 %v2623, %v2619
  %v2660 = vpack.c.b16 %v2624, %v2620
  %v2661 = vpack.c.b16 %v2629, %v2625
  %v2662 = vpack.c.b16 %v2630, %v2626
  %v2663 = vpack.c.b16 %v2631, %v2627
  %v2664 = vpack.c.b16 %v2632, %v2628
  %2697 = vmatprep.subr.bf16.mxu0 0
  %2698 = vmatpush1.bf16.msra.mxu0 %v865
  %2699 = vmatprep.subr.bf16.mxu0 0
  %2700 = vmatpush1.bf16.msra.mxu0 %v864
  %2701 = vmatprep.subr.bf16.mxu0 0
  %2702 = vmatpush1.bf16.msra.mxu0 %v863
  %2703 = vmatprep.subr.bf16.mxu0 0
  %2704 = vmatpush1.bf16.msra.mxu0 %v862
  %2705 = vmatprep.subr.bf16.mxu0 0
  %2706 = vmatpush1.bf16.msra.mxu0 %v861
  %2707 = vmatprep.subr.bf16.mxu0 0
  %2708 = vmatpush1.bf16.msra.mxu0 %v860
  %2709 = vmatprep.subr.bf16.mxu0 0
  %2710 = vmatpush1.bf16.msra.mxu0 %v859
  %2711 = vmatprep.subr.bf16.mxu0 0
  %2712 = vmatpush1.bf16.msra.mxu0 %v858
  %2713 = vmatprep.subr.bf16.mxu0 0
  %2714 = vmatpush2.bf16.msra.mxu0 %v873
  %2715 = vmatprep.subr.bf16.mxu0 0
  %2716 = vmatpush2.bf16.msra.mxu0 %v872
  %2717 = vmatprep.subr.bf16.mxu0 0
  %2718 = vmatpush2.bf16.msra.mxu0 %v871
  %2719 = vmatprep.subr.bf16.mxu0 0
  %2720 = vmatpush2.bf16.msra.mxu0 %v870
  %2721 = vmatprep.subr.bf16.mxu0 0
  %2722 = vmatpush2.bf16.msra.mxu0 %v869
  %2723 = vmatprep.subr.bf16.mxu0 0
  %2724 = vmatpush2.bf16.msra.mxu0 %v868
  %2725 = vmatprep.subr.bf16.mxu0 0
  %2726 = vmatpush2.bf16.msra.mxu0 %v867
  %2727 = vmatprep.subr.bf16.mxu0 0
  %2728 = vmatpush2.bf16.msra.mxu0 %v866
  %2729 = vmatprep.mubr.bf16.mxu0 %v2634
  %2730 = vmatmul.mubr.bf16.gmra.mxu0 %v2633
  %v2731 = vpop.f32.mrf.mxu0
  %v2732 = vadd.f32 0.0, %v2731
  %v2733 = vpop.f32.mrf.mxu0
  %v2734 = vpop.f32.mrf.mxu0
  %v2735 = vadd.f32 0.0, %v2734
  %v2736 = vpop.f32.mrf.mxu0
  %2737 = vmatprep.mubr.bf16.mxu0 %v2638
  %2738 = vmatmul.mubr.bf16.gmra.mxu0 %v2637
  %v2739 = vpop.f32.mrf.mxu0
  %v2740 = vadd.f32 0.0, %v2739
  %v2741 = vpop.f32.mrf.mxu0
  %v2742 = vpop.f32.mrf.mxu0
  %v2743 = vadd.f32 0.0, %v2742
  %v2744 = vpop.f32.mrf.mxu0
  %2745 = vmatprep.mubr.bf16.mxu0 %v2642
  %2746 = vmatmul.mubr.bf16.gmra.mxu0 %v2641
  %v2747 = vpop.f32.mrf.mxu0
  %v2748 = vadd.f32 0.0, %v2747
  %v2749 = vpop.f32.mrf.mxu0
  %v2750 = vpop.f32.mrf.mxu0
  %v2751 = vadd.f32 0.0, %v2750
  %v2752 = vpop.f32.mrf.mxu0
  %2753 = vmatprep.mubr.bf16.mxu0 %v2646
  %2754 = vmatmul.mubr.bf16.gmra.mxu0 %v2645
  %v2755 = vpop.f32.mrf.mxu0
  %v2756 = vadd.f32 0.0, %v2755
  %v2757 = vpop.f32.mrf.mxu0
  %v2758 = vpop.f32.mrf.mxu0
  %v2759 = vadd.f32 0.0, %v2758
  %v2760 = vpop.f32.mrf.mxu0
  %2761 = vmatprep.mubr.bf16.mxu0 %v2650
  %2762 = vmatmul.mubr.bf16.gmra.mxu0 %v2649
  %v2763 = vpop.f32.mrf.mxu0
  %v2764 = vadd.f32 0.0, %v2763
  %v2765 = vpop.f32.mrf.mxu0
  %v2766 = vpop.f32.mrf.mxu0
  %v2767 = vadd.f32 0.0, %v2766
  %v2768 = vpop.f32.mrf.mxu0
  %2769 = vmatprep.mubr.bf16.mxu0 %v2654
  %2770 = vmatmul.mubr.bf16.gmra.mxu0 %v2653
  %v2771 = vpop.f32.mrf.mxu0
  %v2772 = vadd.f32 0.0, %v2771
  %v2773 = vpop.f32.mrf.mxu0
  %v2774 = vpop.f32.mrf.mxu0
  %v2775 = vadd.f32 0.0, %v2774
  %v2776 = vpop.f32.mrf.mxu0
  %2777 = vmatprep.mubr.bf16.mxu0 %v2658
  %2778 = vmatmul.mubr.bf16.gmra.mxu0 %v2657
  %v2779 = vpop.f32.mrf.mxu0
  %v2780 = vadd.f32 0.0, %v2779
  %v2781 = vpop.f32.mrf.mxu0
  %v2782 = vpop.f32.mrf.mxu0
  %v2783 = vadd.f32 0.0, %v2782
  %v2784 = vpop.f32.mrf.mxu0
  %2785 = vmatprep.mubr.bf16.mxu0 %v2662
  %2786 = vmatmul.mubr.bf16.gmra.mxu0 %v2661
  %v2787 = vpop.f32.mrf.mxu0
  %v2788 = vadd.f32 0.0, %v2787
  %v2789 = vpop.f32.mrf.mxu0
  %v2790 = vpop.f32.mrf.mxu0
  %v2791 = vadd.f32 0.0, %v2790
  %v2792 = vpop.f32.mrf.mxu0
  %2793 = vdwg.mxu0
  %2794 = vmatprep.subr.bf16.mxu0 0
  %2795 = vmatpush1.bf16.msra.mxu0 %v881
  %2796 = vmatprep.subr.bf16.mxu0 0
  %2797 = vmatpush1.bf16.msra.mxu0 %v880
  %2798 = vmatprep.subr.bf16.mxu0 0
  %2799 = vmatpush1.bf16.msra.mxu0 %v879
  %2800 = vmatprep.subr.bf16.mxu0 0
  %2801 = vmatpush1.bf16.msra.mxu0 %v878
  %2802 = vmatprep.subr.bf16.mxu0 0
  %2803 = vmatpush1.bf16.msra.mxu0 %v877
  %2804 = vmatprep.subr.bf16.mxu0 0
  %2805 = vmatpush1.bf16.msra.mxu0 %v876
  %2806 = vmatprep.subr.bf16.mxu0 0
  %2807 = vmatpush1.bf16.msra.mxu0 %v875
  %2808 = vmatprep.subr.bf16.mxu0 0
  %2809 = vmatpush1.bf16.msra.mxu0 %v874
  %2810 = vmatprep.subr.bf16.mxu0 0
  %2811 = vmatpush2.bf16.msra.mxu0 %v889
  %2812 = vmatprep.subr.bf16.mxu0 0
  %2813 = vmatpush2.bf16.msra.mxu0 %v888
  %2814 = vmatprep.subr.bf16.mxu0 0
  %2815 = vmatpush2.bf16.msra.mxu0 %v887
  %2816 = vmatprep.subr.bf16.mxu0 0
  %2817 = vmatpush2.bf16.msra.mxu0 %v886
  %2818 = vmatprep.subr.bf16.mxu0 0
  %2819 = vmatpush2.bf16.msra.mxu0 %v885
  %2820 = vmatprep.subr.bf16.mxu0 0
  %2821 = vmatpush2.bf16.msra.mxu0 %v884
  %2822 = vmatprep.subr.bf16.mxu0 0
  %2823 = vmatpush2.bf16.msra.mxu0 %v883
  %2824 = vmatprep.subr.bf16.mxu0 0
  %2825 = vmatpush2.bf16.msra.mxu0 %v882
  %2826 = vmatprep.mubr.bf16.mxu0 %v2636
  %2827 = vmatmul.mubr.bf16.gmra.mxu0 %v2635
  %v2828 = vpop.f32.mrf.mxu0
  %v2829 = vadd.f32 %v2732, %v2828
  %v2830 = vpop.f32.mrf.mxu0
  %v2831 = vpop.f32.mrf.mxu0
  %v2832 = vadd.f32 %v2735, %v2831
  %v2833 = vpop.f32.mrf.mxu0
  %2834 = vmatprep.mubr.bf16.mxu0 %v2640
  %2835 = vmatmul.mubr.bf16.gmra.mxu0 %v2639
  %v2836 = vpop.f32.mrf.mxu0
  %v2837 = vadd.f32 %v2740, %v2836
  %v2838 = vpop.f32.mrf.mxu0
  %v2839 = vpop.f32.mrf.mxu0
  %v2840 = vadd.f32 %v2743, %v2839
  %v2841 = vpop.f32.mrf.mxu0
  %2842 = vmatprep.mubr.bf16.mxu0 %v2644
  %2843 = vmatmul.mubr.bf16.gmra.mxu0 %v2643
  %v2844 = vpop.f32.mrf.mxu0
  %v2845 = vadd.f32 %v2748, %v2844
  %v2846 = vpop.f32.mrf.mxu0
  %v2847 = vpop.f32.mrf.mxu0
  %v2848 = vadd.f32 %v2751, %v2847
  %v2849 = vpop.f32.mrf.mxu0
  %2850 = vmatprep.mubr.bf16.mxu0 %v2648
  %2851 = vmatmul.mubr.bf16.gmra.mxu0 %v2647
  %v2852 = vpop.f32.mrf.mxu0
  %v2853 = vadd.f32 %v2756, %v2852
  %v2854 = vpop.f32.mrf.mxu0
  %v2855 = vpop.f32.mrf.mxu0
  %v2856 = vadd.f32 %v2759, %v2855
  %v2857 = vpop.f32.mrf.mxu0
  %2858 = vmatprep.mubr.bf16.mxu0 %v2652
  %2859 = vmatmul.mubr.bf16.gmra.mxu0 %v2651
  %v2860 = vpop.f32.mrf.mxu0
  %v2861 = vadd.f32 %v2764, %v2860
  %v2862 = vpop.f32.mrf.mxu0
  %v2863 = vpop.f32.mrf.mxu0
  %v2864 = vadd.f32 %v2767, %v2863
  %v2865 = vpop.f32.mrf.mxu0
  %2866 = vmatprep.mubr.bf16.mxu0 %v2656
  %2867 = vmatmul.mubr.bf16.gmra.mxu0 %v2655
  %v2868 = vpop.f32.mrf.mxu0
  %v2869 = vadd.f32 %v2772, %v2868
  %v2870 = vpop.f32.mrf.mxu0
  %v2871 = vpop.f32.mrf.mxu0
  %v2872 = vadd.f32 %v2775, %v2871
  %v2873 = vpop.f32.mrf.mxu0
  %2874 = vmatprep.mubr.bf16.mxu0 %v2660
  %2875 = vmatmul.mubr.bf16.gmra.mxu0 %v2659
  %v2876 = vpop.f32.mrf.mxu0
  %v2877 = vadd.f32 %v2780, %v2876
  %v2878 = vpop.f32.mrf.mxu0
  %v2879 = vpop.f32.mrf.mxu0
  %v2880 = vadd.f32 %v2783, %v2879
  %v2881 = vpop.f32.mrf.mxu0
  %2882 = vmatprep.mubr.bf16.mxu0 %v2664
  %2883 = vmatmul.mubr.bf16.gmra.mxu0 %v2663
  %v2884 = vpop.f32.mrf.mxu0
  %v2885 = vadd.f32 %v2788, %v2884
  %v2886 = vpop.f32.mrf.mxu0
  %v2887 = vpop.f32.mrf.mxu0
  %v2888 = vadd.f32 %v2791, %v2887
  %v2889 = vpop.f32.mrf.mxu0
  %2890 = vdwg.mxu0
  %v2891 = vpack.c.bf16 %v2832, %v2829
  %v2892 = vpack.c.bf16 %v2840, %v2837
  %v2893 = vpack.c.bf16 %v2848, %v2845
  %v2894 = vpack.c.bf16 %v2856, %v2853
  %v2895 = vpack.c.bf16 %v2864, %v2861
  %v2896 = vpack.c.bf16 %v2872, %v2869
  %v2897 = vpack.c.bf16 %v2880, %v2877
  %v2898 = vpack.c.bf16 %v2888, %v2885
  %s2899 = scalar_lea.vmem %s4, 48
  %v2900 = vld [vmem:[%s2899] sm:$0xf]
  %v2901 = vld [vmem:[%s2899 + $0x4] sm:$0xf]
  %v2902 = vld [vmem:[%s2899 + $0x8] sm:$0xf]
  %v2903 = vld [vmem:[%s2899 + $0xc] sm:$0xf]
  %v2908 = vunpack.c.l.b16 %v2900
  %v2909 = vunpack.c.l.b16 %v2901
  %v2910 = vunpack.c.l.b16 %v2902
  %v2911 = vunpack.c.l.b16 %v2903
  %v2912 = vpack.c.b16 %v2909, %v2908
  %v2913 = vpack.c.b16 %v2911, %v2910
  %v2917 = vsel %vm1700, %v2891, 0
  %v2920 = vsel %vm1700, %v2892, 0
  %v2923 = vsel %vm1700, %v2893, 0
  %v2926 = vsel %vm1700, %v2894, 0
  %v2929 = vsel %vm1700, %v2895, 0
  %v2932 = vsel %vm1700, %v2896, 0
  %v2935 = vsel %vm1700, %v2897, 0
  %v2938 = vsel %vm1700, %v2898, 0
  %2940 = vmatprep.subr.bf16.mxu0 0
  %2941 = vmatpush1.bf16.msra.mxu0 0
  %2942 = vmatprep.subr.bf16.mxu0 0
  %2943 = vmatpush1.bf16.msra.mxu0 0
  %2944 = vmatprep.subr.bf16.mxu0 0
  %2945 = vmatpush1.bf16.msra.mxu0 0
  %2946 = vmatprep.subr.bf16.mxu0 0
  %2947 = vmatpush1.bf16.msra.mxu0 0
  %2948 = vmatprep.subr.bf16.mxu0 0
  %2949 = vmatpush1.bf16.msra.mxu0 0
  %2950 = vmatprep.subr.bf16.mxu0 0
  %2951 = vmatpush1.bf16.msra.mxu0 0
  %2952 = vmatprep.subr.bf16.mxu0 0
  %2953 = vmatpush1.bf16.msra.mxu0 %v2913
  %2954 = vmatprep.subr.bf16.mxu0 0
  %2955 = vmatpush1.bf16.msra.mxu0 %v2912
  %2956 = vmatprep.subr.bf16.mxu0 0
  %2957 = vmatpush2.bf16.msra.mxu0 0
  %2958 = vmatprep.subr.bf16.mxu0 0
  %2959 = vmatpush2.bf16.msra.mxu0 0
  %2960 = vmatprep.subr.bf16.mxu0 0
  %2961 = vmatpush2.bf16.msra.mxu0 0
  %2962 = vmatprep.subr.bf16.mxu0 0
  %2963 = vmatpush2.bf16.msra.mxu0 0
  %2964 = vmatprep.subr.bf16.mxu0 0
  %2965 = vmatpush2.bf16.msra.mxu0 0
  %2966 = vmatprep.subr.bf16.mxu0 0
  %2967 = vmatpush2.bf16.msra.mxu0 0
  %2968 = vmatprep.subr.bf16.mxu0 0
  %2969 = vmatpush2.bf16.msra.mxu0 0
  %2970 = vmatprep.subr.bf16.mxu0 0
  %2971 = vmatpush2.bf16.msra.mxu0 0
  %2972 = vmatprep.mubr.bf16.mxu0 0
  %2973 = vmatmul.mubr.bf16.gmra.mxu0 %v2917
  %v2974 = vpop.f32.mrf.mxu0
  %v2975 = vadd.f32 0.0, %v2974
  %v2976 = vpop.f32.mrf.mxu0
  %v2977 = vpop.f32.mrf.mxu0
  %v2978 = vadd.f32 0.0, %v2977
  %v2979 = vpop.f32.mrf.mxu0
  %2980 = vmatprep.mubr.bf16.mxu0 0
  %2981 = vmatmul.mubr.bf16.gmra.mxu0 %v2920
  %v2982 = vpop.f32.mrf.mxu0
  %v2983 = vadd.f32 0.0, %v2982
  %v2984 = vpop.f32.mrf.mxu0
  %v2985 = vpop.f32.mrf.mxu0
  %v2986 = vadd.f32 0.0, %v2985
  %v2987 = vpop.f32.mrf.mxu0
  %2988 = vmatprep.mubr.bf16.mxu0 0
  %2989 = vmatmul.mubr.bf16.gmra.mxu0 %v2923
  %v2990 = vpop.f32.mrf.mxu0
  %v2991 = vadd.f32 0.0, %v2990
  %v2992 = vpop.f32.mrf.mxu0
  %v2993 = vpop.f32.mrf.mxu0
  %v2994 = vadd.f32 0.0, %v2993
  %v2995 = vpop.f32.mrf.mxu0
  %2996 = vmatprep.mubr.bf16.mxu0 0
  %2997 = vmatmul.mubr.bf16.gmra.mxu0 %v2926
  %v2998 = vpop.f32.mrf.mxu0
  %v2999 = vadd.f32 0.0, %v2998
  %v3000 = vpop.f32.mrf.mxu0
  %v3001 = vpop.f32.mrf.mxu0
  %v3002 = vadd.f32 0.0, %v3001
  %v3003 = vpop.f32.mrf.mxu0
  %3004 = vmatprep.mubr.bf16.mxu0 0
  %3005 = vmatmul.mubr.bf16.gmra.mxu0 %v2929
  %v3006 = vpop.f32.mrf.mxu0
  %v3007 = vadd.f32 0.0, %v3006
  %v3008 = vpop.f32.mrf.mxu0
  %v3009 = vpop.f32.mrf.mxu0
  %v3010 = vadd.f32 0.0, %v3009
  %v3011 = vpop.f32.mrf.mxu0
  %3012 = vmatprep.mubr.bf16.mxu0 0
  %3013 = vmatmul.mubr.bf16.gmra.mxu0 %v2932
  %v3014 = vpop.f32.mrf.mxu0
  %v3015 = vadd.f32 0.0, %v3014
  %v3016 = vpop.f32.mrf.mxu0
  %v3017 = vpop.f32.mrf.mxu0
  %v3018 = vadd.f32 0.0, %v3017
  %v3019 = vpop.f32.mrf.mxu0
  %3020 = vmatprep.mubr.bf16.mxu0 0
  %3021 = vmatmul.mubr.bf16.gmra.mxu0 %v2935
  %v3022 = vpop.f32.mrf.mxu0
  %v3023 = vadd.f32 0.0, %v3022
  %v3024 = vpop.f32.mrf.mxu0
  %v3025 = vpop.f32.mrf.mxu0
  %v3026 = vadd.f32 0.0, %v3025
  %v3027 = vpop.f32.mrf.mxu0
  %3028 = vmatprep.mubr.bf16.mxu0 0
  %3029 = vmatmul.mubr.bf16.gmra.mxu0 %v2938
  %v3030 = vpop.f32.mrf.mxu0
  %v3031 = vadd.f32 0.0, %v3030
  %v3032 = vpop.f32.mrf.mxu0
  %v3033 = vpop.f32.mrf.mxu0
  %v3034 = vadd.f32 0.0, %v3033
  %v3035 = vpop.f32.mrf.mxu0
  %3036 = vdwg.mxu0
  %v3037 = vadd.f32 %v2488, %v2975
  %v3038 = vadd.f32 %v2489, %v2978
  %v3039 = vadd.f32 %v2490, %v2983
  %v3040 = vadd.f32 %v2491, %v2986
  %v3041 = vadd.f32 %v2492, %v2991
  %v3042 = vadd.f32 %v2493, %v2994
  %v3043 = vadd.f32 %v2494, %v2999
  %v3044 = vadd.f32 %v2495, %v3002
  %v3045 = vadd.f32 %v2496, %v3007
  %v3046 = vadd.f32 %v2497, %v3010
  %v3047 = vadd.f32 %v2498, %v3015
  %v3048 = vadd.f32 %v2499, %v3018
  %v3049 = vadd.f32 %v2500, %v3023
  %v3050 = vadd.f32 %v2501, %v3026
  %v3051 = vadd.f32 %v2502, %v3031
  %v3052 = vadd.f32 %v2503, %v3034
  %s3053 = scalar_lea.vmem %s3, 1024
  %v3054 = vld [vmem:[%s3053] sm:$0xff]
  %v3055 = vld [vmem:[%s3053 + $0x8] sm:$0xff]
  %v3056 = vld [vmem:[%s3053 + $0x10] sm:$0xff]
  %v3057 = vld [vmem:[%s3053 + $0x18] sm:$0xff]
  %v3058 = vld [vmem:[%s3053 + $0x20] sm:$0xff]
  %v3059 = vld [vmem:[%s3053 + $0x28] sm:$0xff]
  %v3060 = vld [vmem:[%s3053 + $0x30] sm:$0xff]
  %v3061 = vld [vmem:[%s3053 + $0x38] sm:$0xff]
  %v3062 = vld [vmem:[%s3053 + $0x40] sm:$0xff]
  %v3063 = vld [vmem:[%s3053 + $0x48] sm:$0xff]
  %v3064 = vld [vmem:[%s3053 + $0x50] sm:$0xff]
  %v3065 = vld [vmem:[%s3053 + $0x58] sm:$0xff]
  %v3066 = vld [vmem:[%s3053 + $0x60] sm:$0xff]
  %v3067 = vld [vmem:[%s3053 + $0x68] sm:$0xff]
  %v3068 = vld [vmem:[%s3053 + $0x70] sm:$0xff]
  %v3069 = vld [vmem:[%s3053 + $0x78] sm:$0xff]
  %v3070 = vld [vmem:[%s3053 + $0x80] sm:$0xff]
  %v3071 = vld [vmem:[%s3053 + $0x88] sm:$0xff]
  %v3072 = vld [vmem:[%s3053 + $0x90] sm:$0xff]
  %v3073 = vld [vmem:[%s3053 + $0x98] sm:$0xff]
  %v3074 = vld [vmem:[%s3053 + $0xa0] sm:$0xff]
  %v3075 = vld [vmem:[%s3053 + $0xa8] sm:$0xff]
  %v3076 = vld [vmem:[%s3053 + $0xb0] sm:$0xff]
  %v3077 = vld [vmem:[%s3053 + $0xb8] sm:$0xff]
  %v3078 = vld [vmem:[%s3053 + $0xc0] sm:$0xff]
  %v3079 = vld [vmem:[%s3053 + $0xc8] sm:$0xff]
  %v3080 = vld [vmem:[%s3053 + $0xd0] sm:$0xff]
  %v3081 = vld [vmem:[%s3053 + $0xd8] sm:$0xff]
  %v3082 = vld [vmem:[%s3053 + $0xe0] sm:$0xff]
  %v3083 = vld [vmem:[%s3053 + $0xe8] sm:$0xff]
  %v3084 = vld [vmem:[%s3053 + $0xf0] sm:$0xff]
  %v3085 = vld [vmem:[%s3053 + $0xf8] sm:$0xff]
  %v3118 = vunpack.c.l.b16 %v3054
  %v3119 = vunpack.c.h.b16 %v3054
  %v3120 = vunpack.c.l.b16 %v3055
  %v3121 = vunpack.c.h.b16 %v3055
  %v3122 = vunpack.c.l.b16 %v3056
  %v3123 = vunpack.c.h.b16 %v3056
  %v3124 = vunpack.c.l.b16 %v3057
  %v3125 = vunpack.c.h.b16 %v3057
  %v3126 = vunpack.c.l.b16 %v3058
  %v3127 = vunpack.c.h.b16 %v3058
  %v3128 = vunpack.c.l.b16 %v3059
  %v3129 = vunpack.c.h.b16 %v3059
  %v3130 = vunpack.c.l.b16 %v3060
  %v3131 = vunpack.c.h.b16 %v3060
  %v3132 = vunpack.c.l.b16 %v3061
  %v3133 = vunpack.c.h.b16 %v3061
  %v3134 = vunpack.c.l.b16 %v3062
  %v3135 = vunpack.c.h.b16 %v3062
  %v3136 = vunpack.c.l.b16 %v3063
  %v3137 = vunpack.c.h.b16 %v3063
  %v3138 = vunpack.c.l.b16 %v3064
  %v3139 = vunpack.c.h.b16 %v3064
  %v3140 = vunpack.c.l.b16 %v3065
  %v3141 = vunpack.c.h.b16 %v3065
  %v3142 = vunpack.c.l.b16 %v3066
  %v3143 = vunpack.c.h.b16 %v3066
  %v3144 = vunpack.c.l.b16 %v3067
  %v3145 = vunpack.c.h.b16 %v3067
  %v3146 = vunpack.c.l.b16 %v3068
  %v3147 = vunpack.c.h.b16 %v3068
  %v3148 = vunpack.c.l.b16 %v3069
  %v3149 = vunpack.c.h.b16 %v3069
  %v3150 = vunpack.c.l.b16 %v3070
  %v3151 = vunpack.c.h.b16 %v3070
  %v3152 = vunpack.c.l.b16 %v3071
  %v3153 = vunpack.c.h.b16 %v3071
  %v3154 = vunpack.c.l.b16 %v3072
  %v3155 = vunpack.c.h.b16 %v3072
  %v3156 = vunpack.c.l.b16 %v3073
  %v3157 = vunpack.c.h.b16 %v3073
  %v3158 = vunpack.c.l.b16 %v3074
  %v3159 = vunpack.c.h.b16 %v3074
  %v3160 = vunpack.c.l.b16 %v3075
  %v3161 = vunpack.c.h.b16 %v3075
  %v3162 = vunpack.c.l.b16 %v3076
  %v3163 = vunpack.c.h.b16 %v3076
  %v3164 = vunpack.c.l.b16 %v3077
  %v3165 = vunpack.c.h.b16 %v3077
  %v3166 = vunpack.c.l.b16 %v3078
  %v3167 = vunpack.c.h.b16 %v3078
  %v3168 = vunpack.c.l.b16 %v3079
  %v3169 = vunpack.c.h.b16 %v3079
  %v3170 = vunpack.c.l.b16 %v3080
  %v3171 = vunpack.c.h.b16 %v3080
  %v3172 = vunpack.c.l.b16 %v3081
  %v3173 = vunpack.c.h.b16 %v3081
  %v3174 = vunpack.c.l.b16 %v3082
  %v3175 = vunpack.c.h.b16 %v3082
  %v3176 = vunpack.c.l.b16 %v3083
  %v3177 = vunpack.c.h.b16 %v3083
  %v3178 = vunpack.c.l.b16 %v3084
  %v3179 = vunpack.c.h.b16 %v3084
  %v3180 = vunpack.c.l.b16 %v3085
  %v3181 = vunpack.c.h.b16 %v3085
  %v3182 = vpack.c.b16 %v3122, %v3118
  %v3183 = vpack.c.b16 %v3123, %v3119
  %v3184 = vpack.c.b16 %v3124, %v3120
  %v3185 = vpack.c.b16 %v3125, %v3121
  %v3186 = vpack.c.b16 %v3130, %v3126
  %v3187 = vpack.c.b16 %v3131, %v3127
  %v3188 = vpack.c.b16 %v3132, %v3128
  %v3189 = vpack.c.b16 %v3133, %v3129
  %v3190 = vpack.c.b16 %v3138, %v3134
  %v3191 = vpack.c.b16 %v3139, %v3135
  %v3192 = vpack.c.b16 %v3140, %v3136
  %v3193 = vpack.c.b16 %v3141, %v3137
  %v3194 = vpack.c.b16 %v3146, %v3142
  %v3195 = vpack.c.b16 %v3147, %v3143
  %v3196 = vpack.c.b16 %v3148, %v3144
  %v3197 = vpack.c.b16 %v3149, %v3145
  %v3198 = vpack.c.b16 %v3154, %v3150
  %v3199 = vpack.c.b16 %v3155, %v3151
  %v3200 = vpack.c.b16 %v3156, %v3152
  %v3201 = vpack.c.b16 %v3157, %v3153
  %v3202 = vpack.c.b16 %v3162, %v3158
  %v3203 = vpack.c.b16 %v3163, %v3159
  %v3204 = vpack.c.b16 %v3164, %v3160
  %v3205 = vpack.c.b16 %v3165, %v3161
  %v3206 = vpack.c.b16 %v3170, %v3166
  %v3207 = vpack.c.b16 %v3171, %v3167
  %v3208 = vpack.c.b16 %v3172, %v3168
  %v3209 = vpack.c.b16 %v3173, %v3169
  %v3210 = vpack.c.b16 %v3178, %v3174
  %v3211 = vpack.c.b16 %v3179, %v3175
  %v3212 = vpack.c.b16 %v3180, %v3176
  %v3213 = vpack.c.b16 %v3181, %v3177
  %3246 = vmatprep.subr.bf16.mxu0 0
  %3247 = vmatpush1.bf16.msra.mxu0 %v865
  %3248 = vmatprep.subr.bf16.mxu0 0
  %3249 = vmatpush1.bf16.msra.mxu0 %v864
  %3250 = vmatprep.subr.bf16.mxu0 0
  %3251 = vmatpush1.bf16.msra.mxu0 %v863
  %3252 = vmatprep.subr.bf16.mxu0 0
  %3253 = vmatpush1.bf16.msra.mxu0 %v862
  %3254 = vmatprep.subr.bf16.mxu0 0
  %3255 = vmatpush1.bf16.msra.mxu0 %v861
  %3256 = vmatprep.subr.bf16.mxu0 0
  %3257 = vmatpush1.bf16.msra.mxu0 %v860
  %3258 = vmatprep.subr.bf16.mxu0 0
  %3259 = vmatpush1.bf16.msra.mxu0 %v859
  %3260 = vmatprep.subr.bf16.mxu0 0
  %3261 = vmatpush1.bf16.msra.mxu0 %v858
  %3262 = vmatprep.subr.bf16.mxu0 0
  %3263 = vmatpush2.bf16.msra.mxu0 %v873
  %3264 = vmatprep.subr.bf16.mxu0 0
  %3265 = vmatpush2.bf16.msra.mxu0 %v872
  %3266 = vmatprep.subr.bf16.mxu0 0
  %3267 = vmatpush2.bf16.msra.mxu0 %v871
  %3268 = vmatprep.subr.bf16.mxu0 0
  %3269 = vmatpush2.bf16.msra.mxu0 %v870
  %3270 = vmatprep.subr.bf16.mxu0 0
  %3271 = vmatpush2.bf16.msra.mxu0 %v869
  %3272 = vmatprep.subr.bf16.mxu0 0
  %3273 = vmatpush2.bf16.msra.mxu0 %v868
  %3274 = vmatprep.subr.bf16.mxu0 0
  %3275 = vmatpush2.bf16.msra.mxu0 %v867
  %3276 = vmatprep.subr.bf16.mxu0 0
  %3277 = vmatpush2.bf16.msra.mxu0 %v866
  %3278 = vmatprep.mubr.bf16.mxu0 %v3183
  %3279 = vmatmul.mubr.bf16.gmra.mxu0 %v3182
  %v3280 = vpop.f32.mrf.mxu0
  %v3281 = vadd.f32 0.0, %v3280
  %v3282 = vpop.f32.mrf.mxu0
  %v3283 = vpop.f32.mrf.mxu0
  %v3284 = vadd.f32 0.0, %v3283
  %v3285 = vpop.f32.mrf.mxu0
  %3286 = vmatprep.mubr.bf16.mxu0 %v3187
  %3287 = vmatmul.mubr.bf16.gmra.mxu0 %v3186
  %v3288 = vpop.f32.mrf.mxu0
  %v3289 = vadd.f32 0.0, %v3288
  %v3290 = vpop.f32.mrf.mxu0
  %v3291 = vpop.f32.mrf.mxu0
  %v3292 = vadd.f32 0.0, %v3291
  %v3293 = vpop.f32.mrf.mxu0
  %3294 = vmatprep.mubr.bf16.mxu0 %v3191
  %3295 = vmatmul.mubr.bf16.gmra.mxu0 %v3190
  %v3296 = vpop.f32.mrf.mxu0
  %v3297 = vadd.f32 0.0, %v3296
  %v3298 = vpop.f32.mrf.mxu0
  %v3299 = vpop.f32.mrf.mxu0
  %v3300 = vadd.f32 0.0, %v3299
  %v3301 = vpop.f32.mrf.mxu0
  %3302 = vmatprep.mubr.bf16.mxu0 %v3195
  %3303 = vmatmul.mubr.bf16.gmra.mxu0 %v3194
  %v3304 = vpop.f32.mrf.mxu0
  %v3305 = vadd.f32 0.0, %v3304
  %v3306 = vpop.f32.mrf.mxu0
  %v3307 = vpop.f32.mrf.mxu0
  %v3308 = vadd.f32 0.0, %v3307
  %v3309 = vpop.f32.mrf.mxu0
  %3310 = vmatprep.mubr.bf16.mxu0 %v3199
  %3311 = vmatmul.mubr.bf16.gmra.mxu0 %v3198
  %v3312 = vpop.f32.mrf.mxu0
  %v3313 = vadd.f32 0.0, %v3312
  %v3314 = vpop.f32.mrf.mxu0
  %v3315 = vpop.f32.mrf.mxu0
  %v3316 = vadd.f32 0.0, %v3315
  %v3317 = vpop.f32.mrf.mxu0
  %3318 = vmatprep.mubr.bf16.mxu0 %v3203
  %3319 = vmatmul.mubr.bf16.gmra.mxu0 %v3202
  %v3320 = vpop.f32.mrf.mxu0
  %v3321 = vadd.f32 0.0, %v3320
  %v3322 = vpop.f32.mrf.mxu0
  %v3323 = vpop.f32.mrf.mxu0
  %v3324 = vadd.f32 0.0, %v3323
  %v3325 = vpop.f32.mrf.mxu0
  %3326 = vmatprep.mubr.bf16.mxu0 %v3207
  %3327 = vmatmul.mubr.bf16.gmra.mxu0 %v3206
  %v3328 = vpop.f32.mrf.mxu0
  %v3329 = vadd.f32 0.0, %v3328
  %v3330 = vpop.f32.mrf.mxu0
  %v3331 = vpop.f32.mrf.mxu0
  %v3332 = vadd.f32 0.0, %v3331
  %v3333 = vpop.f32.mrf.mxu0
  %3334 = vmatprep.mubr.bf16.mxu0 %v3211
  %3335 = vmatmul.mubr.bf16.gmra.mxu0 %v3210
  %v3336 = vpop.f32.mrf.mxu0
  %v3337 = vadd.f32 0.0, %v3336
  %v3338 = vpop.f32.mrf.mxu0
  %v3339 = vpop.f32.mrf.mxu0
  %v3340 = vadd.f32 0.0, %v3339
  %v3341 = vpop.f32.mrf.mxu0
  %3342 = vdwg.mxu0
  %3343 = vmatprep.subr.bf16.mxu0 0
  %3344 = vmatpush1.bf16.msra.mxu0 %v881
  %3345 = vmatprep.subr.bf16.mxu0 0
  %3346 = vmatpush1.bf16.msra.mxu0 %v880
  %3347 = vmatprep.subr.bf16.mxu0 0
  %3348 = vmatpush1.bf16.msra.mxu0 %v879
  %3349 = vmatprep.subr.bf16.mxu0 0
  %3350 = vmatpush1.bf16.msra.mxu0 %v878
  %3351 = vmatprep.subr.bf16.mxu0 0
  %3352 = vmatpush1.bf16.msra.mxu0 %v877
  %3353 = vmatprep.subr.bf16.mxu0 0
  %3354 = vmatpush1.bf16.msra.mxu0 %v876
  %3355 = vmatprep.subr.bf16.mxu0 0
  %3356 = vmatpush1.bf16.msra.mxu0 %v875
  %3357 = vmatprep.subr.bf16.mxu0 0
  %3358 = vmatpush1.bf16.msra.mxu0 %v874
  %3359 = vmatprep.subr.bf16.mxu0 0
  %3360 = vmatpush2.bf16.msra.mxu0 %v889
  %3361 = vmatprep.subr.bf16.mxu0 0
  %3362 = vmatpush2.bf16.msra.mxu0 %v888
  %3363 = vmatprep.subr.bf16.mxu0 0
  %3364 = vmatpush2.bf16.msra.mxu0 %v887
  %3365 = vmatprep.subr.bf16.mxu0 0
  %3366 = vmatpush2.bf16.msra.mxu0 %v886
  %3367 = vmatprep.subr.bf16.mxu0 0
  %3368 = vmatpush2.bf16.msra.mxu0 %v885
  %3369 = vmatprep.subr.bf16.mxu0 0
  %3370 = vmatpush2.bf16.msra.mxu0 %v884
  %3371 = vmatprep.subr.bf16.mxu0 0
  %3372 = vmatpush2.bf16.msra.mxu0 %v883
  %3373 = vmatprep.subr.bf16.mxu0 0
  %3374 = vmatpush2.bf16.msra.mxu0 %v882
  %3375 = vmatprep.mubr.bf16.mxu0 %v3185
  %3376 = vmatmul.mubr.bf16.gmra.mxu0 %v3184
  %v3377 = vpop.f32.mrf.mxu0
  %v3378 = vadd.f32 %v3281, %v3377
  %v3379 = vpop.f32.mrf.mxu0
  %v3380 = vpop.f32.mrf.mxu0
  %v3381 = vadd.f32 %v3284, %v3380
  %v3382 = vpop.f32.mrf.mxu0
  %3383 = vmatprep.mubr.bf16.mxu0 %v3189
  %3384 = vmatmul.mubr.bf16.gmra.mxu0 %v3188
  %v3385 = vpop.f32.mrf.mxu0
  %v3386 = vadd.f32 %v3289, %v3385
  %v3387 = vpop.f32.mrf.mxu0
  %v3388 = vpop.f32.mrf.mxu0
  %v3389 = vadd.f32 %v3292, %v3388
  %v3390 = vpop.f32.mrf.mxu0
  %3391 = vmatprep.mubr.bf16.mxu0 %v3193
  %3392 = vmatmul.mubr.bf16.gmra.mxu0 %v3192
  %v3393 = vpop.f32.mrf.mxu0
  %v3394 = vadd.f32 %v3297, %v3393
  %v3395 = vpop.f32.mrf.mxu0
  %v3396 = vpop.f32.mrf.mxu0
  %v3397 = vadd.f32 %v3300, %v3396
  %v3398 = vpop.f32.mrf.mxu0
  %3399 = vmatprep.mubr.bf16.mxu0 %v3197
  %3400 = vmatmul.mubr.bf16.gmra.mxu0 %v3196
  %v3401 = vpop.f32.mrf.mxu0
  %v3402 = vadd.f32 %v3305, %v3401
  %v3403 = vpop.f32.mrf.mxu0
  %v3404 = vpop.f32.mrf.mxu0
  %v3405 = vadd.f32 %v3308, %v3404
  %v3406 = vpop.f32.mrf.mxu0
  %3407 = vmatprep.mubr.bf16.mxu0 %v3201
  %3408 = vmatmul.mubr.bf16.gmra.mxu0 %v3200
  %v3409 = vpop.f32.mrf.mxu0
  %v3410 = vadd.f32 %v3313, %v3409
  %v3411 = vpop.f32.mrf.mxu0
  %v3412 = vpop.f32.mrf.mxu0
  %v3413 = vadd.f32 %v3316, %v3412
  %v3414 = vpop.f32.mrf.mxu0
  %3415 = vmatprep.mubr.bf16.mxu0 %v3205
  %3416 = vmatmul.mubr.bf16.gmra.mxu0 %v3204
  %v3417 = vpop.f32.mrf.mxu0
  %v3418 = vadd.f32 %v3321, %v3417
  %v3419 = vpop.f32.mrf.mxu0
  %v3420 = vpop.f32.mrf.mxu0
  %v3421 = vadd.f32 %v3324, %v3420
  %v3422 = vpop.f32.mrf.mxu0
  %3423 = vmatprep.mubr.bf16.mxu0 %v3209
  %3424 = vmatmul.mubr.bf16.gmra.mxu0 %v3208
  %v3425 = vpop.f32.mrf.mxu0
  %v3426 = vadd.f32 %v3329, %v3425
  %v3427 = vpop.f32.mrf.mxu0
  %v3428 = vpop.f32.mrf.mxu0
  %v3429 = vadd.f32 %v3332, %v3428
  %v3430 = vpop.f32.mrf.mxu0
  %3431 = vmatprep.mubr.bf16.mxu0 %v3213
  %3432 = vmatmul.mubr.bf16.gmra.mxu0 %v3212
  %v3433 = vpop.f32.mrf.mxu0
  %v3434 = vadd.f32 %v3337, %v3433
  %v3435 = vpop.f32.mrf.mxu0
  %v3436 = vpop.f32.mrf.mxu0
  %v3437 = vadd.f32 %v3340, %v3436
  %v3438 = vpop.f32.mrf.mxu0
  %3439 = vdwg.mxu0
  %v3440 = vpack.c.bf16 %v3381, %v3378
  %v3441 = vpack.c.bf16 %v3389, %v3386
  %v3442 = vpack.c.bf16 %v3397, %v3394
  %v3443 = vpack.c.bf16 %v3405, %v3402
  %v3444 = vpack.c.bf16 %v3413, %v3410
  %v3445 = vpack.c.bf16 %v3421, %v3418
  %v3446 = vpack.c.bf16 %v3429, %v3426
  %v3447 = vpack.c.bf16 %v3437, %v3434
  %s3448 = scalar_lea.vmem %s4, 64
  %v3449 = vld [vmem:[%s3448] sm:$0xf]
  %v3450 = vld [vmem:[%s3448 + $0x4] sm:$0xf]
  %v3451 = vld [vmem:[%s3448 + $0x8] sm:$0xf]
  %v3452 = vld [vmem:[%s3448 + $0xc] sm:$0xf]
  %v3457 = vunpack.c.l.b16 %v3449
  %v3458 = vunpack.c.l.b16 %v3450
  %v3459 = vunpack.c.l.b16 %v3451
  %v3460 = vunpack.c.l.b16 %v3452
  %v3461 = vpack.c.b16 %v3458, %v3457
  %v3462 = vpack.c.b16 %v3460, %v3459
  %v3466 = vsel %vm1700, %v3440, 0
  %v3469 = vsel %vm1700, %v3441, 0
  %v3472 = vsel %vm1700, %v3442, 0
  %v3475 = vsel %vm1700, %v3443, 0
  %v3478 = vsel %vm1700, %v3444, 0
  %v3481 = vsel %vm1700, %v3445, 0
  %v3484 = vsel %vm1700, %v3446, 0
  %v3487 = vsel %vm1700, %v3447, 0
  %3489 = vmatprep.subr.bf16.mxu0 0
  %3490 = vmatpush1.bf16.msra.mxu0 0
  %3491 = vmatprep.subr.bf16.mxu0 0
  %3492 = vmatpush1.bf16.msra.mxu0 0
  %3493 = vmatprep.subr.bf16.mxu0 0
  %3494 = vmatpush1.bf16.msra.mxu0 0
  %3495 = vmatprep.subr.bf16.mxu0 0
  %3496 = vmatpush1.bf16.msra.mxu0 0
  %3497 = vmatprep.subr.bf16.mxu0 0
  %3498 = vmatpush1.bf16.msra.mxu0 0
  %3499 = vmatprep.subr.bf16.mxu0 0
  %3500 = vmatpush1.bf16.msra.mxu0 0
  %3501 = vmatprep.subr.bf16.mxu0 0
  %3502 = vmatpush1.bf16.msra.mxu0 %v3462
  %3503 = vmatprep.subr.bf16.mxu0 0
  %3504 = vmatpush1.bf16.msra.mxu0 %v3461
  %3505 = vmatprep.subr.bf16.mxu0 0
  %3506 = vmatpush2.bf16.msra.mxu0 0
  %3507 = vmatprep.subr.bf16.mxu0 0
  %3508 = vmatpush2.bf16.msra.mxu0 0
  %3509 = vmatprep.subr.bf16.mxu0 0
  %3510 = vmatpush2.bf16.msra.mxu0 0
  %3511 = vmatprep.subr.bf16.mxu0 0
  %3512 = vmatpush2.bf16.msra.mxu0 0
  %3513 = vmatprep.subr.bf16.mxu0 0
  %3514 = vmatpush2.bf16.msra.mxu0 0
  %3515 = vmatprep.subr.bf16.mxu0 0
  %3516 = vmatpush2.bf16.msra.mxu0 0
  %3517 = vmatprep.subr.bf16.mxu0 0
  %3518 = vmatpush2.bf16.msra.mxu0 0
  %3519 = vmatprep.subr.bf16.mxu0 0
  %3520 = vmatpush2.bf16.msra.mxu0 0
  %3521 = vmatprep.mubr.bf16.mxu0 0
  %3522 = vmatmul.mubr.bf16.gmra.mxu0 %v3466
  %v3523 = vpop.f32.mrf.mxu0
  %v3524 = vadd.f32 0.0, %v3523
  %v3525 = vpop.f32.mrf.mxu0
  %v3526 = vpop.f32.mrf.mxu0
  %v3527 = vadd.f32 0.0, %v3526
  %v3528 = vpop.f32.mrf.mxu0
  %3529 = vmatprep.mubr.bf16.mxu0 0
  %3530 = vmatmul.mubr.bf16.gmra.mxu0 %v3469
  %v3531 = vpop.f32.mrf.mxu0
  %v3532 = vadd.f32 0.0, %v3531
  %v3533 = vpop.f32.mrf.mxu0
  %v3534 = vpop.f32.mrf.mxu0
  %v3535 = vadd.f32 0.0, %v3534
  %v3536 = vpop.f32.mrf.mxu0
  %3537 = vmatprep.mubr.bf16.mxu0 0
  %3538 = vmatmul.mubr.bf16.gmra.mxu0 %v3472
  %v3539 = vpop.f32.mrf.mxu0
  %v3540 = vadd.f32 0.0, %v3539
  %v3541 = vpop.f32.mrf.mxu0
  %v3542 = vpop.f32.mrf.mxu0
  %v3543 = vadd.f32 0.0, %v3542
  %v3544 = vpop.f32.mrf.mxu0
  %3545 = vmatprep.mubr.bf16.mxu0 0
  %3546 = vmatmul.mubr.bf16.gmra.mxu0 %v3475
  %v3547 = vpop.f32.mrf.mxu0
  %v3548 = vadd.f32 0.0, %v3547
  %v3549 = vpop.f32.mrf.mxu0
  %v3550 = vpop.f32.mrf.mxu0
  %v3551 = vadd.f32 0.0, %v3550
  %v3552 = vpop.f32.mrf.mxu0
  %3553 = vmatprep.mubr.bf16.mxu0 0
  %3554 = vmatmul.mubr.bf16.gmra.mxu0 %v3478
  %v3555 = vpop.f32.mrf.mxu0
  %v3556 = vadd.f32 0.0, %v3555
  %v3557 = vpop.f32.mrf.mxu0
  %v3558 = vpop.f32.mrf.mxu0
  %v3559 = vadd.f32 0.0, %v3558
  %v3560 = vpop.f32.mrf.mxu0
  %3561 = vmatprep.mubr.bf16.mxu0 0
  %3562 = vmatmul.mubr.bf16.gmra.mxu0 %v3481
  %v3563 = vpop.f32.mrf.mxu0
  %v3564 = vadd.f32 0.0, %v3563
  %v3565 = vpop.f32.mrf.mxu0
  %v3566 = vpop.f32.mrf.mxu0
  %v3567 = vadd.f32 0.0, %v3566
  %v3568 = vpop.f32.mrf.mxu0
  %3569 = vmatprep.mubr.bf16.mxu0 0
  %3570 = vmatmul.mubr.bf16.gmra.mxu0 %v3484
  %v3571 = vpop.f32.mrf.mxu0
  %v3572 = vadd.f32 0.0, %v3571
  %v3573 = vpop.f32.mrf.mxu0
  %v3574 = vpop.f32.mrf.mxu0
  %v3575 = vadd.f32 0.0, %v3574
  %v3576 = vpop.f32.mrf.mxu0
  %3577 = vmatprep.mubr.bf16.mxu0 0
  %3578 = vmatmul.mubr.bf16.gmra.mxu0 %v3487
  %v3579 = vpop.f32.mrf.mxu0
  %v3580 = vadd.f32 0.0, %v3579
  %v3581 = vpop.f32.mrf.mxu0
  %v3582 = vpop.f32.mrf.mxu0
  %v3583 = vadd.f32 0.0, %v3582
  %v3584 = vpop.f32.mrf.mxu0
  %3585 = vdwg.mxu0
  %v3586 = vadd.f32 %v3037, %v3524
  %v3587 = vadd.f32 %v3038, %v3527
  %v3588 = vadd.f32 %v3039, %v3532
  %v3589 = vadd.f32 %v3040, %v3535
  %v3590 = vadd.f32 %v3041, %v3540
  %v3591 = vadd.f32 %v3042, %v3543
  %v3592 = vadd.f32 %v3043, %v3548
  %v3593 = vadd.f32 %v3044, %v3551
  %v3594 = vadd.f32 %v3045, %v3556
  %v3595 = vadd.f32 %v3046, %v3559
  %v3596 = vadd.f32 %v3047, %v3564
  %v3597 = vadd.f32 %v3048, %v3567
  %v3598 = vadd.f32 %v3049, %v3572
  %v3599 = vadd.f32 %v3050, %v3575
  %v3600 = vadd.f32 %v3051, %v3580
  %v3601 = vadd.f32 %v3052, %v3583
  %s3602 = scalar_lea.vmem %s3, 1280
  %v3603 = vld [vmem:[%s3602] sm:$0xff]
  %v3604 = vld [vmem:[%s3602 + $0x8] sm:$0xff]
  %v3605 = vld [vmem:[%s3602 + $0x10] sm:$0xff]
  %v3606 = vld [vmem:[%s3602 + $0x18] sm:$0xff]
  %v3607 = vld [vmem:[%s3602 + $0x20] sm:$0xff]
  %v3608 = vld [vmem:[%s3602 + $0x28] sm:$0xff]
  %v3609 = vld [vmem:[%s3602 + $0x30] sm:$0xff]
  %v3610 = vld [vmem:[%s3602 + $0x38] sm:$0xff]
  %v3611 = vld [vmem:[%s3602 + $0x40] sm:$0xff]
  %v3612 = vld [vmem:[%s3602 + $0x48] sm:$0xff]
  %v3613 = vld [vmem:[%s3602 + $0x50] sm:$0xff]
  %v3614 = vld [vmem:[%s3602 + $0x58] sm:$0xff]
  %v3615 = vld [vmem:[%s3602 + $0x60] sm:$0xff]
  %v3616 = vld [vmem:[%s3602 + $0x68] sm:$0xff]
  %v3617 = vld [vmem:[%s3602 + $0x70] sm:$0xff]
  %v3618 = vld [vmem:[%s3602 + $0x78] sm:$0xff]
  %v3619 = vld [vmem:[%s3602 + $0x80] sm:$0xff]
  %v3620 = vld [vmem:[%s3602 + $0x88] sm:$0xff]
  %v3621 = vld [vmem:[%s3602 + $0x90] sm:$0xff]
  %v3622 = vld [vmem:[%s3602 + $0x98] sm:$0xff]
  %v3623 = vld [vmem:[%s3602 + $0xa0] sm:$0xff]
  %v3624 = vld [vmem:[%s3602 + $0xa8] sm:$0xff]
  %v3625 = vld [vmem:[%s3602 + $0xb0] sm:$0xff]
  %v3626 = vld [vmem:[%s3602 + $0xb8] sm:$0xff]
  %v3627 = vld [vmem:[%s3602 + $0xc0] sm:$0xff]
  %v3628 = vld [vmem:[%s3602 + $0xc8] sm:$0xff]
  %v3629 = vld [vmem:[%s3602 + $0xd0] sm:$0xff]
  %v3630 = vld [vmem:[%s3602 + $0xd8] sm:$0xff]
  %v3631 = vld [vmem:[%s3602 + $0xe0] sm:$0xff]
  %v3632 = vld [vmem:[%s3602 + $0xe8] sm:$0xff]
  %v3633 = vld [vmem:[%s3602 + $0xf0] sm:$0xff]
  %v3634 = vld [vmem:[%s3602 + $0xf8] sm:$0xff]
  %v3667 = vunpack.c.l.b16 %v3603
  %v3668 = vunpack.c.h.b16 %v3603
  %v3669 = vunpack.c.l.b16 %v3604
  %v3670 = vunpack.c.h.b16 %v3604
  %v3671 = vunpack.c.l.b16 %v3605
  %v3672 = vunpack.c.h.b16 %v3605
  %v3673 = vunpack.c.l.b16 %v3606
  %v3674 = vunpack.c.h.b16 %v3606
  %v3675 = vunpack.c.l.b16 %v3607
  %v3676 = vunpack.c.h.b16 %v3607
  %v3677 = vunpack.c.l.b16 %v3608
  %v3678 = vunpack.c.h.b16 %v3608
  %v3679 = vunpack.c.l.b16 %v3609
  %v3680 = vunpack.c.h.b16 %v3609
  %v3681 = vunpack.c.l.b16 %v3610
  %v3682 = vunpack.c.h.b16 %v3610
  %v3683 = vunpack.c.l.b16 %v3611
  %v3684 = vunpack.c.h.b16 %v3611
  %v3685 = vunpack.c.l.b16 %v3612
  %v3686 = vunpack.c.h.b16 %v3612
  %v3687 = vunpack.c.l.b16 %v3613
  %v3688 = vunpack.c.h.b16 %v3613
  %v3689 = vunpack.c.l.b16 %v3614
  %v3690 = vunpack.c.h.b16 %v3614
  %v3691 = vunpack.c.l.b16 %v3615
  %v3692 = vunpack.c.h.b16 %v3615
  %v3693 = vunpack.c.l.b16 %v3616
  %v3694 = vunpack.c.h.b16 %v3616
  %v3695 = vunpack.c.l.b16 %v3617
  %v3696 = vunpack.c.h.b16 %v3617
  %v3697 = vunpack.c.l.b16 %v3618
  %v3698 = vunpack.c.h.b16 %v3618
  %v3699 = vunpack.c.l.b16 %v3619
  %v3700 = vunpack.c.h.b16 %v3619
  %v3701 = vunpack.c.l.b16 %v3620
  %v3702 = vunpack.c.h.b16 %v3620
  %v3703 = vunpack.c.l.b16 %v3621
  %v3704 = vunpack.c.h.b16 %v3621
  %v3705 = vunpack.c.l.b16 %v3622
  %v3706 = vunpack.c.h.b16 %v3622
  %v3707 = vunpack.c.l.b16 %v3623
  %v3708 = vunpack.c.h.b16 %v3623
  %v3709 = vunpack.c.l.b16 %v3624
  %v3710 = vunpack.c.h.b16 %v3624
  %v3711 = vunpack.c.l.b16 %v3625
  %v3712 = vunpack.c.h.b16 %v3625
  %v3713 = vunpack.c.l.b16 %v3626
  %v3714 = vunpack.c.h.b16 %v3626
  %v3715 = vunpack.c.l.b16 %v3627
  %v3716 = vunpack.c.h.b16 %v3627
  %v3717 = vunpack.c.l.b16 %v3628
  %v3718 = vunpack.c.h.b16 %v3628
  %v3719 = vunpack.c.l.b16 %v3629
  %v3720 = vunpack.c.h.b16 %v3629
  %v3721 = vunpack.c.l.b16 %v3630
  %v3722 = vunpack.c.h.b16 %v3630
  %v3723 = vunpack.c.l.b16 %v3631
  %v3724 = vunpack.c.h.b16 %v3631
  %v3725 = vunpack.c.l.b16 %v3632
  %v3726 = vunpack.c.h.b16 %v3632
  %v3727 = vunpack.c.l.b16 %v3633
  %v3728 = vunpack.c.h.b16 %v3633
  %v3729 = vunpack.c.l.b16 %v3634
  %v3730 = vunpack.c.h.b16 %v3634
  %v3731 = vpack.c.b16 %v3671, %v3667
  %v3732 = vpack.c.b16 %v3672, %v3668
  %v3733 = vpack.c.b16 %v3673, %v3669
  %v3734 = vpack.c.b16 %v3674, %v3670
  %v3735 = vpack.c.b16 %v3679, %v3675
  %v3736 = vpack.c.b16 %v3680, %v3676
  %v3737 = vpack.c.b16 %v3681, %v3677
  %v3738 = vpack.c.b16 %v3682, %v3678
  %v3739 = vpack.c.b16 %v3687, %v3683
  %v3740 = vpack.c.b16 %v3688, %v3684
  %v3741 = vpack.c.b16 %v3689, %v3685
  %v3742 = vpack.c.b16 %v3690, %v3686
  %v3743 = vpack.c.b16 %v3695, %v3691
  %v3744 = vpack.c.b16 %v3696, %v3692
  %v3745 = vpack.c.b16 %v3697, %v3693
  %v3746 = vpack.c.b16 %v3698, %v3694
  %v3747 = vpack.c.b16 %v3703, %v3699
  %v3748 = vpack.c.b16 %v3704, %v3700
  %v3749 = vpack.c.b16 %v3705, %v3701
  %v3750 = vpack.c.b16 %v3706, %v3702
  %v3751 = vpack.c.b16 %v3711, %v3707
  %v3752 = vpack.c.b16 %v3712, %v3708
  %v3753 = vpack.c.b16 %v3713, %v3709
  %v3754 = vpack.c.b16 %v3714, %v3710
  %v3755 = vpack.c.b16 %v3719, %v3715
  %v3756 = vpack.c.b16 %v3720, %v3716
  %v3757 = vpack.c.b16 %v3721, %v3717
  %v3758 = vpack.c.b16 %v3722, %v3718
  %v3759 = vpack.c.b16 %v3727, %v3723
  %v3760 = vpack.c.b16 %v3728, %v3724
  %v3761 = vpack.c.b16 %v3729, %v3725
  %v3762 = vpack.c.b16 %v3730, %v3726
  %3795 = vmatprep.subr.bf16.mxu0 0
  %3796 = vmatpush1.bf16.msra.mxu0 %v865
  %3797 = vmatprep.subr.bf16.mxu0 0
  %3798 = vmatpush1.bf16.msra.mxu0 %v864
  %3799 = vmatprep.subr.bf16.mxu0 0
  %3800 = vmatpush1.bf16.msra.mxu0 %v863
  %3801 = vmatprep.subr.bf16.mxu0 0
  %3802 = vmatpush1.bf16.msra.mxu0 %v862
  %3803 = vmatprep.subr.bf16.mxu0 0
  %3804 = vmatpush1.bf16.msra.mxu0 %v861
  %3805 = vmatprep.subr.bf16.mxu0 0
  %3806 = vmatpush1.bf16.msra.mxu0 %v860
  %3807 = vmatprep.subr.bf16.mxu0 0
  %3808 = vmatpush1.bf16.msra.mxu0 %v859
  %3809 = vmatprep.subr.bf16.mxu0 0
  %3810 = vmatpush1.bf16.msra.mxu0 %v858
  %3811 = vmatprep.subr.bf16.mxu0 0
  %3812 = vmatpush2.bf16.msra.mxu0 %v873
  %3813 = vmatprep.subr.bf16.mxu0 0
  %3814 = vmatpush2.bf16.msra.mxu0 %v872
  %3815 = vmatprep.subr.bf16.mxu0 0
  %3816 = vmatpush2.bf16.msra.mxu0 %v871
  %3817 = vmatprep.subr.bf16.mxu0 0
  %3818 = vmatpush2.bf16.msra.mxu0 %v870
  %3819 = vmatprep.subr.bf16.mxu0 0
  %3820 = vmatpush2.bf16.msra.mxu0 %v869
  %3821 = vmatprep.subr.bf16.mxu0 0
  %3822 = vmatpush2.bf16.msra.mxu0 %v868
  %3823 = vmatprep.subr.bf16.mxu0 0
  %3824 = vmatpush2.bf16.msra.mxu0 %v867
  %3825 = vmatprep.subr.bf16.mxu0 0
  %3826 = vmatpush2.bf16.msra.mxu0 %v866
  %3827 = vmatprep.mubr.bf16.mxu0 %v3732
  %3828 = vmatmul.mubr.bf16.gmra.mxu0 %v3731
  %v3829 = vpop.f32.mrf.mxu0
  %v3830 = vadd.f32 0.0, %v3829
  %v3831 = vpop.f32.mrf.mxu0
  %v3832 = vpop.f32.mrf.mxu0
  %v3833 = vadd.f32 0.0, %v3832
  %v3834 = vpop.f32.mrf.mxu0
  %3835 = vmatprep.mubr.bf16.mxu0 %v3736
  %3836 = vmatmul.mubr.bf16.gmra.mxu0 %v3735
  %v3837 = vpop.f32.mrf.mxu0
  %v3838 = vadd.f32 0.0, %v3837
  %v3839 = vpop.f32.mrf.mxu0
  %v3840 = vpop.f32.mrf.mxu0
  %v3841 = vadd.f32 0.0, %v3840
  %v3842 = vpop.f32.mrf.mxu0
  %3843 = vmatprep.mubr.bf16.mxu0 %v3740
  %3844 = vmatmul.mubr.bf16.gmra.mxu0 %v3739
  %v3845 = vpop.f32.mrf.mxu0
  %v3846 = vadd.f32 0.0, %v3845
  %v3847 = vpop.f32.mrf.mxu0
  %v3848 = vpop.f32.mrf.mxu0
  %v3849 = vadd.f32 0.0, %v3848
  %v3850 = vpop.f32.mrf.mxu0
  %3851 = vmatprep.mubr.bf16.mxu0 %v3744
  %3852 = vmatmul.mubr.bf16.gmra.mxu0 %v3743
  %v3853 = vpop.f32.mrf.mxu0
  %v3854 = vadd.f32 0.0, %v3853
  %v3855 = vpop.f32.mrf.mxu0
  %v3856 = vpop.f32.mrf.mxu0
  %v3857 = vadd.f32 0.0, %v3856
  %v3858 = vpop.f32.mrf.mxu0
  %3859 = vmatprep.mubr.bf16.mxu0 %v3748
  %3860 = vmatmul.mubr.bf16.gmra.mxu0 %v3747
  %v3861 = vpop.f32.mrf.mxu0
  %v3862 = vadd.f32 0.0, %v3861
  %v3863 = vpop.f32.mrf.mxu0
  %v3864 = vpop.f32.mrf.mxu0
  %v3865 = vadd.f32 0.0, %v3864
  %v3866 = vpop.f32.mrf.mxu0
  %3867 = vmatprep.mubr.bf16.mxu0 %v3752
  %3868 = vmatmul.mubr.bf16.gmra.mxu0 %v3751
  %v3869 = vpop.f32.mrf.mxu0
  %v3870 = vadd.f32 0.0, %v3869
  %v3871 = vpop.f32.mrf.mxu0
  %v3872 = vpop.f32.mrf.mxu0
  %v3873 = vadd.f32 0.0, %v3872
  %v3874 = vpop.f32.mrf.mxu0
  %3875 = vmatprep.mubr.bf16.mxu0 %v3756
  %3876 = vmatmul.mubr.bf16.gmra.mxu0 %v3755
  %v3877 = vpop.f32.mrf.mxu0
  %v3878 = vadd.f32 0.0, %v3877
  %v3879 = vpop.f32.mrf.mxu0
  %v3880 = vpop.f32.mrf.mxu0
  %v3881 = vadd.f32 0.0, %v3880
  %v3882 = vpop.f32.mrf.mxu0
  %3883 = vmatprep.mubr.bf16.mxu0 %v3760
  %3884 = vmatmul.mubr.bf16.gmra.mxu0 %v3759
  %v3885 = vpop.f32.mrf.mxu0
  %v3886 = vadd.f32 0.0, %v3885
  %v3887 = vpop.f32.mrf.mxu0
  %v3888 = vpop.f32.mrf.mxu0
  %v3889 = vadd.f32 0.0, %v3888
  %v3890 = vpop.f32.mrf.mxu0
  %3891 = vdwg.mxu0
  %3892 = vmatprep.subr.bf16.mxu0 0
  %3893 = vmatpush1.bf16.msra.mxu0 %v881
  %3894 = vmatprep.subr.bf16.mxu0 0
  %3895 = vmatpush1.bf16.msra.mxu0 %v880
  %3896 = vmatprep.subr.bf16.mxu0 0
  %3897 = vmatpush1.bf16.msra.mxu0 %v879
  %3898 = vmatprep.subr.bf16.mxu0 0
  %3899 = vmatpush1.bf16.msra.mxu0 %v878
  %3900 = vmatprep.subr.bf16.mxu0 0
  %3901 = vmatpush1.bf16.msra.mxu0 %v877
  %3902 = vmatprep.subr.bf16.mxu0 0
  %3903 = vmatpush1.bf16.msra.mxu0 %v876
  %3904 = vmatprep.subr.bf16.mxu0 0
  %3905 = vmatpush1.bf16.msra.mxu0 %v875
  %3906 = vmatprep.subr.bf16.mxu0 0
  %3907 = vmatpush1.bf16.msra.mxu0 %v874
  %3908 = vmatprep.subr.bf16.mxu0 0
  %3909 = vmatpush2.bf16.msra.mxu0 %v889
  %3910 = vmatprep.subr.bf16.mxu0 0
  %3911 = vmatpush2.bf16.msra.mxu0 %v888
  %3912 = vmatprep.subr.bf16.mxu0 0
  %3913 = vmatpush2.bf16.msra.mxu0 %v887
  %3914 = vmatprep.subr.bf16.mxu0 0
  %3915 = vmatpush2.bf16.msra.mxu0 %v886
  %3916 = vmatprep.subr.bf16.mxu0 0
  %3917 = vmatpush2.bf16.msra.mxu0 %v885
  %3918 = vmatprep.subr.bf16.mxu0 0
  %3919 = vmatpush2.bf16.msra.mxu0 %v884
  %3920 = vmatprep.subr.bf16.mxu0 0
  %3921 = vmatpush2.bf16.msra.mxu0 %v883
  %3922 = vmatprep.subr.bf16.mxu0 0
  %3923 = vmatpush2.bf16.msra.mxu0 %v882
  %3924 = vmatprep.mubr.bf16.mxu0 %v3734
  %3925 = vmatmul.mubr.bf16.gmra.mxu0 %v3733
  %v3926 = vpop.f32.mrf.mxu0
  %v3927 = vadd.f32 %v3830, %v3926
  %v3928 = vpop.f32.mrf.mxu0
  %v3929 = vpop.f32.mrf.mxu0
  %v3930 = vadd.f32 %v3833, %v3929
  %v3931 = vpop.f32.mrf.mxu0
  %3932 = vmatprep.mubr.bf16.mxu0 %v3738
  %3933 = vmatmul.mubr.bf16.gmra.mxu0 %v3737
  %v3934 = vpop.f32.mrf.mxu0
  %v3935 = vadd.f32 %v3838, %v3934
  %v3936 = vpop.f32.mrf.mxu0
  %v3937 = vpop.f32.mrf.mxu0
  %v3938 = vadd.f32 %v3841, %v3937
  %v3939 = vpop.f32.mrf.mxu0
  %3940 = vmatprep.mubr.bf16.mxu0 %v3742
  %3941 = vmatmul.mubr.bf16.gmra.mxu0 %v3741
  %v3942 = vpop.f32.mrf.mxu0
  %v3943 = vadd.f32 %v3846, %v3942
  %v3944 = vpop.f32.mrf.mxu0
  %v3945 = vpop.f32.mrf.mxu0
  %v3946 = vadd.f32 %v3849, %v3945
  %v3947 = vpop.f32.mrf.mxu0
  %3948 = vmatprep.mubr.bf16.mxu0 %v3746
  %3949 = vmatmul.mubr.bf16.gmra.mxu0 %v3745
  %v3950 = vpop.f32.mrf.mxu0
  %v3951 = vadd.f32 %v3854, %v3950
  %v3952 = vpop.f32.mrf.mxu0
  %v3953 = vpop.f32.mrf.mxu0
  %v3954 = vadd.f32 %v3857, %v3953
  %v3955 = vpop.f32.mrf.mxu0
  %3956 = vmatprep.mubr.bf16.mxu0 %v3750
  %3957 = vmatmul.mubr.bf16.gmra.mxu0 %v3749
  %v3958 = vpop.f32.mrf.mxu0
  %v3959 = vadd.f32 %v3862, %v3958
  %v3960 = vpop.f32.mrf.mxu0
  %v3961 = vpop.f32.mrf.mxu0
  %v3962 = vadd.f32 %v3865, %v3961
  %v3963 = vpop.f32.mrf.mxu0
  %3964 = vmatprep.mubr.bf16.mxu0 %v3754
  %3965 = vmatmul.mubr.bf16.gmra.mxu0 %v3753
  %v3966 = vpop.f32.mrf.mxu0
  %v3967 = vadd.f32 %v3870, %v3966
  %v3968 = vpop.f32.mrf.mxu0
  %v3969 = vpop.f32.mrf.mxu0
  %v3970 = vadd.f32 %v3873, %v3969
  %v3971 = vpop.f32.mrf.mxu0
  %3972 = vmatprep.mubr.bf16.mxu0 %v3758
  %3973 = vmatmul.mubr.bf16.gmra.mxu0 %v3757
  %v3974 = vpop.f32.mrf.mxu0
  %v3975 = vadd.f32 %v3878, %v3974
  %v3976 = vpop.f32.mrf.mxu0
  %v3977 = vpop.f32.mrf.mxu0
  %v3978 = vadd.f32 %v3881, %v3977
  %v3979 = vpop.f32.mrf.mxu0
  %3980 = vmatprep.mubr.bf16.mxu0 %v3762
  %3981 = vmatmul.mubr.bf16.gmra.mxu0 %v3761
  %v3982 = vpop.f32.mrf.mxu0
  %v3983 = vadd.f32 %v3886, %v3982
  %v3984 = vpop.f32.mrf.mxu0
  %v3985 = vpop.f32.mrf.mxu0
  %v3986 = vadd.f32 %v3889, %v3985
  %v3987 = vpop.f32.mrf.mxu0
  %3988 = vdwg.mxu0
  %v3989 = vpack.c.bf16 %v3930, %v3927
  %v3990 = vpack.c.bf16 %v3938, %v3935
  %v3991 = vpack.c.bf16 %v3946, %v3943
  %v3992 = vpack.c.bf16 %v3954, %v3951
  %v3993 = vpack.c.bf16 %v3962, %v3959
  %v3994 = vpack.c.bf16 %v3970, %v3967
  %v3995 = vpack.c.bf16 %v3978, %v3975
  %v3996 = vpack.c.bf16 %v3986, %v3983
  %s3997 = scalar_lea.vmem %s4, 80
  %v3998 = vld [vmem:[%s3997] sm:$0xf]
  %v3999 = vld [vmem:[%s3997 + $0x4] sm:$0xf]
  %v4000 = vld [vmem:[%s3997 + $0x8] sm:$0xf]
  %v4001 = vld [vmem:[%s3997 + $0xc] sm:$0xf]
  %v4006 = vunpack.c.l.b16 %v3998
  %v4007 = vunpack.c.l.b16 %v3999
  %v4008 = vunpack.c.l.b16 %v4000
  %v4009 = vunpack.c.l.b16 %v4001
  %v4010 = vpack.c.b16 %v4007, %v4006
  %v4011 = vpack.c.b16 %v4009, %v4008
  %v4015 = vsel %vm1700, %v3989, 0
  %v4018 = vsel %vm1700, %v3990, 0
  %v4021 = vsel %vm1700, %v3991, 0
  %v4024 = vsel %vm1700, %v3992, 0
  %v4027 = vsel %vm1700, %v3993, 0
  %v4030 = vsel %vm1700, %v3994, 0
  %v4033 = vsel %vm1700, %v3995, 0
  %v4036 = vsel %vm1700, %v3996, 0
  %4038 = vmatprep.subr.bf16.mxu0 0
  %4039 = vmatpush1.bf16.msra.mxu0 0
  %4040 = vmatprep.subr.bf16.mxu0 0
  %4041 = vmatpush1.bf16.msra.mxu0 0
  %4042 = vmatprep.subr.bf16.mxu0 0
  %4043 = vmatpush1.bf16.msra.mxu0 0
  %4044 = vmatprep.subr.bf16.mxu0 0
  %4045 = vmatpush1.bf16.msra.mxu0 0
  %4046 = vmatprep.subr.bf16.mxu0 0
  %4047 = vmatpush1.bf16.msra.mxu0 0
  %4048 = vmatprep.subr.bf16.mxu0 0
  %4049 = vmatpush1.bf16.msra.mxu0 0
  %4050 = vmatprep.subr.bf16.mxu0 0
  %4051 = vmatpush1.bf16.msra.mxu0 %v4011
  %4052 = vmatprep.subr.bf16.mxu0 0
  %4053 = vmatpush1.bf16.msra.mxu0 %v4010
  %4054 = vmatprep.subr.bf16.mxu0 0
  %4055 = vmatpush2.bf16.msra.mxu0 0
  %4056 = vmatprep.subr.bf16.mxu0 0
  %4057 = vmatpush2.bf16.msra.mxu0 0
  %4058 = vmatprep.subr.bf16.mxu0 0
  %4059 = vmatpush2.bf16.msra.mxu0 0
  %4060 = vmatprep.subr.bf16.mxu0 0
  %4061 = vmatpush2.bf16.msra.mxu0 0
  %4062 = vmatprep.subr.bf16.mxu0 0
  %4063 = vmatpush2.bf16.msra.mxu0 0
  %4064 = vmatprep.subr.bf16.mxu0 0
  %4065 = vmatpush2.bf16.msra.mxu0 0
  %4066 = vmatprep.subr.bf16.mxu0 0
  %4067 = vmatpush2.bf16.msra.mxu0 0
  %4068 = vmatprep.subr.bf16.mxu0 0
  %4069 = vmatpush2.bf16.msra.mxu0 0
  %4070 = vmatprep.mubr.bf16.mxu0 0
  %4071 = vmatmul.mubr.bf16.gmra.mxu0 %v4015
  %v4072 = vpop.f32.mrf.mxu0
  %v4073 = vadd.f32 0.0, %v4072
  %v4074 = vpop.f32.mrf.mxu0
  %v4075 = vpop.f32.mrf.mxu0
  %v4076 = vadd.f32 0.0, %v4075
  %v4077 = vpop.f32.mrf.mxu0
  %4078 = vmatprep.mubr.bf16.mxu0 0
  %4079 = vmatmul.mubr.bf16.gmra.mxu0 %v4018
  %v4080 = vpop.f32.mrf.mxu0
  %v4081 = vadd.f32 0.0, %v4080
  %v4082 = vpop.f32.mrf.mxu0
  %v4083 = vpop.f32.mrf.mxu0
  %v4084 = vadd.f32 0.0, %v4083
  %v4085 = vpop.f32.mrf.mxu0
  %4086 = vmatprep.mubr.bf16.mxu0 0
  %4087 = vmatmul.mubr.bf16.gmra.mxu0 %v4021
  %v4088 = vpop.f32.mrf.mxu0
  %v4089 = vadd.f32 0.0, %v4088
  %v4090 = vpop.f32.mrf.mxu0
  %v4091 = vpop.f32.mrf.mxu0
  %v4092 = vadd.f32 0.0, %v4091
  %v4093 = vpop.f32.mrf.mxu0
  %4094 = vmatprep.mubr.bf16.mxu0 0
  %4095 = vmatmul.mubr.bf16.gmra.mxu0 %v4024
  %v4096 = vpop.f32.mrf.mxu0
  %v4097 = vadd.f32 0.0, %v4096
  %v4098 = vpop.f32.mrf.mxu0
  %v4099 = vpop.f32.mrf.mxu0
  %v4100 = vadd.f32 0.0, %v4099
  %v4101 = vpop.f32.mrf.mxu0
  %4102 = vmatprep.mubr.bf16.mxu0 0
  %4103 = vmatmul.mubr.bf16.gmra.mxu0 %v4027
  %v4104 = vpop.f32.mrf.mxu0
  %v4105 = vadd.f32 0.0, %v4104
  %v4106 = vpop.f32.mrf.mxu0
  %v4107 = vpop.f32.mrf.mxu0
  %v4108 = vadd.f32 0.0, %v4107
  %v4109 = vpop.f32.mrf.mxu0
  %4110 = vmatprep.mubr.bf16.mxu0 0
  %4111 = vmatmul.mubr.bf16.gmra.mxu0 %v4030
  %v4112 = vpop.f32.mrf.mxu0
  %v4113 = vadd.f32 0.0, %v4112
  %v4114 = vpop.f32.mrf.mxu0
  %v4115 = vpop.f32.mrf.mxu0
  %v4116 = vadd.f32 0.0, %v4115
  %v4117 = vpop.f32.mrf.mxu0
  %4118 = vmatprep.mubr.bf16.mxu0 0
  %4119 = vmatmul.mubr.bf16.gmra.mxu0 %v4033
  %v4120 = vpop.f32.mrf.mxu0
  %v4121 = vadd.f32 0.0, %v4120
  %v4122 = vpop.f32.mrf.mxu0
  %v4123 = vpop.f32.mrf.mxu0
  %v4124 = vadd.f32 0.0, %v4123
  %v4125 = vpop.f32.mrf.mxu0
  %4126 = vmatprep.mubr.bf16.mxu0 0
  %4127 = vmatmul.mubr.bf16.gmra.mxu0 %v4036
  %v4128 = vpop.f32.mrf.mxu0
  %v4129 = vadd.f32 0.0, %v4128
  %v4130 = vpop.f32.mrf.mxu0
  %v4131 = vpop.f32.mrf.mxu0
  %v4132 = vadd.f32 0.0, %v4131
  %v4133 = vpop.f32.mrf.mxu0
  %4134 = vdwg.mxu0
  %v4135 = vadd.f32 %v3586, %v4073
  %v4136 = vadd.f32 %v3587, %v4076
  %v4137 = vadd.f32 %v3588, %v4081
  %v4138 = vadd.f32 %v3589, %v4084
  %v4139 = vadd.f32 %v3590, %v4089
  %v4140 = vadd.f32 %v3591, %v4092
  %v4141 = vadd.f32 %v3592, %v4097
  %v4142 = vadd.f32 %v3593, %v4100
  %v4143 = vadd.f32 %v3594, %v4105
  %v4144 = vadd.f32 %v3595, %v4108
  %v4145 = vadd.f32 %v3596, %v4113
  %v4146 = vadd.f32 %v3597, %v4116
  %v4147 = vadd.f32 %v3598, %v4121
  %v4148 = vadd.f32 %v3599, %v4124
  %v4149 = vadd.f32 %v3600, %v4129
  %v4150 = vadd.f32 %v3601, %v4132
  %s4151 = scalar_lea.vmem %s3, 1536
  %v4152 = vld [vmem:[%s4151] sm:$0xff]
  %v4153 = vld [vmem:[%s4151 + $0x8] sm:$0xff]
  %v4154 = vld [vmem:[%s4151 + $0x10] sm:$0xff]
  %v4155 = vld [vmem:[%s4151 + $0x18] sm:$0xff]
  %v4156 = vld [vmem:[%s4151 + $0x20] sm:$0xff]
  %v4157 = vld [vmem:[%s4151 + $0x28] sm:$0xff]
  %v4158 = vld [vmem:[%s4151 + $0x30] sm:$0xff]
  %v4159 = vld [vmem:[%s4151 + $0x38] sm:$0xff]
  %v4160 = vld [vmem:[%s4151 + $0x40] sm:$0xff]
  %v4161 = vld [vmem:[%s4151 + $0x48] sm:$0xff]
  %v4162 = vld [vmem:[%s4151 + $0x50] sm:$0xff]
  %v4163 = vld [vmem:[%s4151 + $0x58] sm:$0xff]
  %v4164 = vld [vmem:[%s4151 + $0x60] sm:$0xff]
  %v4165 = vld [vmem:[%s4151 + $0x68] sm:$0xff]
  %v4166 = vld [vmem:[%s4151 + $0x70] sm:$0xff]
  %v4167 = vld [vmem:[%s4151 + $0x78] sm:$0xff]
  %v4168 = vld [vmem:[%s4151 + $0x80] sm:$0xff]
  %v4169 = vld [vmem:[%s4151 + $0x88] sm:$0xff]
  %v4170 = vld [vmem:[%s4151 + $0x90] sm:$0xff]
  %v4171 = vld [vmem:[%s4151 + $0x98] sm:$0xff]
  %v4172 = vld [vmem:[%s4151 + $0xa0] sm:$0xff]
  %v4173 = vld [vmem:[%s4151 + $0xa8] sm:$0xff]
  %v4174 = vld [vmem:[%s4151 + $0xb0] sm:$0xff]
  %v4175 = vld [vmem:[%s4151 + $0xb8] sm:$0xff]
  %v4176 = vld [vmem:[%s4151 + $0xc0] sm:$0xff]
  %v4177 = vld [vmem:[%s4151 + $0xc8] sm:$0xff]
  %v4178 = vld [vmem:[%s4151 + $0xd0] sm:$0xff]
  %v4179 = vld [vmem:[%s4151 + $0xd8] sm:$0xff]
  %v4180 = vld [vmem:[%s4151 + $0xe0] sm:$0xff]
  %v4181 = vld [vmem:[%s4151 + $0xe8] sm:$0xff]
  %v4182 = vld [vmem:[%s4151 + $0xf0] sm:$0xff]
  %v4183 = vld [vmem:[%s4151 + $0xf8] sm:$0xff]
  %v4216 = vunpack.c.l.b16 %v4152
  %v4217 = vunpack.c.h.b16 %v4152
  %v4218 = vunpack.c.l.b16 %v4153
  %v4219 = vunpack.c.h.b16 %v4153
  %v4220 = vunpack.c.l.b16 %v4154
  %v4221 = vunpack.c.h.b16 %v4154
  %v4222 = vunpack.c.l.b16 %v4155
  %v4223 = vunpack.c.h.b16 %v4155
  %v4224 = vunpack.c.l.b16 %v4156
  %v4225 = vunpack.c.h.b16 %v4156
  %v4226 = vunpack.c.l.b16 %v4157
  %v4227 = vunpack.c.h.b16 %v4157
  %v4228 = vunpack.c.l.b16 %v4158
  %v4229 = vunpack.c.h.b16 %v4158
  %v4230 = vunpack.c.l.b16 %v4159
  %v4231 = vunpack.c.h.b16 %v4159
  %v4232 = vunpack.c.l.b16 %v4160
  %v4233 = vunpack.c.h.b16 %v4160
  %v4234 = vunpack.c.l.b16 %v4161
  %v4235 = vunpack.c.h.b16 %v4161
  %v4236 = vunpack.c.l.b16 %v4162
  %v4237 = vunpack.c.h.b16 %v4162
  %v4238 = vunpack.c.l.b16 %v4163
  %v4239 = vunpack.c.h.b16 %v4163
  %v4240 = vunpack.c.l.b16 %v4164
  %v4241 = vunpack.c.h.b16 %v4164
  %v4242 = vunpack.c.l.b16 %v4165
  %v4243 = vunpack.c.h.b16 %v4165
  %v4244 = vunpack.c.l.b16 %v4166
  %v4245 = vunpack.c.h.b16 %v4166
  %v4246 = vunpack.c.l.b16 %v4167
  %v4247 = vunpack.c.h.b16 %v4167
  %v4248 = vunpack.c.l.b16 %v4168
  %v4249 = vunpack.c.h.b16 %v4168
  %v4250 = vunpack.c.l.b16 %v4169
  %v4251 = vunpack.c.h.b16 %v4169
  %v4252 = vunpack.c.l.b16 %v4170
  %v4253 = vunpack.c.h.b16 %v4170
  %v4254 = vunpack.c.l.b16 %v4171
  %v4255 = vunpack.c.h.b16 %v4171
  %v4256 = vunpack.c.l.b16 %v4172
  %v4257 = vunpack.c.h.b16 %v4172
  %v4258 = vunpack.c.l.b16 %v4173
  %v4259 = vunpack.c.h.b16 %v4173
  %v4260 = vunpack.c.l.b16 %v4174
  %v4261 = vunpack.c.h.b16 %v4174
  %v4262 = vunpack.c.l.b16 %v4175
  %v4263 = vunpack.c.h.b16 %v4175
  %v4264 = vunpack.c.l.b16 %v4176
  %v4265 = vunpack.c.h.b16 %v4176
  %v4266 = vunpack.c.l.b16 %v4177
  %v4267 = vunpack.c.h.b16 %v4177
  %v4268 = vunpack.c.l.b16 %v4178
  %v4269 = vunpack.c.h.b16 %v4178
  %v4270 = vunpack.c.l.b16 %v4179
  %v4271 = vunpack.c.h.b16 %v4179
  %v4272 = vunpack.c.l.b16 %v4180
  %v4273 = vunpack.c.h.b16 %v4180
  %v4274 = vunpack.c.l.b16 %v4181
  %v4275 = vunpack.c.h.b16 %v4181
  %v4276 = vunpack.c.l.b16 %v4182
  %v4277 = vunpack.c.h.b16 %v4182
  %v4278 = vunpack.c.l.b16 %v4183
  %v4279 = vunpack.c.h.b16 %v4183
  %v4280 = vpack.c.b16 %v4220, %v4216
  %v4281 = vpack.c.b16 %v4221, %v4217
  %v4282 = vpack.c.b16 %v4222, %v4218
  %v4283 = vpack.c.b16 %v4223, %v4219
  %v4284 = vpack.c.b16 %v4228, %v4224
  %v4285 = vpack.c.b16 %v4229, %v4225
  %v4286 = vpack.c.b16 %v4230, %v4226
  %v4287 = vpack.c.b16 %v4231, %v4227
  %v4288 = vpack.c.b16 %v4236, %v4232
  %v4289 = vpack.c.b16 %v4237, %v4233
  %v4290 = vpack.c.b16 %v4238, %v4234
  %v4291 = vpack.c.b16 %v4239, %v4235
  %v4292 = vpack.c.b16 %v4244, %v4240
  %v4293 = vpack.c.b16 %v4245, %v4241
  %v4294 = vpack.c.b16 %v4246, %v4242
  %v4295 = vpack.c.b16 %v4247, %v4243
  %v4296 = vpack.c.b16 %v4252, %v4248
  %v4297 = vpack.c.b16 %v4253, %v4249
  %v4298 = vpack.c.b16 %v4254, %v4250
  %v4299 = vpack.c.b16 %v4255, %v4251
  %v4300 = vpack.c.b16 %v4260, %v4256
  %v4301 = vpack.c.b16 %v4261, %v4257
  %v4302 = vpack.c.b16 %v4262, %v4258
  %v4303 = vpack.c.b16 %v4263, %v4259
  %v4304 = vpack.c.b16 %v4268, %v4264
  %v4305 = vpack.c.b16 %v4269, %v4265
  %v4306 = vpack.c.b16 %v4270, %v4266
  %v4307 = vpack.c.b16 %v4271, %v4267
  %v4308 = vpack.c.b16 %v4276, %v4272
  %v4309 = vpack.c.b16 %v4277, %v4273
  %v4310 = vpack.c.b16 %v4278, %v4274
  %v4311 = vpack.c.b16 %v4279, %v4275
  %4344 = vmatprep.subr.bf16.mxu0 0
  %4345 = vmatpush1.bf16.msra.mxu0 %v865
  %4346 = vmatprep.subr.bf16.mxu0 0
  %4347 = vmatpush1.bf16.msra.mxu0 %v864
  %4348 = vmatprep.subr.bf16.mxu0 0
  %4349 = vmatpush1.bf16.msra.mxu0 %v863
  %4350 = vmatprep.subr.bf16.mxu0 0
  %4351 = vmatpush1.bf16.msra.mxu0 %v862
  %4352 = vmatprep.subr.bf16.mxu0 0
  %4353 = vmatpush1.bf16.msra.mxu0 %v861
  %4354 = vmatprep.subr.bf16.mxu0 0
  %4355 = vmatpush1.bf16.msra.mxu0 %v860
  %4356 = vmatprep.subr.bf16.mxu0 0
  %4357 = vmatpush1.bf16.msra.mxu0 %v859
  %4358 = vmatprep.subr.bf16.mxu0 0
  %4359 = vmatpush1.bf16.msra.mxu0 %v858
  %4360 = vmatprep.subr.bf16.mxu0 0
  %4361 = vmatpush2.bf16.msra.mxu0 %v873
  %4362 = vmatprep.subr.bf16.mxu0 0
  %4363 = vmatpush2.bf16.msra.mxu0 %v872
  %4364 = vmatprep.subr.bf16.mxu0 0
  %4365 = vmatpush2.bf16.msra.mxu0 %v871
  %4366 = vmatprep.subr.bf16.mxu0 0
  %4367 = vmatpush2.bf16.msra.mxu0 %v870
  %4368 = vmatprep.subr.bf16.mxu0 0
  %4369 = vmatpush2.bf16.msra.mxu0 %v869
  %4370 = vmatprep.subr.bf16.mxu0 0
  %4371 = vmatpush2.bf16.msra.mxu0 %v868
  %4372 = vmatprep.subr.bf16.mxu0 0
  %4373 = vmatpush2.bf16.msra.mxu0 %v867
  %4374 = vmatprep.subr.bf16.mxu0 0
  %4375 = vmatpush2.bf16.msra.mxu0 %v866
  %4376 = vmatprep.mubr.bf16.mxu0 %v4281
  %4377 = vmatmul.mubr.bf16.gmra.mxu0 %v4280
  %v4378 = vpop.f32.mrf.mxu0
  %v4379 = vadd.f32 0.0, %v4378
  %v4380 = vpop.f32.mrf.mxu0
  %v4381 = vpop.f32.mrf.mxu0
  %v4382 = vadd.f32 0.0, %v4381
  %v4383 = vpop.f32.mrf.mxu0
  %4384 = vmatprep.mubr.bf16.mxu0 %v4285
  %4385 = vmatmul.mubr.bf16.gmra.mxu0 %v4284
  %v4386 = vpop.f32.mrf.mxu0
  %v4387 = vadd.f32 0.0, %v4386
  %v4388 = vpop.f32.mrf.mxu0
  %v4389 = vpop.f32.mrf.mxu0
  %v4390 = vadd.f32 0.0, %v4389
  %v4391 = vpop.f32.mrf.mxu0
  %4392 = vmatprep.mubr.bf16.mxu0 %v4289
  %4393 = vmatmul.mubr.bf16.gmra.mxu0 %v4288
  %v4394 = vpop.f32.mrf.mxu0
  %v4395 = vadd.f32 0.0, %v4394
  %v4396 = vpop.f32.mrf.mxu0
  %v4397 = vpop.f32.mrf.mxu0
  %v4398 = vadd.f32 0.0, %v4397
  %v4399 = vpop.f32.mrf.mxu0
  %4400 = vmatprep.mubr.bf16.mxu0 %v4293
  %4401 = vmatmul.mubr.bf16.gmra.mxu0 %v4292
  %v4402 = vpop.f32.mrf.mxu0
  %v4403 = vadd.f32 0.0, %v4402
  %v4404 = vpop.f32.mrf.mxu0
  %v4405 = vpop.f32.mrf.mxu0
  %v4406 = vadd.f32 0.0, %v4405
  %v4407 = vpop.f32.mrf.mxu0
  %4408 = vmatprep.mubr.bf16.mxu0 %v4297
  %4409 = vmatmul.mubr.bf16.gmra.mxu0 %v4296
  %v4410 = vpop.f32.mrf.mxu0
  %v4411 = vadd.f32 0.0, %v4410
  %v4412 = vpop.f32.mrf.mxu0
  %v4413 = vpop.f32.mrf.mxu0
  %v4414 = vadd.f32 0.0, %v4413
  %v4415 = vpop.f32.mrf.mxu0
  %4416 = vmatprep.mubr.bf16.mxu0 %v4301
  %4417 = vmatmul.mubr.bf16.gmra.mxu0 %v4300
  %v4418 = vpop.f32.mrf.mxu0
  %v4419 = vadd.f32 0.0, %v4418
  %v4420 = vpop.f32.mrf.mxu0
  %v4421 = vpop.f32.mrf.mxu0
  %v4422 = vadd.f32 0.0, %v4421
  %v4423 = vpop.f32.mrf.mxu0
  %4424 = vmatprep.mubr.bf16.mxu0 %v4305
  %4425 = vmatmul.mubr.bf16.gmra.mxu0 %v4304
  %v4426 = vpop.f32.mrf.mxu0
  %v4427 = vadd.f32 0.0, %v4426
  %v4428 = vpop.f32.mrf.mxu0
  %v4429 = vpop.f32.mrf.mxu0
  %v4430 = vadd.f32 0.0, %v4429
  %v4431 = vpop.f32.mrf.mxu0
  %4432 = vmatprep.mubr.bf16.mxu0 %v4309
  %4433 = vmatmul.mubr.bf16.gmra.mxu0 %v4308
  %v4434 = vpop.f32.mrf.mxu0
  %v4435 = vadd.f32 0.0, %v4434
  %v4436 = vpop.f32.mrf.mxu0
  %v4437 = vpop.f32.mrf.mxu0
  %v4438 = vadd.f32 0.0, %v4437
  %v4439 = vpop.f32.mrf.mxu0
  %4440 = vdwg.mxu0
  %4441 = vmatprep.subr.bf16.mxu0 0
  %4442 = vmatpush1.bf16.msra.mxu0 %v881
  %4443 = vmatprep.subr.bf16.mxu0 0
  %4444 = vmatpush1.bf16.msra.mxu0 %v880
  %4445 = vmatprep.subr.bf16.mxu0 0
  %4446 = vmatpush1.bf16.msra.mxu0 %v879
  %4447 = vmatprep.subr.bf16.mxu0 0
  %4448 = vmatpush1.bf16.msra.mxu0 %v878
  %4449 = vmatprep.subr.bf16.mxu0 0
  %4450 = vmatpush1.bf16.msra.mxu0 %v877
  %4451 = vmatprep.subr.bf16.mxu0 0
  %4452 = vmatpush1.bf16.msra.mxu0 %v876
  %4453 = vmatprep.subr.bf16.mxu0 0
  %4454 = vmatpush1.bf16.msra.mxu0 %v875
  %4455 = vmatprep.subr.bf16.mxu0 0
  %4456 = vmatpush1.bf16.msra.mxu0 %v874
  %4457 = vmatprep.subr.bf16.mxu0 0
  %4458 = vmatpush2.bf16.msra.mxu0 %v889
  %4459 = vmatprep.subr.bf16.mxu0 0
  %4460 = vmatpush2.bf16.msra.mxu0 %v888
  %4461 = vmatprep.subr.bf16.mxu0 0
  %4462 = vmatpush2.bf16.msra.mxu0 %v887
  %4463 = vmatprep.subr.bf16.mxu0 0
  %4464 = vmatpush2.bf16.msra.mxu0 %v886
  %4465 = vmatprep.subr.bf16.mxu0 0
  %4466 = vmatpush2.bf16.msra.mxu0 %v885
  %4467 = vmatprep.subr.bf16.mxu0 0
  %4468 = vmatpush2.bf16.msra.mxu0 %v884
  %4469 = vmatprep.subr.bf16.mxu0 0
  %4470 = vmatpush2.bf16.msra.mxu0 %v883
  %4471 = vmatprep.subr.bf16.mxu0 0
  %4472 = vmatpush2.bf16.msra.mxu0 %v882
  %4473 = vmatprep.mubr.bf16.mxu0 %v4283
  %4474 = vmatmul.mubr.bf16.gmra.mxu0 %v4282
  %v4475 = vpop.f32.mrf.mxu0
  %v4476 = vadd.f32 %v4379, %v4475
  %v4477 = vpop.f32.mrf.mxu0
  %v4478 = vpop.f32.mrf.mxu0
  %v4479 = vadd.f32 %v4382, %v4478
  %v4480 = vpop.f32.mrf.mxu0
  %4481 = vmatprep.mubr.bf16.mxu0 %v4287
  %4482 = vmatmul.mubr.bf16.gmra.mxu0 %v4286
  %v4483 = vpop.f32.mrf.mxu0
  %v4484 = vadd.f32 %v4387, %v4483
  %v4485 = vpop.f32.mrf.mxu0
  %v4486 = vpop.f32.mrf.mxu0
  %v4487 = vadd.f32 %v4390, %v4486
  %v4488 = vpop.f32.mrf.mxu0
  %4489 = vmatprep.mubr.bf16.mxu0 %v4291
  %4490 = vmatmul.mubr.bf16.gmra.mxu0 %v4290
  %v4491 = vpop.f32.mrf.mxu0
  %v4492 = vadd.f32 %v4395, %v4491
  %v4493 = vpop.f32.mrf.mxu0
  %v4494 = vpop.f32.mrf.mxu0
  %v4495 = vadd.f32 %v4398, %v4494
  %v4496 = vpop.f32.mrf.mxu0
  %4497 = vmatprep.mubr.bf16.mxu0 %v4295
  %4498 = vmatmul.mubr.bf16.gmra.mxu0 %v4294
  %v4499 = vpop.f32.mrf.mxu0
  %v4500 = vadd.f32 %v4403, %v4499
  %v4501 = vpop.f32.mrf.mxu0
  %v4502 = vpop.f32.mrf.mxu0
  %v4503 = vadd.f32 %v4406, %v4502
  %v4504 = vpop.f32.mrf.mxu0
  %4505 = vmatprep.mubr.bf16.mxu0 %v4299
  %4506 = vmatmul.mubr.bf16.gmra.mxu0 %v4298
  %v4507 = vpop.f32.mrf.mxu0
  %v4508 = vadd.f32 %v4411, %v4507
  %v4509 = vpop.f32.mrf.mxu0
  %v4510 = vpop.f32.mrf.mxu0
  %v4511 = vadd.f32 %v4414, %v4510
  %v4512 = vpop.f32.mrf.mxu0
  %4513 = vmatprep.mubr.bf16.mxu0 %v4303
  %4514 = vmatmul.mubr.bf16.gmra.mxu0 %v4302
  %v4515 = vpop.f32.mrf.mxu0
  %v4516 = vadd.f32 %v4419, %v4515
  %v4517 = vpop.f32.mrf.mxu0
  %v4518 = vpop.f32.mrf.mxu0
  %v4519 = vadd.f32 %v4422, %v4518
  %v4520 = vpop.f32.mrf.mxu0
  %4521 = vmatprep.mubr.bf16.mxu0 %v4307
  %4522 = vmatmul.mubr.bf16.gmra.mxu0 %v4306
  %v4523 = vpop.f32.mrf.mxu0
  %v4524 = vadd.f32 %v4427, %v4523
  %v4525 = vpop.f32.mrf.mxu0
  %v4526 = vpop.f32.mrf.mxu0
  %v4527 = vadd.f32 %v4430, %v4526
  %v4528 = vpop.f32.mrf.mxu0
  %4529 = vmatprep.mubr.bf16.mxu0 %v4311
  %4530 = vmatmul.mubr.bf16.gmra.mxu0 %v4310
  %v4531 = vpop.f32.mrf.mxu0
  %v4532 = vadd.f32 %v4435, %v4531
  %v4533 = vpop.f32.mrf.mxu0
  %v4534 = vpop.f32.mrf.mxu0
  %v4535 = vadd.f32 %v4438, %v4534
  %v4536 = vpop.f32.mrf.mxu0
  %4537 = vdwg.mxu0
  %v4538 = vpack.c.bf16 %v4479, %v4476
  %v4539 = vpack.c.bf16 %v4487, %v4484
  %v4540 = vpack.c.bf16 %v4495, %v4492
  %v4541 = vpack.c.bf16 %v4503, %v4500
  %v4542 = vpack.c.bf16 %v4511, %v4508
  %v4543 = vpack.c.bf16 %v4519, %v4516
  %v4544 = vpack.c.bf16 %v4527, %v4524
  %v4545 = vpack.c.bf16 %v4535, %v4532
  %s4546 = scalar_lea.vmem %s4, 96
  %v4547 = vld [vmem:[%s4546] sm:$0xf]
  %v4548 = vld [vmem:[%s4546 + $0x4] sm:$0xf]
  %v4549 = vld [vmem:[%s4546 + $0x8] sm:$0xf]
  %v4550 = vld [vmem:[%s4546 + $0xc] sm:$0xf]
  %v4555 = vunpack.c.l.b16 %v4547
  %v4556 = vunpack.c.l.b16 %v4548
  %v4557 = vunpack.c.l.b16 %v4549
  %v4558 = vunpack.c.l.b16 %v4550
  %v4559 = vpack.c.b16 %v4556, %v4555
  %v4560 = vpack.c.b16 %v4558, %v4557
  %v4564 = vsel %vm1700, %v4538, 0
  %v4567 = vsel %vm1700, %v4539, 0
  %v4570 = vsel %vm1700, %v4540, 0
  %v4573 = vsel %vm1700, %v4541, 0
  %v4576 = vsel %vm1700, %v4542, 0
  %v4579 = vsel %vm1700, %v4543, 0
  %v4582 = vsel %vm1700, %v4544, 0
  %v4585 = vsel %vm1700, %v4545, 0
  %4587 = vmatprep.subr.bf16.mxu0 0
  %4588 = vmatpush1.bf16.msra.mxu0 0
  %4589 = vmatprep.subr.bf16.mxu0 0
  %4590 = vmatpush1.bf16.msra.mxu0 0
  %4591 = vmatprep.subr.bf16.mxu0 0
  %4592 = vmatpush1.bf16.msra.mxu0 0
  %4593 = vmatprep.subr.bf16.mxu0 0
  %4594 = vmatpush1.bf16.msra.mxu0 0
  %4595 = vmatprep.subr.bf16.mxu0 0
  %4596 = vmatpush1.bf16.msra.mxu0 0
  %4597 = vmatprep.subr.bf16.mxu0 0
  %4598 = vmatpush1.bf16.msra.mxu0 0
  %4599 = vmatprep.subr.bf16.mxu0 0
  %4600 = vmatpush1.bf16.msra.mxu0 %v4560
  %4601 = vmatprep.subr.bf16.mxu0 0
  %4602 = vmatpush1.bf16.msra.mxu0 %v4559
  %4603 = vmatprep.subr.bf16.mxu0 0
  %4604 = vmatpush2.bf16.msra.mxu0 0
  %4605 = vmatprep.subr.bf16.mxu0 0
  %4606 = vmatpush2.bf16.msra.mxu0 0
  %4607 = vmatprep.subr.bf16.mxu0 0
  %4608 = vmatpush2.bf16.msra.mxu0 0
  %4609 = vmatprep.subr.bf16.mxu0 0
  %4610 = vmatpush2.bf16.msra.mxu0 0
  %4611 = vmatprep.subr.bf16.mxu0 0
  %4612 = vmatpush2.bf16.msra.mxu0 0
  %4613 = vmatprep.subr.bf16.mxu0 0
  %4614 = vmatpush2.bf16.msra.mxu0 0
  %4615 = vmatprep.subr.bf16.mxu0 0
  %4616 = vmatpush2.bf16.msra.mxu0 0
  %4617 = vmatprep.subr.bf16.mxu0 0
  %4618 = vmatpush2.bf16.msra.mxu0 0
  %4619 = vmatprep.mubr.bf16.mxu0 0
  %4620 = vmatmul.mubr.bf16.gmra.mxu0 %v4564
  %v4621 = vpop.f32.mrf.mxu0
  %v4622 = vadd.f32 0.0, %v4621
  %v4623 = vpop.f32.mrf.mxu0
  %v4624 = vpop.f32.mrf.mxu0
  %v4625 = vadd.f32 0.0, %v4624
  %v4626 = vpop.f32.mrf.mxu0
  %4627 = vmatprep.mubr.bf16.mxu0 0
  %4628 = vmatmul.mubr.bf16.gmra.mxu0 %v4567
  %v4629 = vpop.f32.mrf.mxu0
  %v4630 = vadd.f32 0.0, %v4629
  %v4631 = vpop.f32.mrf.mxu0
  %v4632 = vpop.f32.mrf.mxu0
  %v4633 = vadd.f32 0.0, %v4632
  %v4634 = vpop.f32.mrf.mxu0
  %4635 = vmatprep.mubr.bf16.mxu0 0
  %4636 = vmatmul.mubr.bf16.gmra.mxu0 %v4570
  %v4637 = vpop.f32.mrf.mxu0
  %v4638 = vadd.f32 0.0, %v4637
  %v4639 = vpop.f32.mrf.mxu0
  %v4640 = vpop.f32.mrf.mxu0
  %v4641 = vadd.f32 0.0, %v4640
  %v4642 = vpop.f32.mrf.mxu0
  %4643 = vmatprep.mubr.bf16.mxu0 0
  %4644 = vmatmul.mubr.bf16.gmra.mxu0 %v4573
  %v4645 = vpop.f32.mrf.mxu0
  %v4646 = vadd.f32 0.0, %v4645
  %v4647 = vpop.f32.mrf.mxu0
  %v4648 = vpop.f32.mrf.mxu0
  %v4649 = vadd.f32 0.0, %v4648
  %v4650 = vpop.f32.mrf.mxu0
  %4651 = vmatprep.mubr.bf16.mxu0 0
  %4652 = vmatmul.mubr.bf16.gmra.mxu0 %v4576
  %v4653 = vpop.f32.mrf.mxu0
  %v4654 = vadd.f32 0.0, %v4653
  %v4655 = vpop.f32.mrf.mxu0
  %v4656 = vpop.f32.mrf.mxu0
  %v4657 = vadd.f32 0.0, %v4656
  %v4658 = vpop.f32.mrf.mxu0
  %4659 = vmatprep.mubr.bf16.mxu0 0
  %4660 = vmatmul.mubr.bf16.gmra.mxu0 %v4579
  %v4661 = vpop.f32.mrf.mxu0
  %v4662 = vadd.f32 0.0, %v4661
  %v4663 = vpop.f32.mrf.mxu0
  %v4664 = vpop.f32.mrf.mxu0
  %v4665 = vadd.f32 0.0, %v4664
  %v4666 = vpop.f32.mrf.mxu0
  %4667 = vmatprep.mubr.bf16.mxu0 0
  %4668 = vmatmul.mubr.bf16.gmra.mxu0 %v4582
  %v4669 = vpop.f32.mrf.mxu0
  %v4670 = vadd.f32 0.0, %v4669
  %v4671 = vpop.f32.mrf.mxu0
  %v4672 = vpop.f32.mrf.mxu0
  %v4673 = vadd.f32 0.0, %v4672
  %v4674 = vpop.f32.mrf.mxu0
  %4675 = vmatprep.mubr.bf16.mxu0 0
  %4676 = vmatmul.mubr.bf16.gmra.mxu0 %v4585
  %v4677 = vpop.f32.mrf.mxu0
  %v4678 = vadd.f32 0.0, %v4677
  %v4679 = vpop.f32.mrf.mxu0
  %v4680 = vpop.f32.mrf.mxu0
  %v4681 = vadd.f32 0.0, %v4680
  %v4682 = vpop.f32.mrf.mxu0
  %4683 = vdwg.mxu0
  %v4684 = vadd.f32 %v4135, %v4622
  %v4685 = vadd.f32 %v4136, %v4625
  %v4686 = vadd.f32 %v4137, %v4630
  %v4687 = vadd.f32 %v4138, %v4633
  %v4688 = vadd.f32 %v4139, %v4638
  %v4689 = vadd.f32 %v4140, %v4641
  %v4690 = vadd.f32 %v4141, %v4646
  %v4691 = vadd.f32 %v4142, %v4649
  %v4692 = vadd.f32 %v4143, %v4654
  %v4693 = vadd.f32 %v4144, %v4657
  %v4694 = vadd.f32 %v4145, %v4662
  %v4695 = vadd.f32 %v4146, %v4665
  %v4696 = vadd.f32 %v4147, %v4670
  %v4697 = vadd.f32 %v4148, %v4673
  %v4698 = vadd.f32 %v4149, %v4678
  %v4699 = vadd.f32 %v4150, %v4681
  %s4700 = scalar_lea.vmem %s3, 1792
  %v4701 = vld [vmem:[%s4700] sm:$0xff]
  %v4702 = vld [vmem:[%s4700 + $0x8] sm:$0xff]
  %v4703 = vld [vmem:[%s4700 + $0x10] sm:$0xff]
  %v4704 = vld [vmem:[%s4700 + $0x18] sm:$0xff]
  %v4705 = vld [vmem:[%s4700 + $0x20] sm:$0xff]
  %v4706 = vld [vmem:[%s4700 + $0x28] sm:$0xff]
  %v4707 = vld [vmem:[%s4700 + $0x30] sm:$0xff]
  %v4708 = vld [vmem:[%s4700 + $0x38] sm:$0xff]
  %v4709 = vld [vmem:[%s4700 + $0x40] sm:$0xff]
  %v4710 = vld [vmem:[%s4700 + $0x48] sm:$0xff]
  %v4711 = vld [vmem:[%s4700 + $0x50] sm:$0xff]
  %v4712 = vld [vmem:[%s4700 + $0x58] sm:$0xff]
  %v4713 = vld [vmem:[%s4700 + $0x60] sm:$0xff]
  %v4714 = vld [vmem:[%s4700 + $0x68] sm:$0xff]
  %v4715 = vld [vmem:[%s4700 + $0x70] sm:$0xff]
  %v4716 = vld [vmem:[%s4700 + $0x78] sm:$0xff]
  %v4717 = vld [vmem:[%s4700 + $0x80] sm:$0xff]
  %v4718 = vld [vmem:[%s4700 + $0x88] sm:$0xff]
  %v4719 = vld [vmem:[%s4700 + $0x90] sm:$0xff]
  %v4720 = vld [vmem:[%s4700 + $0x98] sm:$0xff]
  %v4721 = vld [vmem:[%s4700 + $0xa0] sm:$0xff]
  %v4722 = vld [vmem:[%s4700 + $0xa8] sm:$0xff]
  %v4723 = vld [vmem:[%s4700 + $0xb0] sm:$0xff]
  %v4724 = vld [vmem:[%s4700 + $0xb8] sm:$0xff]
  %v4725 = vld [vmem:[%s4700 + $0xc0] sm:$0xff]
  %v4726 = vld [vmem:[%s4700 + $0xc8] sm:$0xff]
  %v4727 = vld [vmem:[%s4700 + $0xd0] sm:$0xff]
  %v4728 = vld [vmem:[%s4700 + $0xd8] sm:$0xff]
  %v4729 = vld [vmem:[%s4700 + $0xe0] sm:$0xff]
  %v4730 = vld [vmem:[%s4700 + $0xe8] sm:$0xff]
  %v4731 = vld [vmem:[%s4700 + $0xf0] sm:$0xff]
  %v4732 = vld [vmem:[%s4700 + $0xf8] sm:$0xff]
  %v4765 = vunpack.c.l.b16 %v4701
  %v4766 = vunpack.c.h.b16 %v4701
  %v4767 = vunpack.c.l.b16 %v4702
  %v4768 = vunpack.c.h.b16 %v4702
  %v4769 = vunpack.c.l.b16 %v4703
  %v4770 = vunpack.c.h.b16 %v4703
  %v4771 = vunpack.c.l.b16 %v4704
  %v4772 = vunpack.c.h.b16 %v4704
  %v4773 = vunpack.c.l.b16 %v4705
  %v4774 = vunpack.c.h.b16 %v4705
  %v4775 = vunpack.c.l.b16 %v4706
  %v4776 = vunpack.c.h.b16 %v4706
  %v4777 = vunpack.c.l.b16 %v4707
  %v4778 = vunpack.c.h.b16 %v4707
  %v4779 = vunpack.c.l.b16 %v4708
  %v4780 = vunpack.c.h.b16 %v4708
  %v4781 = vunpack.c.l.b16 %v4709
  %v4782 = vunpack.c.h.b16 %v4709
  %v4783 = vunpack.c.l.b16 %v4710
  %v4784 = vunpack.c.h.b16 %v4710
  %v4785 = vunpack.c.l.b16 %v4711
  %v4786 = vunpack.c.h.b16 %v4711
  %v4787 = vunpack.c.l.b16 %v4712
  %v4788 = vunpack.c.h.b16 %v4712
  %v4789 = vunpack.c.l.b16 %v4713
  %v4790 = vunpack.c.h.b16 %v4713
  %v4791 = vunpack.c.l.b16 %v4714
  %v4792 = vunpack.c.h.b16 %v4714
  %v4793 = vunpack.c.l.b16 %v4715
  %v4794 = vunpack.c.h.b16 %v4715
  %v4795 = vunpack.c.l.b16 %v4716
  %v4796 = vunpack.c.h.b16 %v4716
  %v4797 = vunpack.c.l.b16 %v4717
  %v4798 = vunpack.c.h.b16 %v4717
  %v4799 = vunpack.c.l.b16 %v4718
  %v4800 = vunpack.c.h.b16 %v4718
  %v4801 = vunpack.c.l.b16 %v4719
  %v4802 = vunpack.c.h.b16 %v4719
  %v4803 = vunpack.c.l.b16 %v4720
  %v4804 = vunpack.c.h.b16 %v4720
  %v4805 = vunpack.c.l.b16 %v4721
  %v4806 = vunpack.c.h.b16 %v4721
  %v4807 = vunpack.c.l.b16 %v4722
  %v4808 = vunpack.c.h.b16 %v4722
  %v4809 = vunpack.c.l.b16 %v4723
  %v4810 = vunpack.c.h.b16 %v4723
  %v4811 = vunpack.c.l.b16 %v4724
  %v4812 = vunpack.c.h.b16 %v4724
  %v4813 = vunpack.c.l.b16 %v4725
  %v4814 = vunpack.c.h.b16 %v4725
  %v4815 = vunpack.c.l.b16 %v4726
  %v4816 = vunpack.c.h.b16 %v4726
  %v4817 = vunpack.c.l.b16 %v4727
  %v4818 = vunpack.c.h.b16 %v4727
  %v4819 = vunpack.c.l.b16 %v4728
  %v4820 = vunpack.c.h.b16 %v4728
  %v4821 = vunpack.c.l.b16 %v4729
  %v4822 = vunpack.c.h.b16 %v4729
  %v4823 = vunpack.c.l.b16 %v4730
  %v4824 = vunpack.c.h.b16 %v4730
  %v4825 = vunpack.c.l.b16 %v4731
  %v4826 = vunpack.c.h.b16 %v4731
  %v4827 = vunpack.c.l.b16 %v4732
  %v4828 = vunpack.c.h.b16 %v4732
  %v4829 = vpack.c.b16 %v4769, %v4765
  %v4830 = vpack.c.b16 %v4770, %v4766
  %v4831 = vpack.c.b16 %v4771, %v4767
  %v4832 = vpack.c.b16 %v4772, %v4768
  %v4833 = vpack.c.b16 %v4777, %v4773
  %v4834 = vpack.c.b16 %v4778, %v4774
  %v4835 = vpack.c.b16 %v4779, %v4775
  %v4836 = vpack.c.b16 %v4780, %v4776
  %v4837 = vpack.c.b16 %v4785, %v4781
  %v4838 = vpack.c.b16 %v4786, %v4782
  %v4839 = vpack.c.b16 %v4787, %v4783
  %v4840 = vpack.c.b16 %v4788, %v4784
  %v4841 = vpack.c.b16 %v4793, %v4789
  %v4842 = vpack.c.b16 %v4794, %v4790
  %v4843 = vpack.c.b16 %v4795, %v4791
  %v4844 = vpack.c.b16 %v4796, %v4792
  %v4845 = vpack.c.b16 %v4801, %v4797
  %v4846 = vpack.c.b16 %v4802, %v4798
  %v4847 = vpack.c.b16 %v4803, %v4799
  %v4848 = vpack.c.b16 %v4804, %v4800
  %v4849 = vpack.c.b16 %v4809, %v4805
  %v4850 = vpack.c.b16 %v4810, %v4806
  %v4851 = vpack.c.b16 %v4811, %v4807
  %v4852 = vpack.c.b16 %v4812, %v4808
  %v4853 = vpack.c.b16 %v4817, %v4813
  %v4854 = vpack.c.b16 %v4818, %v4814
  %v4855 = vpack.c.b16 %v4819, %v4815
  %v4856 = vpack.c.b16 %v4820, %v4816
  %v4857 = vpack.c.b16 %v4825, %v4821
  %v4858 = vpack.c.b16 %v4826, %v4822
  %v4859 = vpack.c.b16 %v4827, %v4823
  %v4860 = vpack.c.b16 %v4828, %v4824
  %4893 = vmatprep.subr.bf16.mxu0 0
  %4894 = vmatpush1.bf16.msra.mxu0 %v865
  %4895 = vmatprep.subr.bf16.mxu0 0
  %4896 = vmatpush1.bf16.msra.mxu0 %v864
  %4897 = vmatprep.subr.bf16.mxu0 0
  %4898 = vmatpush1.bf16.msra.mxu0 %v863
  %4899 = vmatprep.subr.bf16.mxu0 0
  %4900 = vmatpush1.bf16.msra.mxu0 %v862
  %4901 = vmatprep.subr.bf16.mxu0 0
  %4902 = vmatpush1.bf16.msra.mxu0 %v861
  %4903 = vmatprep.subr.bf16.mxu0 0
  %4904 = vmatpush1.bf16.msra.mxu0 %v860
  %4905 = vmatprep.subr.bf16.mxu0 0
  %4906 = vmatpush1.bf16.msra.mxu0 %v859
  %4907 = vmatprep.subr.bf16.mxu0 0
  %4908 = vmatpush1.bf16.msra.mxu0 %v858
  %4909 = vmatprep.subr.bf16.mxu0 0
  %4910 = vmatpush2.bf16.msra.mxu0 %v873
  %4911 = vmatprep.subr.bf16.mxu0 0
  %4912 = vmatpush2.bf16.msra.mxu0 %v872
  %4913 = vmatprep.subr.bf16.mxu0 0
  %4914 = vmatpush2.bf16.msra.mxu0 %v871
  %4915 = vmatprep.subr.bf16.mxu0 0
  %4916 = vmatpush2.bf16.msra.mxu0 %v870
  %4917 = vmatprep.subr.bf16.mxu0 0
  %4918 = vmatpush2.bf16.msra.mxu0 %v869
  %4919 = vmatprep.subr.bf16.mxu0 0
  %4920 = vmatpush2.bf16.msra.mxu0 %v868
  %4921 = vmatprep.subr.bf16.mxu0 0
  %4922 = vmatpush2.bf16.msra.mxu0 %v867
  %4923 = vmatprep.subr.bf16.mxu0 0
  %4924 = vmatpush2.bf16.msra.mxu0 %v866
  %4925 = vmatprep.mubr.bf16.mxu0 %v4830
  %4926 = vmatmul.mubr.bf16.gmra.mxu0 %v4829
  %v4927 = vpop.f32.mrf.mxu0
  %v4928 = vadd.f32 0.0, %v4927
  %v4929 = vpop.f32.mrf.mxu0
  %v4930 = vpop.f32.mrf.mxu0
  %v4931 = vadd.f32 0.0, %v4930
  %v4932 = vpop.f32.mrf.mxu0
  %4933 = vmatprep.mubr.bf16.mxu0 %v4834
  %4934 = vmatmul.mubr.bf16.gmra.mxu0 %v4833
  %v4935 = vpop.f32.mrf.mxu0
  %v4936 = vadd.f32 0.0, %v4935
  %v4937 = vpop.f32.mrf.mxu0
  %v4938 = vpop.f32.mrf.mxu0
  %v4939 = vadd.f32 0.0, %v4938
  %v4940 = vpop.f32.mrf.mxu0
  %4941 = vmatprep.mubr.bf16.mxu0 %v4838
  %4942 = vmatmul.mubr.bf16.gmra.mxu0 %v4837
  %v4943 = vpop.f32.mrf.mxu0
  %v4944 = vadd.f32 0.0, %v4943
  %v4945 = vpop.f32.mrf.mxu0
  %v4946 = vpop.f32.mrf.mxu0
  %v4947 = vadd.f32 0.0, %v4946
  %v4948 = vpop.f32.mrf.mxu0
  %4949 = vmatprep.mubr.bf16.mxu0 %v4842
  %4950 = vmatmul.mubr.bf16.gmra.mxu0 %v4841
  %v4951 = vpop.f32.mrf.mxu0
  %v4952 = vadd.f32 0.0, %v4951
  %v4953 = vpop.f32.mrf.mxu0
  %v4954 = vpop.f32.mrf.mxu0
  %v4955 = vadd.f32 0.0, %v4954
  %v4956 = vpop.f32.mrf.mxu0
  %4957 = vmatprep.mubr.bf16.mxu0 %v4846
  %4958 = vmatmul.mubr.bf16.gmra.mxu0 %v4845
  %v4959 = vpop.f32.mrf.mxu0
  %v4960 = vadd.f32 0.0, %v4959
  %v4961 = vpop.f32.mrf.mxu0
  %v4962 = vpop.f32.mrf.mxu0
  %v4963 = vadd.f32 0.0, %v4962
  %v4964 = vpop.f32.mrf.mxu0
  %4965 = vmatprep.mubr.bf16.mxu0 %v4850
  %4966 = vmatmul.mubr.bf16.gmra.mxu0 %v4849
  %v4967 = vpop.f32.mrf.mxu0
  %v4968 = vadd.f32 0.0, %v4967
  %v4969 = vpop.f32.mrf.mxu0
  %v4970 = vpop.f32.mrf.mxu0
  %v4971 = vadd.f32 0.0, %v4970
  %v4972 = vpop.f32.mrf.mxu0
  %4973 = vmatprep.mubr.bf16.mxu0 %v4854
  %4974 = vmatmul.mubr.bf16.gmra.mxu0 %v4853
  %v4975 = vpop.f32.mrf.mxu0
  %v4976 = vadd.f32 0.0, %v4975
  %v4977 = vpop.f32.mrf.mxu0
  %v4978 = vpop.f32.mrf.mxu0
  %v4979 = vadd.f32 0.0, %v4978
  %v4980 = vpop.f32.mrf.mxu0
  %4981 = vmatprep.mubr.bf16.mxu0 %v4858
  %4982 = vmatmul.mubr.bf16.gmra.mxu0 %v4857
  %v4983 = vpop.f32.mrf.mxu0
  %v4984 = vadd.f32 0.0, %v4983
  %v4985 = vpop.f32.mrf.mxu0
  %v4986 = vpop.f32.mrf.mxu0
  %v4987 = vadd.f32 0.0, %v4986
  %v4988 = vpop.f32.mrf.mxu0
  %4989 = vdwg.mxu0
  %4990 = vmatprep.subr.bf16.mxu0 0
  %4991 = vmatpush1.bf16.msra.mxu0 %v881
  %4992 = vmatprep.subr.bf16.mxu0 0
  %4993 = vmatpush1.bf16.msra.mxu0 %v880
  %4994 = vmatprep.subr.bf16.mxu0 0
  %4995 = vmatpush1.bf16.msra.mxu0 %v879
  %4996 = vmatprep.subr.bf16.mxu0 0
  %4997 = vmatpush1.bf16.msra.mxu0 %v878
  %4998 = vmatprep.subr.bf16.mxu0 0
  %4999 = vmatpush1.bf16.msra.mxu0 %v877
  %5000 = vmatprep.subr.bf16.mxu0 0
  %5001 = vmatpush1.bf16.msra.mxu0 %v876
  %5002 = vmatprep.subr.bf16.mxu0 0
  %5003 = vmatpush1.bf16.msra.mxu0 %v875
  %5004 = vmatprep.subr.bf16.mxu0 0
  %5005 = vmatpush1.bf16.msra.mxu0 %v874
  %5006 = vmatprep.subr.bf16.mxu0 0
  %5007 = vmatpush2.bf16.msra.mxu0 %v889
  %5008 = vmatprep.subr.bf16.mxu0 0
  %5009 = vmatpush2.bf16.msra.mxu0 %v888
  %5010 = vmatprep.subr.bf16.mxu0 0
  %5011 = vmatpush2.bf16.msra.mxu0 %v887
  %5012 = vmatprep.subr.bf16.mxu0 0
  %5013 = vmatpush2.bf16.msra.mxu0 %v886
  %5014 = vmatprep.subr.bf16.mxu0 0
  %5015 = vmatpush2.bf16.msra.mxu0 %v885
  %5016 = vmatprep.subr.bf16.mxu0 0
  %5017 = vmatpush2.bf16.msra.mxu0 %v884
  %5018 = vmatprep.subr.bf16.mxu0 0
  %5019 = vmatpush2.bf16.msra.mxu0 %v883
  %5020 = vmatprep.subr.bf16.mxu0 0
  %5021 = vmatpush2.bf16.msra.mxu0 %v882
  %5022 = vmatprep.mubr.bf16.mxu0 %v4832
  %5023 = vmatmul.mubr.bf16.gmra.mxu0 %v4831
  %v5024 = vpop.f32.mrf.mxu0
  %v5025 = vadd.f32 %v4928, %v5024
  %v5026 = vpop.f32.mrf.mxu0
  %v5027 = vpop.f32.mrf.mxu0
  %v5028 = vadd.f32 %v4931, %v5027
  %v5029 = vpop.f32.mrf.mxu0
  %5030 = vmatprep.mubr.bf16.mxu0 %v4836
  %5031 = vmatmul.mubr.bf16.gmra.mxu0 %v4835
  %v5032 = vpop.f32.mrf.mxu0
  %v5033 = vadd.f32 %v4936, %v5032
  %v5034 = vpop.f32.mrf.mxu0
  %v5035 = vpop.f32.mrf.mxu0
  %v5036 = vadd.f32 %v4939, %v5035
  %v5037 = vpop.f32.mrf.mxu0
  %5038 = vmatprep.mubr.bf16.mxu0 %v4840
  %5039 = vmatmul.mubr.bf16.gmra.mxu0 %v4839
  %v5040 = vpop.f32.mrf.mxu0
  %v5041 = vadd.f32 %v4944, %v5040
  %v5042 = vpop.f32.mrf.mxu0
  %v5043 = vpop.f32.mrf.mxu0
  %v5044 = vadd.f32 %v4947, %v5043
  %v5045 = vpop.f32.mrf.mxu0
  %5046 = vmatprep.mubr.bf16.mxu0 %v4844
  %5047 = vmatmul.mubr.bf16.gmra.mxu0 %v4843
  %v5048 = vpop.f32.mrf.mxu0
  %v5049 = vadd.f32 %v4952, %v5048
  %v5050 = vpop.f32.mrf.mxu0
  %v5051 = vpop.f32.mrf.mxu0
  %v5052 = vadd.f32 %v4955, %v5051
  %v5053 = vpop.f32.mrf.mxu0
  %5054 = vmatprep.mubr.bf16.mxu0 %v4848
  %5055 = vmatmul.mubr.bf16.gmra.mxu0 %v4847
  %v5056 = vpop.f32.mrf.mxu0
  %v5057 = vadd.f32 %v4960, %v5056
  %v5058 = vpop.f32.mrf.mxu0
  %v5059 = vpop.f32.mrf.mxu0
  %v5060 = vadd.f32 %v4963, %v5059
  %v5061 = vpop.f32.mrf.mxu0
  %5062 = vmatprep.mubr.bf16.mxu0 %v4852
  %5063 = vmatmul.mubr.bf16.gmra.mxu0 %v4851
  %v5064 = vpop.f32.mrf.mxu0
  %v5065 = vadd.f32 %v4968, %v5064
  %v5066 = vpop.f32.mrf.mxu0
  %v5067 = vpop.f32.mrf.mxu0
  %v5068 = vadd.f32 %v4971, %v5067
  %v5069 = vpop.f32.mrf.mxu0
  %5070 = vmatprep.mubr.bf16.mxu0 %v4856
  %5071 = vmatmul.mubr.bf16.gmra.mxu0 %v4855
  %v5072 = vpop.f32.mrf.mxu0
  %v5073 = vadd.f32 %v4976, %v5072
  %v5074 = vpop.f32.mrf.mxu0
  %v5075 = vpop.f32.mrf.mxu0
  %v5076 = vadd.f32 %v4979, %v5075
  %v5077 = vpop.f32.mrf.mxu0
  %5078 = vmatprep.mubr.bf16.mxu0 %v4860
  %5079 = vmatmul.mubr.bf16.gmra.mxu0 %v4859
  %v5080 = vpop.f32.mrf.mxu0
  %v5081 = vadd.f32 %v4984, %v5080
  %v5082 = vpop.f32.mrf.mxu0
  %v5083 = vpop.f32.mrf.mxu0
  %v5084 = vadd.f32 %v4987, %v5083
  %v5085 = vpop.f32.mrf.mxu0
  %5086 = vdwg.mxu0
  %v5087 = vpack.c.bf16 %v5028, %v5025
  %v5088 = vpack.c.bf16 %v5036, %v5033
  %v5089 = vpack.c.bf16 %v5044, %v5041
  %v5090 = vpack.c.bf16 %v5052, %v5049
  %v5091 = vpack.c.bf16 %v5060, %v5057
  %v5092 = vpack.c.bf16 %v5068, %v5065
  %v5093 = vpack.c.bf16 %v5076, %v5073
  %v5094 = vpack.c.bf16 %v5084, %v5081
  %s5095 = scalar_lea.vmem %s4, 112
  %v5096 = vld [vmem:[%s5095] sm:$0xf]
  %v5097 = vld [vmem:[%s5095 + $0x4] sm:$0xf]
  %v5098 = vld [vmem:[%s5095 + $0x8] sm:$0xf]
  %v5099 = vld [vmem:[%s5095 + $0xc] sm:$0xf]
  %v5104 = vunpack.c.l.b16 %v5096
  %v5105 = vunpack.c.l.b16 %v5097
  %v5106 = vunpack.c.l.b16 %v5098
  %v5107 = vunpack.c.l.b16 %v5099
  %v5108 = vpack.c.b16 %v5105, %v5104
  %v5109 = vpack.c.b16 %v5107, %v5106
  %v5113 = vsel %vm1700, %v5087, 0
  %v5116 = vsel %vm1700, %v5088, 0
  %v5119 = vsel %vm1700, %v5089, 0
  %v5122 = vsel %vm1700, %v5090, 0
  %v5125 = vsel %vm1700, %v5091, 0
  %v5128 = vsel %vm1700, %v5092, 0
  %v5131 = vsel %vm1700, %v5093, 0
  %v5134 = vsel %vm1700, %v5094, 0
  %5136 = vmatprep.subr.bf16.mxu0 0
  %5137 = vmatpush1.bf16.msra.mxu0 0
  %5138 = vmatprep.subr.bf16.mxu0 0
  %5139 = vmatpush1.bf16.msra.mxu0 0
  %5140 = vmatprep.subr.bf16.mxu0 0
  %5141 = vmatpush1.bf16.msra.mxu0 0
  %5142 = vmatprep.subr.bf16.mxu0 0
  %5143 = vmatpush1.bf16.msra.mxu0 0
  %5144 = vmatprep.subr.bf16.mxu0 0
  %5145 = vmatpush1.bf16.msra.mxu0 0
  %5146 = vmatprep.subr.bf16.mxu0 0
  %5147 = vmatpush1.bf16.msra.mxu0 0
  %5148 = vmatprep.subr.bf16.mxu0 0
  %5149 = vmatpush1.bf16.msra.mxu0 %v5109
  %5150 = vmatprep.subr.bf16.mxu0 0
  %5151 = vmatpush1.bf16.msra.mxu0 %v5108
  %5152 = vmatprep.subr.bf16.mxu0 0
  %5153 = vmatpush2.bf16.msra.mxu0 0
  %5154 = vmatprep.subr.bf16.mxu0 0
  %5155 = vmatpush2.bf16.msra.mxu0 0
  %5156 = vmatprep.subr.bf16.mxu0 0
  %5157 = vmatpush2.bf16.msra.mxu0 0
  %5158 = vmatprep.subr.bf16.mxu0 0
  %5159 = vmatpush2.bf16.msra.mxu0 0
  %5160 = vmatprep.subr.bf16.mxu0 0
  %5161 = vmatpush2.bf16.msra.mxu0 0
  %5162 = vmatprep.subr.bf16.mxu0 0
  %5163 = vmatpush2.bf16.msra.mxu0 0
  %5164 = vmatprep.subr.bf16.mxu0 0
  %5165 = vmatpush2.bf16.msra.mxu0 0
  %5166 = vmatprep.subr.bf16.mxu0 0
  %5167 = vmatpush2.bf16.msra.mxu0 0
  %5168 = vmatprep.mubr.bf16.mxu0 0
  %5169 = vmatmul.mubr.bf16.gmra.mxu0 %v5113
  %v5170 = vpop.f32.mrf.mxu0
  %v5171 = vadd.f32 0.0, %v5170
  %v5172 = vpop.f32.mrf.mxu0
  %v5173 = vpop.f32.mrf.mxu0
  %v5174 = vadd.f32 0.0, %v5173
  %v5175 = vpop.f32.mrf.mxu0
  %5176 = vmatprep.mubr.bf16.mxu0 0
  %5177 = vmatmul.mubr.bf16.gmra.mxu0 %v5116
  %v5178 = vpop.f32.mrf.mxu0
  %v5179 = vadd.f32 0.0, %v5178
  %v5180 = vpop.f32.mrf.mxu0
  %v5181 = vpop.f32.mrf.mxu0
  %v5182 = vadd.f32 0.0, %v5181
  %v5183 = vpop.f32.mrf.mxu0
  %5184 = vmatprep.mubr.bf16.mxu0 0
  %5185 = vmatmul.mubr.bf16.gmra.mxu0 %v5119
  %v5186 = vpop.f32.mrf.mxu0
  %v5187 = vadd.f32 0.0, %v5186
  %v5188 = vpop.f32.mrf.mxu0
  %v5189 = vpop.f32.mrf.mxu0
  %v5190 = vadd.f32 0.0, %v5189
  %v5191 = vpop.f32.mrf.mxu0
  %5192 = vmatprep.mubr.bf16.mxu0 0
  %5193 = vmatmul.mubr.bf16.gmra.mxu0 %v5122
  %v5194 = vpop.f32.mrf.mxu0
  %v5195 = vadd.f32 0.0, %v5194
  %v5196 = vpop.f32.mrf.mxu0
  %v5197 = vpop.f32.mrf.mxu0
  %v5198 = vadd.f32 0.0, %v5197
  %v5199 = vpop.f32.mrf.mxu0
  %5200 = vmatprep.mubr.bf16.mxu0 0
  %5201 = vmatmul.mubr.bf16.gmra.mxu0 %v5125
  %v5202 = vpop.f32.mrf.mxu0
  %v5203 = vadd.f32 0.0, %v5202
  %v5204 = vpop.f32.mrf.mxu0
  %v5205 = vpop.f32.mrf.mxu0
  %v5206 = vadd.f32 0.0, %v5205
  %v5207 = vpop.f32.mrf.mxu0
  %5208 = vmatprep.mubr.bf16.mxu0 0
  %5209 = vmatmul.mubr.bf16.gmra.mxu0 %v5128
  %v5210 = vpop.f32.mrf.mxu0
  %v5211 = vadd.f32 0.0, %v5210
  %v5212 = vpop.f32.mrf.mxu0
  %v5213 = vpop.f32.mrf.mxu0
  %v5214 = vadd.f32 0.0, %v5213
  %v5215 = vpop.f32.mrf.mxu0
  %5216 = vmatprep.mubr.bf16.mxu0 0
  %5217 = vmatmul.mubr.bf16.gmra.mxu0 %v5131
  %v5218 = vpop.f32.mrf.mxu0
  %v5219 = vadd.f32 0.0, %v5218
  %v5220 = vpop.f32.mrf.mxu0
  %v5221 = vpop.f32.mrf.mxu0
  %v5222 = vadd.f32 0.0, %v5221
  %v5223 = vpop.f32.mrf.mxu0
  %5224 = vmatprep.mubr.bf16.mxu0 0
  %5225 = vmatmul.mubr.bf16.gmra.mxu0 %v5134
  %v5226 = vpop.f32.mrf.mxu0
  %v5227 = vadd.f32 0.0, %v5226
  %v5228 = vpop.f32.mrf.mxu0
  %v5229 = vpop.f32.mrf.mxu0
  %v5230 = vadd.f32 0.0, %v5229
  %v5231 = vpop.f32.mrf.mxu0
  %5232 = vdwg.mxu0
  %v5233 = vadd.f32 %v4684, %v5171
  %v5234 = vadd.f32 %v4685, %v5174
  %v5235 = vadd.f32 %v4686, %v5179
  %v5236 = vadd.f32 %v4687, %v5182
  %v5237 = vadd.f32 %v4688, %v5187
  %v5238 = vadd.f32 %v4689, %v5190
  %v5239 = vadd.f32 %v4690, %v5195
  %v5240 = vadd.f32 %v4691, %v5198
  %v5241 = vadd.f32 %v4692, %v5203
  %v5242 = vadd.f32 %v4693, %v5206
  %v5243 = vadd.f32 %v4694, %v5211
  %v5244 = vadd.f32 %v4695, %v5214
  %v5245 = vadd.f32 %v4696, %v5219
  %v5246 = vadd.f32 %v4697, %v5222
  %v5247 = vadd.f32 %v4698, %v5227
  %v5248 = vadd.f32 %v4699, %v5230
  %s5249 = scalar_lea.vmem %s3, 2048
  %v5250 = vld [vmem:[%s5249] sm:$0xff]
  %v5251 = vld [vmem:[%s5249 + $0x8] sm:$0xff]
  %v5252 = vld [vmem:[%s5249 + $0x10] sm:$0xff]
  %v5253 = vld [vmem:[%s5249 + $0x18] sm:$0xff]
  %v5254 = vld [vmem:[%s5249 + $0x20] sm:$0xff]
  %v5255 = vld [vmem:[%s5249 + $0x28] sm:$0xff]
  %v5256 = vld [vmem:[%s5249 + $0x30] sm:$0xff]
  %v5257 = vld [vmem:[%s5249 + $0x38] sm:$0xff]
  %v5258 = vld [vmem:[%s5249 + $0x40] sm:$0xff]
  %v5259 = vld [vmem:[%s5249 + $0x48] sm:$0xff]
  %v5260 = vld [vmem:[%s5249 + $0x50] sm:$0xff]
  %v5261 = vld [vmem:[%s5249 + $0x58] sm:$0xff]
  %v5262 = vld [vmem:[%s5249 + $0x60] sm:$0xff]
  %v5263 = vld [vmem:[%s5249 + $0x68] sm:$0xff]
  %v5264 = vld [vmem:[%s5249 + $0x70] sm:$0xff]
  %v5265 = vld [vmem:[%s5249 + $0x78] sm:$0xff]
  %v5266 = vld [vmem:[%s5249 + $0x80] sm:$0xff]
  %v5267 = vld [vmem:[%s5249 + $0x88] sm:$0xff]
  %v5268 = vld [vmem:[%s5249 + $0x90] sm:$0xff]
  %v5269 = vld [vmem:[%s5249 + $0x98] sm:$0xff]
  %v5270 = vld [vmem:[%s5249 + $0xa0] sm:$0xff]
  %v5271 = vld [vmem:[%s5249 + $0xa8] sm:$0xff]
  %v5272 = vld [vmem:[%s5249 + $0xb0] sm:$0xff]
  %v5273 = vld [vmem:[%s5249 + $0xb8] sm:$0xff]
  %v5274 = vld [vmem:[%s5249 + $0xc0] sm:$0xff]
  %v5275 = vld [vmem:[%s5249 + $0xc8] sm:$0xff]
  %v5276 = vld [vmem:[%s5249 + $0xd0] sm:$0xff]
  %v5277 = vld [vmem:[%s5249 + $0xd8] sm:$0xff]
  %v5278 = vld [vmem:[%s5249 + $0xe0] sm:$0xff]
  %v5279 = vld [vmem:[%s5249 + $0xe8] sm:$0xff]
  %v5280 = vld [vmem:[%s5249 + $0xf0] sm:$0xff]
  %v5281 = vld [vmem:[%s5249 + $0xf8] sm:$0xff]
  %v5314 = vunpack.c.l.b16 %v5250
  %v5315 = vunpack.c.h.b16 %v5250
  %v5316 = vunpack.c.l.b16 %v5251
  %v5317 = vunpack.c.h.b16 %v5251
  %v5318 = vunpack.c.l.b16 %v5252
  %v5319 = vunpack.c.h.b16 %v5252
  %v5320 = vunpack.c.l.b16 %v5253
  %v5321 = vunpack.c.h.b16 %v5253
  %v5322 = vunpack.c.l.b16 %v5254
  %v5323 = vunpack.c.h.b16 %v5254
  %v5324 = vunpack.c.l.b16 %v5255
  %v5325 = vunpack.c.h.b16 %v5255
  %v5326 = vunpack.c.l.b16 %v5256
  %v5327 = vunpack.c.h.b16 %v5256
  %v5328 = vunpack.c.l.b16 %v5257
  %v5329 = vunpack.c.h.b16 %v5257
  %v5330 = vunpack.c.l.b16 %v5258
  %v5331 = vunpack.c.h.b16 %v5258
  %v5332 = vunpack.c.l.b16 %v5259
  %v5333 = vunpack.c.h.b16 %v5259
  %v5334 = vunpack.c.l.b16 %v5260
  %v5335 = vunpack.c.h.b16 %v5260
  %v5336 = vunpack.c.l.b16 %v5261
  %v5337 = vunpack.c.h.b16 %v5261
  %v5338 = vunpack.c.l.b16 %v5262
  %v5339 = vunpack.c.h.b16 %v5262
  %v5340 = vunpack.c.l.b16 %v5263
  %v5341 = vunpack.c.h.b16 %v5263
  %v5342 = vunpack.c.l.b16 %v5264
  %v5343 = vunpack.c.h.b16 %v5264
  %v5344 = vunpack.c.l.b16 %v5265
  %v5345 = vunpack.c.h.b16 %v5265
  %v5346 = vunpack.c.l.b16 %v5266
  %v5347 = vunpack.c.h.b16 %v5266
  %v5348 = vunpack.c.l.b16 %v5267
  %v5349 = vunpack.c.h.b16 %v5267
  %v5350 = vunpack.c.l.b16 %v5268
  %v5351 = vunpack.c.h.b16 %v5268
  %v5352 = vunpack.c.l.b16 %v5269
  %v5353 = vunpack.c.h.b16 %v5269
  %v5354 = vunpack.c.l.b16 %v5270
  %v5355 = vunpack.c.h.b16 %v5270
  %v5356 = vunpack.c.l.b16 %v5271
  %v5357 = vunpack.c.h.b16 %v5271
  %v5358 = vunpack.c.l.b16 %v5272
  %v5359 = vunpack.c.h.b16 %v5272
  %v5360 = vunpack.c.l.b16 %v5273
  %v5361 = vunpack.c.h.b16 %v5273
  %v5362 = vunpack.c.l.b16 %v5274
  %v5363 = vunpack.c.h.b16 %v5274
  %v5364 = vunpack.c.l.b16 %v5275
  %v5365 = vunpack.c.h.b16 %v5275
  %v5366 = vunpack.c.l.b16 %v5276
  %v5367 = vunpack.c.h.b16 %v5276
  %v5368 = vunpack.c.l.b16 %v5277
  %v5369 = vunpack.c.h.b16 %v5277
  %v5370 = vunpack.c.l.b16 %v5278
  %v5371 = vunpack.c.h.b16 %v5278
  %v5372 = vunpack.c.l.b16 %v5279
  %v5373 = vunpack.c.h.b16 %v5279
  %v5374 = vunpack.c.l.b16 %v5280
  %v5375 = vunpack.c.h.b16 %v5280
  %v5376 = vunpack.c.l.b16 %v5281
  %v5377 = vunpack.c.h.b16 %v5281
  %v5378 = vpack.c.b16 %v5318, %v5314
  %v5379 = vpack.c.b16 %v5319, %v5315
  %v5380 = vpack.c.b16 %v5320, %v5316
  %v5381 = vpack.c.b16 %v5321, %v5317
  %v5382 = vpack.c.b16 %v5326, %v5322
  %v5383 = vpack.c.b16 %v5327, %v5323
  %v5384 = vpack.c.b16 %v5328, %v5324
  %v5385 = vpack.c.b16 %v5329, %v5325
  %v5386 = vpack.c.b16 %v5334, %v5330
  %v5387 = vpack.c.b16 %v5335, %v5331
  %v5388 = vpack.c.b16 %v5336, %v5332
  %v5389 = vpack.c.b16 %v5337, %v5333
  %v5390 = vpack.c.b16 %v5342, %v5338
  %v5391 = vpack.c.b16 %v5343, %v5339
  %v5392 = vpack.c.b16 %v5344, %v5340
  %v5393 = vpack.c.b16 %v5345, %v5341
  %v5394 = vpack.c.b16 %v5350, %v5346
  %v5395 = vpack.c.b16 %v5351, %v5347
  %v5396 = vpack.c.b16 %v5352, %v5348
  %v5397 = vpack.c.b16 %v5353, %v5349
  %v5398 = vpack.c.b16 %v5358, %v5354
  %v5399 = vpack.c.b16 %v5359, %v5355
  %v5400 = vpack.c.b16 %v5360, %v5356
  %v5401 = vpack.c.b16 %v5361, %v5357
  %v5402 = vpack.c.b16 %v5366, %v5362
  %v5403 = vpack.c.b16 %v5367, %v5363
  %v5404 = vpack.c.b16 %v5368, %v5364
  %v5405 = vpack.c.b16 %v5369, %v5365
  %v5406 = vpack.c.b16 %v5374, %v5370
  %v5407 = vpack.c.b16 %v5375, %v5371
  %v5408 = vpack.c.b16 %v5376, %v5372
  %v5409 = vpack.c.b16 %v5377, %v5373
  %5442 = vmatprep.subr.bf16.mxu0 0
  %5443 = vmatpush1.bf16.msra.mxu0 %v865
  %5444 = vmatprep.subr.bf16.mxu0 0
  %5445 = vmatpush1.bf16.msra.mxu0 %v864
  %5446 = vmatprep.subr.bf16.mxu0 0
  %5447 = vmatpush1.bf16.msra.mxu0 %v863
  %5448 = vmatprep.subr.bf16.mxu0 0
  %5449 = vmatpush1.bf16.msra.mxu0 %v862
  %5450 = vmatprep.subr.bf16.mxu0 0
  %5451 = vmatpush1.bf16.msra.mxu0 %v861
  %5452 = vmatprep.subr.bf16.mxu0 0
  %5453 = vmatpush1.bf16.msra.mxu0 %v860
  %5454 = vmatprep.subr.bf16.mxu0 0
  %5455 = vmatpush1.bf16.msra.mxu0 %v859
  %5456 = vmatprep.subr.bf16.mxu0 0
  %5457 = vmatpush1.bf16.msra.mxu0 %v858
  %5458 = vmatprep.subr.bf16.mxu0 0
  %5459 = vmatpush2.bf16.msra.mxu0 %v873
  %5460 = vmatprep.subr.bf16.mxu0 0
  %5461 = vmatpush2.bf16.msra.mxu0 %v872
  %5462 = vmatprep.subr.bf16.mxu0 0
  %5463 = vmatpush2.bf16.msra.mxu0 %v871
  %5464 = vmatprep.subr.bf16.mxu0 0
  %5465 = vmatpush2.bf16.msra.mxu0 %v870
  %5466 = vmatprep.subr.bf16.mxu0 0
  %5467 = vmatpush2.bf16.msra.mxu0 %v869
  %5468 = vmatprep.subr.bf16.mxu0 0
  %5469 = vmatpush2.bf16.msra.mxu0 %v868
  %5470 = vmatprep.subr.bf16.mxu0 0
  %5471 = vmatpush2.bf16.msra.mxu0 %v867
  %5472 = vmatprep.subr.bf16.mxu0 0
  %5473 = vmatpush2.bf16.msra.mxu0 %v866
  %5474 = vmatprep.mubr.bf16.mxu0 %v5379
  %5475 = vmatmul.mubr.bf16.gmra.mxu0 %v5378
  %v5476 = vpop.f32.mrf.mxu0
  %v5477 = vadd.f32 0.0, %v5476
  %v5478 = vpop.f32.mrf.mxu0
  %v5479 = vpop.f32.mrf.mxu0
  %v5480 = vadd.f32 0.0, %v5479
  %v5481 = vpop.f32.mrf.mxu0
  %5482 = vmatprep.mubr.bf16.mxu0 %v5383
  %5483 = vmatmul.mubr.bf16.gmra.mxu0 %v5382
  %v5484 = vpop.f32.mrf.mxu0
  %v5485 = vadd.f32 0.0, %v5484
  %v5486 = vpop.f32.mrf.mxu0
  %v5487 = vpop.f32.mrf.mxu0
  %v5488 = vadd.f32 0.0, %v5487
  %v5489 = vpop.f32.mrf.mxu0
  %5490 = vmatprep.mubr.bf16.mxu0 %v5387
  %5491 = vmatmul.mubr.bf16.gmra.mxu0 %v5386
  %v5492 = vpop.f32.mrf.mxu0
  %v5493 = vadd.f32 0.0, %v5492
  %v5494 = vpop.f32.mrf.mxu0
  %v5495 = vpop.f32.mrf.mxu0
  %v5496 = vadd.f32 0.0, %v5495
  %v5497 = vpop.f32.mrf.mxu0
  %5498 = vmatprep.mubr.bf16.mxu0 %v5391
  %5499 = vmatmul.mubr.bf16.gmra.mxu0 %v5390
  %v5500 = vpop.f32.mrf.mxu0
  %v5501 = vadd.f32 0.0, %v5500
  %v5502 = vpop.f32.mrf.mxu0
  %v5503 = vpop.f32.mrf.mxu0
  %v5504 = vadd.f32 0.0, %v5503
  %v5505 = vpop.f32.mrf.mxu0
  %5506 = vmatprep.mubr.bf16.mxu0 %v5395
  %5507 = vmatmul.mubr.bf16.gmra.mxu0 %v5394
  %v5508 = vpop.f32.mrf.mxu0
  %v5509 = vadd.f32 0.0, %v5508
  %v5510 = vpop.f32.mrf.mxu0
  %v5511 = vpop.f32.mrf.mxu0
  %v5512 = vadd.f32 0.0, %v5511
  %v5513 = vpop.f32.mrf.mxu0
  %5514 = vmatprep.mubr.bf16.mxu0 %v5399
  %5515 = vmatmul.mubr.bf16.gmra.mxu0 %v5398
  %v5516 = vpop.f32.mrf.mxu0
  %v5517 = vadd.f32 0.0, %v5516
  %v5518 = vpop.f32.mrf.mxu0
  %v5519 = vpop.f32.mrf.mxu0
  %v5520 = vadd.f32 0.0, %v5519
  %v5521 = vpop.f32.mrf.mxu0
  %5522 = vmatprep.mubr.bf16.mxu0 %v5403
  %5523 = vmatmul.mubr.bf16.gmra.mxu0 %v5402
  %v5524 = vpop.f32.mrf.mxu0
  %v5525 = vadd.f32 0.0, %v5524
  %v5526 = vpop.f32.mrf.mxu0
  %v5527 = vpop.f32.mrf.mxu0
  %v5528 = vadd.f32 0.0, %v5527
  %v5529 = vpop.f32.mrf.mxu0
  %5530 = vmatprep.mubr.bf16.mxu0 %v5407
  %5531 = vmatmul.mubr.bf16.gmra.mxu0 %v5406
  %v5532 = vpop.f32.mrf.mxu0
  %v5533 = vadd.f32 0.0, %v5532
  %v5534 = vpop.f32.mrf.mxu0
  %v5535 = vpop.f32.mrf.mxu0
  %v5536 = vadd.f32 0.0, %v5535
  %v5537 = vpop.f32.mrf.mxu0
  %5538 = vdwg.mxu0
  %5539 = vmatprep.subr.bf16.mxu0 0
  %5540 = vmatpush1.bf16.msra.mxu0 %v881
  %5541 = vmatprep.subr.bf16.mxu0 0
  %5542 = vmatpush1.bf16.msra.mxu0 %v880
  %5543 = vmatprep.subr.bf16.mxu0 0
  %5544 = vmatpush1.bf16.msra.mxu0 %v879
  %5545 = vmatprep.subr.bf16.mxu0 0
  %5546 = vmatpush1.bf16.msra.mxu0 %v878
  %5547 = vmatprep.subr.bf16.mxu0 0
  %5548 = vmatpush1.bf16.msra.mxu0 %v877
  %5549 = vmatprep.subr.bf16.mxu0 0
  %5550 = vmatpush1.bf16.msra.mxu0 %v876
  %5551 = vmatprep.subr.bf16.mxu0 0
  %5552 = vmatpush1.bf16.msra.mxu0 %v875
  %5553 = vmatprep.subr.bf16.mxu0 0
  %5554 = vmatpush1.bf16.msra.mxu0 %v874
  %5555 = vmatprep.subr.bf16.mxu0 0
  %5556 = vmatpush2.bf16.msra.mxu0 %v889
  %5557 = vmatprep.subr.bf16.mxu0 0
  %5558 = vmatpush2.bf16.msra.mxu0 %v888
  %5559 = vmatprep.subr.bf16.mxu0 0
  %5560 = vmatpush2.bf16.msra.mxu0 %v887
  %5561 = vmatprep.subr.bf16.mxu0 0
  %5562 = vmatpush2.bf16.msra.mxu0 %v886
  %5563 = vmatprep.subr.bf16.mxu0 0
  %5564 = vmatpush2.bf16.msra.mxu0 %v885
  %5565 = vmatprep.subr.bf16.mxu0 0
  %5566 = vmatpush2.bf16.msra.mxu0 %v884
  %5567 = vmatprep.subr.bf16.mxu0 0
  %5568 = vmatpush2.bf16.msra.mxu0 %v883
  %5569 = vmatprep.subr.bf16.mxu0 0
  %5570 = vmatpush2.bf16.msra.mxu0 %v882
  %5571 = vmatprep.mubr.bf16.mxu0 %v5381
  %5572 = vmatmul.mubr.bf16.gmra.mxu0 %v5380
  %v5573 = vpop.f32.mrf.mxu0
  %v5574 = vadd.f32 %v5477, %v5573
  %v5575 = vpop.f32.mrf.mxu0
  %v5576 = vpop.f32.mrf.mxu0
  %v5577 = vadd.f32 %v5480, %v5576
  %v5578 = vpop.f32.mrf.mxu0
  %5579 = vmatprep.mubr.bf16.mxu0 %v5385
  %5580 = vmatmul.mubr.bf16.gmra.mxu0 %v5384
  %v5581 = vpop.f32.mrf.mxu0
  %v5582 = vadd.f32 %v5485, %v5581
  %v5583 = vpop.f32.mrf.mxu0
  %v5584 = vpop.f32.mrf.mxu0
  %v5585 = vadd.f32 %v5488, %v5584
  %v5586 = vpop.f32.mrf.mxu0
  %5587 = vmatprep.mubr.bf16.mxu0 %v5389
  %5588 = vmatmul.mubr.bf16.gmra.mxu0 %v5388
  %v5589 = vpop.f32.mrf.mxu0
  %v5590 = vadd.f32 %v5493, %v5589
  %v5591 = vpop.f32.mrf.mxu0
  %v5592 = vpop.f32.mrf.mxu0
  %v5593 = vadd.f32 %v5496, %v5592
  %v5594 = vpop.f32.mrf.mxu0
  %5595 = vmatprep.mubr.bf16.mxu0 %v5393
  %5596 = vmatmul.mubr.bf16.gmra.mxu0 %v5392
  %v5597 = vpop.f32.mrf.mxu0
  %v5598 = vadd.f32 %v5501, %v5597
  %v5599 = vpop.f32.mrf.mxu0
  %v5600 = vpop.f32.mrf.mxu0
  %v5601 = vadd.f32 %v5504, %v5600
  %v5602 = vpop.f32.mrf.mxu0
  %5603 = vmatprep.mubr.bf16.mxu0 %v5397
  %5604 = vmatmul.mubr.bf16.gmra.mxu0 %v5396
  %v5605 = vpop.f32.mrf.mxu0
  %v5606 = vadd.f32 %v5509, %v5605
  %v5607 = vpop.f32.mrf.mxu0
  %v5608 = vpop.f32.mrf.mxu0
  %v5609 = vadd.f32 %v5512, %v5608
  %v5610 = vpop.f32.mrf.mxu0
  %5611 = vmatprep.mubr.bf16.mxu0 %v5401
  %5612 = vmatmul.mubr.bf16.gmra.mxu0 %v5400
  %v5613 = vpop.f32.mrf.mxu0
  %v5614 = vadd.f32 %v5517, %v5613
  %v5615 = vpop.f32.mrf.mxu0
  %v5616 = vpop.f32.mrf.mxu0
  %v5617 = vadd.f32 %v5520, %v5616
  %v5618 = vpop.f32.mrf.mxu0
  %5619 = vmatprep.mubr.bf16.mxu0 %v5405
  %5620 = vmatmul.mubr.bf16.gmra.mxu0 %v5404
  %v5621 = vpop.f32.mrf.mxu0
  %v5622 = vadd.f32 %v5525, %v5621
  %v5623 = vpop.f32.mrf.mxu0
  %v5624 = vpop.f32.mrf.mxu0
  %v5625 = vadd.f32 %v5528, %v5624
  %v5626 = vpop.f32.mrf.mxu0
  %5627 = vmatprep.mubr.bf16.mxu0 %v5409
  %5628 = vmatmul.mubr.bf16.gmra.mxu0 %v5408
  %v5629 = vpop.f32.mrf.mxu0
  %v5630 = vadd.f32 %v5533, %v5629
  %v5631 = vpop.f32.mrf.mxu0
  %v5632 = vpop.f32.mrf.mxu0
  %v5633 = vadd.f32 %v5536, %v5632
  %v5634 = vpop.f32.mrf.mxu0
  %5635 = vdwg.mxu0
  %v5636 = vpack.c.bf16 %v5577, %v5574
  %v5637 = vpack.c.bf16 %v5585, %v5582
  %v5638 = vpack.c.bf16 %v5593, %v5590
  %v5639 = vpack.c.bf16 %v5601, %v5598
  %v5640 = vpack.c.bf16 %v5609, %v5606
  %v5641 = vpack.c.bf16 %v5617, %v5614
  %v5642 = vpack.c.bf16 %v5625, %v5622
  %v5643 = vpack.c.bf16 %v5633, %v5630
  %s5644 = scalar_lea.vmem %s4, 128
  %v5645 = vld [vmem:[%s5644] sm:$0xf]
  %v5646 = vld [vmem:[%s5644 + $0x4] sm:$0xf]
  %v5647 = vld [vmem:[%s5644 + $0x8] sm:$0xf]
  %v5648 = vld [vmem:[%s5644 + $0xc] sm:$0xf]
  %v5653 = vunpack.c.l.b16 %v5645
  %v5654 = vunpack.c.l.b16 %v5646
  %v5655 = vunpack.c.l.b16 %v5647
  %v5656 = vunpack.c.l.b16 %v5648
  %v5657 = vpack.c.b16 %v5654, %v5653
  %v5658 = vpack.c.b16 %v5656, %v5655
  %v5662 = vsel %vm1700, %v5636, 0
  %v5665 = vsel %vm1700, %v5637, 0
  %v5668 = vsel %vm1700, %v5638, 0
  %v5671 = vsel %vm1700, %v5639, 0
  %v5674 = vsel %vm1700, %v5640, 0
  %v5677 = vsel %vm1700, %v5641, 0
  %v5680 = vsel %vm1700, %v5642, 0
  %v5683 = vsel %vm1700, %v5643, 0
  %5685 = vmatprep.subr.bf16.mxu0 0
  %5686 = vmatpush1.bf16.msra.mxu0 0
  %5687 = vmatprep.subr.bf16.mxu0 0
  %5688 = vmatpush1.bf16.msra.mxu0 0
  %5689 = vmatprep.subr.bf16.mxu0 0
  %5690 = vmatpush1.bf16.msra.mxu0 0
  %5691 = vmatprep.subr.bf16.mxu0 0
  %5692 = vmatpush1.bf16.msra.mxu0 0
  %5693 = vmatprep.subr.bf16.mxu0 0
  %5694 = vmatpush1.bf16.msra.mxu0 0
  %5695 = vmatprep.subr.bf16.mxu0 0
  %5696 = vmatpush1.bf16.msra.mxu0 0
  %5697 = vmatprep.subr.bf16.mxu0 0
  %5698 = vmatpush1.bf16.msra.mxu0 %v5658
  %5699 = vmatprep.subr.bf16.mxu0 0
  %5700 = vmatpush1.bf16.msra.mxu0 %v5657
  %5701 = vmatprep.subr.bf16.mxu0 0
  %5702 = vmatpush2.bf16.msra.mxu0 0
  %5703 = vmatprep.subr.bf16.mxu0 0
  %5704 = vmatpush2.bf16.msra.mxu0 0
  %5705 = vmatprep.subr.bf16.mxu0 0
  %5706 = vmatpush2.bf16.msra.mxu0 0
  %5707 = vmatprep.subr.bf16.mxu0 0
  %5708 = vmatpush2.bf16.msra.mxu0 0
  %5709 = vmatprep.subr.bf16.mxu0 0
  %5710 = vmatpush2.bf16.msra.mxu0 0
  %5711 = vmatprep.subr.bf16.mxu0 0
  %5712 = vmatpush2.bf16.msra.mxu0 0
  %5713 = vmatprep.subr.bf16.mxu0 0
  %5714 = vmatpush2.bf16.msra.mxu0 0
  %5715 = vmatprep.subr.bf16.mxu0 0
  %5716 = vmatpush2.bf16.msra.mxu0 0
  %5717 = vmatprep.mubr.bf16.mxu0 0
  %5718 = vmatmul.mubr.bf16.gmra.mxu0 %v5662
  %v5719 = vpop.f32.mrf.mxu0
  %v5720 = vadd.f32 0.0, %v5719
  %v5721 = vpop.f32.mrf.mxu0
  %v5722 = vpop.f32.mrf.mxu0
  %v5723 = vadd.f32 0.0, %v5722
  %v5724 = vpop.f32.mrf.mxu0
  %5725 = vmatprep.mubr.bf16.mxu0 0
  %5726 = vmatmul.mubr.bf16.gmra.mxu0 %v5665
  %v5727 = vpop.f32.mrf.mxu0
  %v5728 = vadd.f32 0.0, %v5727
  %v5729 = vpop.f32.mrf.mxu0
  %v5730 = vpop.f32.mrf.mxu0
  %v5731 = vadd.f32 0.0, %v5730
  %v5732 = vpop.f32.mrf.mxu0
  %5733 = vmatprep.mubr.bf16.mxu0 0
  %5734 = vmatmul.mubr.bf16.gmra.mxu0 %v5668
  %v5735 = vpop.f32.mrf.mxu0
  %v5736 = vadd.f32 0.0, %v5735
  %v5737 = vpop.f32.mrf.mxu0
  %v5738 = vpop.f32.mrf.mxu0
  %v5739 = vadd.f32 0.0, %v5738
  %v5740 = vpop.f32.mrf.mxu0
  %5741 = vmatprep.mubr.bf16.mxu0 0
  %5742 = vmatmul.mubr.bf16.gmra.mxu0 %v5671
  %v5743 = vpop.f32.mrf.mxu0
  %v5744 = vadd.f32 0.0, %v5743
  %v5745 = vpop.f32.mrf.mxu0
  %v5746 = vpop.f32.mrf.mxu0
  %v5747 = vadd.f32 0.0, %v5746
  %v5748 = vpop.f32.mrf.mxu0
  %5749 = vmatprep.mubr.bf16.mxu0 0
  %5750 = vmatmul.mubr.bf16.gmra.mxu0 %v5674
  %v5751 = vpop.f32.mrf.mxu0
  %v5752 = vadd.f32 0.0, %v5751
  %v5753 = vpop.f32.mrf.mxu0
  %v5754 = vpop.f32.mrf.mxu0
  %v5755 = vadd.f32 0.0, %v5754
  %v5756 = vpop.f32.mrf.mxu0
  %5757 = vmatprep.mubr.bf16.mxu0 0
  %5758 = vmatmul.mubr.bf16.gmra.mxu0 %v5677
  %v5759 = vpop.f32.mrf.mxu0
  %v5760 = vadd.f32 0.0, %v5759
  %v5761 = vpop.f32.mrf.mxu0
  %v5762 = vpop.f32.mrf.mxu0
  %v5763 = vadd.f32 0.0, %v5762
  %v5764 = vpop.f32.mrf.mxu0
  %5765 = vmatprep.mubr.bf16.mxu0 0
  %5766 = vmatmul.mubr.bf16.gmra.mxu0 %v5680
  %v5767 = vpop.f32.mrf.mxu0
  %v5768 = vadd.f32 0.0, %v5767
  %v5769 = vpop.f32.mrf.mxu0
  %v5770 = vpop.f32.mrf.mxu0
  %v5771 = vadd.f32 0.0, %v5770
  %v5772 = vpop.f32.mrf.mxu0
  %5773 = vmatprep.mubr.bf16.mxu0 0
  %5774 = vmatmul.mubr.bf16.gmra.mxu0 %v5683
  %v5775 = vpop.f32.mrf.mxu0
  %v5776 = vadd.f32 0.0, %v5775
  %v5777 = vpop.f32.mrf.mxu0
  %v5778 = vpop.f32.mrf.mxu0
  %v5779 = vadd.f32 0.0, %v5778
  %v5780 = vpop.f32.mrf.mxu0
  %5781 = vdwg.mxu0
  %v5782 = vadd.f32 %v5233, %v5720
  %v5783 = vadd.f32 %v5234, %v5723
  %v5784 = vadd.f32 %v5235, %v5728
  %v5785 = vadd.f32 %v5236, %v5731
  %v5786 = vadd.f32 %v5237, %v5736
  %v5787 = vadd.f32 %v5238, %v5739
  %v5788 = vadd.f32 %v5239, %v5744
  %v5789 = vadd.f32 %v5240, %v5747
  %v5790 = vadd.f32 %v5241, %v5752
  %v5791 = vadd.f32 %v5242, %v5755
  %v5792 = vadd.f32 %v5243, %v5760
  %v5793 = vadd.f32 %v5244, %v5763
  %v5794 = vadd.f32 %v5245, %v5768
  %v5795 = vadd.f32 %v5246, %v5771
  %v5796 = vadd.f32 %v5247, %v5776
  %v5797 = vadd.f32 %v5248, %v5779
  %s5798 = scalar_lea.vmem %s3, 2304
  %v5799 = vld [vmem:[%s5798] sm:$0xff]
  %v5800 = vld [vmem:[%s5798 + $0x8] sm:$0xff]
  %v5801 = vld [vmem:[%s5798 + $0x10] sm:$0xff]
  %v5802 = vld [vmem:[%s5798 + $0x18] sm:$0xff]
  %v5803 = vld [vmem:[%s5798 + $0x20] sm:$0xff]
  %v5804 = vld [vmem:[%s5798 + $0x28] sm:$0xff]
  %v5805 = vld [vmem:[%s5798 + $0x30] sm:$0xff]
  %v5806 = vld [vmem:[%s5798 + $0x38] sm:$0xff]
  %v5807 = vld [vmem:[%s5798 + $0x40] sm:$0xff]
  %v5808 = vld [vmem:[%s5798 + $0x48] sm:$0xff]
  %v5809 = vld [vmem:[%s5798 + $0x50] sm:$0xff]
  %v5810 = vld [vmem:[%s5798 + $0x58] sm:$0xff]
  %v5811 = vld [vmem:[%s5798 + $0x60] sm:$0xff]
  %v5812 = vld [vmem:[%s5798 + $0x68] sm:$0xff]
  %v5813 = vld [vmem:[%s5798 + $0x70] sm:$0xff]
  %v5814 = vld [vmem:[%s5798 + $0x78] sm:$0xff]
  %v5815 = vld [vmem:[%s5798 + $0x80] sm:$0xff]
  %v5816 = vld [vmem:[%s5798 + $0x88] sm:$0xff]
  %v5817 = vld [vmem:[%s5798 + $0x90] sm:$0xff]
  %v5818 = vld [vmem:[%s5798 + $0x98] sm:$0xff]
  %v5819 = vld [vmem:[%s5798 + $0xa0] sm:$0xff]
  %v5820 = vld [vmem:[%s5798 + $0xa8] sm:$0xff]
  %v5821 = vld [vmem:[%s5798 + $0xb0] sm:$0xff]
  %v5822 = vld [vmem:[%s5798 + $0xb8] sm:$0xff]
  %v5823 = vld [vmem:[%s5798 + $0xc0] sm:$0xff]
  %v5824 = vld [vmem:[%s5798 + $0xc8] sm:$0xff]
  %v5825 = vld [vmem:[%s5798 + $0xd0] sm:$0xff]
  %v5826 = vld [vmem:[%s5798 + $0xd8] sm:$0xff]
  %v5827 = vld [vmem:[%s5798 + $0xe0] sm:$0xff]
  %v5828 = vld [vmem:[%s5798 + $0xe8] sm:$0xff]
  %v5829 = vld [vmem:[%s5798 + $0xf0] sm:$0xff]
  %v5830 = vld [vmem:[%s5798 + $0xf8] sm:$0xff]
  %v5863 = vunpack.c.l.b16 %v5799
  %v5864 = vunpack.c.h.b16 %v5799
  %v5865 = vunpack.c.l.b16 %v5800
  %v5866 = vunpack.c.h.b16 %v5800
  %v5867 = vunpack.c.l.b16 %v5801
  %v5868 = vunpack.c.h.b16 %v5801
  %v5869 = vunpack.c.l.b16 %v5802
  %v5870 = vunpack.c.h.b16 %v5802
  %v5871 = vunpack.c.l.b16 %v5803
  %v5872 = vunpack.c.h.b16 %v5803
  %v5873 = vunpack.c.l.b16 %v5804
  %v5874 = vunpack.c.h.b16 %v5804
  %v5875 = vunpack.c.l.b16 %v5805
  %v5876 = vunpack.c.h.b16 %v5805
  %v5877 = vunpack.c.l.b16 %v5806
  %v5878 = vunpack.c.h.b16 %v5806
  %v5879 = vunpack.c.l.b16 %v5807
  %v5880 = vunpack.c.h.b16 %v5807
  %v5881 = vunpack.c.l.b16 %v5808
  %v5882 = vunpack.c.h.b16 %v5808
  %v5883 = vunpack.c.l.b16 %v5809
  %v5884 = vunpack.c.h.b16 %v5809
  %v5885 = vunpack.c.l.b16 %v5810
  %v5886 = vunpack.c.h.b16 %v5810
  %v5887 = vunpack.c.l.b16 %v5811
  %v5888 = vunpack.c.h.b16 %v5811
  %v5889 = vunpack.c.l.b16 %v5812
  %v5890 = vunpack.c.h.b16 %v5812
  %v5891 = vunpack.c.l.b16 %v5813
  %v5892 = vunpack.c.h.b16 %v5813
  %v5893 = vunpack.c.l.b16 %v5814
  %v5894 = vunpack.c.h.b16 %v5814
  %v5895 = vunpack.c.l.b16 %v5815
  %v5896 = vunpack.c.h.b16 %v5815
  %v5897 = vunpack.c.l.b16 %v5816
  %v5898 = vunpack.c.h.b16 %v5816
  %v5899 = vunpack.c.l.b16 %v5817
  %v5900 = vunpack.c.h.b16 %v5817
  %v5901 = vunpack.c.l.b16 %v5818
  %v5902 = vunpack.c.h.b16 %v5818
  %v5903 = vunpack.c.l.b16 %v5819
  %v5904 = vunpack.c.h.b16 %v5819
  %v5905 = vunpack.c.l.b16 %v5820
  %v5906 = vunpack.c.h.b16 %v5820
  %v5907 = vunpack.c.l.b16 %v5821
  %v5908 = vunpack.c.h.b16 %v5821
  %v5909 = vunpack.c.l.b16 %v5822
  %v5910 = vunpack.c.h.b16 %v5822
  %v5911 = vunpack.c.l.b16 %v5823
  %v5912 = vunpack.c.h.b16 %v5823
  %v5913 = vunpack.c.l.b16 %v5824
  %v5914 = vunpack.c.h.b16 %v5824
  %v5915 = vunpack.c.l.b16 %v5825
  %v5916 = vunpack.c.h.b16 %v5825
  %v5917 = vunpack.c.l.b16 %v5826
  %v5918 = vunpack.c.h.b16 %v5826
  %v5919 = vunpack.c.l.b16 %v5827
  %v5920 = vunpack.c.h.b16 %v5827
  %v5921 = vunpack.c.l.b16 %v5828
  %v5922 = vunpack.c.h.b16 %v5828
  %v5923 = vunpack.c.l.b16 %v5829
  %v5924 = vunpack.c.h.b16 %v5829
  %v5925 = vunpack.c.l.b16 %v5830
  %v5926 = vunpack.c.h.b16 %v5830
  %v5927 = vpack.c.b16 %v5867, %v5863
  %v5928 = vpack.c.b16 %v5868, %v5864
  %v5929 = vpack.c.b16 %v5869, %v5865
  %v5930 = vpack.c.b16 %v5870, %v5866
  %v5931 = vpack.c.b16 %v5875, %v5871
  %v5932 = vpack.c.b16 %v5876, %v5872
  %v5933 = vpack.c.b16 %v5877, %v5873
  %v5934 = vpack.c.b16 %v5878, %v5874
  %v5935 = vpack.c.b16 %v5883, %v5879
  %v5936 = vpack.c.b16 %v5884, %v5880
  %v5937 = vpack.c.b16 %v5885, %v5881
  %v5938 = vpack.c.b16 %v5886, %v5882
  %v5939 = vpack.c.b16 %v5891, %v5887
  %v5940 = vpack.c.b16 %v5892, %v5888
  %v5941 = vpack.c.b16 %v5893, %v5889
  %v5942 = vpack.c.b16 %v5894, %v5890
  %v5943 = vpack.c.b16 %v5899, %v5895
  %v5944 = vpack.c.b16 %v5900, %v5896
  %v5945 = vpack.c.b16 %v5901, %v5897
  %v5946 = vpack.c.b16 %v5902, %v5898
  %v5947 = vpack.c.b16 %v5907, %v5903
  %v5948 = vpack.c.b16 %v5908, %v5904
  %v5949 = vpack.c.b16 %v5909, %v5905
  %v5950 = vpack.c.b16 %v5910, %v5906
  %v5951 = vpack.c.b16 %v5915, %v5911
  %v5952 = vpack.c.b16 %v5916, %v5912
  %v5953 = vpack.c.b16 %v5917, %v5913
  %v5954 = vpack.c.b16 %v5918, %v5914
  %v5955 = vpack.c.b16 %v5923, %v5919
  %v5956 = vpack.c.b16 %v5924, %v5920
  %v5957 = vpack.c.b16 %v5925, %v5921
  %v5958 = vpack.c.b16 %v5926, %v5922
  %5991 = vmatprep.subr.bf16.mxu0 0
  %5992 = vmatpush1.bf16.msra.mxu0 %v865
  %5993 = vmatprep.subr.bf16.mxu0 0
  %5994 = vmatpush1.bf16.msra.mxu0 %v864
  %5995 = vmatprep.subr.bf16.mxu0 0
  %5996 = vmatpush1.bf16.msra.mxu0 %v863
  %5997 = vmatprep.subr.bf16.mxu0 0
  %5998 = vmatpush1.bf16.msra.mxu0 %v862
  %5999 = vmatprep.subr.bf16.mxu0 0
  %6000 = vmatpush1.bf16.msra.mxu0 %v861
  %6001 = vmatprep.subr.bf16.mxu0 0
  %6002 = vmatpush1.bf16.msra.mxu0 %v860
  %6003 = vmatprep.subr.bf16.mxu0 0
  %6004 = vmatpush1.bf16.msra.mxu0 %v859
  %6005 = vmatprep.subr.bf16.mxu0 0
  %6006 = vmatpush1.bf16.msra.mxu0 %v858
  %6007 = vmatprep.subr.bf16.mxu0 0
  %6008 = vmatpush2.bf16.msra.mxu0 %v873
  %6009 = vmatprep.subr.bf16.mxu0 0
  %6010 = vmatpush2.bf16.msra.mxu0 %v872
  %6011 = vmatprep.subr.bf16.mxu0 0
  %6012 = vmatpush2.bf16.msra.mxu0 %v871
  %6013 = vmatprep.subr.bf16.mxu0 0
  %6014 = vmatpush2.bf16.msra.mxu0 %v870
  %6015 = vmatprep.subr.bf16.mxu0 0
  %6016 = vmatpush2.bf16.msra.mxu0 %v869
  %6017 = vmatprep.subr.bf16.mxu0 0
  %6018 = vmatpush2.bf16.msra.mxu0 %v868
  %6019 = vmatprep.subr.bf16.mxu0 0
  %6020 = vmatpush2.bf16.msra.mxu0 %v867
  %6021 = vmatprep.subr.bf16.mxu0 0
  %6022 = vmatpush2.bf16.msra.mxu0 %v866
  %6023 = vmatprep.mubr.bf16.mxu0 %v5928
  %6024 = vmatmul.mubr.bf16.gmra.mxu0 %v5927
  %v6025 = vpop.f32.mrf.mxu0
  %v6026 = vadd.f32 0.0, %v6025
  %v6027 = vpop.f32.mrf.mxu0
  %v6028 = vpop.f32.mrf.mxu0
  %v6029 = vadd.f32 0.0, %v6028
  %v6030 = vpop.f32.mrf.mxu0
  %6031 = vmatprep.mubr.bf16.mxu0 %v5932
  %6032 = vmatmul.mubr.bf16.gmra.mxu0 %v5931
  %v6033 = vpop.f32.mrf.mxu0
  %v6034 = vadd.f32 0.0, %v6033
  %v6035 = vpop.f32.mrf.mxu0
  %v6036 = vpop.f32.mrf.mxu0
  %v6037 = vadd.f32 0.0, %v6036
  %v6038 = vpop.f32.mrf.mxu0
  %6039 = vmatprep.mubr.bf16.mxu0 %v5936
  %6040 = vmatmul.mubr.bf16.gmra.mxu0 %v5935
  %v6041 = vpop.f32.mrf.mxu0
  %v6042 = vadd.f32 0.0, %v6041
  %v6043 = vpop.f32.mrf.mxu0
  %v6044 = vpop.f32.mrf.mxu0
  %v6045 = vadd.f32 0.0, %v6044
  %v6046 = vpop.f32.mrf.mxu0
  %6047 = vmatprep.mubr.bf16.mxu0 %v5940
  %6048 = vmatmul.mubr.bf16.gmra.mxu0 %v5939
  %v6049 = vpop.f32.mrf.mxu0
  %v6050 = vadd.f32 0.0, %v6049
  %v6051 = vpop.f32.mrf.mxu0
  %v6052 = vpop.f32.mrf.mxu0
  %v6053 = vadd.f32 0.0, %v6052
  %v6054 = vpop.f32.mrf.mxu0
  %6055 = vmatprep.mubr.bf16.mxu0 %v5944
  %6056 = vmatmul.mubr.bf16.gmra.mxu0 %v5943
  %v6057 = vpop.f32.mrf.mxu0
  %v6058 = vadd.f32 0.0, %v6057
  %v6059 = vpop.f32.mrf.mxu0
  %v6060 = vpop.f32.mrf.mxu0
  %v6061 = vadd.f32 0.0, %v6060
  %v6062 = vpop.f32.mrf.mxu0
  %6063 = vmatprep.mubr.bf16.mxu0 %v5948
  %6064 = vmatmul.mubr.bf16.gmra.mxu0 %v5947
  %v6065 = vpop.f32.mrf.mxu0
  %v6066 = vadd.f32 0.0, %v6065
  %v6067 = vpop.f32.mrf.mxu0
  %v6068 = vpop.f32.mrf.mxu0
  %v6069 = vadd.f32 0.0, %v6068
  %v6070 = vpop.f32.mrf.mxu0
  %6071 = vmatprep.mubr.bf16.mxu0 %v5952
  %6072 = vmatmul.mubr.bf16.gmra.mxu0 %v5951
  %v6073 = vpop.f32.mrf.mxu0
  %v6074 = vadd.f32 0.0, %v6073
  %v6075 = vpop.f32.mrf.mxu0
  %v6076 = vpop.f32.mrf.mxu0
  %v6077 = vadd.f32 0.0, %v6076
  %v6078 = vpop.f32.mrf.mxu0
  %6079 = vmatprep.mubr.bf16.mxu0 %v5956
  %6080 = vmatmul.mubr.bf16.gmra.mxu0 %v5955
  %v6081 = vpop.f32.mrf.mxu0
  %v6082 = vadd.f32 0.0, %v6081
  %v6083 = vpop.f32.mrf.mxu0
  %v6084 = vpop.f32.mrf.mxu0
  %v6085 = vadd.f32 0.0, %v6084
  %v6086 = vpop.f32.mrf.mxu0
  %6087 = vdwg.mxu0
  %6088 = vmatprep.subr.bf16.mxu0 0
  %6089 = vmatpush1.bf16.msra.mxu0 %v881
  %6090 = vmatprep.subr.bf16.mxu0 0
  %6091 = vmatpush1.bf16.msra.mxu0 %v880
  %6092 = vmatprep.subr.bf16.mxu0 0
  %6093 = vmatpush1.bf16.msra.mxu0 %v879
  %6094 = vmatprep.subr.bf16.mxu0 0
  %6095 = vmatpush1.bf16.msra.mxu0 %v878
  %6096 = vmatprep.subr.bf16.mxu0 0
  %6097 = vmatpush1.bf16.msra.mxu0 %v877
  %6098 = vmatprep.subr.bf16.mxu0 0
  %6099 = vmatpush1.bf16.msra.mxu0 %v876
  %6100 = vmatprep.subr.bf16.mxu0 0
  %6101 = vmatpush1.bf16.msra.mxu0 %v875
  %6102 = vmatprep.subr.bf16.mxu0 0
  %6103 = vmatpush1.bf16.msra.mxu0 %v874
  %6104 = vmatprep.subr.bf16.mxu0 0
  %6105 = vmatpush2.bf16.msra.mxu0 %v889
  %6106 = vmatprep.subr.bf16.mxu0 0
  %6107 = vmatpush2.bf16.msra.mxu0 %v888
  %6108 = vmatprep.subr.bf16.mxu0 0
  %6109 = vmatpush2.bf16.msra.mxu0 %v887
  %6110 = vmatprep.subr.bf16.mxu0 0
  %6111 = vmatpush2.bf16.msra.mxu0 %v886
  %6112 = vmatprep.subr.bf16.mxu0 0
  %6113 = vmatpush2.bf16.msra.mxu0 %v885
  %6114 = vmatprep.subr.bf16.mxu0 0
  %6115 = vmatpush2.bf16.msra.mxu0 %v884
  %6116 = vmatprep.subr.bf16.mxu0 0
  %6117 = vmatpush2.bf16.msra.mxu0 %v883
  %6118 = vmatprep.subr.bf16.mxu0 0
  %6119 = vmatpush2.bf16.msra.mxu0 %v882
  %6120 = vmatprep.mubr.bf16.mxu0 %v5930
  %6121 = vmatmul.mubr.bf16.gmra.mxu0 %v5929
  %v6122 = vpop.f32.mrf.mxu0
  %v6123 = vadd.f32 %v6026, %v6122
  %v6124 = vpop.f32.mrf.mxu0
  %v6125 = vpop.f32.mrf.mxu0
  %v6126 = vadd.f32 %v6029, %v6125
  %v6127 = vpop.f32.mrf.mxu0
  %6128 = vmatprep.mubr.bf16.mxu0 %v5934
  %6129 = vmatmul.mubr.bf16.gmra.mxu0 %v5933
  %v6130 = vpop.f32.mrf.mxu0
  %v6131 = vadd.f32 %v6034, %v6130
  %v6132 = vpop.f32.mrf.mxu0
  %v6133 = vpop.f32.mrf.mxu0
  %v6134 = vadd.f32 %v6037, %v6133
  %v6135 = vpop.f32.mrf.mxu0
  %6136 = vmatprep.mubr.bf16.mxu0 %v5938
  %6137 = vmatmul.mubr.bf16.gmra.mxu0 %v5937
  %v6138 = vpop.f32.mrf.mxu0
  %v6139 = vadd.f32 %v6042, %v6138
  %v6140 = vpop.f32.mrf.mxu0
  %v6141 = vpop.f32.mrf.mxu0
  %v6142 = vadd.f32 %v6045, %v6141
  %v6143 = vpop.f32.mrf.mxu0
  %6144 = vmatprep.mubr.bf16.mxu0 %v5942
  %6145 = vmatmul.mubr.bf16.gmra.mxu0 %v5941
  %v6146 = vpop.f32.mrf.mxu0
  %v6147 = vadd.f32 %v6050, %v6146
  %v6148 = vpop.f32.mrf.mxu0
  %v6149 = vpop.f32.mrf.mxu0
  %v6150 = vadd.f32 %v6053, %v6149
  %v6151 = vpop.f32.mrf.mxu0
  %6152 = vmatprep.mubr.bf16.mxu0 %v5946
  %6153 = vmatmul.mubr.bf16.gmra.mxu0 %v5945
  %v6154 = vpop.f32.mrf.mxu0
  %v6155 = vadd.f32 %v6058, %v6154
  %v6156 = vpop.f32.mrf.mxu0
  %v6157 = vpop.f32.mrf.mxu0
  %v6158 = vadd.f32 %v6061, %v6157
  %v6159 = vpop.f32.mrf.mxu0
  %6160 = vmatprep.mubr.bf16.mxu0 %v5950
  %6161 = vmatmul.mubr.bf16.gmra.mxu0 %v5949
  %v6162 = vpop.f32.mrf.mxu0
  %v6163 = vadd.f32 %v6066, %v6162
  %v6164 = vpop.f32.mrf.mxu0
  %v6165 = vpop.f32.mrf.mxu0
  %v6166 = vadd.f32 %v6069, %v6165
  %v6167 = vpop.f32.mrf.mxu0
  %6168 = vmatprep.mubr.bf16.mxu0 %v5954
  %6169 = vmatmul.mubr.bf16.gmra.mxu0 %v5953
  %v6170 = vpop.f32.mrf.mxu0
  %v6171 = vadd.f32 %v6074, %v6170
  %v6172 = vpop.f32.mrf.mxu0
  %v6173 = vpop.f32.mrf.mxu0
  %v6174 = vadd.f32 %v6077, %v6173
  %v6175 = vpop.f32.mrf.mxu0
  %6176 = vmatprep.mubr.bf16.mxu0 %v5958
  %6177 = vmatmul.mubr.bf16.gmra.mxu0 %v5957
  %v6178 = vpop.f32.mrf.mxu0
  %v6179 = vadd.f32 %v6082, %v6178
  %v6180 = vpop.f32.mrf.mxu0
  %v6181 = vpop.f32.mrf.mxu0
  %v6182 = vadd.f32 %v6085, %v6181
  %v6183 = vpop.f32.mrf.mxu0
  %6184 = vdwg.mxu0
  %v6185 = vpack.c.bf16 %v6126, %v6123
  %v6186 = vpack.c.bf16 %v6134, %v6131
  %v6187 = vpack.c.bf16 %v6142, %v6139
  %v6188 = vpack.c.bf16 %v6150, %v6147
  %v6189 = vpack.c.bf16 %v6158, %v6155
  %v6190 = vpack.c.bf16 %v6166, %v6163
  %v6191 = vpack.c.bf16 %v6174, %v6171
  %v6192 = vpack.c.bf16 %v6182, %v6179
  %s6193 = scalar_lea.vmem %s4, 144
  %v6194 = vld [vmem:[%s6193] sm:$0xf]
  %v6195 = vld [vmem:[%s6193 + $0x4] sm:$0xf]
  %v6196 = vld [vmem:[%s6193 + $0x8] sm:$0xf]
  %v6197 = vld [vmem:[%s6193 + $0xc] sm:$0xf]
  %v6202 = vunpack.c.l.b16 %v6194
  %v6203 = vunpack.c.l.b16 %v6195
  %v6204 = vunpack.c.l.b16 %v6196
  %v6205 = vunpack.c.l.b16 %v6197
  %v6206 = vpack.c.b16 %v6203, %v6202
  %v6207 = vpack.c.b16 %v6205, %v6204
  %v6211 = vsel %vm1700, %v6185, 0
  %v6214 = vsel %vm1700, %v6186, 0
  %v6217 = vsel %vm1700, %v6187, 0
  %v6220 = vsel %vm1700, %v6188, 0
  %v6223 = vsel %vm1700, %v6189, 0
  %v6226 = vsel %vm1700, %v6190, 0
  %v6229 = vsel %vm1700, %v6191, 0
  %v6232 = vsel %vm1700, %v6192, 0
  %6234 = vmatprep.subr.bf16.mxu0 0
  %6235 = vmatpush1.bf16.msra.mxu0 0
  %6236 = vmatprep.subr.bf16.mxu0 0
  %6237 = vmatpush1.bf16.msra.mxu0 0
  %6238 = vmatprep.subr.bf16.mxu0 0
  %6239 = vmatpush1.bf16.msra.mxu0 0
  %6240 = vmatprep.subr.bf16.mxu0 0
  %6241 = vmatpush1.bf16.msra.mxu0 0
  %6242 = vmatprep.subr.bf16.mxu0 0
  %6243 = vmatpush1.bf16.msra.mxu0 0
  %6244 = vmatprep.subr.bf16.mxu0 0
  %6245 = vmatpush1.bf16.msra.mxu0 0
  %6246 = vmatprep.subr.bf16.mxu0 0
  %6247 = vmatpush1.bf16.msra.mxu0 %v6207
  %6248 = vmatprep.subr.bf16.mxu0 0
  %6249 = vmatpush1.bf16.msra.mxu0 %v6206
  %6250 = vmatprep.subr.bf16.mxu0 0
  %6251 = vmatpush2.bf16.msra.mxu0 0
  %6252 = vmatprep.subr.bf16.mxu0 0
  %6253 = vmatpush2.bf16.msra.mxu0 0
  %6254 = vmatprep.subr.bf16.mxu0 0
  %6255 = vmatpush2.bf16.msra.mxu0 0
  %6256 = vmatprep.subr.bf16.mxu0 0
  %6257 = vmatpush2.bf16.msra.mxu0 0
  %6258 = vmatprep.subr.bf16.mxu0 0
  %6259 = vmatpush2.bf16.msra.mxu0 0
  %6260 = vmatprep.subr.bf16.mxu0 0
  %6261 = vmatpush2.bf16.msra.mxu0 0
  %6262 = vmatprep.subr.bf16.mxu0 0
  %6263 = vmatpush2.bf16.msra.mxu0 0
  %6264 = vmatprep.subr.bf16.mxu0 0
  %6265 = vmatpush2.bf16.msra.mxu0 0
  %6266 = vmatprep.mubr.bf16.mxu0 0
  %6267 = vmatmul.mubr.bf16.gmra.mxu0 %v6211
  %v6268 = vpop.f32.mrf.mxu0
  %v6269 = vadd.f32 0.0, %v6268
  %v6270 = vpop.f32.mrf.mxu0
  %v6271 = vpop.f32.mrf.mxu0
  %v6272 = vadd.f32 0.0, %v6271
  %v6273 = vpop.f32.mrf.mxu0
  %6274 = vmatprep.mubr.bf16.mxu0 0
  %6275 = vmatmul.mubr.bf16.gmra.mxu0 %v6214
  %v6276 = vpop.f32.mrf.mxu0
  %v6277 = vadd.f32 0.0, %v6276
  %v6278 = vpop.f32.mrf.mxu0
  %v6279 = vpop.f32.mrf.mxu0
  %v6280 = vadd.f32 0.0, %v6279
  %v6281 = vpop.f32.mrf.mxu0
  %6282 = vmatprep.mubr.bf16.mxu0 0
  %6283 = vmatmul.mubr.bf16.gmra.mxu0 %v6217
  %v6284 = vpop.f32.mrf.mxu0
  %v6285 = vadd.f32 0.0, %v6284
  %v6286 = vpop.f32.mrf.mxu0
  %v6287 = vpop.f32.mrf.mxu0
  %v6288 = vadd.f32 0.0, %v6287
  %v6289 = vpop.f32.mrf.mxu0
  %6290 = vmatprep.mubr.bf16.mxu0 0
  %6291 = vmatmul.mubr.bf16.gmra.mxu0 %v6220
  %v6292 = vpop.f32.mrf.mxu0
  %v6293 = vadd.f32 0.0, %v6292
  %v6294 = vpop.f32.mrf.mxu0
  %v6295 = vpop.f32.mrf.mxu0
  %v6296 = vadd.f32 0.0, %v6295
  %v6297 = vpop.f32.mrf.mxu0
  %6298 = vmatprep.mubr.bf16.mxu0 0
  %6299 = vmatmul.mubr.bf16.gmra.mxu0 %v6223
  %v6300 = vpop.f32.mrf.mxu0
  %v6301 = vadd.f32 0.0, %v6300
  %v6302 = vpop.f32.mrf.mxu0
  %v6303 = vpop.f32.mrf.mxu0
  %v6304 = vadd.f32 0.0, %v6303
  %v6305 = vpop.f32.mrf.mxu0
  %6306 = vmatprep.mubr.bf16.mxu0 0
  %6307 = vmatmul.mubr.bf16.gmra.mxu0 %v6226
  %v6308 = vpop.f32.mrf.mxu0
  %v6309 = vadd.f32 0.0, %v6308
  %v6310 = vpop.f32.mrf.mxu0
  %v6311 = vpop.f32.mrf.mxu0
  %v6312 = vadd.f32 0.0, %v6311
  %v6313 = vpop.f32.mrf.mxu0
  %6314 = vmatprep.mubr.bf16.mxu0 0
  %6315 = vmatmul.mubr.bf16.gmra.mxu0 %v6229
  %v6316 = vpop.f32.mrf.mxu0
  %v6317 = vadd.f32 0.0, %v6316
  %v6318 = vpop.f32.mrf.mxu0
  %v6319 = vpop.f32.mrf.mxu0
  %v6320 = vadd.f32 0.0, %v6319
  %v6321 = vpop.f32.mrf.mxu0
  %6322 = vmatprep.mubr.bf16.mxu0 0
  %6323 = vmatmul.mubr.bf16.gmra.mxu0 %v6232
  %v6324 = vpop.f32.mrf.mxu0
  %v6325 = vadd.f32 0.0, %v6324
  %v6326 = vpop.f32.mrf.mxu0
  %v6327 = vpop.f32.mrf.mxu0
  %v6328 = vadd.f32 0.0, %v6327
  %v6329 = vpop.f32.mrf.mxu0
  %6330 = vdwg.mxu0
  %v6331 = vadd.f32 %v5782, %v6269
  %v6332 = vadd.f32 %v5783, %v6272
  %v6333 = vadd.f32 %v5784, %v6277
  %v6334 = vadd.f32 %v5785, %v6280
  %v6335 = vadd.f32 %v5786, %v6285
  %v6336 = vadd.f32 %v5787, %v6288
  %v6337 = vadd.f32 %v5788, %v6293
  %v6338 = vadd.f32 %v5789, %v6296
  %v6339 = vadd.f32 %v5790, %v6301
  %v6340 = vadd.f32 %v5791, %v6304
  %v6341 = vadd.f32 %v5792, %v6309
  %v6342 = vadd.f32 %v5793, %v6312
  %v6343 = vadd.f32 %v5794, %v6317
  %v6344 = vadd.f32 %v5795, %v6320
  %v6345 = vadd.f32 %v5796, %v6325
  %v6346 = vadd.f32 %v5797, %v6328
  %s6347 = scalar_lea.vmem %s3, 2560
  %v6348 = vld [vmem:[%s6347] sm:$0xff]
  %v6349 = vld [vmem:[%s6347 + $0x8] sm:$0xff]
  %v6350 = vld [vmem:[%s6347 + $0x10] sm:$0xff]
  %v6351 = vld [vmem:[%s6347 + $0x18] sm:$0xff]
  %v6352 = vld [vmem:[%s6347 + $0x20] sm:$0xff]
  %v6353 = vld [vmem:[%s6347 + $0x28] sm:$0xff]
  %v6354 = vld [vmem:[%s6347 + $0x30] sm:$0xff]
  %v6355 = vld [vmem:[%s6347 + $0x38] sm:$0xff]
  %v6356 = vld [vmem:[%s6347 + $0x40] sm:$0xff]
  %v6357 = vld [vmem:[%s6347 + $0x48] sm:$0xff]
  %v6358 = vld [vmem:[%s6347 + $0x50] sm:$0xff]
  %v6359 = vld [vmem:[%s6347 + $0x58] sm:$0xff]
  %v6360 = vld [vmem:[%s6347 + $0x60] sm:$0xff]
  %v6361 = vld [vmem:[%s6347 + $0x68] sm:$0xff]
  %v6362 = vld [vmem:[%s6347 + $0x70] sm:$0xff]
  %v6363 = vld [vmem:[%s6347 + $0x78] sm:$0xff]
  %v6364 = vld [vmem:[%s6347 + $0x80] sm:$0xff]
  %v6365 = vld [vmem:[%s6347 + $0x88] sm:$0xff]
  %v6366 = vld [vmem:[%s6347 + $0x90] sm:$0xff]
  %v6367 = vld [vmem:[%s6347 + $0x98] sm:$0xff]
  %v6368 = vld [vmem:[%s6347 + $0xa0] sm:$0xff]
  %v6369 = vld [vmem:[%s6347 + $0xa8] sm:$0xff]
  %v6370 = vld [vmem:[%s6347 + $0xb0] sm:$0xff]
  %v6371 = vld [vmem:[%s6347 + $0xb8] sm:$0xff]
  %v6372 = vld [vmem:[%s6347 + $0xc0] sm:$0xff]
  %v6373 = vld [vmem:[%s6347 + $0xc8] sm:$0xff]
  %v6374 = vld [vmem:[%s6347 + $0xd0] sm:$0xff]
  %v6375 = vld [vmem:[%s6347 + $0xd8] sm:$0xff]
  %v6376 = vld [vmem:[%s6347 + $0xe0] sm:$0xff]
  %v6377 = vld [vmem:[%s6347 + $0xe8] sm:$0xff]
  %v6378 = vld [vmem:[%s6347 + $0xf0] sm:$0xff]
  %v6379 = vld [vmem:[%s6347 + $0xf8] sm:$0xff]
  %v6412 = vunpack.c.l.b16 %v6348
  %v6413 = vunpack.c.h.b16 %v6348
  %v6414 = vunpack.c.l.b16 %v6349
  %v6415 = vunpack.c.h.b16 %v6349
  %v6416 = vunpack.c.l.b16 %v6350
  %v6417 = vunpack.c.h.b16 %v6350
  %v6418 = vunpack.c.l.b16 %v6351
  %v6419 = vunpack.c.h.b16 %v6351
  %v6420 = vunpack.c.l.b16 %v6352
  %v6421 = vunpack.c.h.b16 %v6352
  %v6422 = vunpack.c.l.b16 %v6353
  %v6423 = vunpack.c.h.b16 %v6353
  %v6424 = vunpack.c.l.b16 %v6354
  %v6425 = vunpack.c.h.b16 %v6354
  %v6426 = vunpack.c.l.b16 %v6355
  %v6427 = vunpack.c.h.b16 %v6355
  %v6428 = vunpack.c.l.b16 %v6356
  %v6429 = vunpack.c.h.b16 %v6356
  %v6430 = vunpack.c.l.b16 %v6357
  %v6431 = vunpack.c.h.b16 %v6357
  %v6432 = vunpack.c.l.b16 %v6358
  %v6433 = vunpack.c.h.b16 %v6358
  %v6434 = vunpack.c.l.b16 %v6359
  %v6435 = vunpack.c.h.b16 %v6359
  %v6436 = vunpack.c.l.b16 %v6360
  %v6437 = vunpack.c.h.b16 %v6360
  %v6438 = vunpack.c.l.b16 %v6361
  %v6439 = vunpack.c.h.b16 %v6361
  %v6440 = vunpack.c.l.b16 %v6362
  %v6441 = vunpack.c.h.b16 %v6362
  %v6442 = vunpack.c.l.b16 %v6363
  %v6443 = vunpack.c.h.b16 %v6363
  %v6444 = vunpack.c.l.b16 %v6364
  %v6445 = vunpack.c.h.b16 %v6364
  %v6446 = vunpack.c.l.b16 %v6365
  %v6447 = vunpack.c.h.b16 %v6365
  %v6448 = vunpack.c.l.b16 %v6366
  %v6449 = vunpack.c.h.b16 %v6366
  %v6450 = vunpack.c.l.b16 %v6367
  %v6451 = vunpack.c.h.b16 %v6367
  %v6452 = vunpack.c.l.b16 %v6368
  %v6453 = vunpack.c.h.b16 %v6368
  %v6454 = vunpack.c.l.b16 %v6369
  %v6455 = vunpack.c.h.b16 %v6369
  %v6456 = vunpack.c.l.b16 %v6370
  %v6457 = vunpack.c.h.b16 %v6370
  %v6458 = vunpack.c.l.b16 %v6371
  %v6459 = vunpack.c.h.b16 %v6371
  %v6460 = vunpack.c.l.b16 %v6372
  %v6461 = vunpack.c.h.b16 %v6372
  %v6462 = vunpack.c.l.b16 %v6373
  %v6463 = vunpack.c.h.b16 %v6373
  %v6464 = vunpack.c.l.b16 %v6374
  %v6465 = vunpack.c.h.b16 %v6374
  %v6466 = vunpack.c.l.b16 %v6375
  %v6467 = vunpack.c.h.b16 %v6375
  %v6468 = vunpack.c.l.b16 %v6376
  %v6469 = vunpack.c.h.b16 %v6376
  %v6470 = vunpack.c.l.b16 %v6377
  %v6471 = vunpack.c.h.b16 %v6377
  %v6472 = vunpack.c.l.b16 %v6378
  %v6473 = vunpack.c.h.b16 %v6378
  %v6474 = vunpack.c.l.b16 %v6379
  %v6475 = vunpack.c.h.b16 %v6379
  %v6476 = vpack.c.b16 %v6416, %v6412
  %v6477 = vpack.c.b16 %v6417, %v6413
  %v6478 = vpack.c.b16 %v6418, %v6414
  %v6479 = vpack.c.b16 %v6419, %v6415
  %v6480 = vpack.c.b16 %v6424, %v6420
  %v6481 = vpack.c.b16 %v6425, %v6421
  %v6482 = vpack.c.b16 %v6426, %v6422
  %v6483 = vpack.c.b16 %v6427, %v6423
  %v6484 = vpack.c.b16 %v6432, %v6428
  %v6485 = vpack.c.b16 %v6433, %v6429
  %v6486 = vpack.c.b16 %v6434, %v6430
  %v6487 = vpack.c.b16 %v6435, %v6431
  %v6488 = vpack.c.b16 %v6440, %v6436
  %v6489 = vpack.c.b16 %v6441, %v6437
  %v6490 = vpack.c.b16 %v6442, %v6438
  %v6491 = vpack.c.b16 %v6443, %v6439
  %v6492 = vpack.c.b16 %v6448, %v6444
  %v6493 = vpack.c.b16 %v6449, %v6445
  %v6494 = vpack.c.b16 %v6450, %v6446
  %v6495 = vpack.c.b16 %v6451, %v6447
  %v6496 = vpack.c.b16 %v6456, %v6452
  %v6497 = vpack.c.b16 %v6457, %v6453
  %v6498 = vpack.c.b16 %v6458, %v6454
  %v6499 = vpack.c.b16 %v6459, %v6455
  %v6500 = vpack.c.b16 %v6464, %v6460
  %v6501 = vpack.c.b16 %v6465, %v6461
  %v6502 = vpack.c.b16 %v6466, %v6462
  %v6503 = vpack.c.b16 %v6467, %v6463
  %v6504 = vpack.c.b16 %v6472, %v6468
  %v6505 = vpack.c.b16 %v6473, %v6469
  %v6506 = vpack.c.b16 %v6474, %v6470
  %v6507 = vpack.c.b16 %v6475, %v6471
  %6540 = vmatprep.subr.bf16.mxu0 0
  %6541 = vmatpush1.bf16.msra.mxu0 %v865
  %6542 = vmatprep.subr.bf16.mxu0 0
  %6543 = vmatpush1.bf16.msra.mxu0 %v864
  %6544 = vmatprep.subr.bf16.mxu0 0
  %6545 = vmatpush1.bf16.msra.mxu0 %v863
  %6546 = vmatprep.subr.bf16.mxu0 0
  %6547 = vmatpush1.bf16.msra.mxu0 %v862
  %6548 = vmatprep.subr.bf16.mxu0 0
  %6549 = vmatpush1.bf16.msra.mxu0 %v861
  %6550 = vmatprep.subr.bf16.mxu0 0
  %6551 = vmatpush1.bf16.msra.mxu0 %v860
  %6552 = vmatprep.subr.bf16.mxu0 0
  %6553 = vmatpush1.bf16.msra.mxu0 %v859
  %6554 = vmatprep.subr.bf16.mxu0 0
  %6555 = vmatpush1.bf16.msra.mxu0 %v858
  %6556 = vmatprep.subr.bf16.mxu0 0
  %6557 = vmatpush2.bf16.msra.mxu0 %v873
  %6558 = vmatprep.subr.bf16.mxu0 0
  %6559 = vmatpush2.bf16.msra.mxu0 %v872
  %6560 = vmatprep.subr.bf16.mxu0 0
  %6561 = vmatpush2.bf16.msra.mxu0 %v871
  %6562 = vmatprep.subr.bf16.mxu0 0
  %6563 = vmatpush2.bf16.msra.mxu0 %v870
  %6564 = vmatprep.subr.bf16.mxu0 0
  %6565 = vmatpush2.bf16.msra.mxu0 %v869
  %6566 = vmatprep.subr.bf16.mxu0 0
  %6567 = vmatpush2.bf16.msra.mxu0 %v868
  %6568 = vmatprep.subr.bf16.mxu0 0
  %6569 = vmatpush2.bf16.msra.mxu0 %v867
  %6570 = vmatprep.subr.bf16.mxu0 0
  %6571 = vmatpush2.bf16.msra.mxu0 %v866
  %6572 = vmatprep.mubr.bf16.mxu0 %v6477
  %6573 = vmatmul.mubr.bf16.gmra.mxu0 %v6476
  %v6574 = vpop.f32.mrf.mxu0
  %v6575 = vadd.f32 0.0, %v6574
  %v6576 = vpop.f32.mrf.mxu0
  %v6577 = vpop.f32.mrf.mxu0
  %v6578 = vadd.f32 0.0, %v6577
  %v6579 = vpop.f32.mrf.mxu0
  %6580 = vmatprep.mubr.bf16.mxu0 %v6481
  %6581 = vmatmul.mubr.bf16.gmra.mxu0 %v6480
  %v6582 = vpop.f32.mrf.mxu0
  %v6583 = vadd.f32 0.0, %v6582
  %v6584 = vpop.f32.mrf.mxu0
  %v6585 = vpop.f32.mrf.mxu0
  %v6586 = vadd.f32 0.0, %v6585
  %v6587 = vpop.f32.mrf.mxu0
  %6588 = vmatprep.mubr.bf16.mxu0 %v6485
  %6589 = vmatmul.mubr.bf16.gmra.mxu0 %v6484
  %v6590 = vpop.f32.mrf.mxu0
  %v6591 = vadd.f32 0.0, %v6590
  %v6592 = vpop.f32.mrf.mxu0
  %v6593 = vpop.f32.mrf.mxu0
  %v6594 = vadd.f32 0.0, %v6593
  %v6595 = vpop.f32.mrf.mxu0
  %6596 = vmatprep.mubr.bf16.mxu0 %v6489
  %6597 = vmatmul.mubr.bf16.gmra.mxu0 %v6488
  %v6598 = vpop.f32.mrf.mxu0
  %v6599 = vadd.f32 0.0, %v6598
  %v6600 = vpop.f32.mrf.mxu0
  %v6601 = vpop.f32.mrf.mxu0
  %v6602 = vadd.f32 0.0, %v6601
  %v6603 = vpop.f32.mrf.mxu0
  %6604 = vmatprep.mubr.bf16.mxu0 %v6493
  %6605 = vmatmul.mubr.bf16.gmra.mxu0 %v6492
  %v6606 = vpop.f32.mrf.mxu0
  %v6607 = vadd.f32 0.0, %v6606
  %v6608 = vpop.f32.mrf.mxu0
  %v6609 = vpop.f32.mrf.mxu0
  %v6610 = vadd.f32 0.0, %v6609
  %v6611 = vpop.f32.mrf.mxu0
  %6612 = vmatprep.mubr.bf16.mxu0 %v6497
  %6613 = vmatmul.mubr.bf16.gmra.mxu0 %v6496
  %v6614 = vpop.f32.mrf.mxu0
  %v6615 = vadd.f32 0.0, %v6614
  %v6616 = vpop.f32.mrf.mxu0
  %v6617 = vpop.f32.mrf.mxu0
  %v6618 = vadd.f32 0.0, %v6617
  %v6619 = vpop.f32.mrf.mxu0
  %6620 = vmatprep.mubr.bf16.mxu0 %v6501
  %6621 = vmatmul.mubr.bf16.gmra.mxu0 %v6500
  %v6622 = vpop.f32.mrf.mxu0
  %v6623 = vadd.f32 0.0, %v6622
  %v6624 = vpop.f32.mrf.mxu0
  %v6625 = vpop.f32.mrf.mxu0
  %v6626 = vadd.f32 0.0, %v6625
  %v6627 = vpop.f32.mrf.mxu0
  %6628 = vmatprep.mubr.bf16.mxu0 %v6505
  %6629 = vmatmul.mubr.bf16.gmra.mxu0 %v6504
  %v6630 = vpop.f32.mrf.mxu0
  %v6631 = vadd.f32 0.0, %v6630
  %v6632 = vpop.f32.mrf.mxu0
  %v6633 = vpop.f32.mrf.mxu0
  %v6634 = vadd.f32 0.0, %v6633
  %v6635 = vpop.f32.mrf.mxu0
  %6636 = vdwg.mxu0
  %6637 = vmatprep.subr.bf16.mxu0 0
  %6638 = vmatpush1.bf16.msra.mxu0 %v881
  %6639 = vmatprep.subr.bf16.mxu0 0
  %6640 = vmatpush1.bf16.msra.mxu0 %v880
  %6641 = vmatprep.subr.bf16.mxu0 0
  %6642 = vmatpush1.bf16.msra.mxu0 %v879
  %6643 = vmatprep.subr.bf16.mxu0 0
  %6644 = vmatpush1.bf16.msra.mxu0 %v878
  %6645 = vmatprep.subr.bf16.mxu0 0
  %6646 = vmatpush1.bf16.msra.mxu0 %v877
  %6647 = vmatprep.subr.bf16.mxu0 0
  %6648 = vmatpush1.bf16.msra.mxu0 %v876
  %6649 = vmatprep.subr.bf16.mxu0 0
  %6650 = vmatpush1.bf16.msra.mxu0 %v875
  %6651 = vmatprep.subr.bf16.mxu0 0
  %6652 = vmatpush1.bf16.msra.mxu0 %v874
  %6653 = vmatprep.subr.bf16.mxu0 0
  %6654 = vmatpush2.bf16.msra.mxu0 %v889
  %6655 = vmatprep.subr.bf16.mxu0 0
  %6656 = vmatpush2.bf16.msra.mxu0 %v888
  %6657 = vmatprep.subr.bf16.mxu0 0
  %6658 = vmatpush2.bf16.msra.mxu0 %v887
  %6659 = vmatprep.subr.bf16.mxu0 0
  %6660 = vmatpush2.bf16.msra.mxu0 %v886
  %6661 = vmatprep.subr.bf16.mxu0 0
  %6662 = vmatpush2.bf16.msra.mxu0 %v885
  %6663 = vmatprep.subr.bf16.mxu0 0
  %6664 = vmatpush2.bf16.msra.mxu0 %v884
  %6665 = vmatprep.subr.bf16.mxu0 0
  %6666 = vmatpush2.bf16.msra.mxu0 %v883
  %6667 = vmatprep.subr.bf16.mxu0 0
  %6668 = vmatpush2.bf16.msra.mxu0 %v882
  %6669 = vmatprep.mubr.bf16.mxu0 %v6479
  %6670 = vmatmul.mubr.bf16.gmra.mxu0 %v6478
  %v6671 = vpop.f32.mrf.mxu0
  %v6672 = vadd.f32 %v6575, %v6671
  %v6673 = vpop.f32.mrf.mxu0
  %v6674 = vpop.f32.mrf.mxu0
  %v6675 = vadd.f32 %v6578, %v6674
  %v6676 = vpop.f32.mrf.mxu0
  %6677 = vmatprep.mubr.bf16.mxu0 %v6483
  %6678 = vmatmul.mubr.bf16.gmra.mxu0 %v6482
  %v6679 = vpop.f32.mrf.mxu0
  %v6680 = vadd.f32 %v6583, %v6679
  %v6681 = vpop.f32.mrf.mxu0
  %v6682 = vpop.f32.mrf.mxu0
  %v6683 = vadd.f32 %v6586, %v6682
  %v6684 = vpop.f32.mrf.mxu0
  %6685 = vmatprep.mubr.bf16.mxu0 %v6487
  %6686 = vmatmul.mubr.bf16.gmra.mxu0 %v6486
  %v6687 = vpop.f32.mrf.mxu0
  %v6688 = vadd.f32 %v6591, %v6687
  %v6689 = vpop.f32.mrf.mxu0
  %v6690 = vpop.f32.mrf.mxu0
  %v6691 = vadd.f32 %v6594, %v6690
  %v6692 = vpop.f32.mrf.mxu0
  %6693 = vmatprep.mubr.bf16.mxu0 %v6491
  %6694 = vmatmul.mubr.bf16.gmra.mxu0 %v6490
  %v6695 = vpop.f32.mrf.mxu0
  %v6696 = vadd.f32 %v6599, %v6695
  %v6697 = vpop.f32.mrf.mxu0
  %v6698 = vpop.f32.mrf.mxu0
  %v6699 = vadd.f32 %v6602, %v6698
  %v6700 = vpop.f32.mrf.mxu0
  %6701 = vmatprep.mubr.bf16.mxu0 %v6495
  %6702 = vmatmul.mubr.bf16.gmra.mxu0 %v6494
  %v6703 = vpop.f32.mrf.mxu0
  %v6704 = vadd.f32 %v6607, %v6703
  %v6705 = vpop.f32.mrf.mxu0
  %v6706 = vpop.f32.mrf.mxu0
  %v6707 = vadd.f32 %v6610, %v6706
  %v6708 = vpop.f32.mrf.mxu0
  %6709 = vmatprep.mubr.bf16.mxu0 %v6499
  %6710 = vmatmul.mubr.bf16.gmra.mxu0 %v6498
  %v6711 = vpop.f32.mrf.mxu0
  %v6712 = vadd.f32 %v6615, %v6711
  %v6713 = vpop.f32.mrf.mxu0
  %v6714 = vpop.f32.mrf.mxu0
  %v6715 = vadd.f32 %v6618, %v6714
  %v6716 = vpop.f32.mrf.mxu0
  %6717 = vmatprep.mubr.bf16.mxu0 %v6503
  %6718 = vmatmul.mubr.bf16.gmra.mxu0 %v6502
  %v6719 = vpop.f32.mrf.mxu0
  %v6720 = vadd.f32 %v6623, %v6719
  %v6721 = vpop.f32.mrf.mxu0
  %v6722 = vpop.f32.mrf.mxu0
  %v6723 = vadd.f32 %v6626, %v6722
  %v6724 = vpop.f32.mrf.mxu0
  %6725 = vmatprep.mubr.bf16.mxu0 %v6507
  %6726 = vmatmul.mubr.bf16.gmra.mxu0 %v6506
  %v6727 = vpop.f32.mrf.mxu0
  %v6728 = vadd.f32 %v6631, %v6727
  %v6729 = vpop.f32.mrf.mxu0
  %v6730 = vpop.f32.mrf.mxu0
  %v6731 = vadd.f32 %v6634, %v6730
  %v6732 = vpop.f32.mrf.mxu0
  %6733 = vdwg.mxu0
  %v6734 = vpack.c.bf16 %v6675, %v6672
  %v6735 = vpack.c.bf16 %v6683, %v6680
  %v6736 = vpack.c.bf16 %v6691, %v6688
  %v6737 = vpack.c.bf16 %v6699, %v6696
  %v6738 = vpack.c.bf16 %v6707, %v6704
  %v6739 = vpack.c.bf16 %v6715, %v6712
  %v6740 = vpack.c.bf16 %v6723, %v6720
  %v6741 = vpack.c.bf16 %v6731, %v6728
  %s6742 = scalar_lea.vmem %s4, 160
  %v6743 = vld [vmem:[%s6742] sm:$0xf]
  %v6744 = vld [vmem:[%s6742 + $0x4] sm:$0xf]
  %v6745 = vld [vmem:[%s6742 + $0x8] sm:$0xf]
  %v6746 = vld [vmem:[%s6742 + $0xc] sm:$0xf]
  %v6751 = vunpack.c.l.b16 %v6743
  %v6752 = vunpack.c.l.b16 %v6744
  %v6753 = vunpack.c.l.b16 %v6745
  %v6754 = vunpack.c.l.b16 %v6746
  %v6755 = vpack.c.b16 %v6752, %v6751
  %v6756 = vpack.c.b16 %v6754, %v6753
  %v6760 = vsel %vm1700, %v6734, 0
  %v6763 = vsel %vm1700, %v6735, 0
  %v6766 = vsel %vm1700, %v6736, 0
  %v6769 = vsel %vm1700, %v6737, 0
  %v6772 = vsel %vm1700, %v6738, 0
  %v6775 = vsel %vm1700, %v6739, 0
  %v6778 = vsel %vm1700, %v6740, 0
  %v6781 = vsel %vm1700, %v6741, 0
  %6783 = vmatprep.subr.bf16.mxu0 0
  %6784 = vmatpush1.bf16.msra.mxu0 0
  %6785 = vmatprep.subr.bf16.mxu0 0
  %6786 = vmatpush1.bf16.msra.mxu0 0
  %6787 = vmatprep.subr.bf16.mxu0 0
  %6788 = vmatpush1.bf16.msra.mxu0 0
  %6789 = vmatprep.subr.bf16.mxu0 0
  %6790 = vmatpush1.bf16.msra.mxu0 0
  %6791 = vmatprep.subr.bf16.mxu0 0
  %6792 = vmatpush1.bf16.msra.mxu0 0
  %6793 = vmatprep.subr.bf16.mxu0 0
  %6794 = vmatpush1.bf16.msra.mxu0 0
  %6795 = vmatprep.subr.bf16.mxu0 0
  %6796 = vmatpush1.bf16.msra.mxu0 %v6756
  %6797 = vmatprep.subr.bf16.mxu0 0
  %6798 = vmatpush1.bf16.msra.mxu0 %v6755
  %6799 = vmatprep.subr.bf16.mxu0 0
  %6800 = vmatpush2.bf16.msra.mxu0 0
  %6801 = vmatprep.subr.bf16.mxu0 0
  %6802 = vmatpush2.bf16.msra.mxu0 0
  %6803 = vmatprep.subr.bf16.mxu0 0
  %6804 = vmatpush2.bf16.msra.mxu0 0
  %6805 = vmatprep.subr.bf16.mxu0 0
  %6806 = vmatpush2.bf16.msra.mxu0 0
  %6807 = vmatprep.subr.bf16.mxu0 0
  %6808 = vmatpush2.bf16.msra.mxu0 0
  %6809 = vmatprep.subr.bf16.mxu0 0
  %6810 = vmatpush2.bf16.msra.mxu0 0
  %6811 = vmatprep.subr.bf16.mxu0 0
  %6812 = vmatpush2.bf16.msra.mxu0 0
  %6813 = vmatprep.subr.bf16.mxu0 0
  %6814 = vmatpush2.bf16.msra.mxu0 0
  %6815 = vmatprep.mubr.bf16.mxu0 0
  %6816 = vmatmul.mubr.bf16.gmra.mxu0 %v6760
  %v6817 = vpop.f32.mrf.mxu0
  %v6818 = vadd.f32 0.0, %v6817
  %v6819 = vpop.f32.mrf.mxu0
  %v6820 = vpop.f32.mrf.mxu0
  %v6821 = vadd.f32 0.0, %v6820
  %v6822 = vpop.f32.mrf.mxu0
  %6823 = vmatprep.mubr.bf16.mxu0 0
  %6824 = vmatmul.mubr.bf16.gmra.mxu0 %v6763
  %v6825 = vpop.f32.mrf.mxu0
  %v6826 = vadd.f32 0.0, %v6825
  %v6827 = vpop.f32.mrf.mxu0
  %v6828 = vpop.f32.mrf.mxu0
  %v6829 = vadd.f32 0.0, %v6828
  %v6830 = vpop.f32.mrf.mxu0
  %6831 = vmatprep.mubr.bf16.mxu0 0
  %6832 = vmatmul.mubr.bf16.gmra.mxu0 %v6766
  %v6833 = vpop.f32.mrf.mxu0
  %v6834 = vadd.f32 0.0, %v6833
  %v6835 = vpop.f32.mrf.mxu0
  %v6836 = vpop.f32.mrf.mxu0
  %v6837 = vadd.f32 0.0, %v6836
  %v6838 = vpop.f32.mrf.mxu0
  %6839 = vmatprep.mubr.bf16.mxu0 0
  %6840 = vmatmul.mubr.bf16.gmra.mxu0 %v6769
  %v6841 = vpop.f32.mrf.mxu0
  %v6842 = vadd.f32 0.0, %v6841
  %v6843 = vpop.f32.mrf.mxu0
  %v6844 = vpop.f32.mrf.mxu0
  %v6845 = vadd.f32 0.0, %v6844
  %v6846 = vpop.f32.mrf.mxu0
  %6847 = vmatprep.mubr.bf16.mxu0 0
  %6848 = vmatmul.mubr.bf16.gmra.mxu0 %v6772
  %v6849 = vpop.f32.mrf.mxu0
  %v6850 = vadd.f32 0.0, %v6849
  %v6851 = vpop.f32.mrf.mxu0
  %v6852 = vpop.f32.mrf.mxu0
  %v6853 = vadd.f32 0.0, %v6852
  %v6854 = vpop.f32.mrf.mxu0
  %6855 = vmatprep.mubr.bf16.mxu0 0
  %6856 = vmatmul.mubr.bf16.gmra.mxu0 %v6775
  %v6857 = vpop.f32.mrf.mxu0
  %v6858 = vadd.f32 0.0, %v6857
  %v6859 = vpop.f32.mrf.mxu0
  %v6860 = vpop.f32.mrf.mxu0
  %v6861 = vadd.f32 0.0, %v6860
  %v6862 = vpop.f32.mrf.mxu0
  %6863 = vmatprep.mubr.bf16.mxu0 0
  %6864 = vmatmul.mubr.bf16.gmra.mxu0 %v6778
  %v6865 = vpop.f32.mrf.mxu0
  %v6866 = vadd.f32 0.0, %v6865
  %v6867 = vpop.f32.mrf.mxu0
  %v6868 = vpop.f32.mrf.mxu0
  %v6869 = vadd.f32 0.0, %v6868
  %v6870 = vpop.f32.mrf.mxu0
  %6871 = vmatprep.mubr.bf16.mxu0 0
  %6872 = vmatmul.mubr.bf16.gmra.mxu0 %v6781
  %v6873 = vpop.f32.mrf.mxu0
  %v6874 = vadd.f32 0.0, %v6873
  %v6875 = vpop.f32.mrf.mxu0
  %v6876 = vpop.f32.mrf.mxu0
  %v6877 = vadd.f32 0.0, %v6876
  %v6878 = vpop.f32.mrf.mxu0
  %6879 = vdwg.mxu0
  %v6880 = vadd.f32 %v6331, %v6818
  %v6881 = vadd.f32 %v6332, %v6821
  %v6882 = vadd.f32 %v6333, %v6826
  %v6883 = vadd.f32 %v6334, %v6829
  %v6884 = vadd.f32 %v6335, %v6834
  %v6885 = vadd.f32 %v6336, %v6837
  %v6886 = vadd.f32 %v6337, %v6842
  %v6887 = vadd.f32 %v6338, %v6845
  %v6888 = vadd.f32 %v6339, %v6850
  %v6889 = vadd.f32 %v6340, %v6853
  %v6890 = vadd.f32 %v6341, %v6858
  %v6891 = vadd.f32 %v6342, %v6861
  %v6892 = vadd.f32 %v6343, %v6866
  %v6893 = vadd.f32 %v6344, %v6869
  %v6894 = vadd.f32 %v6345, %v6874
  %v6895 = vadd.f32 %v6346, %v6877
  %s6896 = scalar_lea.vmem %s3, 2816
  %v6897 = vld [vmem:[%s6896] sm:$0xff]
  %v6898 = vld [vmem:[%s6896 + $0x8] sm:$0xff]
  %v6899 = vld [vmem:[%s6896 + $0x10] sm:$0xff]
  %v6900 = vld [vmem:[%s6896 + $0x18] sm:$0xff]
  %v6901 = vld [vmem:[%s6896 + $0x20] sm:$0xff]
  %v6902 = vld [vmem:[%s6896 + $0x28] sm:$0xff]
  %v6903 = vld [vmem:[%s6896 + $0x30] sm:$0xff]
  %v6904 = vld [vmem:[%s6896 + $0x38] sm:$0xff]
  %v6905 = vld [vmem:[%s6896 + $0x40] sm:$0xff]
  %v6906 = vld [vmem:[%s6896 + $0x48] sm:$0xff]
  %v6907 = vld [vmem:[%s6896 + $0x50] sm:$0xff]
  %v6908 = vld [vmem:[%s6896 + $0x58] sm:$0xff]
  %v6909 = vld [vmem:[%s6896 + $0x60] sm:$0xff]
  %v6910 = vld [vmem:[%s6896 + $0x68] sm:$0xff]
  %v6911 = vld [vmem:[%s6896 + $0x70] sm:$0xff]
  %v6912 = vld [vmem:[%s6896 + $0x78] sm:$0xff]
  %v6913 = vld [vmem:[%s6896 + $0x80] sm:$0xff]
  %v6914 = vld [vmem:[%s6896 + $0x88] sm:$0xff]
  %v6915 = vld [vmem:[%s6896 + $0x90] sm:$0xff]
  %v6916 = vld [vmem:[%s6896 + $0x98] sm:$0xff]
  %v6917 = vld [vmem:[%s6896 + $0xa0] sm:$0xff]
  %v6918 = vld [vmem:[%s6896 + $0xa8] sm:$0xff]
  %v6919 = vld [vmem:[%s6896 + $0xb0] sm:$0xff]
  %v6920 = vld [vmem:[%s6896 + $0xb8] sm:$0xff]
  %v6921 = vld [vmem:[%s6896 + $0xc0] sm:$0xff]
  %v6922 = vld [vmem:[%s6896 + $0xc8] sm:$0xff]
  %v6923 = vld [vmem:[%s6896 + $0xd0] sm:$0xff]
  %v6924 = vld [vmem:[%s6896 + $0xd8] sm:$0xff]
  %v6925 = vld [vmem:[%s6896 + $0xe0] sm:$0xff]
  %v6926 = vld [vmem:[%s6896 + $0xe8] sm:$0xff]
  %v6927 = vld [vmem:[%s6896 + $0xf0] sm:$0xff]
  %v6928 = vld [vmem:[%s6896 + $0xf8] sm:$0xff]
  %v6961 = vunpack.c.l.b16 %v6897
  %v6962 = vunpack.c.h.b16 %v6897
  %v6963 = vunpack.c.l.b16 %v6898
  %v6964 = vunpack.c.h.b16 %v6898
  %v6965 = vunpack.c.l.b16 %v6899
  %v6966 = vunpack.c.h.b16 %v6899
  %v6967 = vunpack.c.l.b16 %v6900
  %v6968 = vunpack.c.h.b16 %v6900
  %v6969 = vunpack.c.l.b16 %v6901
  %v6970 = vunpack.c.h.b16 %v6901
  %v6971 = vunpack.c.l.b16 %v6902
  %v6972 = vunpack.c.h.b16 %v6902
  %v6973 = vunpack.c.l.b16 %v6903
  %v6974 = vunpack.c.h.b16 %v6903
  %v6975 = vunpack.c.l.b16 %v6904
  %v6976 = vunpack.c.h.b16 %v6904
  %v6977 = vunpack.c.l.b16 %v6905
  %v6978 = vunpack.c.h.b16 %v6905
  %v6979 = vunpack.c.l.b16 %v6906
  %v6980 = vunpack.c.h.b16 %v6906
  %v6981 = vunpack.c.l.b16 %v6907
  %v6982 = vunpack.c.h.b16 %v6907
  %v6983 = vunpack.c.l.b16 %v6908
  %v6984 = vunpack.c.h.b16 %v6908
  %v6985 = vunpack.c.l.b16 %v6909
  %v6986 = vunpack.c.h.b16 %v6909
  %v6987 = vunpack.c.l.b16 %v6910
  %v6988 = vunpack.c.h.b16 %v6910
  %v6989 = vunpack.c.l.b16 %v6911
  %v6990 = vunpack.c.h.b16 %v6911
  %v6991 = vunpack.c.l.b16 %v6912
  %v6992 = vunpack.c.h.b16 %v6912
  %v6993 = vunpack.c.l.b16 %v6913
  %v6994 = vunpack.c.h.b16 %v6913
  %v6995 = vunpack.c.l.b16 %v6914
  %v6996 = vunpack.c.h.b16 %v6914
  %v6997 = vunpack.c.l.b16 %v6915
  %v6998 = vunpack.c.h.b16 %v6915
  %v6999 = vunpack.c.l.b16 %v6916
  %v7000 = vunpack.c.h.b16 %v6916
  %v7001 = vunpack.c.l.b16 %v6917
  %v7002 = vunpack.c.h.b16 %v6917
  %v7003 = vunpack.c.l.b16 %v6918
  %v7004 = vunpack.c.h.b16 %v6918
  %v7005 = vunpack.c.l.b16 %v6919
  %v7006 = vunpack.c.h.b16 %v6919
  %v7007 = vunpack.c.l.b16 %v6920
  %v7008 = vunpack.c.h.b16 %v6920
  %v7009 = vunpack.c.l.b16 %v6921
  %v7010 = vunpack.c.h.b16 %v6921
  %v7011 = vunpack.c.l.b16 %v6922
  %v7012 = vunpack.c.h.b16 %v6922
  %v7013 = vunpack.c.l.b16 %v6923
  %v7014 = vunpack.c.h.b16 %v6923
  %v7015 = vunpack.c.l.b16 %v6924
  %v7016 = vunpack.c.h.b16 %v6924
  %v7017 = vunpack.c.l.b16 %v6925
  %v7018 = vunpack.c.h.b16 %v6925
  %v7019 = vunpack.c.l.b16 %v6926
  %v7020 = vunpack.c.h.b16 %v6926
  %v7021 = vunpack.c.l.b16 %v6927
  %v7022 = vunpack.c.h.b16 %v6927
  %v7023 = vunpack.c.l.b16 %v6928
  %v7024 = vunpack.c.h.b16 %v6928
  %v7025 = vpack.c.b16 %v6965, %v6961
  %v7026 = vpack.c.b16 %v6966, %v6962
  %v7027 = vpack.c.b16 %v6967, %v6963
  %v7028 = vpack.c.b16 %v6968, %v6964
  %v7029 = vpack.c.b16 %v6973, %v6969
  %v7030 = vpack.c.b16 %v6974, %v6970
  %v7031 = vpack.c.b16 %v6975, %v6971
  %v7032 = vpack.c.b16 %v6976, %v6972
  %v7033 = vpack.c.b16 %v6981, %v6977
  %v7034 = vpack.c.b16 %v6982, %v6978
  %v7035 = vpack.c.b16 %v6983, %v6979
  %v7036 = vpack.c.b16 %v6984, %v6980
  %v7037 = vpack.c.b16 %v6989, %v6985
  %v7038 = vpack.c.b16 %v6990, %v6986
  %v7039 = vpack.c.b16 %v6991, %v6987
  %v7040 = vpack.c.b16 %v6992, %v6988
  %v7041 = vpack.c.b16 %v6997, %v6993
  %v7042 = vpack.c.b16 %v6998, %v6994
  %v7043 = vpack.c.b16 %v6999, %v6995
  %v7044 = vpack.c.b16 %v7000, %v6996
  %v7045 = vpack.c.b16 %v7005, %v7001
  %v7046 = vpack.c.b16 %v7006, %v7002
  %v7047 = vpack.c.b16 %v7007, %v7003
  %v7048 = vpack.c.b16 %v7008, %v7004
  %v7049 = vpack.c.b16 %v7013, %v7009
  %v7050 = vpack.c.b16 %v7014, %v7010
  %v7051 = vpack.c.b16 %v7015, %v7011
  %v7052 = vpack.c.b16 %v7016, %v7012
  %v7053 = vpack.c.b16 %v7021, %v7017
  %v7054 = vpack.c.b16 %v7022, %v7018
  %v7055 = vpack.c.b16 %v7023, %v7019
  %v7056 = vpack.c.b16 %v7024, %v7020
  %7089 = vmatprep.subr.bf16.mxu0 0
  %7090 = vmatpush1.bf16.msra.mxu0 %v865
  %7091 = vmatprep.subr.bf16.mxu0 0
  %7092 = vmatpush1.bf16.msra.mxu0 %v864
  %7093 = vmatprep.subr.bf16.mxu0 0
  %7094 = vmatpush1.bf16.msra.mxu0 %v863
  %7095 = vmatprep.subr.bf16.mxu0 0
  %7096 = vmatpush1.bf16.msra.mxu0 %v862
  %7097 = vmatprep.subr.bf16.mxu0 0
  %7098 = vmatpush1.bf16.msra.mxu0 %v861
  %7099 = vmatprep.subr.bf16.mxu0 0
  %7100 = vmatpush1.bf16.msra.mxu0 %v860
  %7101 = vmatprep.subr.bf16.mxu0 0
  %7102 = vmatpush1.bf16.msra.mxu0 %v859
  %7103 = vmatprep.subr.bf16.mxu0 0
  %7104 = vmatpush1.bf16.msra.mxu0 %v858
  %7105 = vmatprep.subr.bf16.mxu0 0
  %7106 = vmatpush2.bf16.msra.mxu0 %v873
  %7107 = vmatprep.subr.bf16.mxu0 0
  %7108 = vmatpush2.bf16.msra.mxu0 %v872
  %7109 = vmatprep.subr.bf16.mxu0 0
  %7110 = vmatpush2.bf16.msra.mxu0 %v871
  %7111 = vmatprep.subr.bf16.mxu0 0
  %7112 = vmatpush2.bf16.msra.mxu0 %v870
  %7113 = vmatprep.subr.bf16.mxu0 0
  %7114 = vmatpush2.bf16.msra.mxu0 %v869
  %7115 = vmatprep.subr.bf16.mxu0 0
  %7116 = vmatpush2.bf16.msra.mxu0 %v868
  %7117 = vmatprep.subr.bf16.mxu0 0
  %7118 = vmatpush2.bf16.msra.mxu0 %v867
  %7119 = vmatprep.subr.bf16.mxu0 0
  %7120 = vmatpush2.bf16.msra.mxu0 %v866
  %7121 = vmatprep.mubr.bf16.mxu0 %v7026
  %7122 = vmatmul.mubr.bf16.gmra.mxu0 %v7025
  %v7123 = vpop.f32.mrf.mxu0
  %v7124 = vadd.f32 0.0, %v7123
  %v7125 = vpop.f32.mrf.mxu0
  %v7126 = vpop.f32.mrf.mxu0
  %v7127 = vadd.f32 0.0, %v7126
  %v7128 = vpop.f32.mrf.mxu0
  %7129 = vmatprep.mubr.bf16.mxu0 %v7030
  %7130 = vmatmul.mubr.bf16.gmra.mxu0 %v7029
  %v7131 = vpop.f32.mrf.mxu0
  %v7132 = vadd.f32 0.0, %v7131
  %v7133 = vpop.f32.mrf.mxu0
  %v7134 = vpop.f32.mrf.mxu0
  %v7135 = vadd.f32 0.0, %v7134
  %v7136 = vpop.f32.mrf.mxu0
  %7137 = vmatprep.mubr.bf16.mxu0 %v7034
  %7138 = vmatmul.mubr.bf16.gmra.mxu0 %v7033
  %v7139 = vpop.f32.mrf.mxu0
  %v7140 = vadd.f32 0.0, %v7139
  %v7141 = vpop.f32.mrf.mxu0
  %v7142 = vpop.f32.mrf.mxu0
  %v7143 = vadd.f32 0.0, %v7142
  %v7144 = vpop.f32.mrf.mxu0
  %7145 = vmatprep.mubr.bf16.mxu0 %v7038
  %7146 = vmatmul.mubr.bf16.gmra.mxu0 %v7037
  %v7147 = vpop.f32.mrf.mxu0
  %v7148 = vadd.f32 0.0, %v7147
  %v7149 = vpop.f32.mrf.mxu0
  %v7150 = vpop.f32.mrf.mxu0
  %v7151 = vadd.f32 0.0, %v7150
  %v7152 = vpop.f32.mrf.mxu0
  %7153 = vmatprep.mubr.bf16.mxu0 %v7042
  %7154 = vmatmul.mubr.bf16.gmra.mxu0 %v7041
  %v7155 = vpop.f32.mrf.mxu0
  %v7156 = vadd.f32 0.0, %v7155
  %v7157 = vpop.f32.mrf.mxu0
  %v7158 = vpop.f32.mrf.mxu0
  %v7159 = vadd.f32 0.0, %v7158
  %v7160 = vpop.f32.mrf.mxu0
  %7161 = vmatprep.mubr.bf16.mxu0 %v7046
  %7162 = vmatmul.mubr.bf16.gmra.mxu0 %v7045
  %v7163 = vpop.f32.mrf.mxu0
  %v7164 = vadd.f32 0.0, %v7163
  %v7165 = vpop.f32.mrf.mxu0
  %v7166 = vpop.f32.mrf.mxu0
  %v7167 = vadd.f32 0.0, %v7166
  %v7168 = vpop.f32.mrf.mxu0
  %7169 = vmatprep.mubr.bf16.mxu0 %v7050
  %7170 = vmatmul.mubr.bf16.gmra.mxu0 %v7049
  %v7171 = vpop.f32.mrf.mxu0
  %v7172 = vadd.f32 0.0, %v7171
  %v7173 = vpop.f32.mrf.mxu0
  %v7174 = vpop.f32.mrf.mxu0
  %v7175 = vadd.f32 0.0, %v7174
  %v7176 = vpop.f32.mrf.mxu0
  %7177 = vmatprep.mubr.bf16.mxu0 %v7054
  %7178 = vmatmul.mubr.bf16.gmra.mxu0 %v7053
  %v7179 = vpop.f32.mrf.mxu0
  %v7180 = vadd.f32 0.0, %v7179
  %v7181 = vpop.f32.mrf.mxu0
  %v7182 = vpop.f32.mrf.mxu0
  %v7183 = vadd.f32 0.0, %v7182
  %v7184 = vpop.f32.mrf.mxu0
  %7185 = vdwg.mxu0
  %7186 = vmatprep.subr.bf16.mxu0 0
  %7187 = vmatpush1.bf16.msra.mxu0 %v881
  %7188 = vmatprep.subr.bf16.mxu0 0
  %7189 = vmatpush1.bf16.msra.mxu0 %v880
  %7190 = vmatprep.subr.bf16.mxu0 0
  %7191 = vmatpush1.bf16.msra.mxu0 %v879
  %7192 = vmatprep.subr.bf16.mxu0 0
  %7193 = vmatpush1.bf16.msra.mxu0 %v878
  %7194 = vmatprep.subr.bf16.mxu0 0
  %7195 = vmatpush1.bf16.msra.mxu0 %v877
  %7196 = vmatprep.subr.bf16.mxu0 0
  %7197 = vmatpush1.bf16.msra.mxu0 %v876
  %7198 = vmatprep.subr.bf16.mxu0 0
  %7199 = vmatpush1.bf16.msra.mxu0 %v875
  %7200 = vmatprep.subr.bf16.mxu0 0
  %7201 = vmatpush1.bf16.msra.mxu0 %v874
  %7202 = vmatprep.subr.bf16.mxu0 0
  %7203 = vmatpush2.bf16.msra.mxu0 %v889
  %7204 = vmatprep.subr.bf16.mxu0 0
  %7205 = vmatpush2.bf16.msra.mxu0 %v888
  %7206 = vmatprep.subr.bf16.mxu0 0
  %7207 = vmatpush2.bf16.msra.mxu0 %v887
  %7208 = vmatprep.subr.bf16.mxu0 0
  %7209 = vmatpush2.bf16.msra.mxu0 %v886
  %7210 = vmatprep.subr.bf16.mxu0 0
  %7211 = vmatpush2.bf16.msra.mxu0 %v885
  %7212 = vmatprep.subr.bf16.mxu0 0
  %7213 = vmatpush2.bf16.msra.mxu0 %v884
  %7214 = vmatprep.subr.bf16.mxu0 0
  %7215 = vmatpush2.bf16.msra.mxu0 %v883
  %7216 = vmatprep.subr.bf16.mxu0 0
  %7217 = vmatpush2.bf16.msra.mxu0 %v882
  %7218 = vmatprep.mubr.bf16.mxu0 %v7028
  %7219 = vmatmul.mubr.bf16.gmra.mxu0 %v7027
  %v7220 = vpop.f32.mrf.mxu0
  %v7221 = vadd.f32 %v7124, %v7220
  %v7222 = vpop.f32.mrf.mxu0
  %v7223 = vpop.f32.mrf.mxu0
  %v7224 = vadd.f32 %v7127, %v7223
  %v7225 = vpop.f32.mrf.mxu0
  %7226 = vmatprep.mubr.bf16.mxu0 %v7032
  %7227 = vmatmul.mubr.bf16.gmra.mxu0 %v7031
  %v7228 = vpop.f32.mrf.mxu0
  %v7229 = vadd.f32 %v7132, %v7228
  %v7230 = vpop.f32.mrf.mxu0
  %v7231 = vpop.f32.mrf.mxu0
  %v7232 = vadd.f32 %v7135, %v7231
  %v7233 = vpop.f32.mrf.mxu0
  %7234 = vmatprep.mubr.bf16.mxu0 %v7036
  %7235 = vmatmul.mubr.bf16.gmra.mxu0 %v7035
  %v7236 = vpop.f32.mrf.mxu0
  %v7237 = vadd.f32 %v7140, %v7236
  %v7238 = vpop.f32.mrf.mxu0
  %v7239 = vpop.f32.mrf.mxu0
  %v7240 = vadd.f32 %v7143, %v7239
  %v7241 = vpop.f32.mrf.mxu0
  %7242 = vmatprep.mubr.bf16.mxu0 %v7040
  %7243 = vmatmul.mubr.bf16.gmra.mxu0 %v7039
  %v7244 = vpop.f32.mrf.mxu0
  %v7245 = vadd.f32 %v7148, %v7244
  %v7246 = vpop.f32.mrf.mxu0
  %v7247 = vpop.f32.mrf.mxu0
  %v7248 = vadd.f32 %v7151, %v7247
  %v7249 = vpop.f32.mrf.mxu0
  %7250 = vmatprep.mubr.bf16.mxu0 %v7044
  %7251 = vmatmul.mubr.bf16.gmra.mxu0 %v7043
  %v7252 = vpop.f32.mrf.mxu0
  %v7253 = vadd.f32 %v7156, %v7252
  %v7254 = vpop.f32.mrf.mxu0
  %v7255 = vpop.f32.mrf.mxu0
  %v7256 = vadd.f32 %v7159, %v7255
  %v7257 = vpop.f32.mrf.mxu0
  %7258 = vmatprep.mubr.bf16.mxu0 %v7048
  %7259 = vmatmul.mubr.bf16.gmra.mxu0 %v7047
  %v7260 = vpop.f32.mrf.mxu0
  %v7261 = vadd.f32 %v7164, %v7260
  %v7262 = vpop.f32.mrf.mxu0
  %v7263 = vpop.f32.mrf.mxu0
  %v7264 = vadd.f32 %v7167, %v7263
  %v7265 = vpop.f32.mrf.mxu0
  %7266 = vmatprep.mubr.bf16.mxu0 %v7052
  %7267 = vmatmul.mubr.bf16.gmra.mxu0 %v7051
  %v7268 = vpop.f32.mrf.mxu0
  %v7269 = vadd.f32 %v7172, %v7268
  %v7270 = vpop.f32.mrf.mxu0
  %v7271 = vpop.f32.mrf.mxu0
  %v7272 = vadd.f32 %v7175, %v7271
  %v7273 = vpop.f32.mrf.mxu0
  %7274 = vmatprep.mubr.bf16.mxu0 %v7056
  %7275 = vmatmul.mubr.bf16.gmra.mxu0 %v7055
  %v7276 = vpop.f32.mrf.mxu0
  %v7277 = vadd.f32 %v7180, %v7276
  %v7278 = vpop.f32.mrf.mxu0
  %v7279 = vpop.f32.mrf.mxu0
  %v7280 = vadd.f32 %v7183, %v7279
  %v7281 = vpop.f32.mrf.mxu0
  %7282 = vdwg.mxu0
  %v7283 = vpack.c.bf16 %v7224, %v7221
  %v7284 = vpack.c.bf16 %v7232, %v7229
  %v7285 = vpack.c.bf16 %v7240, %v7237
  %v7286 = vpack.c.bf16 %v7248, %v7245
  %v7287 = vpack.c.bf16 %v7256, %v7253
  %v7288 = vpack.c.bf16 %v7264, %v7261
  %v7289 = vpack.c.bf16 %v7272, %v7269
  %v7290 = vpack.c.bf16 %v7280, %v7277
  %s7291 = scalar_lea.vmem %s4, 176
  %v7292 = vld [vmem:[%s7291] sm:$0xf]
  %v7293 = vld [vmem:[%s7291 + $0x4] sm:$0xf]
  %v7294 = vld [vmem:[%s7291 + $0x8] sm:$0xf]
  %v7295 = vld [vmem:[%s7291 + $0xc] sm:$0xf]
  %v7300 = vunpack.c.l.b16 %v7292
  %v7301 = vunpack.c.l.b16 %v7293
  %v7302 = vunpack.c.l.b16 %v7294
  %v7303 = vunpack.c.l.b16 %v7295
  %v7304 = vpack.c.b16 %v7301, %v7300
  %v7305 = vpack.c.b16 %v7303, %v7302
  %v7309 = vsel %vm1700, %v7283, 0
  %v7312 = vsel %vm1700, %v7284, 0
  %v7315 = vsel %vm1700, %v7285, 0
  %v7318 = vsel %vm1700, %v7286, 0
  %v7321 = vsel %vm1700, %v7287, 0
  %v7324 = vsel %vm1700, %v7288, 0
  %v7327 = vsel %vm1700, %v7289, 0
  %v7330 = vsel %vm1700, %v7290, 0
  %7332 = vmatprep.subr.bf16.mxu0 0
  %7333 = vmatpush1.bf16.msra.mxu0 0
  %7334 = vmatprep.subr.bf16.mxu0 0
  %7335 = vmatpush1.bf16.msra.mxu0 0
  %7336 = vmatprep.subr.bf16.mxu0 0
  %7337 = vmatpush1.bf16.msra.mxu0 0
  %7338 = vmatprep.subr.bf16.mxu0 0
  %7339 = vmatpush1.bf16.msra.mxu0 0
  %7340 = vmatprep.subr.bf16.mxu0 0
  %7341 = vmatpush1.bf16.msra.mxu0 0
  %7342 = vmatprep.subr.bf16.mxu0 0
  %7343 = vmatpush1.bf16.msra.mxu0 0
  %7344 = vmatprep.subr.bf16.mxu0 0
  %7345 = vmatpush1.bf16.msra.mxu0 %v7305
  %7346 = vmatprep.subr.bf16.mxu0 0
  %7347 = vmatpush1.bf16.msra.mxu0 %v7304
  %7348 = vmatprep.subr.bf16.mxu0 0
  %7349 = vmatpush2.bf16.msra.mxu0 0
  %7350 = vmatprep.subr.bf16.mxu0 0
  %7351 = vmatpush2.bf16.msra.mxu0 0
  %7352 = vmatprep.subr.bf16.mxu0 0
  %7353 = vmatpush2.bf16.msra.mxu0 0
  %7354 = vmatprep.subr.bf16.mxu0 0
  %7355 = vmatpush2.bf16.msra.mxu0 0
  %7356 = vmatprep.subr.bf16.mxu0 0
  %7357 = vmatpush2.bf16.msra.mxu0 0
  %7358 = vmatprep.subr.bf16.mxu0 0
  %7359 = vmatpush2.bf16.msra.mxu0 0
  %7360 = vmatprep.subr.bf16.mxu0 0
  %7361 = vmatpush2.bf16.msra.mxu0 0
  %7362 = vmatprep.subr.bf16.mxu0 0
  %7363 = vmatpush2.bf16.msra.mxu0 0
  %7364 = vmatprep.mubr.bf16.mxu0 0
  %7365 = vmatmul.mubr.bf16.gmra.mxu0 %v7309
  %v7366 = vpop.f32.mrf.mxu0
  %v7367 = vadd.f32 0.0, %v7366
  %v7368 = vpop.f32.mrf.mxu0
  %v7369 = vpop.f32.mrf.mxu0
  %v7370 = vadd.f32 0.0, %v7369
  %v7371 = vpop.f32.mrf.mxu0
  %7372 = vmatprep.mubr.bf16.mxu0 0
  %7373 = vmatmul.mubr.bf16.gmra.mxu0 %v7312
  %v7374 = vpop.f32.mrf.mxu0
  %v7375 = vadd.f32 0.0, %v7374
  %v7376 = vpop.f32.mrf.mxu0
  %v7377 = vpop.f32.mrf.mxu0
  %v7378 = vadd.f32 0.0, %v7377
  %v7379 = vpop.f32.mrf.mxu0
  %7380 = vmatprep.mubr.bf16.mxu0 0
  %7381 = vmatmul.mubr.bf16.gmra.mxu0 %v7315
  %v7382 = vpop.f32.mrf.mxu0
  %v7383 = vadd.f32 0.0, %v7382
  %v7384 = vpop.f32.mrf.mxu0
  %v7385 = vpop.f32.mrf.mxu0
  %v7386 = vadd.f32 0.0, %v7385
  %v7387 = vpop.f32.mrf.mxu0
  %7388 = vmatprep.mubr.bf16.mxu0 0
  %7389 = vmatmul.mubr.bf16.gmra.mxu0 %v7318
  %v7390 = vpop.f32.mrf.mxu0
  %v7391 = vadd.f32 0.0, %v7390
  %v7392 = vpop.f32.mrf.mxu0
  %v7393 = vpop.f32.mrf.mxu0
  %v7394 = vadd.f32 0.0, %v7393
  %v7395 = vpop.f32.mrf.mxu0
  %7396 = vmatprep.mubr.bf16.mxu0 0
  %7397 = vmatmul.mubr.bf16.gmra.mxu0 %v7321
  %v7398 = vpop.f32.mrf.mxu0
  %v7399 = vadd.f32 0.0, %v7398
  %v7400 = vpop.f32.mrf.mxu0
  %v7401 = vpop.f32.mrf.mxu0
  %v7402 = vadd.f32 0.0, %v7401
  %v7403 = vpop.f32.mrf.mxu0
  %7404 = vmatprep.mubr.bf16.mxu0 0
  %7405 = vmatmul.mubr.bf16.gmra.mxu0 %v7324
  %v7406 = vpop.f32.mrf.mxu0
  %v7407 = vadd.f32 0.0, %v7406
  %v7408 = vpop.f32.mrf.mxu0
  %v7409 = vpop.f32.mrf.mxu0
  %v7410 = vadd.f32 0.0, %v7409
  %v7411 = vpop.f32.mrf.mxu0
  %7412 = vmatprep.mubr.bf16.mxu0 0
  %7413 = vmatmul.mubr.bf16.gmra.mxu0 %v7327
  %v7414 = vpop.f32.mrf.mxu0
  %v7415 = vadd.f32 0.0, %v7414
  %v7416 = vpop.f32.mrf.mxu0
  %v7417 = vpop.f32.mrf.mxu0
  %v7418 = vadd.f32 0.0, %v7417
  %v7419 = vpop.f32.mrf.mxu0
  %7420 = vmatprep.mubr.bf16.mxu0 0
  %7421 = vmatmul.mubr.bf16.gmra.mxu0 %v7330
  %v7422 = vpop.f32.mrf.mxu0
  %v7423 = vadd.f32 0.0, %v7422
  %v7424 = vpop.f32.mrf.mxu0
  %v7425 = vpop.f32.mrf.mxu0
  %v7426 = vadd.f32 0.0, %v7425
  %v7427 = vpop.f32.mrf.mxu0
  %7428 = vdwg.mxu0
  %v7429 = vadd.f32 %v6880, %v7367
  %v7430 = vadd.f32 %v6881, %v7370
  %v7431 = vadd.f32 %v6882, %v7375
  %v7432 = vadd.f32 %v6883, %v7378
  %v7433 = vadd.f32 %v6884, %v7383
  %v7434 = vadd.f32 %v6885, %v7386
  %v7435 = vadd.f32 %v6886, %v7391
  %v7436 = vadd.f32 %v6887, %v7394
  %v7437 = vadd.f32 %v6888, %v7399
  %v7438 = vadd.f32 %v6889, %v7402
  %v7439 = vadd.f32 %v6890, %v7407
  %v7440 = vadd.f32 %v6891, %v7410
  %v7441 = vadd.f32 %v6892, %v7415
  %v7442 = vadd.f32 %v6893, %v7418
  %v7443 = vadd.f32 %v6894, %v7423
  %v7444 = vadd.f32 %v6895, %v7426
  %s7445 = scalar_lea.vmem %s3, 3072
  %v7446 = vld [vmem:[%s7445] sm:$0xff]
  %v7447 = vld [vmem:[%s7445 + $0x8] sm:$0xff]
  %v7448 = vld [vmem:[%s7445 + $0x10] sm:$0xff]
  %v7449 = vld [vmem:[%s7445 + $0x18] sm:$0xff]
  %v7450 = vld [vmem:[%s7445 + $0x20] sm:$0xff]
  %v7451 = vld [vmem:[%s7445 + $0x28] sm:$0xff]
  %v7452 = vld [vmem:[%s7445 + $0x30] sm:$0xff]
  %v7453 = vld [vmem:[%s7445 + $0x38] sm:$0xff]
  %v7454 = vld [vmem:[%s7445 + $0x40] sm:$0xff]
  %v7455 = vld [vmem:[%s7445 + $0x48] sm:$0xff]
  %v7456 = vld [vmem:[%s7445 + $0x50] sm:$0xff]
  %v7457 = vld [vmem:[%s7445 + $0x58] sm:$0xff]
  %v7458 = vld [vmem:[%s7445 + $0x60] sm:$0xff]
  %v7459 = vld [vmem:[%s7445 + $0x68] sm:$0xff]
  %v7460 = vld [vmem:[%s7445 + $0x70] sm:$0xff]
  %v7461 = vld [vmem:[%s7445 + $0x78] sm:$0xff]
  %v7462 = vld [vmem:[%s7445 + $0x80] sm:$0xff]
  %v7463 = vld [vmem:[%s7445 + $0x88] sm:$0xff]
  %v7464 = vld [vmem:[%s7445 + $0x90] sm:$0xff]
  %v7465 = vld [vmem:[%s7445 + $0x98] sm:$0xff]
  %v7466 = vld [vmem:[%s7445 + $0xa0] sm:$0xff]
  %v7467 = vld [vmem:[%s7445 + $0xa8] sm:$0xff]
  %v7468 = vld [vmem:[%s7445 + $0xb0] sm:$0xff]
  %v7469 = vld [vmem:[%s7445 + $0xb8] sm:$0xff]
  %v7470 = vld [vmem:[%s7445 + $0xc0] sm:$0xff]
  %v7471 = vld [vmem:[%s7445 + $0xc8] sm:$0xff]
  %v7472 = vld [vmem:[%s7445 + $0xd0] sm:$0xff]
  %v7473 = vld [vmem:[%s7445 + $0xd8] sm:$0xff]
  %v7474 = vld [vmem:[%s7445 + $0xe0] sm:$0xff]
  %v7475 = vld [vmem:[%s7445 + $0xe8] sm:$0xff]
  %v7476 = vld [vmem:[%s7445 + $0xf0] sm:$0xff]
  %v7477 = vld [vmem:[%s7445 + $0xf8] sm:$0xff]
  %v7510 = vunpack.c.l.b16 %v7446
  %v7511 = vunpack.c.h.b16 %v7446
  %v7512 = vunpack.c.l.b16 %v7447
  %v7513 = vunpack.c.h.b16 %v7447
  %v7514 = vunpack.c.l.b16 %v7448
  %v7515 = vunpack.c.h.b16 %v7448
  %v7516 = vunpack.c.l.b16 %v7449
  %v7517 = vunpack.c.h.b16 %v7449
  %v7518 = vunpack.c.l.b16 %v7450
  %v7519 = vunpack.c.h.b16 %v7450
  %v7520 = vunpack.c.l.b16 %v7451
  %v7521 = vunpack.c.h.b16 %v7451
  %v7522 = vunpack.c.l.b16 %v7452
  %v7523 = vunpack.c.h.b16 %v7452
  %v7524 = vunpack.c.l.b16 %v7453
  %v7525 = vunpack.c.h.b16 %v7453
  %v7526 = vunpack.c.l.b16 %v7454
  %v7527 = vunpack.c.h.b16 %v7454
  %v7528 = vunpack.c.l.b16 %v7455
  %v7529 = vunpack.c.h.b16 %v7455
  %v7530 = vunpack.c.l.b16 %v7456
  %v7531 = vunpack.c.h.b16 %v7456
  %v7532 = vunpack.c.l.b16 %v7457
  %v7533 = vunpack.c.h.b16 %v7457
  %v7534 = vunpack.c.l.b16 %v7458
  %v7535 = vunpack.c.h.b16 %v7458
  %v7536 = vunpack.c.l.b16 %v7459
  %v7537 = vunpack.c.h.b16 %v7459
  %v7538 = vunpack.c.l.b16 %v7460
  %v7539 = vunpack.c.h.b16 %v7460
  %v7540 = vunpack.c.l.b16 %v7461
  %v7541 = vunpack.c.h.b16 %v7461
  %v7542 = vunpack.c.l.b16 %v7462
  %v7543 = vunpack.c.h.b16 %v7462
  %v7544 = vunpack.c.l.b16 %v7463
  %v7545 = vunpack.c.h.b16 %v7463
  %v7546 = vunpack.c.l.b16 %v7464
  %v7547 = vunpack.c.h.b16 %v7464
  %v7548 = vunpack.c.l.b16 %v7465
  %v7549 = vunpack.c.h.b16 %v7465
  %v7550 = vunpack.c.l.b16 %v7466
  %v7551 = vunpack.c.h.b16 %v7466
  %v7552 = vunpack.c.l.b16 %v7467
  %v7553 = vunpack.c.h.b16 %v7467
  %v7554 = vunpack.c.l.b16 %v7468
  %v7555 = vunpack.c.h.b16 %v7468
  %v7556 = vunpack.c.l.b16 %v7469
  %v7557 = vunpack.c.h.b16 %v7469
  %v7558 = vunpack.c.l.b16 %v7470
  %v7559 = vunpack.c.h.b16 %v7470
  %v7560 = vunpack.c.l.b16 %v7471
  %v7561 = vunpack.c.h.b16 %v7471
  %v7562 = vunpack.c.l.b16 %v7472
  %v7563 = vunpack.c.h.b16 %v7472
  %v7564 = vunpack.c.l.b16 %v7473
  %v7565 = vunpack.c.h.b16 %v7473
  %v7566 = vunpack.c.l.b16 %v7474
  %v7567 = vunpack.c.h.b16 %v7474
  %v7568 = vunpack.c.l.b16 %v7475
  %v7569 = vunpack.c.h.b16 %v7475
  %v7570 = vunpack.c.l.b16 %v7476
  %v7571 = vunpack.c.h.b16 %v7476
  %v7572 = vunpack.c.l.b16 %v7477
  %v7573 = vunpack.c.h.b16 %v7477
  %v7574 = vpack.c.b16 %v7514, %v7510
  %v7575 = vpack.c.b16 %v7515, %v7511
  %v7576 = vpack.c.b16 %v7516, %v7512
  %v7577 = vpack.c.b16 %v7517, %v7513
  %v7578 = vpack.c.b16 %v7522, %v7518
  %v7579 = vpack.c.b16 %v7523, %v7519
  %v7580 = vpack.c.b16 %v7524, %v7520
  %v7581 = vpack.c.b16 %v7525, %v7521
  %v7582 = vpack.c.b16 %v7530, %v7526
  %v7583 = vpack.c.b16 %v7531, %v7527
  %v7584 = vpack.c.b16 %v7532, %v7528
  %v7585 = vpack.c.b16 %v7533, %v7529
  %v7586 = vpack.c.b16 %v7538, %v7534
  %v7587 = vpack.c.b16 %v7539, %v7535
  %v7588 = vpack.c.b16 %v7540, %v7536
  %v7589 = vpack.c.b16 %v7541, %v7537
  %v7590 = vpack.c.b16 %v7546, %v7542
  %v7591 = vpack.c.b16 %v7547, %v7543
  %v7592 = vpack.c.b16 %v7548, %v7544
  %v7593 = vpack.c.b16 %v7549, %v7545
  %v7594 = vpack.c.b16 %v7554, %v7550
  %v7595 = vpack.c.b16 %v7555, %v7551
  %v7596 = vpack.c.b16 %v7556, %v7552
  %v7597 = vpack.c.b16 %v7557, %v7553
  %v7598 = vpack.c.b16 %v7562, %v7558
  %v7599 = vpack.c.b16 %v7563, %v7559
  %v7600 = vpack.c.b16 %v7564, %v7560
  %v7601 = vpack.c.b16 %v7565, %v7561
  %v7602 = vpack.c.b16 %v7570, %v7566
  %v7603 = vpack.c.b16 %v7571, %v7567
  %v7604 = vpack.c.b16 %v7572, %v7568
  %v7605 = vpack.c.b16 %v7573, %v7569
  %7638 = vmatprep.subr.bf16.mxu0 0
  %7639 = vmatpush1.bf16.msra.mxu0 %v865
  %7640 = vmatprep.subr.bf16.mxu0 0
  %7641 = vmatpush1.bf16.msra.mxu0 %v864
  %7642 = vmatprep.subr.bf16.mxu0 0
  %7643 = vmatpush1.bf16.msra.mxu0 %v863
  %7644 = vmatprep.subr.bf16.mxu0 0
  %7645 = vmatpush1.bf16.msra.mxu0 %v862
  %7646 = vmatprep.subr.bf16.mxu0 0
  %7647 = vmatpush1.bf16.msra.mxu0 %v861
  %7648 = vmatprep.subr.bf16.mxu0 0
  %7649 = vmatpush1.bf16.msra.mxu0 %v860
  %7650 = vmatprep.subr.bf16.mxu0 0
  %7651 = vmatpush1.bf16.msra.mxu0 %v859
  %7652 = vmatprep.subr.bf16.mxu0 0
  %7653 = vmatpush1.bf16.msra.mxu0 %v858
  %7654 = vmatprep.subr.bf16.mxu0 0
  %7655 = vmatpush2.bf16.msra.mxu0 %v873
  %7656 = vmatprep.subr.bf16.mxu0 0
  %7657 = vmatpush2.bf16.msra.mxu0 %v872
  %7658 = vmatprep.subr.bf16.mxu0 0
  %7659 = vmatpush2.bf16.msra.mxu0 %v871
  %7660 = vmatprep.subr.bf16.mxu0 0
  %7661 = vmatpush2.bf16.msra.mxu0 %v870
  %7662 = vmatprep.subr.bf16.mxu0 0
  %7663 = vmatpush2.bf16.msra.mxu0 %v869
  %7664 = vmatprep.subr.bf16.mxu0 0
  %7665 = vmatpush2.bf16.msra.mxu0 %v868
  %7666 = vmatprep.subr.bf16.mxu0 0
  %7667 = vmatpush2.bf16.msra.mxu0 %v867
  %7668 = vmatprep.subr.bf16.mxu0 0
  %7669 = vmatpush2.bf16.msra.mxu0 %v866
  %7670 = vmatprep.mubr.bf16.mxu0 %v7575
  %7671 = vmatmul.mubr.bf16.gmra.mxu0 %v7574
  %v7672 = vpop.f32.mrf.mxu0
  %v7673 = vadd.f32 0.0, %v7672
  %v7674 = vpop.f32.mrf.mxu0
  %v7675 = vpop.f32.mrf.mxu0
  %v7676 = vadd.f32 0.0, %v7675
  %v7677 = vpop.f32.mrf.mxu0
  %7678 = vmatprep.mubr.bf16.mxu0 %v7579
  %7679 = vmatmul.mubr.bf16.gmra.mxu0 %v7578
  %v7680 = vpop.f32.mrf.mxu0
  %v7681 = vadd.f32 0.0, %v7680
  %v7682 = vpop.f32.mrf.mxu0
  %v7683 = vpop.f32.mrf.mxu0
  %v7684 = vadd.f32 0.0, %v7683
  %v7685 = vpop.f32.mrf.mxu0
  %7686 = vmatprep.mubr.bf16.mxu0 %v7583
  %7687 = vmatmul.mubr.bf16.gmra.mxu0 %v7582
  %v7688 = vpop.f32.mrf.mxu0
  %v7689 = vadd.f32 0.0, %v7688
  %v7690 = vpop.f32.mrf.mxu0
  %v7691 = vpop.f32.mrf.mxu0
  %v7692 = vadd.f32 0.0, %v7691
  %v7693 = vpop.f32.mrf.mxu0
  %7694 = vmatprep.mubr.bf16.mxu0 %v7587
  %7695 = vmatmul.mubr.bf16.gmra.mxu0 %v7586
  %v7696 = vpop.f32.mrf.mxu0
  %v7697 = vadd.f32 0.0, %v7696
  %v7698 = vpop.f32.mrf.mxu0
  %v7699 = vpop.f32.mrf.mxu0
  %v7700 = vadd.f32 0.0, %v7699
  %v7701 = vpop.f32.mrf.mxu0
  %7702 = vmatprep.mubr.bf16.mxu0 %v7591
  %7703 = vmatmul.mubr.bf16.gmra.mxu0 %v7590
  %v7704 = vpop.f32.mrf.mxu0
  %v7705 = vadd.f32 0.0, %v7704
  %v7706 = vpop.f32.mrf.mxu0
  %v7707 = vpop.f32.mrf.mxu0
  %v7708 = vadd.f32 0.0, %v7707
  %v7709 = vpop.f32.mrf.mxu0
  %7710 = vmatprep.mubr.bf16.mxu0 %v7595
  %7711 = vmatmul.mubr.bf16.gmra.mxu0 %v7594
  %v7712 = vpop.f32.mrf.mxu0
  %v7713 = vadd.f32 0.0, %v7712
  %v7714 = vpop.f32.mrf.mxu0
  %v7715 = vpop.f32.mrf.mxu0
  %v7716 = vadd.f32 0.0, %v7715
  %v7717 = vpop.f32.mrf.mxu0
  %7718 = vmatprep.mubr.bf16.mxu0 %v7599
  %7719 = vmatmul.mubr.bf16.gmra.mxu0 %v7598
  %v7720 = vpop.f32.mrf.mxu0
  %v7721 = vadd.f32 0.0, %v7720
  %v7722 = vpop.f32.mrf.mxu0
  %v7723 = vpop.f32.mrf.mxu0
  %v7724 = vadd.f32 0.0, %v7723
  %v7725 = vpop.f32.mrf.mxu0
  %7726 = vmatprep.mubr.bf16.mxu0 %v7603
  %7727 = vmatmul.mubr.bf16.gmra.mxu0 %v7602
  %v7728 = vpop.f32.mrf.mxu0
  %v7729 = vadd.f32 0.0, %v7728
  %v7730 = vpop.f32.mrf.mxu0
  %v7731 = vpop.f32.mrf.mxu0
  %v7732 = vadd.f32 0.0, %v7731
  %v7733 = vpop.f32.mrf.mxu0
  %7734 = vdwg.mxu0
  %7735 = vmatprep.subr.bf16.mxu0 0
  %7736 = vmatpush1.bf16.msra.mxu0 %v881
  %7737 = vmatprep.subr.bf16.mxu0 0
  %7738 = vmatpush1.bf16.msra.mxu0 %v880
  %7739 = vmatprep.subr.bf16.mxu0 0
  %7740 = vmatpush1.bf16.msra.mxu0 %v879
  %7741 = vmatprep.subr.bf16.mxu0 0
  %7742 = vmatpush1.bf16.msra.mxu0 %v878
  %7743 = vmatprep.subr.bf16.mxu0 0
  %7744 = vmatpush1.bf16.msra.mxu0 %v877
  %7745 = vmatprep.subr.bf16.mxu0 0
  %7746 = vmatpush1.bf16.msra.mxu0 %v876
  %7747 = vmatprep.subr.bf16.mxu0 0
  %7748 = vmatpush1.bf16.msra.mxu0 %v875
  %7749 = vmatprep.subr.bf16.mxu0 0
  %7750 = vmatpush1.bf16.msra.mxu0 %v874
  %7751 = vmatprep.subr.bf16.mxu0 0
  %7752 = vmatpush2.bf16.msra.mxu0 %v889
  %7753 = vmatprep.subr.bf16.mxu0 0
  %7754 = vmatpush2.bf16.msra.mxu0 %v888
  %7755 = vmatprep.subr.bf16.mxu0 0
  %7756 = vmatpush2.bf16.msra.mxu0 %v887
  %7757 = vmatprep.subr.bf16.mxu0 0
  %7758 = vmatpush2.bf16.msra.mxu0 %v886
  %7759 = vmatprep.subr.bf16.mxu0 0
  %7760 = vmatpush2.bf16.msra.mxu0 %v885
  %7761 = vmatprep.subr.bf16.mxu0 0
  %7762 = vmatpush2.bf16.msra.mxu0 %v884
  %7763 = vmatprep.subr.bf16.mxu0 0
  %7764 = vmatpush2.bf16.msra.mxu0 %v883
  %7765 = vmatprep.subr.bf16.mxu0 0
  %7766 = vmatpush2.bf16.msra.mxu0 %v882
  %7767 = vmatprep.mubr.bf16.mxu0 %v7577
  %7768 = vmatmul.mubr.bf16.gmra.mxu0 %v7576
  %v7769 = vpop.f32.mrf.mxu0
  %v7770 = vadd.f32 %v7673, %v7769
  %v7771 = vpop.f32.mrf.mxu0
  %v7772 = vpop.f32.mrf.mxu0
  %v7773 = vadd.f32 %v7676, %v7772
  %v7774 = vpop.f32.mrf.mxu0
  %7775 = vmatprep.mubr.bf16.mxu0 %v7581
  %7776 = vmatmul.mubr.bf16.gmra.mxu0 %v7580
  %v7777 = vpop.f32.mrf.mxu0
  %v7778 = vadd.f32 %v7681, %v7777
  %v7779 = vpop.f32.mrf.mxu0
  %v7780 = vpop.f32.mrf.mxu0
  %v7781 = vadd.f32 %v7684, %v7780
  %v7782 = vpop.f32.mrf.mxu0
  %7783 = vmatprep.mubr.bf16.mxu0 %v7585
  %7784 = vmatmul.mubr.bf16.gmra.mxu0 %v7584
  %v7785 = vpop.f32.mrf.mxu0
  %v7786 = vadd.f32 %v7689, %v7785
  %v7787 = vpop.f32.mrf.mxu0
  %v7788 = vpop.f32.mrf.mxu0
  %v7789 = vadd.f32 %v7692, %v7788
  %v7790 = vpop.f32.mrf.mxu0
  %7791 = vmatprep.mubr.bf16.mxu0 %v7589
  %7792 = vmatmul.mubr.bf16.gmra.mxu0 %v7588
  %v7793 = vpop.f32.mrf.mxu0
  %v7794 = vadd.f32 %v7697, %v7793
  %v7795 = vpop.f32.mrf.mxu0
  %v7796 = vpop.f32.mrf.mxu0
  %v7797 = vadd.f32 %v7700, %v7796
  %v7798 = vpop.f32.mrf.mxu0
  %7799 = vmatprep.mubr.bf16.mxu0 %v7593
  %7800 = vmatmul.mubr.bf16.gmra.mxu0 %v7592
  %v7801 = vpop.f32.mrf.mxu0
  %v7802 = vadd.f32 %v7705, %v7801
  %v7803 = vpop.f32.mrf.mxu0
  %v7804 = vpop.f32.mrf.mxu0
  %v7805 = vadd.f32 %v7708, %v7804
  %v7806 = vpop.f32.mrf.mxu0
  %7807 = vmatprep.mubr.bf16.mxu0 %v7597
  %7808 = vmatmul.mubr.bf16.gmra.mxu0 %v7596
  %v7809 = vpop.f32.mrf.mxu0
  %v7810 = vadd.f32 %v7713, %v7809
  %v7811 = vpop.f32.mrf.mxu0
  %v7812 = vpop.f32.mrf.mxu0
  %v7813 = vadd.f32 %v7716, %v7812
  %v7814 = vpop.f32.mrf.mxu0
  %7815 = vmatprep.mubr.bf16.mxu0 %v7601
  %7816 = vmatmul.mubr.bf16.gmra.mxu0 %v7600
  %v7817 = vpop.f32.mrf.mxu0
  %v7818 = vadd.f32 %v7721, %v7817
  %v7819 = vpop.f32.mrf.mxu0
  %v7820 = vpop.f32.mrf.mxu0
  %v7821 = vadd.f32 %v7724, %v7820
  %v7822 = vpop.f32.mrf.mxu0
  %7823 = vmatprep.mubr.bf16.mxu0 %v7605
  %7824 = vmatmul.mubr.bf16.gmra.mxu0 %v7604
  %v7825 = vpop.f32.mrf.mxu0
  %v7826 = vadd.f32 %v7729, %v7825
  %v7827 = vpop.f32.mrf.mxu0
  %v7828 = vpop.f32.mrf.mxu0
  %v7829 = vadd.f32 %v7732, %v7828
  %v7830 = vpop.f32.mrf.mxu0
  %7831 = vdwg.mxu0
  %v7832 = vpack.c.bf16 %v7773, %v7770
  %v7833 = vpack.c.bf16 %v7781, %v7778
  %v7834 = vpack.c.bf16 %v7789, %v7786
  %v7835 = vpack.c.bf16 %v7797, %v7794
  %v7836 = vpack.c.bf16 %v7805, %v7802
  %v7837 = vpack.c.bf16 %v7813, %v7810
  %v7838 = vpack.c.bf16 %v7821, %v7818
  %v7839 = vpack.c.bf16 %v7829, %v7826
  %s7840 = scalar_lea.vmem %s4, 192
  %v7841 = vld [vmem:[%s7840] sm:$0xf]
  %v7842 = vld [vmem:[%s7840 + $0x4] sm:$0xf]
  %v7843 = vld [vmem:[%s7840 + $0x8] sm:$0xf]
  %v7844 = vld [vmem:[%s7840 + $0xc] sm:$0xf]
  %v7849 = vunpack.c.l.b16 %v7841
  %v7850 = vunpack.c.l.b16 %v7842
  %v7851 = vunpack.c.l.b16 %v7843
  %v7852 = vunpack.c.l.b16 %v7844
  %v7853 = vpack.c.b16 %v7850, %v7849
  %v7854 = vpack.c.b16 %v7852, %v7851
  %v7858 = vsel %vm1700, %v7832, 0
  %v7861 = vsel %vm1700, %v7833, 0
  %v7864 = vsel %vm1700, %v7834, 0
  %v7867 = vsel %vm1700, %v7835, 0
  %v7870 = vsel %vm1700, %v7836, 0
  %v7873 = vsel %vm1700, %v7837, 0
  %v7876 = vsel %vm1700, %v7838, 0
  %v7879 = vsel %vm1700, %v7839, 0
  %7881 = vmatprep.subr.bf16.mxu0 0
  %7882 = vmatpush1.bf16.msra.mxu0 0
  %7883 = vmatprep.subr.bf16.mxu0 0
  %7884 = vmatpush1.bf16.msra.mxu0 0
  %7885 = vmatprep.subr.bf16.mxu0 0
  %7886 = vmatpush1.bf16.msra.mxu0 0
  %7887 = vmatprep.subr.bf16.mxu0 0
  %7888 = vmatpush1.bf16.msra.mxu0 0
  %7889 = vmatprep.subr.bf16.mxu0 0
  %7890 = vmatpush1.bf16.msra.mxu0 0
  %7891 = vmatprep.subr.bf16.mxu0 0
  %7892 = vmatpush1.bf16.msra.mxu0 0
  %7893 = vmatprep.subr.bf16.mxu0 0
  %7894 = vmatpush1.bf16.msra.mxu0 %v7854
  %7895 = vmatprep.subr.bf16.mxu0 0
  %7896 = vmatpush1.bf16.msra.mxu0 %v7853
  %7897 = vmatprep.subr.bf16.mxu0 0
  %7898 = vmatpush2.bf16.msra.mxu0 0
  %7899 = vmatprep.subr.bf16.mxu0 0
  %7900 = vmatpush2.bf16.msra.mxu0 0
  %7901 = vmatprep.subr.bf16.mxu0 0
  %7902 = vmatpush2.bf16.msra.mxu0 0
  %7903 = vmatprep.subr.bf16.mxu0 0
  %7904 = vmatpush2.bf16.msra.mxu0 0
  %7905 = vmatprep.subr.bf16.mxu0 0
  %7906 = vmatpush2.bf16.msra.mxu0 0
  %7907 = vmatprep.subr.bf16.mxu0 0
  %7908 = vmatpush2.bf16.msra.mxu0 0
  %7909 = vmatprep.subr.bf16.mxu0 0
  %7910 = vmatpush2.bf16.msra.mxu0 0
  %7911 = vmatprep.subr.bf16.mxu0 0
  %7912 = vmatpush2.bf16.msra.mxu0 0
  %7913 = vmatprep.mubr.bf16.mxu0 0
  %7914 = vmatmul.mubr.bf16.gmra.mxu0 %v7858
  %v7915 = vpop.f32.mrf.mxu0
  %v7916 = vadd.f32 0.0, %v7915
  %v7917 = vpop.f32.mrf.mxu0
  %v7918 = vpop.f32.mrf.mxu0
  %v7919 = vadd.f32 0.0, %v7918
  %v7920 = vpop.f32.mrf.mxu0
  %7921 = vmatprep.mubr.bf16.mxu0 0
  %7922 = vmatmul.mubr.bf16.gmra.mxu0 %v7861
  %v7923 = vpop.f32.mrf.mxu0
  %v7924 = vadd.f32 0.0, %v7923
  %v7925 = vpop.f32.mrf.mxu0
  %v7926 = vpop.f32.mrf.mxu0
  %v7927 = vadd.f32 0.0, %v7926
  %v7928 = vpop.f32.mrf.mxu0
  %7929 = vmatprep.mubr.bf16.mxu0 0
  %7930 = vmatmul.mubr.bf16.gmra.mxu0 %v7864
  %v7931 = vpop.f32.mrf.mxu0
  %v7932 = vadd.f32 0.0, %v7931
  %v7933 = vpop.f32.mrf.mxu0
  %v7934 = vpop.f32.mrf.mxu0
  %v7935 = vadd.f32 0.0, %v7934
  %v7936 = vpop.f32.mrf.mxu0
  %7937 = vmatprep.mubr.bf16.mxu0 0
  %7938 = vmatmul.mubr.bf16.gmra.mxu0 %v7867
  %v7939 = vpop.f32.mrf.mxu0
  %v7940 = vadd.f32 0.0, %v7939
  %v7941 = vpop.f32.mrf.mxu0
  %v7942 = vpop.f32.mrf.mxu0
  %v7943 = vadd.f32 0.0, %v7942
  %v7944 = vpop.f32.mrf.mxu0
  %7945 = vmatprep.mubr.bf16.mxu0 0
  %7946 = vmatmul.mubr.bf16.gmra.mxu0 %v7870
  %v7947 = vpop.f32.mrf.mxu0
  %v7948 = vadd.f32 0.0, %v7947
  %v7949 = vpop.f32.mrf.mxu0
  %v7950 = vpop.f32.mrf.mxu0
  %v7951 = vadd.f32 0.0, %v7950
  %v7952 = vpop.f32.mrf.mxu0
  %7953 = vmatprep.mubr.bf16.mxu0 0
  %7954 = vmatmul.mubr.bf16.gmra.mxu0 %v7873
  %v7955 = vpop.f32.mrf.mxu0
  %v7956 = vadd.f32 0.0, %v7955
  %v7957 = vpop.f32.mrf.mxu0
  %v7958 = vpop.f32.mrf.mxu0
  %v7959 = vadd.f32 0.0, %v7958
  %v7960 = vpop.f32.mrf.mxu0
  %7961 = vmatprep.mubr.bf16.mxu0 0
  %7962 = vmatmul.mubr.bf16.gmra.mxu0 %v7876
  %v7963 = vpop.f32.mrf.mxu0
  %v7964 = vadd.f32 0.0, %v7963
  %v7965 = vpop.f32.mrf.mxu0
  %v7966 = vpop.f32.mrf.mxu0
  %v7967 = vadd.f32 0.0, %v7966
  %v7968 = vpop.f32.mrf.mxu0
  %7969 = vmatprep.mubr.bf16.mxu0 0
  %7970 = vmatmul.mubr.bf16.gmra.mxu0 %v7879
  %v7971 = vpop.f32.mrf.mxu0
  %v7972 = vadd.f32 0.0, %v7971
  %v7973 = vpop.f32.mrf.mxu0
  %v7974 = vpop.f32.mrf.mxu0
  %v7975 = vadd.f32 0.0, %v7974
  %v7976 = vpop.f32.mrf.mxu0
  %7977 = vdwg.mxu0
  %v7978 = vadd.f32 %v7429, %v7916
  %v7979 = vadd.f32 %v7430, %v7919
  %v7980 = vadd.f32 %v7431, %v7924
  %v7981 = vadd.f32 %v7432, %v7927
  %v7982 = vadd.f32 %v7433, %v7932
  %v7983 = vadd.f32 %v7434, %v7935
  %v7984 = vadd.f32 %v7435, %v7940
  %v7985 = vadd.f32 %v7436, %v7943
  %v7986 = vadd.f32 %v7437, %v7948
  %v7987 = vadd.f32 %v7438, %v7951
  %v7988 = vadd.f32 %v7439, %v7956
  %v7989 = vadd.f32 %v7440, %v7959
  %v7990 = vadd.f32 %v7441, %v7964
  %v7991 = vadd.f32 %v7442, %v7967
  %v7992 = vadd.f32 %v7443, %v7972
  %v7993 = vadd.f32 %v7444, %v7975
  %s7994 = scalar_lea.vmem %s3, 3328
  %v7995 = vld [vmem:[%s7994] sm:$0xff]
  %v7996 = vld [vmem:[%s7994 + $0x8] sm:$0xff]
  %v7997 = vld [vmem:[%s7994 + $0x10] sm:$0xff]
  %v7998 = vld [vmem:[%s7994 + $0x18] sm:$0xff]
  %v7999 = vld [vmem:[%s7994 + $0x20] sm:$0xff]
  %v8000 = vld [vmem:[%s7994 + $0x28] sm:$0xff]
  %v8001 = vld [vmem:[%s7994 + $0x30] sm:$0xff]
  %v8002 = vld [vmem:[%s7994 + $0x38] sm:$0xff]
  %v8003 = vld [vmem:[%s7994 + $0x40] sm:$0xff]
  %v8004 = vld [vmem:[%s7994 + $0x48] sm:$0xff]
  %v8005 = vld [vmem:[%s7994 + $0x50] sm:$0xff]
  %v8006 = vld [vmem:[%s7994 + $0x58] sm:$0xff]
  %v8007 = vld [vmem:[%s7994 + $0x60] sm:$0xff]
  %v8008 = vld [vmem:[%s7994 + $0x68] sm:$0xff]
  %v8009 = vld [vmem:[%s7994 + $0x70] sm:$0xff]
  %v8010 = vld [vmem:[%s7994 + $0x78] sm:$0xff]
  %v8011 = vld [vmem:[%s7994 + $0x80] sm:$0xff]
  %v8012 = vld [vmem:[%s7994 + $0x88] sm:$0xff]
  %v8013 = vld [vmem:[%s7994 + $0x90] sm:$0xff]
  %v8014 = vld [vmem:[%s7994 + $0x98] sm:$0xff]
  %v8015 = vld [vmem:[%s7994 + $0xa0] sm:$0xff]
  %v8016 = vld [vmem:[%s7994 + $0xa8] sm:$0xff]
  %v8017 = vld [vmem:[%s7994 + $0xb0] sm:$0xff]
  %v8018 = vld [vmem:[%s7994 + $0xb8] sm:$0xff]
  %v8019 = vld [vmem:[%s7994 + $0xc0] sm:$0xff]
  %v8020 = vld [vmem:[%s7994 + $0xc8] sm:$0xff]
  %v8021 = vld [vmem:[%s7994 + $0xd0] sm:$0xff]
  %v8022 = vld [vmem:[%s7994 + $0xd8] sm:$0xff]
  %v8023 = vld [vmem:[%s7994 + $0xe0] sm:$0xff]
  %v8024 = vld [vmem:[%s7994 + $0xe8] sm:$0xff]
  %v8025 = vld [vmem:[%s7994 + $0xf0] sm:$0xff]
  %v8026 = vld [vmem:[%s7994 + $0xf8] sm:$0xff]
  %v8059 = vunpack.c.l.b16 %v7995
  %v8060 = vunpack.c.h.b16 %v7995
  %v8061 = vunpack.c.l.b16 %v7996
  %v8062 = vunpack.c.h.b16 %v7996
  %v8063 = vunpack.c.l.b16 %v7997
  %v8064 = vunpack.c.h.b16 %v7997
  %v8065 = vunpack.c.l.b16 %v7998
  %v8066 = vunpack.c.h.b16 %v7998
  %v8067 = vunpack.c.l.b16 %v7999
  %v8068 = vunpack.c.h.b16 %v7999
  %v8069 = vunpack.c.l.b16 %v8000
  %v8070 = vunpack.c.h.b16 %v8000
  %v8071 = vunpack.c.l.b16 %v8001
  %v8072 = vunpack.c.h.b16 %v8001
  %v8073 = vunpack.c.l.b16 %v8002
  %v8074 = vunpack.c.h.b16 %v8002
  %v8075 = vunpack.c.l.b16 %v8003
  %v8076 = vunpack.c.h.b16 %v8003
  %v8077 = vunpack.c.l.b16 %v8004
  %v8078 = vunpack.c.h.b16 %v8004
  %v8079 = vunpack.c.l.b16 %v8005
  %v8080 = vunpack.c.h.b16 %v8005
  %v8081 = vunpack.c.l.b16 %v8006
  %v8082 = vunpack.c.h.b16 %v8006
  %v8083 = vunpack.c.l.b16 %v8007
  %v8084 = vunpack.c.h.b16 %v8007
  %v8085 = vunpack.c.l.b16 %v8008
  %v8086 = vunpack.c.h.b16 %v8008
  %v8087 = vunpack.c.l.b16 %v8009
  %v8088 = vunpack.c.h.b16 %v8009
  %v8089 = vunpack.c.l.b16 %v8010
  %v8090 = vunpack.c.h.b16 %v8010
  %v8091 = vunpack.c.l.b16 %v8011
  %v8092 = vunpack.c.h.b16 %v8011
  %v8093 = vunpack.c.l.b16 %v8012
  %v8094 = vunpack.c.h.b16 %v8012
  %v8095 = vunpack.c.l.b16 %v8013
  %v8096 = vunpack.c.h.b16 %v8013
  %v8097 = vunpack.c.l.b16 %v8014
  %v8098 = vunpack.c.h.b16 %v8014
  %v8099 = vunpack.c.l.b16 %v8015
  %v8100 = vunpack.c.h.b16 %v8015
  %v8101 = vunpack.c.l.b16 %v8016
  %v8102 = vunpack.c.h.b16 %v8016
  %v8103 = vunpack.c.l.b16 %v8017
  %v8104 = vunpack.c.h.b16 %v8017
  %v8105 = vunpack.c.l.b16 %v8018
  %v8106 = vunpack.c.h.b16 %v8018
  %v8107 = vunpack.c.l.b16 %v8019
  %v8108 = vunpack.c.h.b16 %v8019
  %v8109 = vunpack.c.l.b16 %v8020
  %v8110 = vunpack.c.h.b16 %v8020
  %v8111 = vunpack.c.l.b16 %v8021
  %v8112 = vunpack.c.h.b16 %v8021
  %v8113 = vunpack.c.l.b16 %v8022
  %v8114 = vunpack.c.h.b16 %v8022
  %v8115 = vunpack.c.l.b16 %v8023
  %v8116 = vunpack.c.h.b16 %v8023
  %v8117 = vunpack.c.l.b16 %v8024
  %v8118 = vunpack.c.h.b16 %v8024
  %v8119 = vunpack.c.l.b16 %v8025
  %v8120 = vunpack.c.h.b16 %v8025
  %v8121 = vunpack.c.l.b16 %v8026
  %v8122 = vunpack.c.h.b16 %v8026
  %v8123 = vpack.c.b16 %v8063, %v8059
  %v8124 = vpack.c.b16 %v8064, %v8060
  %v8125 = vpack.c.b16 %v8065, %v8061
  %v8126 = vpack.c.b16 %v8066, %v8062
  %v8127 = vpack.c.b16 %v8071, %v8067
  %v8128 = vpack.c.b16 %v8072, %v8068
  %v8129 = vpack.c.b16 %v8073, %v8069
  %v8130 = vpack.c.b16 %v8074, %v8070
  %v8131 = vpack.c.b16 %v8079, %v8075
  %v8132 = vpack.c.b16 %v8080, %v8076
  %v8133 = vpack.c.b16 %v8081, %v8077
  %v8134 = vpack.c.b16 %v8082, %v8078
  %v8135 = vpack.c.b16 %v8087, %v8083
  %v8136 = vpack.c.b16 %v8088, %v8084
  %v8137 = vpack.c.b16 %v8089, %v8085
  %v8138 = vpack.c.b16 %v8090, %v8086
  %v8139 = vpack.c.b16 %v8095, %v8091
  %v8140 = vpack.c.b16 %v8096, %v8092
  %v8141 = vpack.c.b16 %v8097, %v8093
  %v8142 = vpack.c.b16 %v8098, %v8094
  %v8143 = vpack.c.b16 %v8103, %v8099
  %v8144 = vpack.c.b16 %v8104, %v8100
  %v8145 = vpack.c.b16 %v8105, %v8101
  %v8146 = vpack.c.b16 %v8106, %v8102
  %v8147 = vpack.c.b16 %v8111, %v8107
  %v8148 = vpack.c.b16 %v8112, %v8108
  %v8149 = vpack.c.b16 %v8113, %v8109
  %v8150 = vpack.c.b16 %v8114, %v8110
  %v8151 = vpack.c.b16 %v8119, %v8115
  %v8152 = vpack.c.b16 %v8120, %v8116
  %v8153 = vpack.c.b16 %v8121, %v8117
  %v8154 = vpack.c.b16 %v8122, %v8118
  %8187 = vmatprep.subr.bf16.mxu0 0
  %8188 = vmatpush1.bf16.msra.mxu0 %v865
  %8189 = vmatprep.subr.bf16.mxu0 0
  %8190 = vmatpush1.bf16.msra.mxu0 %v864
  %8191 = vmatprep.subr.bf16.mxu0 0
  %8192 = vmatpush1.bf16.msra.mxu0 %v863
  %8193 = vmatprep.subr.bf16.mxu0 0
  %8194 = vmatpush1.bf16.msra.mxu0 %v862
  %8195 = vmatprep.subr.bf16.mxu0 0
  %8196 = vmatpush1.bf16.msra.mxu0 %v861
  %8197 = vmatprep.subr.bf16.mxu0 0
  %8198 = vmatpush1.bf16.msra.mxu0 %v860
  %8199 = vmatprep.subr.bf16.mxu0 0
  %8200 = vmatpush1.bf16.msra.mxu0 %v859
  %8201 = vmatprep.subr.bf16.mxu0 0
  %8202 = vmatpush1.bf16.msra.mxu0 %v858
  %8203 = vmatprep.subr.bf16.mxu0 0
  %8204 = vmatpush2.bf16.msra.mxu0 %v873
  %8205 = vmatprep.subr.bf16.mxu0 0
  %8206 = vmatpush2.bf16.msra.mxu0 %v872
  %8207 = vmatprep.subr.bf16.mxu0 0
  %8208 = vmatpush2.bf16.msra.mxu0 %v871
  %8209 = vmatprep.subr.bf16.mxu0 0
  %8210 = vmatpush2.bf16.msra.mxu0 %v870
  %8211 = vmatprep.subr.bf16.mxu0 0
  %8212 = vmatpush2.bf16.msra.mxu0 %v869
  %8213 = vmatprep.subr.bf16.mxu0 0
  %8214 = vmatpush2.bf16.msra.mxu0 %v868
  %8215 = vmatprep.subr.bf16.mxu0 0
  %8216 = vmatpush2.bf16.msra.mxu0 %v867
  %8217 = vmatprep.subr.bf16.mxu0 0
  %8218 = vmatpush2.bf16.msra.mxu0 %v866
  %8219 = vmatprep.mubr.bf16.mxu0 %v8124
  %8220 = vmatmul.mubr.bf16.gmra.mxu0 %v8123
  %v8221 = vpop.f32.mrf.mxu0
  %v8222 = vadd.f32 0.0, %v8221
  %v8223 = vpop.f32.mrf.mxu0
  %v8224 = vpop.f32.mrf.mxu0
  %v8225 = vadd.f32 0.0, %v8224
  %v8226 = vpop.f32.mrf.mxu0
  %8227 = vmatprep.mubr.bf16.mxu0 %v8128
  %8228 = vmatmul.mubr.bf16.gmra.mxu0 %v8127
  %v8229 = vpop.f32.mrf.mxu0
  %v8230 = vadd.f32 0.0, %v8229
  %v8231 = vpop.f32.mrf.mxu0
  %v8232 = vpop.f32.mrf.mxu0
  %v8233 = vadd.f32 0.0, %v8232
  %v8234 = vpop.f32.mrf.mxu0
  %8235 = vmatprep.mubr.bf16.mxu0 %v8132
  %8236 = vmatmul.mubr.bf16.gmra.mxu0 %v8131
  %v8237 = vpop.f32.mrf.mxu0
  %v8238 = vadd.f32 0.0, %v8237
  %v8239 = vpop.f32.mrf.mxu0
  %v8240 = vpop.f32.mrf.mxu0
  %v8241 = vadd.f32 0.0, %v8240
  %v8242 = vpop.f32.mrf.mxu0
  %8243 = vmatprep.mubr.bf16.mxu0 %v8136
  %8244 = vmatmul.mubr.bf16.gmra.mxu0 %v8135
  %v8245 = vpop.f32.mrf.mxu0
  %v8246 = vadd.f32 0.0, %v8245
  %v8247 = vpop.f32.mrf.mxu0
  %v8248 = vpop.f32.mrf.mxu0
  %v8249 = vadd.f32 0.0, %v8248
  %v8250 = vpop.f32.mrf.mxu0
  %8251 = vmatprep.mubr.bf16.mxu0 %v8140
  %8252 = vmatmul.mubr.bf16.gmra.mxu0 %v8139
  %v8253 = vpop.f32.mrf.mxu0
  %v8254 = vadd.f32 0.0, %v8253
  %v8255 = vpop.f32.mrf.mxu0
  %v8256 = vpop.f32.mrf.mxu0
  %v8257 = vadd.f32 0.0, %v8256
  %v8258 = vpop.f32.mrf.mxu0
  %8259 = vmatprep.mubr.bf16.mxu0 %v8144
  %8260 = vmatmul.mubr.bf16.gmra.mxu0 %v8143
  %v8261 = vpop.f32.mrf.mxu0
  %v8262 = vadd.f32 0.0, %v8261
  %v8263 = vpop.f32.mrf.mxu0
  %v8264 = vpop.f32.mrf.mxu0
  %v8265 = vadd.f32 0.0, %v8264
  %v8266 = vpop.f32.mrf.mxu0
  %8267 = vmatprep.mubr.bf16.mxu0 %v8148
  %8268 = vmatmul.mubr.bf16.gmra.mxu0 %v8147
  %v8269 = vpop.f32.mrf.mxu0
  %v8270 = vadd.f32 0.0, %v8269
  %v8271 = vpop.f32.mrf.mxu0
  %v8272 = vpop.f32.mrf.mxu0
  %v8273 = vadd.f32 0.0, %v8272
  %v8274 = vpop.f32.mrf.mxu0
  %8275 = vmatprep.mubr.bf16.mxu0 %v8152
  %8276 = vmatmul.mubr.bf16.gmra.mxu0 %v8151
  %v8277 = vpop.f32.mrf.mxu0
  %v8278 = vadd.f32 0.0, %v8277
  %v8279 = vpop.f32.mrf.mxu0
  %v8280 = vpop.f32.mrf.mxu0
  %v8281 = vadd.f32 0.0, %v8280
  %v8282 = vpop.f32.mrf.mxu0
  %8283 = vdwg.mxu0
  %8284 = vmatprep.subr.bf16.mxu0 0
  %8285 = vmatpush1.bf16.msra.mxu0 %v881
  %8286 = vmatprep.subr.bf16.mxu0 0
  %8287 = vmatpush1.bf16.msra.mxu0 %v880
  %8288 = vmatprep.subr.bf16.mxu0 0
  %8289 = vmatpush1.bf16.msra.mxu0 %v879
  %8290 = vmatprep.subr.bf16.mxu0 0
  %8291 = vmatpush1.bf16.msra.mxu0 %v878
  %8292 = vmatprep.subr.bf16.mxu0 0
  %8293 = vmatpush1.bf16.msra.mxu0 %v877
  %8294 = vmatprep.subr.bf16.mxu0 0
  %8295 = vmatpush1.bf16.msra.mxu0 %v876
  %8296 = vmatprep.subr.bf16.mxu0 0
  %8297 = vmatpush1.bf16.msra.mxu0 %v875
  %8298 = vmatprep.subr.bf16.mxu0 0
  %8299 = vmatpush1.bf16.msra.mxu0 %v874
  %8300 = vmatprep.subr.bf16.mxu0 0
  %8301 = vmatpush2.bf16.msra.mxu0 %v889
  %8302 = vmatprep.subr.bf16.mxu0 0
  %8303 = vmatpush2.bf16.msra.mxu0 %v888
  %8304 = vmatprep.subr.bf16.mxu0 0
  %8305 = vmatpush2.bf16.msra.mxu0 %v887
  %8306 = vmatprep.subr.bf16.mxu0 0
  %8307 = vmatpush2.bf16.msra.mxu0 %v886
  %8308 = vmatprep.subr.bf16.mxu0 0
  %8309 = vmatpush2.bf16.msra.mxu0 %v885
  %8310 = vmatprep.subr.bf16.mxu0 0
  %8311 = vmatpush2.bf16.msra.mxu0 %v884
  %8312 = vmatprep.subr.bf16.mxu0 0
  %8313 = vmatpush2.bf16.msra.mxu0 %v883
  %8314 = vmatprep.subr.bf16.mxu0 0
  %8315 = vmatpush2.bf16.msra.mxu0 %v882
  %8316 = vmatprep.mubr.bf16.mxu0 %v8126
  %8317 = vmatmul.mubr.bf16.gmra.mxu0 %v8125
  %v8318 = vpop.f32.mrf.mxu0
  %v8319 = vadd.f32 %v8222, %v8318
  %v8320 = vpop.f32.mrf.mxu0
  %v8321 = vpop.f32.mrf.mxu0
  %v8322 = vadd.f32 %v8225, %v8321
  %v8323 = vpop.f32.mrf.mxu0
  %8324 = vmatprep.mubr.bf16.mxu0 %v8130
  %8325 = vmatmul.mubr.bf16.gmra.mxu0 %v8129
  %v8326 = vpop.f32.mrf.mxu0
  %v8327 = vadd.f32 %v8230, %v8326
  %v8328 = vpop.f32.mrf.mxu0
  %v8329 = vpop.f32.mrf.mxu0
  %v8330 = vadd.f32 %v8233, %v8329
  %v8331 = vpop.f32.mrf.mxu0
  %8332 = vmatprep.mubr.bf16.mxu0 %v8134
  %8333 = vmatmul.mubr.bf16.gmra.mxu0 %v8133
  %v8334 = vpop.f32.mrf.mxu0
  %v8335 = vadd.f32 %v8238, %v8334
  %v8336 = vpop.f32.mrf.mxu0
  %v8337 = vpop.f32.mrf.mxu0
  %v8338 = vadd.f32 %v8241, %v8337
  %v8339 = vpop.f32.mrf.mxu0
  %8340 = vmatprep.mubr.bf16.mxu0 %v8138
  %8341 = vmatmul.mubr.bf16.gmra.mxu0 %v8137
  %v8342 = vpop.f32.mrf.mxu0
  %v8343 = vadd.f32 %v8246, %v8342
  %v8344 = vpop.f32.mrf.mxu0
  %v8345 = vpop.f32.mrf.mxu0
  %v8346 = vadd.f32 %v8249, %v8345
  %v8347 = vpop.f32.mrf.mxu0
  %8348 = vmatprep.mubr.bf16.mxu0 %v8142
  %8349 = vmatmul.mubr.bf16.gmra.mxu0 %v8141
  %v8350 = vpop.f32.mrf.mxu0
  %v8351 = vadd.f32 %v8254, %v8350
  %v8352 = vpop.f32.mrf.mxu0
  %v8353 = vpop.f32.mrf.mxu0
  %v8354 = vadd.f32 %v8257, %v8353
  %v8355 = vpop.f32.mrf.mxu0
  %8356 = vmatprep.mubr.bf16.mxu0 %v8146
  %8357 = vmatmul.mubr.bf16.gmra.mxu0 %v8145
  %v8358 = vpop.f32.mrf.mxu0
  %v8359 = vadd.f32 %v8262, %v8358
  %v8360 = vpop.f32.mrf.mxu0
  %v8361 = vpop.f32.mrf.mxu0
  %v8362 = vadd.f32 %v8265, %v8361
  %v8363 = vpop.f32.mrf.mxu0
  %8364 = vmatprep.mubr.bf16.mxu0 %v8150
  %8365 = vmatmul.mubr.bf16.gmra.mxu0 %v8149
  %v8366 = vpop.f32.mrf.mxu0
  %v8367 = vadd.f32 %v8270, %v8366
  %v8368 = vpop.f32.mrf.mxu0
  %v8369 = vpop.f32.mrf.mxu0
  %v8370 = vadd.f32 %v8273, %v8369
  %v8371 = vpop.f32.mrf.mxu0
  %8372 = vmatprep.mubr.bf16.mxu0 %v8154
  %8373 = vmatmul.mubr.bf16.gmra.mxu0 %v8153
  %v8374 = vpop.f32.mrf.mxu0
  %v8375 = vadd.f32 %v8278, %v8374
  %v8376 = vpop.f32.mrf.mxu0
  %v8377 = vpop.f32.mrf.mxu0
  %v8378 = vadd.f32 %v8281, %v8377
  %v8379 = vpop.f32.mrf.mxu0
  %8380 = vdwg.mxu0
  %v8381 = vpack.c.bf16 %v8322, %v8319
  %v8382 = vpack.c.bf16 %v8330, %v8327
  %v8383 = vpack.c.bf16 %v8338, %v8335
  %v8384 = vpack.c.bf16 %v8346, %v8343
  %v8385 = vpack.c.bf16 %v8354, %v8351
  %v8386 = vpack.c.bf16 %v8362, %v8359
  %v8387 = vpack.c.bf16 %v8370, %v8367
  %v8388 = vpack.c.bf16 %v8378, %v8375
  %s8389 = scalar_lea.vmem %s4, 208
  %v8390 = vld [vmem:[%s8389] sm:$0xf]
  %v8391 = vld [vmem:[%s8389 + $0x4] sm:$0xf]
  %v8392 = vld [vmem:[%s8389 + $0x8] sm:$0xf]
  %v8393 = vld [vmem:[%s8389 + $0xc] sm:$0xf]
  %v8398 = vunpack.c.l.b16 %v8390
  %v8399 = vunpack.c.l.b16 %v8391
  %v8400 = vunpack.c.l.b16 %v8392
  %v8401 = vunpack.c.l.b16 %v8393
  %v8402 = vpack.c.b16 %v8399, %v8398
  %v8403 = vpack.c.b16 %v8401, %v8400
  %v8407 = vsel %vm1700, %v8381, 0
  %v8410 = vsel %vm1700, %v8382, 0
  %v8413 = vsel %vm1700, %v8383, 0
  %v8416 = vsel %vm1700, %v8384, 0
  %v8419 = vsel %vm1700, %v8385, 0
  %v8422 = vsel %vm1700, %v8386, 0
  %v8425 = vsel %vm1700, %v8387, 0
  %v8428 = vsel %vm1700, %v8388, 0
  %8430 = vmatprep.subr.bf16.mxu0 0
  %8431 = vmatpush1.bf16.msra.mxu0 0
  %8432 = vmatprep.subr.bf16.mxu0 0
  %8433 = vmatpush1.bf16.msra.mxu0 0
  %8434 = vmatprep.subr.bf16.mxu0 0
  %8435 = vmatpush1.bf16.msra.mxu0 0
  %8436 = vmatprep.subr.bf16.mxu0 0
  %8437 = vmatpush1.bf16.msra.mxu0 0
  %8438 = vmatprep.subr.bf16.mxu0 0
  %8439 = vmatpush1.bf16.msra.mxu0 0
  %8440 = vmatprep.subr.bf16.mxu0 0
  %8441 = vmatpush1.bf16.msra.mxu0 0
  %8442 = vmatprep.subr.bf16.mxu0 0
  %8443 = vmatpush1.bf16.msra.mxu0 %v8403
  %8444 = vmatprep.subr.bf16.mxu0 0
  %8445 = vmatpush1.bf16.msra.mxu0 %v8402
  %8446 = vmatprep.subr.bf16.mxu0 0
  %8447 = vmatpush2.bf16.msra.mxu0 0
  %8448 = vmatprep.subr.bf16.mxu0 0
  %8449 = vmatpush2.bf16.msra.mxu0 0
  %8450 = vmatprep.subr.bf16.mxu0 0
  %8451 = vmatpush2.bf16.msra.mxu0 0
  %8452 = vmatprep.subr.bf16.mxu0 0
  %8453 = vmatpush2.bf16.msra.mxu0 0
  %8454 = vmatprep.subr.bf16.mxu0 0
  %8455 = vmatpush2.bf16.msra.mxu0 0
  %8456 = vmatprep.subr.bf16.mxu0 0
  %8457 = vmatpush2.bf16.msra.mxu0 0
  %8458 = vmatprep.subr.bf16.mxu0 0
  %8459 = vmatpush2.bf16.msra.mxu0 0
  %8460 = vmatprep.subr.bf16.mxu0 0
  %8461 = vmatpush2.bf16.msra.mxu0 0
  %8462 = vmatprep.mubr.bf16.mxu0 0
  %8463 = vmatmul.mubr.bf16.gmra.mxu0 %v8407
  %v8464 = vpop.f32.mrf.mxu0
  %v8465 = vadd.f32 0.0, %v8464
  %v8466 = vpop.f32.mrf.mxu0
  %v8467 = vpop.f32.mrf.mxu0
  %v8468 = vadd.f32 0.0, %v8467
  %v8469 = vpop.f32.mrf.mxu0
  %8470 = vmatprep.mubr.bf16.mxu0 0
  %8471 = vmatmul.mubr.bf16.gmra.mxu0 %v8410
  %v8472 = vpop.f32.mrf.mxu0
  %v8473 = vadd.f32 0.0, %v8472
  %v8474 = vpop.f32.mrf.mxu0
  %v8475 = vpop.f32.mrf.mxu0
  %v8476 = vadd.f32 0.0, %v8475
  %v8477 = vpop.f32.mrf.mxu0
  %8478 = vmatprep.mubr.bf16.mxu0 0
  %8479 = vmatmul.mubr.bf16.gmra.mxu0 %v8413
  %v8480 = vpop.f32.mrf.mxu0
  %v8481 = vadd.f32 0.0, %v8480
  %v8482 = vpop.f32.mrf.mxu0
  %v8483 = vpop.f32.mrf.mxu0
  %v8484 = vadd.f32 0.0, %v8483
  %v8485 = vpop.f32.mrf.mxu0
  %8486 = vmatprep.mubr.bf16.mxu0 0
  %8487 = vmatmul.mubr.bf16.gmra.mxu0 %v8416
  %v8488 = vpop.f32.mrf.mxu0
  %v8489 = vadd.f32 0.0, %v8488
  %v8490 = vpop.f32.mrf.mxu0
  %v8491 = vpop.f32.mrf.mxu0
  %v8492 = vadd.f32 0.0, %v8491
  %v8493 = vpop.f32.mrf.mxu0
  %8494 = vmatprep.mubr.bf16.mxu0 0
  %8495 = vmatmul.mubr.bf16.gmra.mxu0 %v8419
  %v8496 = vpop.f32.mrf.mxu0
  %v8497 = vadd.f32 0.0, %v8496
  %v8498 = vpop.f32.mrf.mxu0
  %v8499 = vpop.f32.mrf.mxu0
  %v8500 = vadd.f32 0.0, %v8499
  %v8501 = vpop.f32.mrf.mxu0
  %8502 = vmatprep.mubr.bf16.mxu0 0
  %8503 = vmatmul.mubr.bf16.gmra.mxu0 %v8422
  %v8504 = vpop.f32.mrf.mxu0
  %v8505 = vadd.f32 0.0, %v8504
  %v8506 = vpop.f32.mrf.mxu0
  %v8507 = vpop.f32.mrf.mxu0
  %v8508 = vadd.f32 0.0, %v8507
  %v8509 = vpop.f32.mrf.mxu0
  %8510 = vmatprep.mubr.bf16.mxu0 0
  %8511 = vmatmul.mubr.bf16.gmra.mxu0 %v8425
  %v8512 = vpop.f32.mrf.mxu0
  %v8513 = vadd.f32 0.0, %v8512
  %v8514 = vpop.f32.mrf.mxu0
  %v8515 = vpop.f32.mrf.mxu0
  %v8516 = vadd.f32 0.0, %v8515
  %v8517 = vpop.f32.mrf.mxu0
  %8518 = vmatprep.mubr.bf16.mxu0 0
  %8519 = vmatmul.mubr.bf16.gmra.mxu0 %v8428
  %v8520 = vpop.f32.mrf.mxu0
  %v8521 = vadd.f32 0.0, %v8520
  %v8522 = vpop.f32.mrf.mxu0
  %v8523 = vpop.f32.mrf.mxu0
  %v8524 = vadd.f32 0.0, %v8523
  %v8525 = vpop.f32.mrf.mxu0
  %8526 = vdwg.mxu0
  %v8527 = vadd.f32 %v7978, %v8465
  %v8528 = vadd.f32 %v7979, %v8468
  %v8529 = vadd.f32 %v7980, %v8473
  %v8530 = vadd.f32 %v7981, %v8476
  %v8531 = vadd.f32 %v7982, %v8481
  %v8532 = vadd.f32 %v7983, %v8484
  %v8533 = vadd.f32 %v7984, %v8489
  %v8534 = vadd.f32 %v7985, %v8492
  %v8535 = vadd.f32 %v7986, %v8497
  %v8536 = vadd.f32 %v7987, %v8500
  %v8537 = vadd.f32 %v7988, %v8505
  %v8538 = vadd.f32 %v7989, %v8508
  %v8539 = vadd.f32 %v7990, %v8513
  %v8540 = vadd.f32 %v7991, %v8516
  %v8541 = vadd.f32 %v7992, %v8521
  %v8542 = vadd.f32 %v7993, %v8524
  %s8543 = scalar_lea.vmem %s3, 3584
  %v8544 = vld [vmem:[%s8543] sm:$0xff]
  %v8545 = vld [vmem:[%s8543 + $0x8] sm:$0xff]
  %v8546 = vld [vmem:[%s8543 + $0x10] sm:$0xff]
  %v8547 = vld [vmem:[%s8543 + $0x18] sm:$0xff]
  %v8548 = vld [vmem:[%s8543 + $0x20] sm:$0xff]
  %v8549 = vld [vmem:[%s8543 + $0x28] sm:$0xff]
  %v8550 = vld [vmem:[%s8543 + $0x30] sm:$0xff]
  %v8551 = vld [vmem:[%s8543 + $0x38] sm:$0xff]
  %v8552 = vld [vmem:[%s8543 + $0x40] sm:$0xff]
  %v8553 = vld [vmem:[%s8543 + $0x48] sm:$0xff]
  %v8554 = vld [vmem:[%s8543 + $0x50] sm:$0xff]
  %v8555 = vld [vmem:[%s8543 + $0x58] sm:$0xff]
  %v8556 = vld [vmem:[%s8543 + $0x60] sm:$0xff]
  %v8557 = vld [vmem:[%s8543 + $0x68] sm:$0xff]
  %v8558 = vld [vmem:[%s8543 + $0x70] sm:$0xff]
  %v8559 = vld [vmem:[%s8543 + $0x78] sm:$0xff]
  %v8560 = vld [vmem:[%s8543 + $0x80] sm:$0xff]
  %v8561 = vld [vmem:[%s8543 + $0x88] sm:$0xff]
  %v8562 = vld [vmem:[%s8543 + $0x90] sm:$0xff]
  %v8563 = vld [vmem:[%s8543 + $0x98] sm:$0xff]
  %v8564 = vld [vmem:[%s8543 + $0xa0] sm:$0xff]
  %v8565 = vld [vmem:[%s8543 + $0xa8] sm:$0xff]
  %v8566 = vld [vmem:[%s8543 + $0xb0] sm:$0xff]
  %v8567 = vld [vmem:[%s8543 + $0xb8] sm:$0xff]
  %v8568 = vld [vmem:[%s8543 + $0xc0] sm:$0xff]
  %v8569 = vld [vmem:[%s8543 + $0xc8] sm:$0xff]
  %v8570 = vld [vmem:[%s8543 + $0xd0] sm:$0xff]
  %v8571 = vld [vmem:[%s8543 + $0xd8] sm:$0xff]
  %v8572 = vld [vmem:[%s8543 + $0xe0] sm:$0xff]
  %v8573 = vld [vmem:[%s8543 + $0xe8] sm:$0xff]
  %v8574 = vld [vmem:[%s8543 + $0xf0] sm:$0xff]
  %v8575 = vld [vmem:[%s8543 + $0xf8] sm:$0xff]
  %v8608 = vunpack.c.l.b16 %v8544
  %v8609 = vunpack.c.h.b16 %v8544
  %v8610 = vunpack.c.l.b16 %v8545
  %v8611 = vunpack.c.h.b16 %v8545
  %v8612 = vunpack.c.l.b16 %v8546
  %v8613 = vunpack.c.h.b16 %v8546
  %v8614 = vunpack.c.l.b16 %v8547
  %v8615 = vunpack.c.h.b16 %v8547
  %v8616 = vunpack.c.l.b16 %v8548
  %v8617 = vunpack.c.h.b16 %v8548
  %v8618 = vunpack.c.l.b16 %v8549
  %v8619 = vunpack.c.h.b16 %v8549
  %v8620 = vunpack.c.l.b16 %v8550
  %v8621 = vunpack.c.h.b16 %v8550
  %v8622 = vunpack.c.l.b16 %v8551
  %v8623 = vunpack.c.h.b16 %v8551
  %v8624 = vunpack.c.l.b16 %v8552
  %v8625 = vunpack.c.h.b16 %v8552
  %v8626 = vunpack.c.l.b16 %v8553
  %v8627 = vunpack.c.h.b16 %v8553
  %v8628 = vunpack.c.l.b16 %v8554
  %v8629 = vunpack.c.h.b16 %v8554
  %v8630 = vunpack.c.l.b16 %v8555
  %v8631 = vunpack.c.h.b16 %v8555
  %v8632 = vunpack.c.l.b16 %v8556
  %v8633 = vunpack.c.h.b16 %v8556
  %v8634 = vunpack.c.l.b16 %v8557
  %v8635 = vunpack.c.h.b16 %v8557
  %v8636 = vunpack.c.l.b16 %v8558
  %v8637 = vunpack.c.h.b16 %v8558
  %v8638 = vunpack.c.l.b16 %v8559
  %v8639 = vunpack.c.h.b16 %v8559
  %v8640 = vunpack.c.l.b16 %v8560
  %v8641 = vunpack.c.h.b16 %v8560
  %v8642 = vunpack.c.l.b16 %v8561
  %v8643 = vunpack.c.h.b16 %v8561
  %v8644 = vunpack.c.l.b16 %v8562
  %v8645 = vunpack.c.h.b16 %v8562
  %v8646 = vunpack.c.l.b16 %v8563
  %v8647 = vunpack.c.h.b16 %v8563
  %v8648 = vunpack.c.l.b16 %v8564
  %v8649 = vunpack.c.h.b16 %v8564
  %v8650 = vunpack.c.l.b16 %v8565
  %v8651 = vunpack.c.h.b16 %v8565
  %v8652 = vunpack.c.l.b16 %v8566
  %v8653 = vunpack.c.h.b16 %v8566
  %v8654 = vunpack.c.l.b16 %v8567
  %v8655 = vunpack.c.h.b16 %v8567
  %v8656 = vunpack.c.l.b16 %v8568
  %v8657 = vunpack.c.h.b16 %v8568
  %v8658 = vunpack.c.l.b16 %v8569
  %v8659 = vunpack.c.h.b16 %v8569
  %v8660 = vunpack.c.l.b16 %v8570
  %v8661 = vunpack.c.h.b16 %v8570
  %v8662 = vunpack.c.l.b16 %v8571
  %v8663 = vunpack.c.h.b16 %v8571
  %v8664 = vunpack.c.l.b16 %v8572
  %v8665 = vunpack.c.h.b16 %v8572
  %v8666 = vunpack.c.l.b16 %v8573
  %v8667 = vunpack.c.h.b16 %v8573
  %v8668 = vunpack.c.l.b16 %v8574
  %v8669 = vunpack.c.h.b16 %v8574
  %v8670 = vunpack.c.l.b16 %v8575
  %v8671 = vunpack.c.h.b16 %v8575
  %v8672 = vpack.c.b16 %v8612, %v8608
  %v8673 = vpack.c.b16 %v8613, %v8609
  %v8674 = vpack.c.b16 %v8614, %v8610
  %v8675 = vpack.c.b16 %v8615, %v8611
  %v8676 = vpack.c.b16 %v8620, %v8616
  %v8677 = vpack.c.b16 %v8621, %v8617
  %v8678 = vpack.c.b16 %v8622, %v8618
  %v8679 = vpack.c.b16 %v8623, %v8619
  %v8680 = vpack.c.b16 %v8628, %v8624
  %v8681 = vpack.c.b16 %v8629, %v8625
  %v8682 = vpack.c.b16 %v8630, %v8626
  %v8683 = vpack.c.b16 %v8631, %v8627
  %v8684 = vpack.c.b16 %v8636, %v8632
  %v8685 = vpack.c.b16 %v8637, %v8633
  %v8686 = vpack.c.b16 %v8638, %v8634
  %v8687 = vpack.c.b16 %v8639, %v8635
  %v8688 = vpack.c.b16 %v8644, %v8640
  %v8689 = vpack.c.b16 %v8645, %v8641
  %v8690 = vpack.c.b16 %v8646, %v8642
  %v8691 = vpack.c.b16 %v8647, %v8643
  %v8692 = vpack.c.b16 %v8652, %v8648
  %v8693 = vpack.c.b16 %v8653, %v8649
  %v8694 = vpack.c.b16 %v8654, %v8650
  %v8695 = vpack.c.b16 %v8655, %v8651
  %v8696 = vpack.c.b16 %v8660, %v8656
  %v8697 = vpack.c.b16 %v8661, %v8657
  %v8698 = vpack.c.b16 %v8662, %v8658
  %v8699 = vpack.c.b16 %v8663, %v8659
  %v8700 = vpack.c.b16 %v8668, %v8664
  %v8701 = vpack.c.b16 %v8669, %v8665
  %v8702 = vpack.c.b16 %v8670, %v8666
  %v8703 = vpack.c.b16 %v8671, %v8667
  %8736 = vmatprep.subr.bf16.mxu0 0
  %8737 = vmatpush1.bf16.msra.mxu0 %v865
  %8738 = vmatprep.subr.bf16.mxu0 0
  %8739 = vmatpush1.bf16.msra.mxu0 %v864
  %8740 = vmatprep.subr.bf16.mxu0 0
  %8741 = vmatpush1.bf16.msra.mxu0 %v863
  %8742 = vmatprep.subr.bf16.mxu0 0
  %8743 = vmatpush1.bf16.msra.mxu0 %v862
  %8744 = vmatprep.subr.bf16.mxu0 0
  %8745 = vmatpush1.bf16.msra.mxu0 %v861
  %8746 = vmatprep.subr.bf16.mxu0 0
  %8747 = vmatpush1.bf16.msra.mxu0 %v860
  %8748 = vmatprep.subr.bf16.mxu0 0
  %8749 = vmatpush1.bf16.msra.mxu0 %v859
  %8750 = vmatprep.subr.bf16.mxu0 0
  %8751 = vmatpush1.bf16.msra.mxu0 %v858
  %8752 = vmatprep.subr.bf16.mxu0 0
  %8753 = vmatpush2.bf16.msra.mxu0 %v873
  %8754 = vmatprep.subr.bf16.mxu0 0
  %8755 = vmatpush2.bf16.msra.mxu0 %v872
  %8756 = vmatprep.subr.bf16.mxu0 0
  %8757 = vmatpush2.bf16.msra.mxu0 %v871
  %8758 = vmatprep.subr.bf16.mxu0 0
  %8759 = vmatpush2.bf16.msra.mxu0 %v870
  %8760 = vmatprep.subr.bf16.mxu0 0
  %8761 = vmatpush2.bf16.msra.mxu0 %v869
  %8762 = vmatprep.subr.bf16.mxu0 0
  %8763 = vmatpush2.bf16.msra.mxu0 %v868
  %8764 = vmatprep.subr.bf16.mxu0 0
  %8765 = vmatpush2.bf16.msra.mxu0 %v867
  %8766 = vmatprep.subr.bf16.mxu0 0
  %8767 = vmatpush2.bf16.msra.mxu0 %v866
  %8768 = vmatprep.mubr.bf16.mxu0 %v8673
  %8769 = vmatmul.mubr.bf16.gmra.mxu0 %v8672
  %v8770 = vpop.f32.mrf.mxu0
  %v8771 = vadd.f32 0.0, %v8770
  %v8772 = vpop.f32.mrf.mxu0
  %v8773 = vpop.f32.mrf.mxu0
  %v8774 = vadd.f32 0.0, %v8773
  %v8775 = vpop.f32.mrf.mxu0
  %8776 = vmatprep.mubr.bf16.mxu0 %v8677
  %8777 = vmatmul.mubr.bf16.gmra.mxu0 %v8676
  %v8778 = vpop.f32.mrf.mxu0
  %v8779 = vadd.f32 0.0, %v8778
  %v8780 = vpop.f32.mrf.mxu0
  %v8781 = vpop.f32.mrf.mxu0
  %v8782 = vadd.f32 0.0, %v8781
  %v8783 = vpop.f32.mrf.mxu0
  %8784 = vmatprep.mubr.bf16.mxu0 %v8681
  %8785 = vmatmul.mubr.bf16.gmra.mxu0 %v8680
  %v8786 = vpop.f32.mrf.mxu0
  %v8787 = vadd.f32 0.0, %v8786
  %v8788 = vpop.f32.mrf.mxu0
  %v8789 = vpop.f32.mrf.mxu0
  %v8790 = vadd.f32 0.0, %v8789
  %v8791 = vpop.f32.mrf.mxu0
  %8792 = vmatprep.mubr.bf16.mxu0 %v8685
  %8793 = vmatmul.mubr.bf16.gmra.mxu0 %v8684
  %v8794 = vpop.f32.mrf.mxu0
  %v8795 = vadd.f32 0.0, %v8794
  %v8796 = vpop.f32.mrf.mxu0
  %v8797 = vpop.f32.mrf.mxu0
  %v8798 = vadd.f32 0.0, %v8797
  %v8799 = vpop.f32.mrf.mxu0
  %8800 = vmatprep.mubr.bf16.mxu0 %v8689
  %8801 = vmatmul.mubr.bf16.gmra.mxu0 %v8688
  %v8802 = vpop.f32.mrf.mxu0
  %v8803 = vadd.f32 0.0, %v8802
  %v8804 = vpop.f32.mrf.mxu0
  %v8805 = vpop.f32.mrf.mxu0
  %v8806 = vadd.f32 0.0, %v8805
  %v8807 = vpop.f32.mrf.mxu0
  %8808 = vmatprep.mubr.bf16.mxu0 %v8693
  %8809 = vmatmul.mubr.bf16.gmra.mxu0 %v8692
  %v8810 = vpop.f32.mrf.mxu0
  %v8811 = vadd.f32 0.0, %v8810
  %v8812 = vpop.f32.mrf.mxu0
  %v8813 = vpop.f32.mrf.mxu0
  %v8814 = vadd.f32 0.0, %v8813
  %v8815 = vpop.f32.mrf.mxu0
  %8816 = vmatprep.mubr.bf16.mxu0 %v8697
  %8817 = vmatmul.mubr.bf16.gmra.mxu0 %v8696
  %v8818 = vpop.f32.mrf.mxu0
  %v8819 = vadd.f32 0.0, %v8818
  %v8820 = vpop.f32.mrf.mxu0
  %v8821 = vpop.f32.mrf.mxu0
  %v8822 = vadd.f32 0.0, %v8821
  %v8823 = vpop.f32.mrf.mxu0
  %8824 = vmatprep.mubr.bf16.mxu0 %v8701
  %8825 = vmatmul.mubr.bf16.gmra.mxu0 %v8700
  %v8826 = vpop.f32.mrf.mxu0
  %v8827 = vadd.f32 0.0, %v8826
  %v8828 = vpop.f32.mrf.mxu0
  %v8829 = vpop.f32.mrf.mxu0
  %v8830 = vadd.f32 0.0, %v8829
  %v8831 = vpop.f32.mrf.mxu0
  %8832 = vdwg.mxu0
  %8833 = vmatprep.subr.bf16.mxu0 0
  %8834 = vmatpush1.bf16.msra.mxu0 %v881
  %8835 = vmatprep.subr.bf16.mxu0 0
  %8836 = vmatpush1.bf16.msra.mxu0 %v880
  %8837 = vmatprep.subr.bf16.mxu0 0
  %8838 = vmatpush1.bf16.msra.mxu0 %v879
  %8839 = vmatprep.subr.bf16.mxu0 0
  %8840 = vmatpush1.bf16.msra.mxu0 %v878
  %8841 = vmatprep.subr.bf16.mxu0 0
  %8842 = vmatpush1.bf16.msra.mxu0 %v877
  %8843 = vmatprep.subr.bf16.mxu0 0
  %8844 = vmatpush1.bf16.msra.mxu0 %v876
  %8845 = vmatprep.subr.bf16.mxu0 0
  %8846 = vmatpush1.bf16.msra.mxu0 %v875
  %8847 = vmatprep.subr.bf16.mxu0 0
  %8848 = vmatpush1.bf16.msra.mxu0 %v874
  %8849 = vmatprep.subr.bf16.mxu0 0
  %8850 = vmatpush2.bf16.msra.mxu0 %v889
  %8851 = vmatprep.subr.bf16.mxu0 0
  %8852 = vmatpush2.bf16.msra.mxu0 %v888
  %8853 = vmatprep.subr.bf16.mxu0 0
  %8854 = vmatpush2.bf16.msra.mxu0 %v887
  %8855 = vmatprep.subr.bf16.mxu0 0
  %8856 = vmatpush2.bf16.msra.mxu0 %v886
  %8857 = vmatprep.subr.bf16.mxu0 0
  %8858 = vmatpush2.bf16.msra.mxu0 %v885
  %8859 = vmatprep.subr.bf16.mxu0 0
  %8860 = vmatpush2.bf16.msra.mxu0 %v884
  %8861 = vmatprep.subr.bf16.mxu0 0
  %8862 = vmatpush2.bf16.msra.mxu0 %v883
  %8863 = vmatprep.subr.bf16.mxu0 0
  %8864 = vmatpush2.bf16.msra.mxu0 %v882
  %8865 = vmatprep.mubr.bf16.mxu0 %v8675
  %8866 = vmatmul.mubr.bf16.gmra.mxu0 %v8674
  %v8867 = vpop.f32.mrf.mxu0
  %v8868 = vadd.f32 %v8771, %v8867
  %v8869 = vpop.f32.mrf.mxu0
  %v8870 = vpop.f32.mrf.mxu0
  %v8871 = vadd.f32 %v8774, %v8870
  %v8872 = vpop.f32.mrf.mxu0
  %8873 = vmatprep.mubr.bf16.mxu0 %v8679
  %8874 = vmatmul.mubr.bf16.gmra.mxu0 %v8678
  %v8875 = vpop.f32.mrf.mxu0
  %v8876 = vadd.f32 %v8779, %v8875
  %v8877 = vpop.f32.mrf.mxu0
  %v8878 = vpop.f32.mrf.mxu0
  %v8879 = vadd.f32 %v8782, %v8878
  %v8880 = vpop.f32.mrf.mxu0
  %8881 = vmatprep.mubr.bf16.mxu0 %v8683
  %8882 = vmatmul.mubr.bf16.gmra.mxu0 %v8682
  %v8883 = vpop.f32.mrf.mxu0
  %v8884 = vadd.f32 %v8787, %v8883
  %v8885 = vpop.f32.mrf.mxu0
  %v8886 = vpop.f32.mrf.mxu0
  %v8887 = vadd.f32 %v8790, %v8886
  %v8888 = vpop.f32.mrf.mxu0
  %8889 = vmatprep.mubr.bf16.mxu0 %v8687
  %8890 = vmatmul.mubr.bf16.gmra.mxu0 %v8686
  %v8891 = vpop.f32.mrf.mxu0
  %v8892 = vadd.f32 %v8795, %v8891
  %v8893 = vpop.f32.mrf.mxu0
  %v8894 = vpop.f32.mrf.mxu0
  %v8895 = vadd.f32 %v8798, %v8894
  %v8896 = vpop.f32.mrf.mxu0
  %8897 = vmatprep.mubr.bf16.mxu0 %v8691
  %8898 = vmatmul.mubr.bf16.gmra.mxu0 %v8690
  %v8899 = vpop.f32.mrf.mxu0
  %v8900 = vadd.f32 %v8803, %v8899
  %v8901 = vpop.f32.mrf.mxu0
  %v8902 = vpop.f32.mrf.mxu0
  %v8903 = vadd.f32 %v8806, %v8902
  %v8904 = vpop.f32.mrf.mxu0
  %8905 = vmatprep.mubr.bf16.mxu0 %v8695
  %8906 = vmatmul.mubr.bf16.gmra.mxu0 %v8694
  %v8907 = vpop.f32.mrf.mxu0
  %v8908 = vadd.f32 %v8811, %v8907
  %v8909 = vpop.f32.mrf.mxu0
  %v8910 = vpop.f32.mrf.mxu0
  %v8911 = vadd.f32 %v8814, %v8910
  %v8912 = vpop.f32.mrf.mxu0
  %8913 = vmatprep.mubr.bf16.mxu0 %v8699
  %8914 = vmatmul.mubr.bf16.gmra.mxu0 %v8698
  %v8915 = vpop.f32.mrf.mxu0
  %v8916 = vadd.f32 %v8819, %v8915
  %v8917 = vpop.f32.mrf.mxu0
  %v8918 = vpop.f32.mrf.mxu0
  %v8919 = vadd.f32 %v8822, %v8918
  %v8920 = vpop.f32.mrf.mxu0
  %8921 = vmatprep.mubr.bf16.mxu0 %v8703
  %8922 = vmatmul.mubr.bf16.gmra.mxu0 %v8702
  %v8923 = vpop.f32.mrf.mxu0
  %v8924 = vadd.f32 %v8827, %v8923
  %v8925 = vpop.f32.mrf.mxu0
  %v8926 = vpop.f32.mrf.mxu0
  %v8927 = vadd.f32 %v8830, %v8926
  %v8928 = vpop.f32.mrf.mxu0
  %8929 = vdwg.mxu0
  %v8930 = vpack.c.bf16 %v8871, %v8868
  %v8931 = vpack.c.bf16 %v8879, %v8876
  %v8932 = vpack.c.bf16 %v8887, %v8884
  %v8933 = vpack.c.bf16 %v8895, %v8892
  %v8934 = vpack.c.bf16 %v8903, %v8900
  %v8935 = vpack.c.bf16 %v8911, %v8908
  %v8936 = vpack.c.bf16 %v8919, %v8916
  %v8937 = vpack.c.bf16 %v8927, %v8924
  %s8938 = scalar_lea.vmem %s4, 224
  %v8939 = vld [vmem:[%s8938] sm:$0xf]
  %v8940 = vld [vmem:[%s8938 + $0x4] sm:$0xf]
  %v8941 = vld [vmem:[%s8938 + $0x8] sm:$0xf]
  %v8942 = vld [vmem:[%s8938 + $0xc] sm:$0xf]
  %v8947 = vunpack.c.l.b16 %v8939
  %v8948 = vunpack.c.l.b16 %v8940
  %v8949 = vunpack.c.l.b16 %v8941
  %v8950 = vunpack.c.l.b16 %v8942
  %v8951 = vpack.c.b16 %v8948, %v8947
  %v8952 = vpack.c.b16 %v8950, %v8949
  %v8956 = vsel %vm1700, %v8930, 0
  %v8959 = vsel %vm1700, %v8931, 0
  %v8962 = vsel %vm1700, %v8932, 0
  %v8965 = vsel %vm1700, %v8933, 0
  %v8968 = vsel %vm1700, %v8934, 0
  %v8971 = vsel %vm1700, %v8935, 0
  %v8974 = vsel %vm1700, %v8936, 0
  %v8977 = vsel %vm1700, %v8937, 0
  %8979 = vmatprep.subr.bf16.mxu0 0
  %8980 = vmatpush1.bf16.msra.mxu0 0
  %8981 = vmatprep.subr.bf16.mxu0 0
  %8982 = vmatpush1.bf16.msra.mxu0 0
  %8983 = vmatprep.subr.bf16.mxu0 0
  %8984 = vmatpush1.bf16.msra.mxu0 0
  %8985 = vmatprep.subr.bf16.mxu0 0
  %8986 = vmatpush1.bf16.msra.mxu0 0
  %8987 = vmatprep.subr.bf16.mxu0 0
  %8988 = vmatpush1.bf16.msra.mxu0 0
  %8989 = vmatprep.subr.bf16.mxu0 0
  %8990 = vmatpush1.bf16.msra.mxu0 0
  %8991 = vmatprep.subr.bf16.mxu0 0
  %8992 = vmatpush1.bf16.msra.mxu0 %v8952
  %8993 = vmatprep.subr.bf16.mxu0 0
  %8994 = vmatpush1.bf16.msra.mxu0 %v8951
  %8995 = vmatprep.subr.bf16.mxu0 0
  %8996 = vmatpush2.bf16.msra.mxu0 0
  %8997 = vmatprep.subr.bf16.mxu0 0
  %8998 = vmatpush2.bf16.msra.mxu0 0
  %8999 = vmatprep.subr.bf16.mxu0 0
  %9000 = vmatpush2.bf16.msra.mxu0 0
  %9001 = vmatprep.subr.bf16.mxu0 0
  %9002 = vmatpush2.bf16.msra.mxu0 0
  %9003 = vmatprep.subr.bf16.mxu0 0
  %9004 = vmatpush2.bf16.msra.mxu0 0
  %9005 = vmatprep.subr.bf16.mxu0 0
  %9006 = vmatpush2.bf16.msra.mxu0 0
  %9007 = vmatprep.subr.bf16.mxu0 0
  %9008 = vmatpush2.bf16.msra.mxu0 0
  %9009 = vmatprep.subr.bf16.mxu0 0
  %9010 = vmatpush2.bf16.msra.mxu0 0
  %9011 = vmatprep.mubr.bf16.mxu0 0
  %9012 = vmatmul.mubr.bf16.gmra.mxu0 %v8956
  %v9013 = vpop.f32.mrf.mxu0
  %v9014 = vadd.f32 0.0, %v9013
  %v9015 = vpop.f32.mrf.mxu0
  %v9016 = vpop.f32.mrf.mxu0
  %v9017 = vadd.f32 0.0, %v9016
  %v9018 = vpop.f32.mrf.mxu0
  %9019 = vmatprep.mubr.bf16.mxu0 0
  %9020 = vmatmul.mubr.bf16.gmra.mxu0 %v8959
  %v9021 = vpop.f32.mrf.mxu0
  %v9022 = vadd.f32 0.0, %v9021
  %v9023 = vpop.f32.mrf.mxu0
  %v9024 = vpop.f32.mrf.mxu0
  %v9025 = vadd.f32 0.0, %v9024
  %v9026 = vpop.f32.mrf.mxu0
  %9027 = vmatprep.mubr.bf16.mxu0 0
  %9028 = vmatmul.mubr.bf16.gmra.mxu0 %v8962
  %v9029 = vpop.f32.mrf.mxu0
  %v9030 = vadd.f32 0.0, %v9029
  %v9031 = vpop.f32.mrf.mxu0
  %v9032 = vpop.f32.mrf.mxu0
  %v9033 = vadd.f32 0.0, %v9032
  %v9034 = vpop.f32.mrf.mxu0
  %9035 = vmatprep.mubr.bf16.mxu0 0
  %9036 = vmatmul.mubr.bf16.gmra.mxu0 %v8965
  %v9037 = vpop.f32.mrf.mxu0
  %v9038 = vadd.f32 0.0, %v9037
  %v9039 = vpop.f32.mrf.mxu0
  %v9040 = vpop.f32.mrf.mxu0
  %v9041 = vadd.f32 0.0, %v9040
  %v9042 = vpop.f32.mrf.mxu0
  %9043 = vmatprep.mubr.bf16.mxu0 0
  %9044 = vmatmul.mubr.bf16.gmra.mxu0 %v8968
  %v9045 = vpop.f32.mrf.mxu0
  %v9046 = vadd.f32 0.0, %v9045
  %v9047 = vpop.f32.mrf.mxu0
  %v9048 = vpop.f32.mrf.mxu0
  %v9049 = vadd.f32 0.0, %v9048
  %v9050 = vpop.f32.mrf.mxu0
  %9051 = vmatprep.mubr.bf16.mxu0 0
  %9052 = vmatmul.mubr.bf16.gmra.mxu0 %v8971
  %v9053 = vpop.f32.mrf.mxu0
  %v9054 = vadd.f32 0.0, %v9053
  %v9055 = vpop.f32.mrf.mxu0
  %v9056 = vpop.f32.mrf.mxu0
  %v9057 = vadd.f32 0.0, %v9056
  %v9058 = vpop.f32.mrf.mxu0
  %9059 = vmatprep.mubr.bf16.mxu0 0
  %9060 = vmatmul.mubr.bf16.gmra.mxu0 %v8974
  %v9061 = vpop.f32.mrf.mxu0
  %v9062 = vadd.f32 0.0, %v9061
  %v9063 = vpop.f32.mrf.mxu0
  %v9064 = vpop.f32.mrf.mxu0
  %v9065 = vadd.f32 0.0, %v9064
  %v9066 = vpop.f32.mrf.mxu0
  %9067 = vmatprep.mubr.bf16.mxu0 0
  %9068 = vmatmul.mubr.bf16.gmra.mxu0 %v8977
  %v9069 = vpop.f32.mrf.mxu0
  %v9070 = vadd.f32 0.0, %v9069
  %v9071 = vpop.f32.mrf.mxu0
  %v9072 = vpop.f32.mrf.mxu0
  %v9073 = vadd.f32 0.0, %v9072
  %v9074 = vpop.f32.mrf.mxu0
  %9075 = vdwg.mxu0
  %v9076 = vadd.f32 %v8527, %v9014
  %v9077 = vadd.f32 %v8528, %v9017
  %v9078 = vadd.f32 %v8529, %v9022
  %v9079 = vadd.f32 %v8530, %v9025
  %v9080 = vadd.f32 %v8531, %v9030
  %v9081 = vadd.f32 %v8532, %v9033
  %v9082 = vadd.f32 %v8533, %v9038
  %v9083 = vadd.f32 %v8534, %v9041
  %v9084 = vadd.f32 %v8535, %v9046
  %v9085 = vadd.f32 %v8536, %v9049
  %v9086 = vadd.f32 %v8537, %v9054
  %v9087 = vadd.f32 %v8538, %v9057
  %v9088 = vadd.f32 %v8539, %v9062
  %v9089 = vadd.f32 %v8540, %v9065
  %v9090 = vadd.f32 %v8541, %v9070
  %v9091 = vadd.f32 %v8542, %v9073
  %s9092 = scalar_lea.vmem %s3, 3840
  %v9093 = vld [vmem:[%s9092] sm:$0xff]
  %v9094 = vld [vmem:[%s9092 + $0x8] sm:$0xff]
  %v9095 = vld [vmem:[%s9092 + $0x10] sm:$0xff]
  %v9096 = vld [vmem:[%s9092 + $0x18] sm:$0xff]
  %v9097 = vld [vmem:[%s9092 + $0x20] sm:$0xff]
  %v9098 = vld [vmem:[%s9092 + $0x28] sm:$0xff]
  %v9099 = vld [vmem:[%s9092 + $0x30] sm:$0xff]
  %v9100 = vld [vmem:[%s9092 + $0x38] sm:$0xff]
  %v9101 = vld [vmem:[%s9092 + $0x40] sm:$0xff]
  %v9102 = vld [vmem:[%s9092 + $0x48] sm:$0xff]
  %v9103 = vld [vmem:[%s9092 + $0x50] sm:$0xff]
  %v9104 = vld [vmem:[%s9092 + $0x58] sm:$0xff]
  %v9105 = vld [vmem:[%s9092 + $0x60] sm:$0xff]
  %v9106 = vld [vmem:[%s9092 + $0x68] sm:$0xff]
  %v9107 = vld [vmem:[%s9092 + $0x70] sm:$0xff]
  %v9108 = vld [vmem:[%s9092 + $0x78] sm:$0xff]
  %v9109 = vld [vmem:[%s9092 + $0x80] sm:$0xff]
  %v9110 = vld [vmem:[%s9092 + $0x88] sm:$0xff]
  %v9111 = vld [vmem:[%s9092 + $0x90] sm:$0xff]
  %v9112 = vld [vmem:[%s9092 + $0x98] sm:$0xff]
  %v9113 = vld [vmem:[%s9092 + $0xa0] sm:$0xff]
  %v9114 = vld [vmem:[%s9092 + $0xa8] sm:$0xff]
  %v9115 = vld [vmem:[%s9092 + $0xb0] sm:$0xff]
  %v9116 = vld [vmem:[%s9092 + $0xb8] sm:$0xff]
  %v9117 = vld [vmem:[%s9092 + $0xc0] sm:$0xff]
  %v9118 = vld [vmem:[%s9092 + $0xc8] sm:$0xff]
  %v9119 = vld [vmem:[%s9092 + $0xd0] sm:$0xff]
  %v9120 = vld [vmem:[%s9092 + $0xd8] sm:$0xff]
  %v9121 = vld [vmem:[%s9092 + $0xe0] sm:$0xff]
  %v9122 = vld [vmem:[%s9092 + $0xe8] sm:$0xff]
  %v9123 = vld [vmem:[%s9092 + $0xf0] sm:$0xff]
  %v9124 = vld [vmem:[%s9092 + $0xf8] sm:$0xff]
  %v9157 = vunpack.c.l.b16 %v9093
  %v9158 = vunpack.c.h.b16 %v9093
  %v9159 = vunpack.c.l.b16 %v9094
  %v9160 = vunpack.c.h.b16 %v9094
  %v9161 = vunpack.c.l.b16 %v9095
  %v9162 = vunpack.c.h.b16 %v9095
  %v9163 = vunpack.c.l.b16 %v9096
  %v9164 = vunpack.c.h.b16 %v9096
  %v9165 = vunpack.c.l.b16 %v9097
  %v9166 = vunpack.c.h.b16 %v9097
  %v9167 = vunpack.c.l.b16 %v9098
  %v9168 = vunpack.c.h.b16 %v9098
  %v9169 = vunpack.c.l.b16 %v9099
  %v9170 = vunpack.c.h.b16 %v9099
  %v9171 = vunpack.c.l.b16 %v9100
  %v9172 = vunpack.c.h.b16 %v9100
  %v9173 = vunpack.c.l.b16 %v9101
  %v9174 = vunpack.c.h.b16 %v9101
  %v9175 = vunpack.c.l.b16 %v9102
  %v9176 = vunpack.c.h.b16 %v9102
  %v9177 = vunpack.c.l.b16 %v9103
  %v9178 = vunpack.c.h.b16 %v9103
  %v9179 = vunpack.c.l.b16 %v9104
  %v9180 = vunpack.c.h.b16 %v9104
  %v9181 = vunpack.c.l.b16 %v9105
  %v9182 = vunpack.c.h.b16 %v9105
  %v9183 = vunpack.c.l.b16 %v9106
  %v9184 = vunpack.c.h.b16 %v9106
  %v9185 = vunpack.c.l.b16 %v9107
  %v9186 = vunpack.c.h.b16 %v9107
  %v9187 = vunpack.c.l.b16 %v9108
  %v9188 = vunpack.c.h.b16 %v9108
  %v9189 = vunpack.c.l.b16 %v9109
  %v9190 = vunpack.c.h.b16 %v9109
  %v9191 = vunpack.c.l.b16 %v9110
  %v9192 = vunpack.c.h.b16 %v9110
  %v9193 = vunpack.c.l.b16 %v9111
  %v9194 = vunpack.c.h.b16 %v9111
  %v9195 = vunpack.c.l.b16 %v9112
  %v9196 = vunpack.c.h.b16 %v9112
  %v9197 = vunpack.c.l.b16 %v9113
  %v9198 = vunpack.c.h.b16 %v9113
  %v9199 = vunpack.c.l.b16 %v9114
  %v9200 = vunpack.c.h.b16 %v9114
  %v9201 = vunpack.c.l.b16 %v9115
  %v9202 = vunpack.c.h.b16 %v9115
  %v9203 = vunpack.c.l.b16 %v9116
  %v9204 = vunpack.c.h.b16 %v9116
  %v9205 = vunpack.c.l.b16 %v9117
  %v9206 = vunpack.c.h.b16 %v9117
  %v9207 = vunpack.c.l.b16 %v9118
  %v9208 = vunpack.c.h.b16 %v9118
  %v9209 = vunpack.c.l.b16 %v9119
  %v9210 = vunpack.c.h.b16 %v9119
  %v9211 = vunpack.c.l.b16 %v9120
  %v9212 = vunpack.c.h.b16 %v9120
  %v9213 = vunpack.c.l.b16 %v9121
  %v9214 = vunpack.c.h.b16 %v9121
  %v9215 = vunpack.c.l.b16 %v9122
  %v9216 = vunpack.c.h.b16 %v9122
  %v9217 = vunpack.c.l.b16 %v9123
  %v9218 = vunpack.c.h.b16 %v9123
  %v9219 = vunpack.c.l.b16 %v9124
  %v9220 = vunpack.c.h.b16 %v9124
  %v9221 = vpack.c.b16 %v9161, %v9157
  %v9222 = vpack.c.b16 %v9162, %v9158
  %v9223 = vpack.c.b16 %v9163, %v9159
  %v9224 = vpack.c.b16 %v9164, %v9160
  %v9225 = vpack.c.b16 %v9169, %v9165
  %v9226 = vpack.c.b16 %v9170, %v9166
  %v9227 = vpack.c.b16 %v9171, %v9167
  %v9228 = vpack.c.b16 %v9172, %v9168
  %v9229 = vpack.c.b16 %v9177, %v9173
  %v9230 = vpack.c.b16 %v9178, %v9174
  %v9231 = vpack.c.b16 %v9179, %v9175
  %v9232 = vpack.c.b16 %v9180, %v9176
  %v9233 = vpack.c.b16 %v9185, %v9181
  %v9234 = vpack.c.b16 %v9186, %v9182
  %v9235 = vpack.c.b16 %v9187, %v9183
  %v9236 = vpack.c.b16 %v9188, %v9184
  %v9237 = vpack.c.b16 %v9193, %v9189
  %v9238 = vpack.c.b16 %v9194, %v9190
  %v9239 = vpack.c.b16 %v9195, %v9191
  %v9240 = vpack.c.b16 %v9196, %v9192
  %v9241 = vpack.c.b16 %v9201, %v9197
  %v9242 = vpack.c.b16 %v9202, %v9198
  %v9243 = vpack.c.b16 %v9203, %v9199
  %v9244 = vpack.c.b16 %v9204, %v9200
  %v9245 = vpack.c.b16 %v9209, %v9205
  %v9246 = vpack.c.b16 %v9210, %v9206
  %v9247 = vpack.c.b16 %v9211, %v9207
  %v9248 = vpack.c.b16 %v9212, %v9208
  %v9249 = vpack.c.b16 %v9217, %v9213
  %v9250 = vpack.c.b16 %v9218, %v9214
  %v9251 = vpack.c.b16 %v9219, %v9215
  %v9252 = vpack.c.b16 %v9220, %v9216
  %9285 = vmatprep.subr.bf16.mxu0 0
  %9286 = vmatpush1.bf16.msra.mxu0 %v865
  %9287 = vmatprep.subr.bf16.mxu0 0
  %9288 = vmatpush1.bf16.msra.mxu0 %v864
  %9289 = vmatprep.subr.bf16.mxu0 0
  %9290 = vmatpush1.bf16.msra.mxu0 %v863
  %9291 = vmatprep.subr.bf16.mxu0 0
  %9292 = vmatpush1.bf16.msra.mxu0 %v862
  %9293 = vmatprep.subr.bf16.mxu0 0
  %9294 = vmatpush1.bf16.msra.mxu0 %v861
  %9295 = vmatprep.subr.bf16.mxu0 0
  %9296 = vmatpush1.bf16.msra.mxu0 %v860
  %9297 = vmatprep.subr.bf16.mxu0 0
  %9298 = vmatpush1.bf16.msra.mxu0 %v859
  %9299 = vmatprep.subr.bf16.mxu0 0
  %9300 = vmatpush1.bf16.msra.mxu0 %v858
  %9301 = vmatprep.subr.bf16.mxu0 0
  %9302 = vmatpush2.bf16.msra.mxu0 %v873
  %9303 = vmatprep.subr.bf16.mxu0 0
  %9304 = vmatpush2.bf16.msra.mxu0 %v872
  %9305 = vmatprep.subr.bf16.mxu0 0
  %9306 = vmatpush2.bf16.msra.mxu0 %v871
  %9307 = vmatprep.subr.bf16.mxu0 0
  %9308 = vmatpush2.bf16.msra.mxu0 %v870
  %9309 = vmatprep.subr.bf16.mxu0 0
  %9310 = vmatpush2.bf16.msra.mxu0 %v869
  %9311 = vmatprep.subr.bf16.mxu0 0
  %9312 = vmatpush2.bf16.msra.mxu0 %v868
  %9313 = vmatprep.subr.bf16.mxu0 0
  %9314 = vmatpush2.bf16.msra.mxu0 %v867
  %9315 = vmatprep.subr.bf16.mxu0 0
  %9316 = vmatpush2.bf16.msra.mxu0 %v866
  %9317 = vmatprep.mubr.bf16.mxu0 %v9222
  %9318 = vmatmul.mubr.bf16.gmra.mxu0 %v9221
  %v9319 = vpop.f32.mrf.mxu0
  %v9320 = vadd.f32 0.0, %v9319
  %v9321 = vpop.f32.mrf.mxu0
  %v9322 = vpop.f32.mrf.mxu0
  %v9323 = vadd.f32 0.0, %v9322
  %v9324 = vpop.f32.mrf.mxu0
  %9325 = vmatprep.mubr.bf16.mxu0 %v9226
  %9326 = vmatmul.mubr.bf16.gmra.mxu0 %v9225
  %v9327 = vpop.f32.mrf.mxu0
  %v9328 = vadd.f32 0.0, %v9327
  %v9329 = vpop.f32.mrf.mxu0
  %v9330 = vpop.f32.mrf.mxu0
  %v9331 = vadd.f32 0.0, %v9330
  %v9332 = vpop.f32.mrf.mxu0
  %9333 = vmatprep.mubr.bf16.mxu0 %v9230
  %9334 = vmatmul.mubr.bf16.gmra.mxu0 %v9229
  %v9335 = vpop.f32.mrf.mxu0
  %v9336 = vadd.f32 0.0, %v9335
  %v9337 = vpop.f32.mrf.mxu0
  %v9338 = vpop.f32.mrf.mxu0
  %v9339 = vadd.f32 0.0, %v9338
  %v9340 = vpop.f32.mrf.mxu0
  %9341 = vmatprep.mubr.bf16.mxu0 %v9234
  %9342 = vmatmul.mubr.bf16.gmra.mxu0 %v9233
  %v9343 = vpop.f32.mrf.mxu0
  %v9344 = vadd.f32 0.0, %v9343
  %v9345 = vpop.f32.mrf.mxu0
  %v9346 = vpop.f32.mrf.mxu0
  %v9347 = vadd.f32 0.0, %v9346
  %v9348 = vpop.f32.mrf.mxu0
  %9349 = vmatprep.mubr.bf16.mxu0 %v9238
  %9350 = vmatmul.mubr.bf16.gmra.mxu0 %v9237
  %v9351 = vpop.f32.mrf.mxu0
  %v9352 = vadd.f32 0.0, %v9351
  %v9353 = vpop.f32.mrf.mxu0
  %v9354 = vpop.f32.mrf.mxu0
  %v9355 = vadd.f32 0.0, %v9354
  %v9356 = vpop.f32.mrf.mxu0
  %9357 = vmatprep.mubr.bf16.mxu0 %v9242
  %9358 = vmatmul.mubr.bf16.gmra.mxu0 %v9241
  %v9359 = vpop.f32.mrf.mxu0
  %v9360 = vadd.f32 0.0, %v9359
  %v9361 = vpop.f32.mrf.mxu0
  %v9362 = vpop.f32.mrf.mxu0
  %v9363 = vadd.f32 0.0, %v9362
  %v9364 = vpop.f32.mrf.mxu0
  %9365 = vmatprep.mubr.bf16.mxu0 %v9246
  %9366 = vmatmul.mubr.bf16.gmra.mxu0 %v9245
  %v9367 = vpop.f32.mrf.mxu0
  %v9368 = vadd.f32 0.0, %v9367
  %v9369 = vpop.f32.mrf.mxu0
  %v9370 = vpop.f32.mrf.mxu0
  %v9371 = vadd.f32 0.0, %v9370
  %v9372 = vpop.f32.mrf.mxu0
  %9373 = vmatprep.mubr.bf16.mxu0 %v9250
  %9374 = vmatmul.mubr.bf16.gmra.mxu0 %v9249
  %v9375 = vpop.f32.mrf.mxu0
  %v9376 = vadd.f32 0.0, %v9375
  %v9377 = vpop.f32.mrf.mxu0
  %v9378 = vpop.f32.mrf.mxu0
  %v9379 = vadd.f32 0.0, %v9378
  %v9380 = vpop.f32.mrf.mxu0
  %9381 = vdwg.mxu0
  %9382 = vmatprep.subr.bf16.mxu0 0
  %9383 = vmatpush1.bf16.msra.mxu0 %v881
  %9384 = vmatprep.subr.bf16.mxu0 0
  %9385 = vmatpush1.bf16.msra.mxu0 %v880
  %9386 = vmatprep.subr.bf16.mxu0 0
  %9387 = vmatpush1.bf16.msra.mxu0 %v879
  %9388 = vmatprep.subr.bf16.mxu0 0
  %9389 = vmatpush1.bf16.msra.mxu0 %v878
  %9390 = vmatprep.subr.bf16.mxu0 0
  %9391 = vmatpush1.bf16.msra.mxu0 %v877
  %9392 = vmatprep.subr.bf16.mxu0 0
  %9393 = vmatpush1.bf16.msra.mxu0 %v876
  %9394 = vmatprep.subr.bf16.mxu0 0
  %9395 = vmatpush1.bf16.msra.mxu0 %v875
  %9396 = vmatprep.subr.bf16.mxu0 0
  %9397 = vmatpush1.bf16.msra.mxu0 %v874
  %9398 = vmatprep.subr.bf16.mxu0 0
  %9399 = vmatpush2.bf16.msra.mxu0 %v889
  %9400 = vmatprep.subr.bf16.mxu0 0
  %9401 = vmatpush2.bf16.msra.mxu0 %v888
  %9402 = vmatprep.subr.bf16.mxu0 0
  %9403 = vmatpush2.bf16.msra.mxu0 %v887
  %9404 = vmatprep.subr.bf16.mxu0 0
  %9405 = vmatpush2.bf16.msra.mxu0 %v886
  %9406 = vmatprep.subr.bf16.mxu0 0
  %9407 = vmatpush2.bf16.msra.mxu0 %v885
  %9408 = vmatprep.subr.bf16.mxu0 0
  %9409 = vmatpush2.bf16.msra.mxu0 %v884
  %9410 = vmatprep.subr.bf16.mxu0 0
  %9411 = vmatpush2.bf16.msra.mxu0 %v883
  %9412 = vmatprep.subr.bf16.mxu0 0
  %9413 = vmatpush2.bf16.msra.mxu0 %v882
  %9414 = vmatprep.mubr.bf16.mxu0 %v9224
  %9415 = vmatmul.mubr.bf16.gmra.mxu0 %v9223
  %v9416 = vpop.f32.mrf.mxu0
  %v9417 = vadd.f32 %v9320, %v9416
  %v9418 = vpop.f32.mrf.mxu0
  %v9419 = vpop.f32.mrf.mxu0
  %v9420 = vadd.f32 %v9323, %v9419
  %v9421 = vpop.f32.mrf.mxu0
  %9422 = vmatprep.mubr.bf16.mxu0 %v9228
  %9423 = vmatmul.mubr.bf16.gmra.mxu0 %v9227
  %v9424 = vpop.f32.mrf.mxu0
  %v9425 = vadd.f32 %v9328, %v9424
  %v9426 = vpop.f32.mrf.mxu0
  %v9427 = vpop.f32.mrf.mxu0
  %v9428 = vadd.f32 %v9331, %v9427
  %v9429 = vpop.f32.mrf.mxu0
  %9430 = vmatprep.mubr.bf16.mxu0 %v9232
  %9431 = vmatmul.mubr.bf16.gmra.mxu0 %v9231
  %v9432 = vpop.f32.mrf.mxu0
  %v9433 = vadd.f32 %v9336, %v9432
  %v9434 = vpop.f32.mrf.mxu0
  %v9435 = vpop.f32.mrf.mxu0
  %v9436 = vadd.f32 %v9339, %v9435
  %v9437 = vpop.f32.mrf.mxu0
  %9438 = vmatprep.mubr.bf16.mxu0 %v9236
  %9439 = vmatmul.mubr.bf16.gmra.mxu0 %v9235
  %v9440 = vpop.f32.mrf.mxu0
  %v9441 = vadd.f32 %v9344, %v9440
  %v9442 = vpop.f32.mrf.mxu0
  %v9443 = vpop.f32.mrf.mxu0
  %v9444 = vadd.f32 %v9347, %v9443
  %v9445 = vpop.f32.mrf.mxu0
  %9446 = vmatprep.mubr.bf16.mxu0 %v9240
  %9447 = vmatmul.mubr.bf16.gmra.mxu0 %v9239
  %v9448 = vpop.f32.mrf.mxu0
  %v9449 = vadd.f32 %v9352, %v9448
  %v9450 = vpop.f32.mrf.mxu0
  %v9451 = vpop.f32.mrf.mxu0
  %v9452 = vadd.f32 %v9355, %v9451
  %v9453 = vpop.f32.mrf.mxu0
  %9454 = vmatprep.mubr.bf16.mxu0 %v9244
  %9455 = vmatmul.mubr.bf16.gmra.mxu0 %v9243
  %v9456 = vpop.f32.mrf.mxu0
  %v9457 = vadd.f32 %v9360, %v9456
  %v9458 = vpop.f32.mrf.mxu0
  %v9459 = vpop.f32.mrf.mxu0
  %v9460 = vadd.f32 %v9363, %v9459
  %v9461 = vpop.f32.mrf.mxu0
  %9462 = vmatprep.mubr.bf16.mxu0 %v9248
  %9463 = vmatmul.mubr.bf16.gmra.mxu0 %v9247
  %v9464 = vpop.f32.mrf.mxu0
  %v9465 = vadd.f32 %v9368, %v9464
  %v9466 = vpop.f32.mrf.mxu0
  %v9467 = vpop.f32.mrf.mxu0
  %v9468 = vadd.f32 %v9371, %v9467
  %v9469 = vpop.f32.mrf.mxu0
  %9470 = vmatprep.mubr.bf16.mxu0 %v9252
  %9471 = vmatmul.mubr.bf16.gmra.mxu0 %v9251
  %v9472 = vpop.f32.mrf.mxu0
  %v9473 = vadd.f32 %v9376, %v9472
  %v9474 = vpop.f32.mrf.mxu0
  %v9475 = vpop.f32.mrf.mxu0
  %v9476 = vadd.f32 %v9379, %v9475
  %v9477 = vpop.f32.mrf.mxu0
  %9478 = vdwg.mxu0
  %v9479 = vpack.c.bf16 %v9420, %v9417
  %v9480 = vpack.c.bf16 %v9428, %v9425
  %v9481 = vpack.c.bf16 %v9436, %v9433
  %v9482 = vpack.c.bf16 %v9444, %v9441
  %v9483 = vpack.c.bf16 %v9452, %v9449
  %v9484 = vpack.c.bf16 %v9460, %v9457
  %v9485 = vpack.c.bf16 %v9468, %v9465
  %v9486 = vpack.c.bf16 %v9476, %v9473
  %s9487 = scalar_lea.vmem %s4, 240
  %v9488 = vld [vmem:[%s9487] sm:$0xf]
  %v9489 = vld [vmem:[%s9487 + $0x4] sm:$0xf]
  %v9490 = vld [vmem:[%s9487 + $0x8] sm:$0xf]
  %v9491 = vld [vmem:[%s9487 + $0xc] sm:$0xf]
  %v9496 = vunpack.c.l.b16 %v9488
  %v9497 = vunpack.c.l.b16 %v9489
  %v9498 = vunpack.c.l.b16 %v9490
  %v9499 = vunpack.c.l.b16 %v9491
  %v9500 = vpack.c.b16 %v9497, %v9496
  %v9501 = vpack.c.b16 %v9499, %v9498
  %v9505 = vsel %vm1700, %v9479, 0
  %v9508 = vsel %vm1700, %v9480, 0
  %v9511 = vsel %vm1700, %v9481, 0
  %v9514 = vsel %vm1700, %v9482, 0
  %v9517 = vsel %vm1700, %v9483, 0
  %v9520 = vsel %vm1700, %v9484, 0
  %v9523 = vsel %vm1700, %v9485, 0
  %v9526 = vsel %vm1700, %v9486, 0
  %9528 = vmatprep.subr.bf16.mxu0 0
  %9529 = vmatpush1.bf16.msra.mxu0 0
  %9530 = vmatprep.subr.bf16.mxu0 0
  %9531 = vmatpush1.bf16.msra.mxu0 0
  %9532 = vmatprep.subr.bf16.mxu0 0
  %9533 = vmatpush1.bf16.msra.mxu0 0
  %9534 = vmatprep.subr.bf16.mxu0 0
  %9535 = vmatpush1.bf16.msra.mxu0 0
  %9536 = vmatprep.subr.bf16.mxu0 0
  %9537 = vmatpush1.bf16.msra.mxu0 0
  %9538 = vmatprep.subr.bf16.mxu0 0
  %9539 = vmatpush1.bf16.msra.mxu0 0
  %9540 = vmatprep.subr.bf16.mxu0 0
  %9541 = vmatpush1.bf16.msra.mxu0 %v9501
  %9542 = vmatprep.subr.bf16.mxu0 0
  %9543 = vmatpush1.bf16.msra.mxu0 %v9500
  %9544 = vmatprep.subr.bf16.mxu0 0
  %9545 = vmatpush2.bf16.msra.mxu0 0
  %9546 = vmatprep.subr.bf16.mxu0 0
  %9547 = vmatpush2.bf16.msra.mxu0 0
  %9548 = vmatprep.subr.bf16.mxu0 0
  %9549 = vmatpush2.bf16.msra.mxu0 0
  %9550 = vmatprep.subr.bf16.mxu0 0
  %9551 = vmatpush2.bf16.msra.mxu0 0
  %9552 = vmatprep.subr.bf16.mxu0 0
  %9553 = vmatpush2.bf16.msra.mxu0 0
  %9554 = vmatprep.subr.bf16.mxu0 0
  %9555 = vmatpush2.bf16.msra.mxu0 0
  %9556 = vmatprep.subr.bf16.mxu0 0
  %9557 = vmatpush2.bf16.msra.mxu0 0
  %9558 = vmatprep.subr.bf16.mxu0 0
  %9559 = vmatpush2.bf16.msra.mxu0 0
  %9560 = vmatprep.mubr.bf16.mxu0 0
  %9561 = vmatmul.mubr.bf16.gmra.mxu0 %v9505
  %v9562 = vpop.f32.mrf.mxu0
  %v9563 = vadd.f32 0.0, %v9562
  %v9564 = vpop.f32.mrf.mxu0
  %v9565 = vpop.f32.mrf.mxu0
  %v9566 = vadd.f32 0.0, %v9565
  %v9567 = vpop.f32.mrf.mxu0
  %9568 = vmatprep.mubr.bf16.mxu0 0
  %9569 = vmatmul.mubr.bf16.gmra.mxu0 %v9508
  %v9570 = vpop.f32.mrf.mxu0
  %v9571 = vadd.f32 0.0, %v9570
  %v9572 = vpop.f32.mrf.mxu0
  %v9573 = vpop.f32.mrf.mxu0
  %v9574 = vadd.f32 0.0, %v9573
  %v9575 = vpop.f32.mrf.mxu0
  %9576 = vmatprep.mubr.bf16.mxu0 0
  %9577 = vmatmul.mubr.bf16.gmra.mxu0 %v9511
  %v9578 = vpop.f32.mrf.mxu0
  %v9579 = vadd.f32 0.0, %v9578
  %v9580 = vpop.f32.mrf.mxu0
  %v9581 = vpop.f32.mrf.mxu0
  %v9582 = vadd.f32 0.0, %v9581
  %v9583 = vpop.f32.mrf.mxu0
  %9584 = vmatprep.mubr.bf16.mxu0 0
  %9585 = vmatmul.mubr.bf16.gmra.mxu0 %v9514
  %v9586 = vpop.f32.mrf.mxu0
  %v9587 = vadd.f32 0.0, %v9586
  %v9588 = vpop.f32.mrf.mxu0
  %v9589 = vpop.f32.mrf.mxu0
  %v9590 = vadd.f32 0.0, %v9589
  %v9591 = vpop.f32.mrf.mxu0
  %9592 = vmatprep.mubr.bf16.mxu0 0
  %9593 = vmatmul.mubr.bf16.gmra.mxu0 %v9517
  %v9594 = vpop.f32.mrf.mxu0
  %v9595 = vadd.f32 0.0, %v9594
  %v9596 = vpop.f32.mrf.mxu0
  %v9597 = vpop.f32.mrf.mxu0
  %v9598 = vadd.f32 0.0, %v9597
  %v9599 = vpop.f32.mrf.mxu0
  %9600 = vmatprep.mubr.bf16.mxu0 0
  %9601 = vmatmul.mubr.bf16.gmra.mxu0 %v9520
  %v9602 = vpop.f32.mrf.mxu0
  %v9603 = vadd.f32 0.0, %v9602
  %v9604 = vpop.f32.mrf.mxu0
  %v9605 = vpop.f32.mrf.mxu0
  %v9606 = vadd.f32 0.0, %v9605
  %v9607 = vpop.f32.mrf.mxu0
  %9608 = vmatprep.mubr.bf16.mxu0 0
  %9609 = vmatmul.mubr.bf16.gmra.mxu0 %v9523
  %v9610 = vpop.f32.mrf.mxu0
  %v9611 = vadd.f32 0.0, %v9610
  %v9612 = vpop.f32.mrf.mxu0
  %v9613 = vpop.f32.mrf.mxu0
  %v9614 = vadd.f32 0.0, %v9613
  %v9615 = vpop.f32.mrf.mxu0
  %9616 = vmatprep.mubr.bf16.mxu0 0
  %9617 = vmatmul.mubr.bf16.gmra.mxu0 %v9526
  %v9618 = vpop.f32.mrf.mxu0
  %v9619 = vadd.f32 0.0, %v9618
  %v9620 = vpop.f32.mrf.mxu0
  %v9621 = vpop.f32.mrf.mxu0
  %v9622 = vadd.f32 0.0, %v9621
  %v9623 = vpop.f32.mrf.mxu0
  %9624 = vdwg.mxu0
  %v9625 = vadd.f32 %v9076, %v9563
  %v9626 = vadd.f32 %v9077, %v9566
  %v9627 = vadd.f32 %v9078, %v9571
  %v9628 = vadd.f32 %v9079, %v9574
  %v9629 = vadd.f32 %v9080, %v9579
  %v9630 = vadd.f32 %v9081, %v9582
  %v9631 = vadd.f32 %v9082, %v9587
  %v9632 = vadd.f32 %v9083, %v9590
  %v9633 = vadd.f32 %v9084, %v9595
  %v9634 = vadd.f32 %v9085, %v9598
  %v9635 = vadd.f32 %v9086, %v9603
  %v9636 = vadd.f32 %v9087, %v9606
  %v9637 = vadd.f32 %v9088, %v9611
  %v9638 = vadd.f32 %v9089, %v9614
  %v9639 = vadd.f32 %v9090, %v9619
  %v9640 = vadd.f32 %v9091, %v9622
  %vm9641 = vcmask 523264
  %v9642 = vsel %vm9641, %v9625, 0.0
  %v9643 = vsel %vm9641, %v9626, 0.0
  %v9644 = vadd.f32 %v9642, %v9643
  %v9645 = vsel %vm9641, %v9627, 0.0
  %v9646 = vadd.f32 %v9644, %v9645
  %v9647 = vsel %vm9641, %v9628, 0.0
  %v9648 = vadd.f32 %v9646, %v9647
  %v9649 = vsel %vm9641, %v9629, 0.0
  %v9650 = vadd.f32 %v9648, %v9649
  %v9651 = vsel %vm9641, %v9630, 0.0
  %v9652 = vadd.f32 %v9650, %v9651
  %v9653 = vsel %vm9641, %v9631, 0.0
  %v9654 = vadd.f32 %v9652, %v9653
  %v9655 = vsel %vm9641, %v9632, 0.0
  %v9656 = vadd.f32 %v9654, %v9655
  %v9657 = vsel %vm9641, %v9633, 0.0
  %v9658 = vadd.f32 %v9656, %v9657
  %v9659 = vsel %vm9641, %v9634, 0.0
  %v9660 = vadd.f32 %v9658, %v9659
  %v9661 = vsel %vm9641, %v9635, 0.0
  %v9662 = vadd.f32 %v9660, %v9661
  %v9663 = vsel %vm9641, %v9636, 0.0
  %v9664 = vadd.f32 %v9662, %v9663
  %v9665 = vsel %vm9641, %v9637, 0.0
  %v9666 = vadd.f32 %v9664, %v9665
  %v9667 = vsel %vm9641, %v9638, 0.0
  %v9668 = vadd.f32 %v9666, %v9667
  %v9669 = vsel %vm9641, %v9639, 0.0
  %v9670 = vadd.f32 %v9668, %v9669
  %v9671 = vsel %vm9641, %v9640, 0.0
  %v9672 = vadd.f32 %v9670, %v9671
  %v9673 = vrot.slane %v9672, 4
  %v9674 = vadd.f32 %v9672, %v9673
  %v9675 = vrot.slane %v9674, 2
  %v9676 = vadd.f32 %v9674, %v9675
  %v9677 = vrot.slane %v9676, 1
  %v9678 = vadd.f32 %v9676, %v9677
  %v9679 = vmul.f32 %v9678, 0.0078125
  %v9680 = vmul.f32 %v9625, %v9625
  %v9681 = vmul.f32 %v9626, %v9626
  %v9682 = vmul.f32 %v9627, %v9627
  %v9683 = vmul.f32 %v9628, %v9628
  %v9684 = vmul.f32 %v9629, %v9629
  %v9685 = vmul.f32 %v9630, %v9630
  %v9686 = vmul.f32 %v9631, %v9631
  %v9687 = vmul.f32 %v9632, %v9632
  %v9688 = vmul.f32 %v9633, %v9633
  %v9689 = vmul.f32 %v9634, %v9634
  %v9690 = vmul.f32 %v9635, %v9635
  %v9691 = vmul.f32 %v9636, %v9636
  %v9692 = vmul.f32 %v9637, %v9637
  %v9693 = vmul.f32 %v9638, %v9638
  %v9694 = vmul.f32 %v9639, %v9639
  %v9695 = vmul.f32 %v9640, %v9640
  %v9696 = vsel %vm9641, %v9680, 0.0
  %v9697 = vsel %vm9641, %v9681, 0.0
  %v9698 = vadd.f32 %v9696, %v9697
  %v9699 = vsel %vm9641, %v9682, 0.0
  %v9700 = vadd.f32 %v9698, %v9699
  %v9701 = vsel %vm9641, %v9683, 0.0
  %v9702 = vadd.f32 %v9700, %v9701
  %v9703 = vsel %vm9641, %v9684, 0.0
  %v9704 = vadd.f32 %v9702, %v9703
  %v9705 = vsel %vm9641, %v9685, 0.0
  %v9706 = vadd.f32 %v9704, %v9705
  %v9707 = vsel %vm9641, %v9686, 0.0
  %v9708 = vadd.f32 %v9706, %v9707
  %v9709 = vsel %vm9641, %v9687, 0.0
  %v9710 = vadd.f32 %v9708, %v9709
  %v9711 = vsel %vm9641, %v9688, 0.0
  %v9712 = vadd.f32 %v9710, %v9711
  %v9713 = vsel %vm9641, %v9689, 0.0
  %v9714 = vadd.f32 %v9712, %v9713
  %v9715 = vsel %vm9641, %v9690, 0.0
  %v9716 = vadd.f32 %v9714, %v9715
  %v9717 = vsel %vm9641, %v9691, 0.0
  %v9718 = vadd.f32 %v9716, %v9717
  %v9719 = vsel %vm9641, %v9692, 0.0
  %v9720 = vadd.f32 %v9718, %v9719
  %v9721 = vsel %vm9641, %v9693, 0.0
  %v9722 = vadd.f32 %v9720, %v9721
  %v9723 = vsel %vm9641, %v9694, 0.0
  %v9724 = vadd.f32 %v9722, %v9723
  %v9725 = vsel %vm9641, %v9695, 0.0
  %v9726 = vadd.f32 %v9724, %v9725
  %v9727 = vrot.slane %v9726, 4
  %v9728 = vadd.f32 %v9726, %v9727
  %v9729 = vrot.slane %v9728, 2
  %v9730 = vadd.f32 %v9728, %v9729
  %v9731 = vrot.slane %v9730, 1
  %v9732 = vadd.f32 %v9730, %v9731
  %v9733 = vmul.f32 %v9732, 0.0078125
  %v9734 = vmul.f32 %v9679, %v9679
  %v9735 = vsub.f32 %v9733, %v9734
  %v9736 = vmax.f32 %v9735, 0.0
  %v9737 = vsub.f32 %v9625, %v9679
  %v9738 = vsub.f32 %v9626, %v9679
  %v9739 = vsub.f32 %v9627, %v9679
  %v9740 = vsub.f32 %v9628, %v9679
  %v9741 = vsub.f32 %v9629, %v9679
  %v9742 = vsub.f32 %v9630, %v9679
  %v9743 = vsub.f32 %v9631, %v9679
  %v9744 = vsub.f32 %v9632, %v9679
  %v9745 = vsub.f32 %v9633, %v9679
  %v9746 = vsub.f32 %v9634, %v9679
  %v9747 = vsub.f32 %v9635, %v9679
  %v9748 = vsub.f32 %v9636, %v9679
  %v9749 = vsub.f32 %v9637, %v9679
  %v9750 = vsub.f32 %v9638, %v9679
  %v9751 = vsub.f32 %v9639, %v9679
  %v9752 = vsub.f32 %v9640, %v9679
  %v9753 = vadd.f32 %v9736, 1e-05
  %v9754 = vrsqrt.pop %v9753
  %v9755 = vld [vmem:[%s5] sm:$0x1]
  %v9756 = vmul.f32 %v9754, %v9755
  %v9757 = vlaneseq
  %v9758 = vshrl.u32 %v9757, 7
  %v9759 = vsub.s32 0, %v9758
  %v9760 = vrot.slane %v9756, %v9759
  %v9761 = vmul.f32 %v9737, %v9760
  %v9762 = vmul.f32 %v9738, %v9760
  %v9763 = vmul.f32 %v9739, %v9760
  %v9764 = vmul.f32 %v9740, %v9760
  %v9765 = vmul.f32 %v9741, %v9760
  %v9766 = vmul.f32 %v9742, %v9760
  %v9767 = vmul.f32 %v9743, %v9760
  %v9768 = vmul.f32 %v9744, %v9760
  %v9769 = vmul.f32 %v9745, %v9760
  %v9770 = vmul.f32 %v9746, %v9760
  %v9771 = vmul.f32 %v9747, %v9760
  %v9772 = vmul.f32 %v9748, %v9760
  %v9773 = vmul.f32 %v9749, %v9760
  %v9774 = vmul.f32 %v9750, %v9760
  %v9775 = vmul.f32 %v9751, %v9760
  %v9776 = vmul.f32 %v9752, %v9760
  %v9777 = vld [vmem:[%s6] sm:$0x1]
  %v9779 = vlaneseq
  %v9780 = vshrl.u32 %v9779, 7
  %v9781 = vsub.s32 0, %v9780
  %v9782 = vrot.slane %v9777, %v9781
  %v9784 = vadd.f32 %v9761, %v9782
  %v9785 = vadd.f32 %v9762, %v9782
  %v9786 = vadd.f32 %v9763, %v9782
  %v9787 = vadd.f32 %v9764, %v9782
  %v9788 = vadd.f32 %v9765, %v9782
  %v9789 = vadd.f32 %v9766, %v9782
  %v9790 = vadd.f32 %v9767, %v9782
  %v9791 = vadd.f32 %v9768, %v9782
  %v9792 = vadd.f32 %v9769, %v9782
  %v9793 = vadd.f32 %v9770, %v9782
  %v9794 = vadd.f32 %v9771, %v9782
  %v9795 = vadd.f32 %v9772, %v9782
  %v9796 = vadd.f32 %v9773, %v9782
  %v9797 = vadd.f32 %v9774, %v9782
  %v9798 = vadd.f32 %v9775, %v9782
  %v9799 = vadd.f32 %v9776, %v9782
  %vm9800 = vcmp.gt.f32.partialorder %v9784, 0.0
  %vm9801 = vcmp.gt.f32.partialorder %v9785, 0.0
  %vm9802 = vcmp.gt.f32.partialorder %v9786, 0.0
  %vm9803 = vcmp.gt.f32.partialorder %v9787, 0.0
  %vm9804 = vcmp.gt.f32.partialorder %v9788, 0.0
  %vm9805 = vcmp.gt.f32.partialorder %v9789, 0.0
  %vm9806 = vcmp.gt.f32.partialorder %v9790, 0.0
  %vm9807 = vcmp.gt.f32.partialorder %v9791, 0.0
  %vm9808 = vcmp.gt.f32.partialorder %v9792, 0.0
  %vm9809 = vcmp.gt.f32.partialorder %v9793, 0.0
  %vm9810 = vcmp.gt.f32.partialorder %v9794, 0.0
  %vm9811 = vcmp.gt.f32.partialorder %v9795, 0.0
  %vm9812 = vcmp.gt.f32.partialorder %v9796, 0.0
  %vm9813 = vcmp.gt.f32.partialorder %v9797, 0.0
  %vm9814 = vcmp.gt.f32.partialorder %v9798, 0.0
  %vm9815 = vcmp.gt.f32.partialorder %v9799, 0.0
  %v9816 = vmul.f32 %v9784, 0.2
  %v9817 = vmul.f32 %v9785, 0.2
  %v9818 = vmul.f32 %v9786, 0.2
  %v9819 = vmul.f32 %v9787, 0.2
  %v9820 = vmul.f32 %v9788, 0.2
  %v9821 = vmul.f32 %v9789, 0.2
  %v9822 = vmul.f32 %v9790, 0.2
  %v9823 = vmul.f32 %v9791, 0.2
  %v9824 = vmul.f32 %v9792, 0.2
  %v9825 = vmul.f32 %v9793, 0.2
  %v9826 = vmul.f32 %v9794, 0.2
  %v9827 = vmul.f32 %v9795, 0.2
  %v9828 = vmul.f32 %v9796, 0.2
  %v9829 = vmul.f32 %v9797, 0.2
  %v9830 = vmul.f32 %v9798, 0.2
  %v9831 = vmul.f32 %v9799, 0.2
  %v9832 = vsel %vm9800, %v9784, %v9816
  %v9833 = vsel %vm9801, %v9785, %v9817
  %v9834 = vsel %vm9802, %v9786, %v9818
  %v9835 = vsel %vm9803, %v9787, %v9819
  %v9836 = vsel %vm9804, %v9788, %v9820
  %v9837 = vsel %vm9805, %v9789, %v9821
  %v9838 = vsel %vm9806, %v9790, %v9822
  %v9839 = vsel %vm9807, %v9791, %v9823
  %v9840 = vsel %vm9808, %v9792, %v9824
  %v9841 = vsel %vm9809, %v9793, %v9825
  %v9842 = vsel %vm9810, %v9794, %v9826
  %v9843 = vsel %vm9811, %v9795, %v9827
  %v9844 = vsel %vm9812, %v9796, %v9828
  %v9845 = vsel %vm9813, %v9797, %v9829
  %v9846 = vsel %vm9814, %v9798, %v9830
  %v9847 = vsel %vm9815, %v9799, %v9831
  %v9848 = vpack.c.bf16 %v9833, %v9832
  %v9849 = vpack.c.bf16 %v9835, %v9834
  %v9850 = vpack.c.bf16 %v9837, %v9836
  %v9851 = vpack.c.bf16 %v9839, %v9838
  %v9852 = vpack.c.bf16 %v9841, %v9840
  %v9853 = vpack.c.bf16 %v9843, %v9842
  %v9854 = vpack.c.bf16 %v9845, %v9844
  %v9855 = vpack.c.bf16 %v9847, %v9846
  %v9856 = vld [vmem:[%s7] sm:$0xf]
  %v9857 = vld [vmem:[%s7 + $0x4] sm:$0xf]
  %v9858 = vld [vmem:[%s7 + $0x8] sm:$0xf]
  %v9859 = vld [vmem:[%s7 + $0xc] sm:$0xf]
  %v9864 = vunpack.c.l.b16 %v9856
  %v9865 = vunpack.c.l.b16 %v9857
  %v9866 = vunpack.c.l.b16 %v9858
  %v9867 = vunpack.c.l.b16 %v9859
  %v9868 = vpack.c.b16 %v9865, %v9864
  %v9869 = vpack.c.b16 %v9867, %v9866
  %9872 = vmatprep.subr.bf16.mxu0 0
  %9873 = vmatpush1.bf16.msra.mxu0 %v9855
  %9874 = vmatprep.subr.bf16.mxu0 0
  %9875 = vmatpush1.bf16.msra.mxu0 %v9854
  %9876 = vmatprep.subr.bf16.mxu0 0
  %9877 = vmatpush1.bf16.msra.mxu0 %v9853
  %9878 = vmatprep.subr.bf16.mxu0 0
  %9879 = vmatpush1.bf16.msra.mxu0 %v9852
  %9880 = vmatprep.subr.bf16.mxu0 0
  %9881 = vmatpush1.bf16.msra.mxu0 %v9851
  %9882 = vmatprep.subr.bf16.mxu0 0
  %9883 = vmatpush1.bf16.msra.mxu0 %v9850
  %9884 = vmatprep.subr.bf16.mxu0 0
  %9885 = vmatpush1.bf16.msra.mxu0 %v9849
  %9886 = vmatprep.subr.bf16.mxu0 0
  %9887 = vmatpush1.bf16.msra.mxu0 %v9848
  %9888 = vmatprep.subr.bf16.mxu0 0
  %9889 = vmatpush2.bf16.msra.mxu0 0
  %9890 = vmatprep.subr.bf16.mxu0 0
  %9891 = vmatpush2.bf16.msra.mxu0 0
  %9892 = vmatprep.subr.bf16.mxu0 0
  %9893 = vmatpush2.bf16.msra.mxu0 0
  %9894 = vmatprep.subr.bf16.mxu0 0
  %9895 = vmatpush2.bf16.msra.mxu0 0
  %9896 = vmatprep.subr.bf16.mxu0 0
  %9897 = vmatpush2.bf16.msra.mxu0 0
  %9898 = vmatprep.subr.bf16.mxu0 0
  %9899 = vmatpush2.bf16.msra.mxu0 0
  %9900 = vmatprep.subr.bf16.mxu0 0
  %9901 = vmatpush2.bf16.msra.mxu0 0
  %9902 = vmatprep.subr.bf16.mxu0 0
  %9903 = vmatpush2.bf16.msra.mxu0 0
  %9904 = vmatprep.mubr.bf16.mxu0 0
  %9905 = vmatmul.mubr.bf16.gmra.mxu0 %v9868
  %v9906 = vpop.f32.mrf.mxu0
  %v9907 = vadd.f32 0.0, %v9906
  %v9908 = vpop.f32.mrf.mxu0
  %v9909 = vpop.f32.mrf.mxu0
  %v9910 = vadd.f32 0.0, %v9909
  %v9911 = vpop.f32.mrf.mxu0
  %9912 = vmatprep.mubr.bf16.mxu0 0
  %9913 = vmatmul.mubr.bf16.gmra.mxu0 %v9869
  %v9914 = vpop.f32.mrf.mxu0
  %v9915 = vadd.f32 0.0, %v9914
  %v9916 = vpop.f32.mrf.mxu0
  %v9917 = vpop.f32.mrf.mxu0
  %v9918 = vadd.f32 0.0, %v9917
  %v9919 = vpop.f32.mrf.mxu0
  %9920 = vdwg.mxu0
  %v9921 = vpack.c.bf16 %v9910, %v9907
  %v9922 = vpack.c.bf16 %v9918, %v9915
  %v9923 = vld [vmem:[%s8] sm:$0xf]
  %v9924 = vld [vmem:[%s8 + $0x4] sm:$0xf]
  %v9925 = vld [vmem:[%s8 + $0x8] sm:$0xf]
  %v9926 = vld [vmem:[%s8 + $0xc] sm:$0xf]
  %v9927 = vld [vmem:[%s8 + $0x10] sm:$0xf]
  %v9928 = vld [vmem:[%s8 + $0x14] sm:$0xf]
  %v9929 = vld [vmem:[%s8 + $0x18] sm:$0xf]
  %v9930 = vld [vmem:[%s8 + $0x1c] sm:$0xf]
  %s9931 = scalar_lea.vmem %s7, 16
  %v9932 = vld [vmem:[%s9931] sm:$0xf]
  %v9933 = vld [vmem:[%s9931 + $0x4] sm:$0xf]
  %v9934 = vld [vmem:[%s9931 + $0x8] sm:$0xf]
  %v9935 = vld [vmem:[%s9931 + $0xc] sm:$0xf]
  %v9940 = vunpack.c.l.b16 %v9932
  %v9941 = vunpack.c.l.b16 %v9933
  %v9942 = vunpack.c.l.b16 %v9934
  %v9943 = vunpack.c.l.b16 %v9935
  %v9944 = vpack.c.b16 %v9941, %v9940
  %v9945 = vpack.c.b16 %v9943, %v9942
  %9948 = vmatprep.subr.bf16.mxu0 0
  %9949 = vmatpush1.bf16.msra.mxu0 %v9855
  %9950 = vmatprep.subr.bf16.mxu0 0
  %9951 = vmatpush1.bf16.msra.mxu0 %v9854
  %9952 = vmatprep.subr.bf16.mxu0 0
  %9953 = vmatpush1.bf16.msra.mxu0 %v9853
  %9954 = vmatprep.subr.bf16.mxu0 0
  %9955 = vmatpush1.bf16.msra.mxu0 %v9852
  %9956 = vmatprep.subr.bf16.mxu0 0
  %9957 = vmatpush1.bf16.msra.mxu0 %v9851
  %9958 = vmatprep.subr.bf16.mxu0 0
  %9959 = vmatpush1.bf16.msra.mxu0 %v9850
  %9960 = vmatprep.subr.bf16.mxu0 0
  %9961 = vmatpush1.bf16.msra.mxu0 %v9849
  %9962 = vmatprep.subr.bf16.mxu0 0
  %9963 = vmatpush1.bf16.msra.mxu0 %v9848
  %9964 = vmatprep.subr.bf16.mxu0 0
  %9965 = vmatpush2.bf16.msra.mxu0 0
  %9966 = vmatprep.subr.bf16.mxu0 0
  %9967 = vmatpush2.bf16.msra.mxu0 0
  %9968 = vmatprep.subr.bf16.mxu0 0
  %9969 = vmatpush2.bf16.msra.mxu0 0
  %9970 = vmatprep.subr.bf16.mxu0 0
  %9971 = vmatpush2.bf16.msra.mxu0 0
  %9972 = vmatprep.subr.bf16.mxu0 0
  %9973 = vmatpush2.bf16.msra.mxu0 0
  %9974 = vmatprep.subr.bf16.mxu0 0
  %9975 = vmatpush2.bf16.msra.mxu0 0
  %9976 = vmatprep.subr.bf16.mxu0 0
  %9977 = vmatpush2.bf16.msra.mxu0 0
  %9978 = vmatprep.subr.bf16.mxu0 0
  %9979 = vmatpush2.bf16.msra.mxu0 0
  %9980 = vmatprep.mubr.bf16.mxu0 0
  %9981 = vmatmul.mubr.bf16.gmra.mxu0 %v9944
  %v9982 = vpop.f32.mrf.mxu0
  %v9983 = vadd.f32 0.0, %v9982
  %v9984 = vpop.f32.mrf.mxu0
  %v9985 = vpop.f32.mrf.mxu0
  %v9986 = vadd.f32 0.0, %v9985
  %v9987 = vpop.f32.mrf.mxu0
  %9988 = vmatprep.mubr.bf16.mxu0 0
  %9989 = vmatmul.mubr.bf16.gmra.mxu0 %v9945
  %v9990 = vpop.f32.mrf.mxu0
  %v9991 = vadd.f32 0.0, %v9990
  %v9992 = vpop.f32.mrf.mxu0
  %v9993 = vpop.f32.mrf.mxu0
  %v9994 = vadd.f32 0.0, %v9993
  %v9995 = vpop.f32.mrf.mxu0
  %9996 = vdwg.mxu0
  %v9997 = vpack.c.bf16 %v9986, %v9983
  %v9998 = vpack.c.bf16 %v9994, %v9991
  %s9999 = scalar_lea.vmem %s8, 32
  %v10000 = vld [vmem:[%s9999] sm:$0xf]
  %v10001 = vld [vmem:[%s9999 + $0x4] sm:$0xf]
  %v10002 = vld [vmem:[%s9999 + $0x8] sm:$0xf]
  %v10003 = vld [vmem:[%s9999 + $0xc] sm:$0xf]
  %v10004 = vld [vmem:[%s9999 + $0x10] sm:$0xf]
  %v10005 = vld [vmem:[%s9999 + $0x14] sm:$0xf]
  %v10006 = vld [vmem:[%s9999 + $0x18] sm:$0xf]
  %v10007 = vld [vmem:[%s9999 + $0x1c] sm:$0xf]
  %v10016 = vunpack.c.l.b16 %v10000
  %v10017 = vunpack.c.l.b16 %v10001
  %v10018 = vunpack.c.l.b16 %v10002
  %v10019 = vunpack.c.l.b16 %v10003
  %v10020 = vunpack.c.l.b16 %v10004
  %v10021 = vunpack.c.l.b16 %v10005
  %v10022 = vunpack.c.l.b16 %v10006
  %v10023 = vunpack.c.l.b16 %v10007
  %v10024 = vpack.c.b16 %v10017, %v10016
  %v10025 = vpack.c.b16 %v10019, %v10018
  %v10026 = vpack.c.b16 %v10021, %v10020
  %v10027 = vpack.c.b16 %v10023, %v10022
  %v10033 = vsel %vm9641, %v9997, 0
  %v10036 = vsel %vm9641, %v9998, 0
  %10038 = vmatprep.subr.bf16.mxu0 0
  %10039 = vmatpush1.bf16.msra.mxu0 0
  %10040 = vmatprep.subr.bf16.mxu0 0
  %10041 = vmatpush1.bf16.msra.mxu0 0
  %10042 = vmatprep.subr.bf16.mxu0 0
  %10043 = vmatpush1.bf16.msra.mxu0 0
  %10044 = vmatprep.subr.bf16.mxu0 0
  %10045 = vmatpush1.bf16.msra.mxu0 0
  %10046 = vmatprep.subr.bf16.mxu0 0
  %10047 = vmatpush1.bf16.msra.mxu0 %v10027
  %10048 = vmatprep.subr.bf16.mxu0 0
  %10049 = vmatpush1.bf16.msra.mxu0 %v10026
  %10050 = vmatprep.subr.bf16.mxu0 0
  %10051 = vmatpush1.bf16.msra.mxu0 %v10025
  %10052 = vmatprep.subr.bf16.mxu0 0
  %10053 = vmatpush1.bf16.msra.mxu0 %v10024
  %10054 = vmatprep.subr.bf16.mxu0 0
  %10055 = vmatpush2.bf16.msra.mxu0 0
  %10056 = vmatprep.subr.bf16.mxu0 0
  %10057 = vmatpush2.bf16.msra.mxu0 0
  %10058 = vmatprep.subr.bf16.mxu0 0
  %10059 = vmatpush2.bf16.msra.mxu0 0
  %10060 = vmatprep.subr.bf16.mxu0 0
  %10061 = vmatpush2.bf16.msra.mxu0 0
  %10062 = vmatprep.subr.bf16.mxu0 0
  %10063 = vmatpush2.bf16.msra.mxu0 0
  %10064 = vmatprep.subr.bf16.mxu0 0
  %10065 = vmatpush2.bf16.msra.mxu0 0
  %10066 = vmatprep.subr.bf16.mxu0 0
  %10067 = vmatpush2.bf16.msra.mxu0 0
  %10068 = vmatprep.subr.bf16.mxu0 0
  %10069 = vmatpush2.bf16.msra.mxu0 0
  %10070 = vmatprep.mubr.bf16.mxu0 0
  %10071 = vmatmul.mubr.bf16.gmra.mxu0 %v10033
  %v10072 = vpop.f32.mrf.mxu0
  %v10073 = vadd.f32 0.0, %v10072
  %v10074 = vpop.f32.mrf.mxu0
  %v10075 = vpop.f32.mrf.mxu0
  %v10076 = vadd.f32 0.0, %v10075
  %v10077 = vpop.f32.mrf.mxu0
  %10078 = vmatprep.mubr.bf16.mxu0 0
  %10079 = vmatmul.mubr.bf16.gmra.mxu0 %v10036
  %v10080 = vpop.f32.mrf.mxu0
  %v10081 = vadd.f32 0.0, %v10080
  %v10082 = vpop.f32.mrf.mxu0
  %v10083 = vpop.f32.mrf.mxu0
  %v10084 = vadd.f32 0.0, %v10083
  %v10085 = vpop.f32.mrf.mxu0
  %10086 = vdwg.mxu0
  %v10095 = vunpack.c.l.b16 %v9923
  %v10096 = vunpack.c.l.b16 %v9924
  %v10097 = vunpack.c.l.b16 %v9925
  %v10098 = vunpack.c.l.b16 %v9926
  %v10099 = vunpack.c.l.b16 %v9927
  %v10100 = vunpack.c.l.b16 %v9928
  %v10101 = vunpack.c.l.b16 %v9929
  %v10102 = vunpack.c.l.b16 %v9930
  %v10103 = vpack.c.b16 %v10096, %v10095
  %v10104 = vpack.c.b16 %v10098, %v10097
  %v10105 = vpack.c.b16 %v10100, %v10099
  %v10106 = vpack.c.b16 %v10102, %v10101
  %v10112 = vsel %vm9641, %v9921, 0
  %v10115 = vsel %vm9641, %v9922, 0
  %10117 = vmatprep.subr.bf16.mxu0 0
  %10118 = vmatpush1.bf16.msra.mxu0 0
  %10119 = vmatprep.subr.bf16.mxu0 0
  %10120 = vmatpush1.bf16.msra.mxu0 0
  %10121 = vmatprep.subr.bf16.mxu0 0
  %10122 = vmatpush1.bf16.msra.mxu0 0
  %10123 = vmatprep.subr.bf16.mxu0 0
  %10124 = vmatpush1.bf16.msra.mxu0 0
  %10125 = vmatprep.subr.bf16.mxu0 0
  %10126 = vmatpush1.bf16.msra.mxu0 %v10106
  %10127 = vmatprep.subr.bf16.mxu0 0
  %10128 = vmatpush1.bf16.msra.mxu0 %v10105
  %10129 = vmatprep.subr.bf16.mxu0 0
  %10130 = vmatpush1.bf16.msra.mxu0 %v10104
  %10131 = vmatprep.subr.bf16.mxu0 0
  %10132 = vmatpush1.bf16.msra.mxu0 %v10103
  %10133 = vmatprep.subr.bf16.mxu0 0
  %10134 = vmatpush2.bf16.msra.mxu0 0
  %10135 = vmatprep.subr.bf16.mxu0 0
  %10136 = vmatpush2.bf16.msra.mxu0 0
  %10137 = vmatprep.subr.bf16.mxu0 0
  %10138 = vmatpush2.bf16.msra.mxu0 0
  %10139 = vmatprep.subr.bf16.mxu0 0
  %10140 = vmatpush2.bf16.msra.mxu0 0
  %10141 = vmatprep.subr.bf16.mxu0 0
  %10142 = vmatpush2.bf16.msra.mxu0 0
  %10143 = vmatprep.subr.bf16.mxu0 0
  %10144 = vmatpush2.bf16.msra.mxu0 0
  %10145 = vmatprep.subr.bf16.mxu0 0
  %10146 = vmatpush2.bf16.msra.mxu0 0
  %10147 = vmatprep.subr.bf16.mxu0 0
  %10148 = vmatpush2.bf16.msra.mxu0 0
  %10149 = vmatprep.mubr.bf16.mxu0 0
  %10150 = vmatmul.mubr.bf16.gmra.mxu0 %v10112
  %v10151 = vpop.f32.mrf.mxu0
  %v10152 = vadd.f32 %v10073, %v10151
  %v10153 = vpop.f32.mrf.mxu0
  %v10154 = vpop.f32.mrf.mxu0
  %v10155 = vadd.f32 %v10076, %v10154
  %v10156 = vpop.f32.mrf.mxu0
  %10157 = vmatprep.mubr.bf16.mxu0 0
  %10158 = vmatmul.mubr.bf16.gmra.mxu0 %v10115
  %v10159 = vpop.f32.mrf.mxu0
  %v10160 = vadd.f32 %v10081, %v10159
  %v10161 = vpop.f32.mrf.mxu0
  %v10162 = vpop.f32.mrf.mxu0
  %v10163 = vadd.f32 %v10084, %v10162
  %v10164 = vpop.f32.mrf.mxu0
  %10165 = vdwg.mxu0
  %s10166 = scalar_lea.vmem %s7, 32
  %v10167 = vld [vmem:[%s10166] sm:$0xf]
  %v10168 = vld [vmem:[%s10166 + $0x4] sm:$0xf]
  %v10169 = vld [vmem:[%s10166 + $0x8] sm:$0xf]
  %v10170 = vld [vmem:[%s10166 + $0xc] sm:$0xf]
  %v10175 = vunpack.c.l.b16 %v10167
  %v10176 = vunpack.c.l.b16 %v10168
  %v10177 = vunpack.c.l.b16 %v10169
  %v10178 = vunpack.c.l.b16 %v10170
  %v10179 = vpack.c.b16 %v10176, %v10175
  %v10180 = vpack.c.b16 %v10178, %v10177
  %10183 = vmatprep.subr.bf16.mxu0 0
  %10184 = vmatpush1.bf16.msra.mxu0 %v9855
  %10185 = vmatprep.subr.bf16.mxu0 0
  %10186 = vmatpush1.bf16.msra.mxu0 %v9854
  %10187 = vmatprep.subr.bf16.mxu0 0
  %10188 = vmatpush1.bf16.msra.mxu0 %v9853
  %10189 = vmatprep.subr.bf16.mxu0 0
  %10190 = vmatpush1.bf16.msra.mxu0 %v9852
  %10191 = vmatprep.subr.bf16.mxu0 0
  %10192 = vmatpush1.bf16.msra.mxu0 %v9851
  %10193 = vmatprep.subr.bf16.mxu0 0
  %10194 = vmatpush1.bf16.msra.mxu0 %v9850
  %10195 = vmatprep.subr.bf16.mxu0 0
  %10196 = vmatpush1.bf16.msra.mxu0 %v9849
  %10197 = vmatprep.subr.bf16.mxu0 0
  %10198 = vmatpush1.bf16.msra.mxu0 %v9848
  %10199 = vmatprep.subr.bf16.mxu0 0
  %10200 = vmatpush2.bf16.msra.mxu0 0
  %10201 = vmatprep.subr.bf16.mxu0 0
  %10202 = vmatpush2.bf16.msra.mxu0 0
  %10203 = vmatprep.subr.bf16.mxu0 0
  %10204 = vmatpush2.bf16.msra.mxu0 0
  %10205 = vmatprep.subr.bf16.mxu0 0
  %10206 = vmatpush2.bf16.msra.mxu0 0
  %10207 = vmatprep.subr.bf16.mxu0 0
  %10208 = vmatpush2.bf16.msra.mxu0 0
  %10209 = vmatprep.subr.bf16.mxu0 0
  %10210 = vmatpush2.bf16.msra.mxu0 0
  %10211 = vmatprep.subr.bf16.mxu0 0
  %10212 = vmatpush2.bf16.msra.mxu0 0
  %10213 = vmatprep.subr.bf16.mxu0 0
  %10214 = vmatpush2.bf16.msra.mxu0 0
  %10215 = vmatprep.mubr.bf16.mxu0 0
  %10216 = vmatmul.mubr.bf16.gmra.mxu0 %v10179
  %v10217 = vpop.f32.mrf.mxu0
  %v10218 = vadd.f32 0.0, %v10217
  %v10219 = vpop.f32.mrf.mxu0
  %v10220 = vpop.f32.mrf.mxu0
  %v10221 = vadd.f32 0.0, %v10220
  %v10222 = vpop.f32.mrf.mxu0
  %10223 = vmatprep.mubr.bf16.mxu0 0
  %10224 = vmatmul.mubr.bf16.gmra.mxu0 %v10180
  %v10225 = vpop.f32.mrf.mxu0
  %v10226 = vadd.f32 0.0, %v10225
  %v10227 = vpop.f32.mrf.mxu0
  %v10228 = vpop.f32.mrf.mxu0
  %v10229 = vadd.f32 0.0, %v10228
  %v10230 = vpop.f32.mrf.mxu0
  %10231 = vdwg.mxu0
  %v10232 = vpack.c.bf16 %v10221, %v10218
  %v10233 = vpack.c.bf16 %v10229, %v10226
  %s10234 = scalar_lea.vmem %s8, 64
  %v10235 = vld [vmem:[%s10234] sm:$0xf]
  %v10236 = vld [vmem:[%s10234 + $0x4] sm:$0xf]
  %v10237 = vld [vmem:[%s10234 + $0x8] sm:$0xf]
  %v10238 = vld [vmem:[%s10234 + $0xc] sm:$0xf]
  %v10239 = vld [vmem:[%s10234 + $0x10] sm:$0xf]
  %v10240 = vld [vmem:[%s10234 + $0x14] sm:$0xf]
  %v10241 = vld [vmem:[%s10234 + $0x18] sm:$0xf]
  %v10242 = vld [vmem:[%s10234 + $0x1c] sm:$0xf]
  %v10251 = vunpack.c.l.b16 %v10235
  %v10252 = vunpack.c.l.b16 %v10236
  %v10253 = vunpack.c.l.b16 %v10237
  %v10254 = vunpack.c.l.b16 %v10238
  %v10255 = vunpack.c.l.b16 %v10239
  %v10256 = vunpack.c.l.b16 %v10240
  %v10257 = vunpack.c.l.b16 %v10241
  %v10258 = vunpack.c.l.b16 %v10242
  %v10259 = vpack.c.b16 %v10252, %v10251
  %v10260 = vpack.c.b16 %v10254, %v10253
  %v10261 = vpack.c.b16 %v10256, %v10255
  %v10262 = vpack.c.b16 %v10258, %v10257
  %v10268 = vsel %vm9641, %v10232, 0
  %v10271 = vsel %vm9641, %v10233, 0
  %10273 = vmatprep.subr.bf16.mxu0 0
  %10274 = vmatpush1.bf16.msra.mxu0 0
  %10275 = vmatprep.subr.bf16.mxu0 0
  %10276 = vmatpush1.bf16.msra.mxu0 0
  %10277 = vmatprep.subr.bf16.mxu0 0
  %10278 = vmatpush1.bf16.msra.mxu0 0
  %10279 = vmatprep.subr.bf16.mxu0 0
  %10280 = vmatpush1.bf16.msra.mxu0 0
  %10281 = vmatprep.subr.bf16.mxu0 0
  %10282 = vmatpush1.bf16.msra.mxu0 %v10262
  %10283 = vmatprep.subr.bf16.mxu0 0
  %10284 = vmatpush1.bf16.msra.mxu0 %v10261
  %10285 = vmatprep.subr.bf16.mxu0 0
  %10286 = vmatpush1.bf16.msra.mxu0 %v10260
  %10287 = vmatprep.subr.bf16.mxu0 0
  %10288 = vmatpush1.bf16.msra.mxu0 %v10259
  %10289 = vmatprep.subr.bf16.mxu0 0
  %10290 = vmatpush2.bf16.msra.mxu0 0
  %10291 = vmatprep.subr.bf16.mxu0 0
  %10292 = vmatpush2.bf16.msra.mxu0 0
  %10293 = vmatprep.subr.bf16.mxu0 0
  %10294 = vmatpush2.bf16.msra.mxu0 0
  %10295 = vmatprep.subr.bf16.mxu0 0
  %10296 = vmatpush2.bf16.msra.mxu0 0
  %10297 = vmatprep.subr.bf16.mxu0 0
  %10298 = vmatpush2.bf16.msra.mxu0 0
  %10299 = vmatprep.subr.bf16.mxu0 0
  %10300 = vmatpush2.bf16.msra.mxu0 0
  %10301 = vmatprep.subr.bf16.mxu0 0
  %10302 = vmatpush2.bf16.msra.mxu0 0
  %10303 = vmatprep.subr.bf16.mxu0 0
  %10304 = vmatpush2.bf16.msra.mxu0 0
  %10305 = vmatprep.mubr.bf16.mxu0 0
  %10306 = vmatmul.mubr.bf16.gmra.mxu0 %v10268
  %v10307 = vpop.f32.mrf.mxu0
  %v10308 = vadd.f32 0.0, %v10307
  %v10309 = vpop.f32.mrf.mxu0
  %v10310 = vpop.f32.mrf.mxu0
  %v10311 = vadd.f32 0.0, %v10310
  %v10312 = vpop.f32.mrf.mxu0
  %10313 = vmatprep.mubr.bf16.mxu0 0
  %10314 = vmatmul.mubr.bf16.gmra.mxu0 %v10271
  %v10315 = vpop.f32.mrf.mxu0
  %v10316 = vadd.f32 0.0, %v10315
  %v10317 = vpop.f32.mrf.mxu0
  %v10318 = vpop.f32.mrf.mxu0
  %v10319 = vadd.f32 0.0, %v10318
  %v10320 = vpop.f32.mrf.mxu0
  %10321 = vdwg.mxu0
  %v10322 = vadd.f32 %v10152, %v10308
  %v10323 = vadd.f32 %v10155, %v10311
  %v10324 = vadd.f32 %v10160, %v10316
  %v10325 = vadd.f32 %v10163, %v10319
  %s10326 = scalar_lea.vmem %s7, 48
  %v10327 = vld [vmem:[%s10326] sm:$0xf]
  %v10328 = vld [vmem:[%s10326 + $0x4] sm:$0xf]
  %v10329 = vld [vmem:[%s10326 + $0x8] sm:$0xf]
  %v10330 = vld [vmem:[%s10326 + $0xc] sm:$0xf]
  %v10335 = vunpack.c.l.b16 %v10327
  %v10336 = vunpack.c.l.b16 %v10328
  %v10337 = vunpack.c.l.b16 %v10329
  %v10338 = vunpack.c.l.b16 %v10330
  %v10339 = vpack.c.b16 %v10336, %v10335
  %v10340 = vpack.c.b16 %v10338, %v10337
  %10343 = vmatprep.subr.bf16.mxu0 0
  %10344 = vmatpush1.bf16.msra.mxu0 %v9855
  %10345 = vmatprep.subr.bf16.mxu0 0
  %10346 = vmatpush1.bf16.msra.mxu0 %v9854
  %10347 = vmatprep.subr.bf16.mxu0 0
  %10348 = vmatpush1.bf16.msra.mxu0 %v9853
  %10349 = vmatprep.subr.bf16.mxu0 0
  %10350 = vmatpush1.bf16.msra.mxu0 %v9852
  %10351 = vmatprep.subr.bf16.mxu0 0
  %10352 = vmatpush1.bf16.msra.mxu0 %v9851
  %10353 = vmatprep.subr.bf16.mxu0 0
  %10354 = vmatpush1.bf16.msra.mxu0 %v9850
  %10355 = vmatprep.subr.bf16.mxu0 0
  %10356 = vmatpush1.bf16.msra.mxu0 %v9849
  %10357 = vmatprep.subr.bf16.mxu0 0
  %10358 = vmatpush1.bf16.msra.mxu0 %v9848
  %10359 = vmatprep.subr.bf16.mxu0 0
  %10360 = vmatpush2.bf16.msra.mxu0 0
  %10361 = vmatprep.subr.bf16.mxu0 0
  %10362 = vmatpush2.bf16.msra.mxu0 0
  %10363 = vmatprep.subr.bf16.mxu0 0
  %10364 = vmatpush2.bf16.msra.mxu0 0
  %10365 = vmatprep.subr.bf16.mxu0 0
  %10366 = vmatpush2.bf16.msra.mxu0 0
  %10367 = vmatprep.subr.bf16.mxu0 0
  %10368 = vmatpush2.bf16.msra.mxu0 0
  %10369 = vmatprep.subr.bf16.mxu0 0
  %10370 = vmatpush2.bf16.msra.mxu0 0
  %10371 = vmatprep.subr.bf16.mxu0 0
  %10372 = vmatpush2.bf16.msra.mxu0 0
  %10373 = vmatprep.subr.bf16.mxu0 0
  %10374 = vmatpush2.bf16.msra.mxu0 0
  %10375 = vmatprep.mubr.bf16.mxu0 0
  %10376 = vmatmul.mubr.bf16.gmra.mxu0 %v10339
  %v10377 = vpop.f32.mrf.mxu0
  %v10378 = vadd.f32 0.0, %v10377
  %v10379 = vpop.f32.mrf.mxu0
  %v10380 = vpop.f32.mrf.mxu0
  %v10381 = vadd.f32 0.0, %v10380
  %v10382 = vpop.f32.mrf.mxu0
  %10383 = vmatprep.mubr.bf16.mxu0 0
  %10384 = vmatmul.mubr.bf16.gmra.mxu0 %v10340
  %v10385 = vpop.f32.mrf.mxu0
  %v10386 = vadd.f32 0.0, %v10385
  %v10387 = vpop.f32.mrf.mxu0
  %v10388 = vpop.f32.mrf.mxu0
  %v10389 = vadd.f32 0.0, %v10388
  %v10390 = vpop.f32.mrf.mxu0
  %10391 = vdwg.mxu0
  %v10392 = vpack.c.bf16 %v10381, %v10378
  %v10393 = vpack.c.bf16 %v10389, %v10386
  %s10394 = scalar_lea.vmem %s8, 96
  %v10395 = vld [vmem:[%s10394] sm:$0xf]
  %v10396 = vld [vmem:[%s10394 + $0x4] sm:$0xf]
  %v10397 = vld [vmem:[%s10394 + $0x8] sm:$0xf]
  %v10398 = vld [vmem:[%s10394 + $0xc] sm:$0xf]
  %v10399 = vld [vmem:[%s10394 + $0x10] sm:$0xf]
  %v10400 = vld [vmem:[%s10394 + $0x14] sm:$0xf]
  %v10401 = vld [vmem:[%s10394 + $0x18] sm:$0xf]
  %v10402 = vld [vmem:[%s10394 + $0x1c] sm:$0xf]
  %v10411 = vunpack.c.l.b16 %v10395
  %v10412 = vunpack.c.l.b16 %v10396
  %v10413 = vunpack.c.l.b16 %v10397
  %v10414 = vunpack.c.l.b16 %v10398
  %v10415 = vunpack.c.l.b16 %v10399
  %v10416 = vunpack.c.l.b16 %v10400
  %v10417 = vunpack.c.l.b16 %v10401
  %v10418 = vunpack.c.l.b16 %v10402
  %v10419 = vpack.c.b16 %v10412, %v10411
  %v10420 = vpack.c.b16 %v10414, %v10413
  %v10421 = vpack.c.b16 %v10416, %v10415
  %v10422 = vpack.c.b16 %v10418, %v10417
  %v10428 = vsel %vm9641, %v10392, 0
  %v10431 = vsel %vm9641, %v10393, 0
  %10433 = vmatprep.subr.bf16.mxu0 0
  %10434 = vmatpush1.bf16.msra.mxu0 0
  %10435 = vmatprep.subr.bf16.mxu0 0
  %10436 = vmatpush1.bf16.msra.mxu0 0
  %10437 = vmatprep.subr.bf16.mxu0 0
  %10438 = vmatpush1.bf16.msra.mxu0 0
  %10439 = vmatprep.subr.bf16.mxu0 0
  %10440 = vmatpush1.bf16.msra.mxu0 0
  %10441 = vmatprep.subr.bf16.mxu0 0
  %10442 = vmatpush1.bf16.msra.mxu0 %v10422
  %10443 = vmatprep.subr.bf16.mxu0 0
  %10444 = vmatpush1.bf16.msra.mxu0 %v10421
  %10445 = vmatprep.subr.bf16.mxu0 0
  %10446 = vmatpush1.bf16.msra.mxu0 %v10420
  %10447 = vmatprep.subr.bf16.mxu0 0
  %10448 = vmatpush1.bf16.msra.mxu0 %v10419
  %10449 = vmatprep.subr.bf16.mxu0 0
  %10450 = vmatpush2.bf16.msra.mxu0 0
  %10451 = vmatprep.subr.bf16.mxu0 0
  %10452 = vmatpush2.bf16.msra.mxu0 0
  %10453 = vmatprep.subr.bf16.mxu0 0
  %10454 = vmatpush2.bf16.msra.mxu0 0
  %10455 = vmatprep.subr.bf16.mxu0 0
  %10456 = vmatpush2.bf16.msra.mxu0 0
  %10457 = vmatprep.subr.bf16.mxu0 0
  %10458 = vmatpush2.bf16.msra.mxu0 0
  %10459 = vmatprep.subr.bf16.mxu0 0
  %10460 = vmatpush2.bf16.msra.mxu0 0
  %10461 = vmatprep.subr.bf16.mxu0 0
  %10462 = vmatpush2.bf16.msra.mxu0 0
  %10463 = vmatprep.subr.bf16.mxu0 0
  %10464 = vmatpush2.bf16.msra.mxu0 0
  %10465 = vmatprep.mubr.bf16.mxu0 0
  %10466 = vmatmul.mubr.bf16.gmra.mxu0 %v10428
  %v10467 = vpop.f32.mrf.mxu0
  %v10468 = vadd.f32 0.0, %v10467
  %v10469 = vpop.f32.mrf.mxu0
  %v10470 = vpop.f32.mrf.mxu0
  %v10471 = vadd.f32 0.0, %v10470
  %v10472 = vpop.f32.mrf.mxu0
  %10473 = vmatprep.mubr.bf16.mxu0 0
  %10474 = vmatmul.mubr.bf16.gmra.mxu0 %v10431
  %v10475 = vpop.f32.mrf.mxu0
  %v10476 = vadd.f32 0.0, %v10475
  %v10477 = vpop.f32.mrf.mxu0
  %v10478 = vpop.f32.mrf.mxu0
  %v10479 = vadd.f32 0.0, %v10478
  %v10480 = vpop.f32.mrf.mxu0
  %10481 = vdwg.mxu0
  %v10482 = vadd.f32 %v10322, %v10468
  %v10483 = vadd.f32 %v10323, %v10471
  %v10484 = vadd.f32 %v10324, %v10476
  %v10485 = vadd.f32 %v10325, %v10479
  %s10486 = scalar_lea.vmem %s7, 64
  %v10487 = vld [vmem:[%s10486] sm:$0xf]
  %v10488 = vld [vmem:[%s10486 + $0x4] sm:$0xf]
  %v10489 = vld [vmem:[%s10486 + $0x8] sm:$0xf]
  %v10490 = vld [vmem:[%s10486 + $0xc] sm:$0xf]
  %v10495 = vunpack.c.l.b16 %v10487
  %v10496 = vunpack.c.l.b16 %v10488
  %v10497 = vunpack.c.l.b16 %v10489
  %v10498 = vunpack.c.l.b16 %v10490
  %v10499 = vpack.c.b16 %v10496, %v10495
  %v10500 = vpack.c.b16 %v10498, %v10497
  %10503 = vmatprep.subr.bf16.mxu0 0
  %10504 = vmatpush1.bf16.msra.mxu0 %v9855
  %10505 = vmatprep.subr.bf16.mxu0 0
  %10506 = vmatpush1.bf16.msra.mxu0 %v9854
  %10507 = vmatprep.subr.bf16.mxu0 0
  %10508 = vmatpush1.bf16.msra.mxu0 %v9853
  %10509 = vmatprep.subr.bf16.mxu0 0
  %10510 = vmatpush1.bf16.msra.mxu0 %v9852
  %10511 = vmatprep.subr.bf16.mxu0 0
  %10512 = vmatpush1.bf16.msra.mxu0 %v9851
  %10513 = vmatprep.subr.bf16.mxu0 0
  %10514 = vmatpush1.bf16.msra.mxu0 %v9850
  %10515 = vmatprep.subr.bf16.mxu0 0
  %10516 = vmatpush1.bf16.msra.mxu0 %v9849
  %10517 = vmatprep.subr.bf16.mxu0 0
  %10518 = vmatpush1.bf16.msra.mxu0 %v9848
  %10519 = vmatprep.subr.bf16.mxu0 0
  %10520 = vmatpush2.bf16.msra.mxu0 0
  %10521 = vmatprep.subr.bf16.mxu0 0
  %10522 = vmatpush2.bf16.msra.mxu0 0
  %10523 = vmatprep.subr.bf16.mxu0 0
  %10524 = vmatpush2.bf16.msra.mxu0 0
  %10525 = vmatprep.subr.bf16.mxu0 0
  %10526 = vmatpush2.bf16.msra.mxu0 0
  %10527 = vmatprep.subr.bf16.mxu0 0
  %10528 = vmatpush2.bf16.msra.mxu0 0
  %10529 = vmatprep.subr.bf16.mxu0 0
  %10530 = vmatpush2.bf16.msra.mxu0 0
  %10531 = vmatprep.subr.bf16.mxu0 0
  %10532 = vmatpush2.bf16.msra.mxu0 0
  %10533 = vmatprep.subr.bf16.mxu0 0
  %10534 = vmatpush2.bf16.msra.mxu0 0
  %10535 = vmatprep.mubr.bf16.mxu0 0
  %10536 = vmatmul.mubr.bf16.gmra.mxu0 %v10499
  %v10537 = vpop.f32.mrf.mxu0
  %v10538 = vadd.f32 0.0, %v10537
  %v10539 = vpop.f32.mrf.mxu0
  %v10540 = vpop.f32.mrf.mxu0
  %v10541 = vadd.f32 0.0, %v10540
  %v10542 = vpop.f32.mrf.mxu0
  %10543 = vmatprep.mubr.bf16.mxu0 0
  %10544 = vmatmul.mubr.bf16.gmra.mxu0 %v10500
  %v10545 = vpop.f32.mrf.mxu0
  %v10546 = vadd.f32 0.0, %v10545
  %v10547 = vpop.f32.mrf.mxu0
  %v10548 = vpop.f32.mrf.mxu0
  %v10549 = vadd.f32 0.0, %v10548
  %v10550 = vpop.f32.mrf.mxu0
  %10551 = vdwg.mxu0
  %v10552 = vpack.c.bf16 %v10541, %v10538
  %v10553 = vpack.c.bf16 %v10549, %v10546
  %s10554 = scalar_lea.vmem %s8, 128
  %v10555 = vld [vmem:[%s10554] sm:$0xf]
  %v10556 = vld [vmem:[%s10554 + $0x4] sm:$0xf]
  %v10557 = vld [vmem:[%s10554 + $0x8] sm:$0xf]
  %v10558 = vld [vmem:[%s10554 + $0xc] sm:$0xf]
  %v10559 = vld [vmem:[%s10554 + $0x10] sm:$0xf]
  %v10560 = vld [vmem:[%s10554 + $0x14] sm:$0xf]
  %v10561 = vld [vmem:[%s10554 + $0x18] sm:$0xf]
  %v10562 = vld [vmem:[%s10554 + $0x1c] sm:$0xf]
  %v10571 = vunpack.c.l.b16 %v10555
  %v10572 = vunpack.c.l.b16 %v10556
  %v10573 = vunpack.c.l.b16 %v10557
  %v10574 = vunpack.c.l.b16 %v10558
  %v10575 = vunpack.c.l.b16 %v10559
  %v10576 = vunpack.c.l.b16 %v10560
  %v10577 = vunpack.c.l.b16 %v10561
  %v10578 = vunpack.c.l.b16 %v10562
  %v10579 = vpack.c.b16 %v10572, %v10571
  %v10580 = vpack.c.b16 %v10574, %v10573
  %v10581 = vpack.c.b16 %v10576, %v10575
  %v10582 = vpack.c.b16 %v10578, %v10577
  %v10588 = vsel %vm9641, %v10552, 0
  %v10591 = vsel %vm9641, %v10553, 0
  %10593 = vmatprep.subr.bf16.mxu0 0
  %10594 = vmatpush1.bf16.msra.mxu0 0
  %10595 = vmatprep.subr.bf16.mxu0 0
  %10596 = vmatpush1.bf16.msra.mxu0 0
  %10597 = vmatprep.subr.bf16.mxu0 0
  %10598 = vmatpush1.bf16.msra.mxu0 0
  %10599 = vmatprep.subr.bf16.mxu0 0
  %10600 = vmatpush1.bf16.msra.mxu0 0
  %10601 = vmatprep.subr.bf16.mxu0 0
  %10602 = vmatpush1.bf16.msra.mxu0 %v10582
  %10603 = vmatprep.subr.bf16.mxu0 0
  %10604 = vmatpush1.bf16.msra.mxu0 %v10581
  %10605 = vmatprep.subr.bf16.mxu0 0
  %10606 = vmatpush1.bf16.msra.mxu0 %v10580
  %10607 = vmatprep.subr.bf16.mxu0 0
  %10608 = vmatpush1.bf16.msra.mxu0 %v10579
  %10609 = vmatprep.subr.bf16.mxu0 0
  %10610 = vmatpush2.bf16.msra.mxu0 0
  %10611 = vmatprep.subr.bf16.mxu0 0
  %10612 = vmatpush2.bf16.msra.mxu0 0
  %10613 = vmatprep.subr.bf16.mxu0 0
  %10614 = vmatpush2.bf16.msra.mxu0 0
  %10615 = vmatprep.subr.bf16.mxu0 0
  %10616 = vmatpush2.bf16.msra.mxu0 0
  %10617 = vmatprep.subr.bf16.mxu0 0
  %10618 = vmatpush2.bf16.msra.mxu0 0
  %10619 = vmatprep.subr.bf16.mxu0 0
  %10620 = vmatpush2.bf16.msra.mxu0 0
  %10621 = vmatprep.subr.bf16.mxu0 0
  %10622 = vmatpush2.bf16.msra.mxu0 0
  %10623 = vmatprep.subr.bf16.mxu0 0
  %10624 = vmatpush2.bf16.msra.mxu0 0
  %10625 = vmatprep.mubr.bf16.mxu0 0
  %10626 = vmatmul.mubr.bf16.gmra.mxu0 %v10588
  %v10627 = vpop.f32.mrf.mxu0
  %v10628 = vadd.f32 0.0, %v10627
  %v10629 = vpop.f32.mrf.mxu0
  %v10630 = vpop.f32.mrf.mxu0
  %v10631 = vadd.f32 0.0, %v10630
  %v10632 = vpop.f32.mrf.mxu0
  %10633 = vmatprep.mubr.bf16.mxu0 0
  %10634 = vmatmul.mubr.bf16.gmra.mxu0 %v10591
  %v10635 = vpop.f32.mrf.mxu0
  %v10636 = vadd.f32 0.0, %v10635
  %v10637 = vpop.f32.mrf.mxu0
  %v10638 = vpop.f32.mrf.mxu0
  %v10639 = vadd.f32 0.0, %v10638
  %v10640 = vpop.f32.mrf.mxu0
  %10641 = vdwg.mxu0
  %v10642 = vadd.f32 %v10482, %v10628
  %v10643 = vadd.f32 %v10483, %v10631
  %v10644 = vadd.f32 %v10484, %v10636
  %v10645 = vadd.f32 %v10485, %v10639
  %s10646 = scalar_lea.vmem %s7, 80
  %v10647 = vld [vmem:[%s10646] sm:$0xf]
  %v10648 = vld [vmem:[%s10646 + $0x4] sm:$0xf]
  %v10649 = vld [vmem:[%s10646 + $0x8] sm:$0xf]
  %v10650 = vld [vmem:[%s10646 + $0xc] sm:$0xf]
  %v10655 = vunpack.c.l.b16 %v10647
  %v10656 = vunpack.c.l.b16 %v10648
  %v10657 = vunpack.c.l.b16 %v10649
  %v10658 = vunpack.c.l.b16 %v10650
  %v10659 = vpack.c.b16 %v10656, %v10655
  %v10660 = vpack.c.b16 %v10658, %v10657
  %10663 = vmatprep.subr.bf16.mxu0 0
  %10664 = vmatpush1.bf16.msra.mxu0 %v9855
  %10665 = vmatprep.subr.bf16.mxu0 0
  %10666 = vmatpush1.bf16.msra.mxu0 %v9854
  %10667 = vmatprep.subr.bf16.mxu0 0
  %10668 = vmatpush1.bf16.msra.mxu0 %v9853
  %10669 = vmatprep.subr.bf16.mxu0 0
  %10670 = vmatpush1.bf16.msra.mxu0 %v9852
  %10671 = vmatprep.subr.bf16.mxu0 0
  %10672 = vmatpush1.bf16.msra.mxu0 %v9851
  %10673 = vmatprep.subr.bf16.mxu0 0
  %10674 = vmatpush1.bf16.msra.mxu0 %v9850
  %10675 = vmatprep.subr.bf16.mxu0 0
  %10676 = vmatpush1.bf16.msra.mxu0 %v9849
  %10677 = vmatprep.subr.bf16.mxu0 0
  %10678 = vmatpush1.bf16.msra.mxu0 %v9848
  %10679 = vmatprep.subr.bf16.mxu0 0
  %10680 = vmatpush2.bf16.msra.mxu0 0
  %10681 = vmatprep.subr.bf16.mxu0 0
  %10682 = vmatpush2.bf16.msra.mxu0 0
  %10683 = vmatprep.subr.bf16.mxu0 0
  %10684 = vmatpush2.bf16.msra.mxu0 0
  %10685 = vmatprep.subr.bf16.mxu0 0
  %10686 = vmatpush2.bf16.msra.mxu0 0
  %10687 = vmatprep.subr.bf16.mxu0 0
  %10688 = vmatpush2.bf16.msra.mxu0 0
  %10689 = vmatprep.subr.bf16.mxu0 0
  %10690 = vmatpush2.bf16.msra.mxu0 0
  %10691 = vmatprep.subr.bf16.mxu0 0
  %10692 = vmatpush2.bf16.msra.mxu0 0
  %10693 = vmatprep.subr.bf16.mxu0 0
  %10694 = vmatpush2.bf16.msra.mxu0 0
  %10695 = vmatprep.mubr.bf16.mxu0 0
  %10696 = vmatmul.mubr.bf16.gmra.mxu0 %v10659
  %v10697 = vpop.f32.mrf.mxu0
  %v10698 = vadd.f32 0.0, %v10697
  %v10699 = vpop.f32.mrf.mxu0
  %v10700 = vpop.f32.mrf.mxu0
  %v10701 = vadd.f32 0.0, %v10700
  %v10702 = vpop.f32.mrf.mxu0
  %10703 = vmatprep.mubr.bf16.mxu0 0
  %10704 = vmatmul.mubr.bf16.gmra.mxu0 %v10660
  %v10705 = vpop.f32.mrf.mxu0
  %v10706 = vadd.f32 0.0, %v10705
  %v10707 = vpop.f32.mrf.mxu0
  %v10708 = vpop.f32.mrf.mxu0
  %v10709 = vadd.f32 0.0, %v10708
  %v10710 = vpop.f32.mrf.mxu0
  %10711 = vdwg.mxu0
  %v10712 = vpack.c.bf16 %v10701, %v10698
  %v10713 = vpack.c.bf16 %v10709, %v10706
  %s10714 = scalar_lea.vmem %s8, 160
  %v10715 = vld [vmem:[%s10714] sm:$0xf]
  %v10716 = vld [vmem:[%s10714 + $0x4] sm:$0xf]
  %v10717 = vld [vmem:[%s10714 + $0x8] sm:$0xf]
  %v10718 = vld [vmem:[%s10714 + $0xc] sm:$0xf]
  %v10719 = vld [vmem:[%s10714 + $0x10] sm:$0xf]
  %v10720 = vld [vmem:[%s10714 + $0x14] sm:$0xf]
  %v10721 = vld [vmem:[%s10714 + $0x18] sm:$0xf]
  %v10722 = vld [vmem:[%s10714 + $0x1c] sm:$0xf]
  %v10731 = vunpack.c.l.b16 %v10715
  %v10732 = vunpack.c.l.b16 %v10716
  %v10733 = vunpack.c.l.b16 %v10717
  %v10734 = vunpack.c.l.b16 %v10718
  %v10735 = vunpack.c.l.b16 %v10719
  %v10736 = vunpack.c.l.b16 %v10720
  %v10737 = vunpack.c.l.b16 %v10721
  %v10738 = vunpack.c.l.b16 %v10722
  %v10739 = vpack.c.b16 %v10732, %v10731
  %v10740 = vpack.c.b16 %v10734, %v10733
  %v10741 = vpack.c.b16 %v10736, %v10735
  %v10742 = vpack.c.b16 %v10738, %v10737
  %v10748 = vsel %vm9641, %v10712, 0
  %v10751 = vsel %vm9641, %v10713, 0
  %10753 = vmatprep.subr.bf16.mxu0 0
  %10754 = vmatpush1.bf16.msra.mxu0 0
  %10755 = vmatprep.subr.bf16.mxu0 0
  %10756 = vmatpush1.bf16.msra.mxu0 0
  %10757 = vmatprep.subr.bf16.mxu0 0
  %10758 = vmatpush1.bf16.msra.mxu0 0
  %10759 = vmatprep.subr.bf16.mxu0 0
  %10760 = vmatpush1.bf16.msra.mxu0 0
  %10761 = vmatprep.subr.bf16.mxu0 0
  %10762 = vmatpush1.bf16.msra.mxu0 %v10742
  %10763 = vmatprep.subr.bf16.mxu0 0
  %10764 = vmatpush1.bf16.msra.mxu0 %v10741
  %10765 = vmatprep.subr.bf16.mxu0 0
  %10766 = vmatpush1.bf16.msra.mxu0 %v10740
  %10767 = vmatprep.subr.bf16.mxu0 0
  %10768 = vmatpush1.bf16.msra.mxu0 %v10739
  %10769 = vmatprep.subr.bf16.mxu0 0
  %10770 = vmatpush2.bf16.msra.mxu0 0
  %10771 = vmatprep.subr.bf16.mxu0 0
  %10772 = vmatpush2.bf16.msra.mxu0 0
  %10773 = vmatprep.subr.bf16.mxu0 0
  %10774 = vmatpush2.bf16.msra.mxu0 0
  %10775 = vmatprep.subr.bf16.mxu0 0
  %10776 = vmatpush2.bf16.msra.mxu0 0
  %10777 = vmatprep.subr.bf16.mxu0 0
  %10778 = vmatpush2.bf16.msra.mxu0 0
  %10779 = vmatprep.subr.bf16.mxu0 0
  %10780 = vmatpush2.bf16.msra.mxu0 0
  %10781 = vmatprep.subr.bf16.mxu0 0
  %10782 = vmatpush2.bf16.msra.mxu0 0
  %10783 = vmatprep.subr.bf16.mxu0 0
  %10784 = vmatpush2.bf16.msra.mxu0 0
  %10785 = vmatprep.mubr.bf16.mxu0 0
  %10786 = vmatmul.mubr.bf16.gmra.mxu0 %v10748
  %v10787 = vpop.f32.mrf.mxu0
  %v10788 = vadd.f32 0.0, %v10787
  %v10789 = vpop.f32.mrf.mxu0
  %v10790 = vpop.f32.mrf.mxu0
  %v10791 = vadd.f32 0.0, %v10790
  %v10792 = vpop.f32.mrf.mxu0
  %10793 = vmatprep.mubr.bf16.mxu0 0
  %10794 = vmatmul.mubr.bf16.gmra.mxu0 %v10751
  %v10795 = vpop.f32.mrf.mxu0
  %v10796 = vadd.f32 0.0, %v10795
  %v10797 = vpop.f32.mrf.mxu0
  %v10798 = vpop.f32.mrf.mxu0
  %v10799 = vadd.f32 0.0, %v10798
  %v10800 = vpop.f32.mrf.mxu0
  %10801 = vdwg.mxu0
  %v10802 = vadd.f32 %v10642, %v10788
  %v10803 = vadd.f32 %v10643, %v10791
  %v10804 = vadd.f32 %v10644, %v10796
  %v10805 = vadd.f32 %v10645, %v10799
  %s10806 = scalar_lea.vmem %s7, 96
  %v10807 = vld [vmem:[%s10806] sm:$0xf]
  %v10808 = vld [vmem:[%s10806 + $0x4] sm:$0xf]
  %v10809 = vld [vmem:[%s10806 + $0x8] sm:$0xf]
  %v10810 = vld [vmem:[%s10806 + $0xc] sm:$0xf]
  %v10815 = vunpack.c.l.b16 %v10807
  %v10816 = vunpack.c.l.b16 %v10808
  %v10817 = vunpack.c.l.b16 %v10809
  %v10818 = vunpack.c.l.b16 %v10810
  %v10819 = vpack.c.b16 %v10816, %v10815
  %v10820 = vpack.c.b16 %v10818, %v10817
  %10823 = vmatprep.subr.bf16.mxu0 0
  %10824 = vmatpush1.bf16.msra.mxu0 %v9855
  %10825 = vmatprep.subr.bf16.mxu0 0
  %10826 = vmatpush1.bf16.msra.mxu0 %v9854
  %10827 = vmatprep.subr.bf16.mxu0 0
  %10828 = vmatpush1.bf16.msra.mxu0 %v9853
  %10829 = vmatprep.subr.bf16.mxu0 0
  %10830 = vmatpush1.bf16.msra.mxu0 %v9852
  %10831 = vmatprep.subr.bf16.mxu0 0
  %10832 = vmatpush1.bf16.msra.mxu0 %v9851
  %10833 = vmatprep.subr.bf16.mxu0 0
  %10834 = vmatpush1.bf16.msra.mxu0 %v9850
  %10835 = vmatprep.subr.bf16.mxu0 0
  %10836 = vmatpush1.bf16.msra.mxu0 %v9849
  %10837 = vmatprep.subr.bf16.mxu0 0
  %10838 = vmatpush1.bf16.msra.mxu0 %v9848
  %10839 = vmatprep.subr.bf16.mxu0 0
  %10840 = vmatpush2.bf16.msra.mxu0 0
  %10841 = vmatprep.subr.bf16.mxu0 0
  %10842 = vmatpush2.bf16.msra.mxu0 0
  %10843 = vmatprep.subr.bf16.mxu0 0
  %10844 = vmatpush2.bf16.msra.mxu0 0
  %10845 = vmatprep.subr.bf16.mxu0 0
  %10846 = vmatpush2.bf16.msra.mxu0 0
  %10847 = vmatprep.subr.bf16.mxu0 0
  %10848 = vmatpush2.bf16.msra.mxu0 0
  %10849 = vmatprep.subr.bf16.mxu0 0
  %10850 = vmatpush2.bf16.msra.mxu0 0
  %10851 = vmatprep.subr.bf16.mxu0 0
  %10852 = vmatpush2.bf16.msra.mxu0 0
  %10853 = vmatprep.subr.bf16.mxu0 0
  %10854 = vmatpush2.bf16.msra.mxu0 0
  %10855 = vmatprep.mubr.bf16.mxu0 0
  %10856 = vmatmul.mubr.bf16.gmra.mxu0 %v10819
  %v10857 = vpop.f32.mrf.mxu0
  %v10858 = vadd.f32 0.0, %v10857
  %v10859 = vpop.f32.mrf.mxu0
  %v10860 = vpop.f32.mrf.mxu0
  %v10861 = vadd.f32 0.0, %v10860
  %v10862 = vpop.f32.mrf.mxu0
  %10863 = vmatprep.mubr.bf16.mxu0 0
  %10864 = vmatmul.mubr.bf16.gmra.mxu0 %v10820
  %v10865 = vpop.f32.mrf.mxu0
  %v10866 = vadd.f32 0.0, %v10865
  %v10867 = vpop.f32.mrf.mxu0
  %v10868 = vpop.f32.mrf.mxu0
  %v10869 = vadd.f32 0.0, %v10868
  %v10870 = vpop.f32.mrf.mxu0
  %10871 = vdwg.mxu0
  %v10872 = vpack.c.bf16 %v10861, %v10858
  %v10873 = vpack.c.bf16 %v10869, %v10866
  %s10874 = scalar_lea.vmem %s8, 192
  %v10875 = vld [vmem:[%s10874] sm:$0xf]
  %v10876 = vld [vmem:[%s10874 + $0x4] sm:$0xf]
  %v10877 = vld [vmem:[%s10874 + $0x8] sm:$0xf]
  %v10878 = vld [vmem:[%s10874 + $0xc] sm:$0xf]
  %v10879 = vld [vmem:[%s10874 + $0x10] sm:$0xf]
  %v10880 = vld [vmem:[%s10874 + $0x14] sm:$0xf]
  %v10881 = vld [vmem:[%s10874 + $0x18] sm:$0xf]
  %v10882 = vld [vmem:[%s10874 + $0x1c] sm:$0xf]
  %v10891 = vunpack.c.l.b16 %v10875
  %v10892 = vunpack.c.l.b16 %v10876
  %v10893 = vunpack.c.l.b16 %v10877
  %v10894 = vunpack.c.l.b16 %v10878
  %v10895 = vunpack.c.l.b16 %v10879
  %v10896 = vunpack.c.l.b16 %v10880
  %v10897 = vunpack.c.l.b16 %v10881
  %v10898 = vunpack.c.l.b16 %v10882
  %v10899 = vpack.c.b16 %v10892, %v10891
  %v10900 = vpack.c.b16 %v10894, %v10893
  %v10901 = vpack.c.b16 %v10896, %v10895
  %v10902 = vpack.c.b16 %v10898, %v10897
  %v10908 = vsel %vm9641, %v10872, 0
  %v10911 = vsel %vm9641, %v10873, 0
  %10913 = vmatprep.subr.bf16.mxu0 0
  %10914 = vmatpush1.bf16.msra.mxu0 0
  %10915 = vmatprep.subr.bf16.mxu0 0
  %10916 = vmatpush1.bf16.msra.mxu0 0
  %10917 = vmatprep.subr.bf16.mxu0 0
  %10918 = vmatpush1.bf16.msra.mxu0 0
  %10919 = vmatprep.subr.bf16.mxu0 0
  %10920 = vmatpush1.bf16.msra.mxu0 0
  %10921 = vmatprep.subr.bf16.mxu0 0
  %10922 = vmatpush1.bf16.msra.mxu0 %v10902
  %10923 = vmatprep.subr.bf16.mxu0 0
  %10924 = vmatpush1.bf16.msra.mxu0 %v10901
  %10925 = vmatprep.subr.bf16.mxu0 0
  %10926 = vmatpush1.bf16.msra.mxu0 %v10900
  %10927 = vmatprep.subr.bf16.mxu0 0
  %10928 = vmatpush1.bf16.msra.mxu0 %v10899
  %10929 = vmatprep.subr.bf16.mxu0 0
  %10930 = vmatpush2.bf16.msra.mxu0 0
  %10931 = vmatprep.subr.bf16.mxu0 0
  %10932 = vmatpush2.bf16.msra.mxu0 0
  %10933 = vmatprep.subr.bf16.mxu0 0
  %10934 = vmatpush2.bf16.msra.mxu0 0
  %10935 = vmatprep.subr.bf16.mxu0 0
  %10936 = vmatpush2.bf16.msra.mxu0 0
  %10937 = vmatprep.subr.bf16.mxu0 0
  %10938 = vmatpush2.bf16.msra.mxu0 0
  %10939 = vmatprep.subr.bf16.mxu0 0
  %10940 = vmatpush2.bf16.msra.mxu0 0
  %10941 = vmatprep.subr.bf16.mxu0 0
  %10942 = vmatpush2.bf16.msra.mxu0 0
  %10943 = vmatprep.subr.bf16.mxu0 0
  %10944 = vmatpush2.bf16.msra.mxu0 0
  %10945 = vmatprep.mubr.bf16.mxu0 0
  %10946 = vmatmul.mubr.bf16.gmra.mxu0 %v10908
  %v10947 = vpop.f32.mrf.mxu0
  %v10948 = vadd.f32 0.0, %v10947
  %v10949 = vpop.f32.mrf.mxu0
  %v10950 = vpop.f32.mrf.mxu0
  %v10951 = vadd.f32 0.0, %v10950
  %v10952 = vpop.f32.mrf.mxu0
  %10953 = vmatprep.mubr.bf16.mxu0 0
  %10954 = vmatmul.mubr.bf16.gmra.mxu0 %v10911
  %v10955 = vpop.f32.mrf.mxu0
  %v10956 = vadd.f32 0.0, %v10955
  %v10957 = vpop.f32.mrf.mxu0
  %v10958 = vpop.f32.mrf.mxu0
  %v10959 = vadd.f32 0.0, %v10958
  %v10960 = vpop.f32.mrf.mxu0
  %10961 = vdwg.mxu0
  %v10962 = vadd.f32 %v10802, %v10948
  %v10963 = vadd.f32 %v10803, %v10951
  %v10964 = vadd.f32 %v10804, %v10956
  %v10965 = vadd.f32 %v10805, %v10959
  %s10966 = scalar_lea.vmem %s7, 112
  %v10967 = vld [vmem:[%s10966] sm:$0xf]
  %v10968 = vld [vmem:[%s10966 + $0x4] sm:$0xf]
  %v10969 = vld [vmem:[%s10966 + $0x8] sm:$0xf]
  %v10970 = vld [vmem:[%s10966 + $0xc] sm:$0xf]
  %v10975 = vunpack.c.l.b16 %v10967
  %v10976 = vunpack.c.l.b16 %v10968
  %v10977 = vunpack.c.l.b16 %v10969
  %v10978 = vunpack.c.l.b16 %v10970
  %v10979 = vpack.c.b16 %v10976, %v10975
  %v10980 = vpack.c.b16 %v10978, %v10977
  %10983 = vmatprep.subr.bf16.mxu0 0
  %10984 = vmatpush1.bf16.msra.mxu0 %v9855
  %10985 = vmatprep.subr.bf16.mxu0 0
  %10986 = vmatpush1.bf16.msra.mxu0 %v9854
  %10987 = vmatprep.subr.bf16.mxu0 0
  %10988 = vmatpush1.bf16.msra.mxu0 %v9853
  %10989 = vmatprep.subr.bf16.mxu0 0
  %10990 = vmatpush1.bf16.msra.mxu0 %v9852
  %10991 = vmatprep.subr.bf16.mxu0 0
  %10992 = vmatpush1.bf16.msra.mxu0 %v9851
  %10993 = vmatprep.subr.bf16.mxu0 0
  %10994 = vmatpush1.bf16.msra.mxu0 %v9850
  %10995 = vmatprep.subr.bf16.mxu0 0
  %10996 = vmatpush1.bf16.msra.mxu0 %v9849
  %10997 = vmatprep.subr.bf16.mxu0 0
  %10998 = vmatpush1.bf16.msra.mxu0 %v9848
  %10999 = vmatprep.subr.bf16.mxu0 0
  %11000 = vmatpush2.bf16.msra.mxu0 0
  %11001 = vmatprep.subr.bf16.mxu0 0
  %11002 = vmatpush2.bf16.msra.mxu0 0
  %11003 = vmatprep.subr.bf16.mxu0 0
  %11004 = vmatpush2.bf16.msra.mxu0 0
  %11005 = vmatprep.subr.bf16.mxu0 0
  %11006 = vmatpush2.bf16.msra.mxu0 0
  %11007 = vmatprep.subr.bf16.mxu0 0
  %11008 = vmatpush2.bf16.msra.mxu0 0
  %11009 = vmatprep.subr.bf16.mxu0 0
  %11010 = vmatpush2.bf16.msra.mxu0 0
  %11011 = vmatprep.subr.bf16.mxu0 0
  %11012 = vmatpush2.bf16.msra.mxu0 0
  %11013 = vmatprep.subr.bf16.mxu0 0
  %11014 = vmatpush2.bf16.msra.mxu0 0
  %11015 = vmatprep.mubr.bf16.mxu0 0
  %11016 = vmatmul.mubr.bf16.gmra.mxu0 %v10979
  %v11017 = vpop.f32.mrf.mxu0
  %v11018 = vadd.f32 0.0, %v11017
  %v11019 = vpop.f32.mrf.mxu0
  %v11020 = vpop.f32.mrf.mxu0
  %v11021 = vadd.f32 0.0, %v11020
  %v11022 = vpop.f32.mrf.mxu0
  %11023 = vmatprep.mubr.bf16.mxu0 0
  %11024 = vmatmul.mubr.bf16.gmra.mxu0 %v10980
  %v11025 = vpop.f32.mrf.mxu0
  %v11026 = vadd.f32 0.0, %v11025
  %v11027 = vpop.f32.mrf.mxu0
  %v11028 = vpop.f32.mrf.mxu0
  %v11029 = vadd.f32 0.0, %v11028
  %v11030 = vpop.f32.mrf.mxu0
  %11031 = vdwg.mxu0
  %v11032 = vpack.c.bf16 %v11021, %v11018
  %v11033 = vpack.c.bf16 %v11029, %v11026
  %s11034 = scalar_lea.vmem %s8, 224
  %v11035 = vld [vmem:[%s11034] sm:$0xf]
  %v11036 = vld [vmem:[%s11034 + $0x4] sm:$0xf]
  %v11037 = vld [vmem:[%s11034 + $0x8] sm:$0xf]
  %v11038 = vld [vmem:[%s11034 + $0xc] sm:$0xf]
  %v11039 = vld [vmem:[%s11034 + $0x10] sm:$0xf]
  %v11040 = vld [vmem:[%s11034 + $0x14] sm:$0xf]
  %v11041 = vld [vmem:[%s11034 + $0x18] sm:$0xf]
  %v11042 = vld [vmem:[%s11034 + $0x1c] sm:$0xf]
  %v11051 = vunpack.c.l.b16 %v11035
  %v11052 = vunpack.c.l.b16 %v11036
  %v11053 = vunpack.c.l.b16 %v11037
  %v11054 = vunpack.c.l.b16 %v11038
  %v11055 = vunpack.c.l.b16 %v11039
  %v11056 = vunpack.c.l.b16 %v11040
  %v11057 = vunpack.c.l.b16 %v11041
  %v11058 = vunpack.c.l.b16 %v11042
  %v11059 = vpack.c.b16 %v11052, %v11051
  %v11060 = vpack.c.b16 %v11054, %v11053
  %v11061 = vpack.c.b16 %v11056, %v11055
  %v11062 = vpack.c.b16 %v11058, %v11057
  %v11068 = vsel %vm9641, %v11032, 0
  %v11071 = vsel %vm9641, %v11033, 0
  %11073 = vmatprep.subr.bf16.mxu0 0
  %11074 = vmatpush1.bf16.msra.mxu0 0
  %11075 = vmatprep.subr.bf16.mxu0 0
  %11076 = vmatpush1.bf16.msra.mxu0 0
  %11077 = vmatprep.subr.bf16.mxu0 0
  %11078 = vmatpush1.bf16.msra.mxu0 0
  %11079 = vmatprep.subr.bf16.mxu0 0
  %11080 = vmatpush1.bf16.msra.mxu0 0
  %11081 = vmatprep.subr.bf16.mxu0 0
  %11082 = vmatpush1.bf16.msra.mxu0 %v11062
  %11083 = vmatprep.subr.bf16.mxu0 0
  %11084 = vmatpush1.bf16.msra.mxu0 %v11061
  %11085 = vmatprep.subr.bf16.mxu0 0
  %11086 = vmatpush1.bf16.msra.mxu0 %v11060
  %11087 = vmatprep.subr.bf16.mxu0 0
  %11088 = vmatpush1.bf16.msra.mxu0 %v11059
  %11089 = vmatprep.subr.bf16.mxu0 0
  %11090 = vmatpush2.bf16.msra.mxu0 0
  %11091 = vmatprep.subr.bf16.mxu0 0
  %11092 = vmatpush2.bf16.msra.mxu0 0
  %11093 = vmatprep.subr.bf16.mxu0 0
  %11094 = vmatpush2.bf16.msra.mxu0 0
  %11095 = vmatprep.subr.bf16.mxu0 0
  %11096 = vmatpush2.bf16.msra.mxu0 0
  %11097 = vmatprep.subr.bf16.mxu0 0
  %11098 = vmatpush2.bf16.msra.mxu0 0
  %11099 = vmatprep.subr.bf16.mxu0 0
  %11100 = vmatpush2.bf16.msra.mxu0 0
  %11101 = vmatprep.subr.bf16.mxu0 0
  %11102 = vmatpush2.bf16.msra.mxu0 0
  %11103 = vmatprep.subr.bf16.mxu0 0
  %11104 = vmatpush2.bf16.msra.mxu0 0
  %11105 = vmatprep.mubr.bf16.mxu0 0
  %11106 = vmatmul.mubr.bf16.gmra.mxu0 %v11068
  %v11107 = vpop.f32.mrf.mxu0
  %v11108 = vadd.f32 0.0, %v11107
  %v11109 = vpop.f32.mrf.mxu0
  %v11110 = vpop.f32.mrf.mxu0
  %v11111 = vadd.f32 0.0, %v11110
  %v11112 = vpop.f32.mrf.mxu0
  %11113 = vmatprep.mubr.bf16.mxu0 0
  %11114 = vmatmul.mubr.bf16.gmra.mxu0 %v11071
  %v11115 = vpop.f32.mrf.mxu0
  %v11116 = vadd.f32 0.0, %v11115
  %v11117 = vpop.f32.mrf.mxu0
  %v11118 = vpop.f32.mrf.mxu0
  %v11119 = vadd.f32 0.0, %v11118
  %v11120 = vpop.f32.mrf.mxu0
  %11121 = vdwg.mxu0
  %v11122 = vadd.f32 %v10962, %v11108
  %v11123 = vadd.f32 %v10963, %v11111
  %v11124 = vadd.f32 %v10964, %v11116
  %v11125 = vadd.f32 %v10965, %v11119
  %s11126 = scalar_lea.vmem %s7, 128
  %v11127 = vld [vmem:[%s11126] sm:$0xf]
  %v11128 = vld [vmem:[%s11126 + $0x4] sm:$0xf]
  %v11129 = vld [vmem:[%s11126 + $0x8] sm:$0xf]
  %v11130 = vld [vmem:[%s11126 + $0xc] sm:$0xf]
  %v11135 = vunpack.c.l.b16 %v11127
  %v11136 = vunpack.c.l.b16 %v11128
  %v11137 = vunpack.c.l.b16 %v11129
  %v11138 = vunpack.c.l.b16 %v11130
  %v11139 = vpack.c.b16 %v11136, %v11135
  %v11140 = vpack.c.b16 %v11138, %v11137
  %11143 = vmatprep.subr.bf16.mxu0 0
  %11144 = vmatpush1.bf16.msra.mxu0 %v9855
  %11145 = vmatprep.subr.bf16.mxu0 0
  %11146 = vmatpush1.bf16.msra.mxu0 %v9854
  %11147 = vmatprep.subr.bf16.mxu0 0
  %11148 = vmatpush1.bf16.msra.mxu0 %v9853
  %11149 = vmatprep.subr.bf16.mxu0 0
  %11150 = vmatpush1.bf16.msra.mxu0 %v9852
  %11151 = vmatprep.subr.bf16.mxu0 0
  %11152 = vmatpush1.bf16.msra.mxu0 %v9851
  %11153 = vmatprep.subr.bf16.mxu0 0
  %11154 = vmatpush1.bf16.msra.mxu0 %v9850
  %11155 = vmatprep.subr.bf16.mxu0 0
  %11156 = vmatpush1.bf16.msra.mxu0 %v9849
  %11157 = vmatprep.subr.bf16.mxu0 0
  %11158 = vmatpush1.bf16.msra.mxu0 %v9848
  %11159 = vmatprep.subr.bf16.mxu0 0
  %11160 = vmatpush2.bf16.msra.mxu0 0
  %11161 = vmatprep.subr.bf16.mxu0 0
  %11162 = vmatpush2.bf16.msra.mxu0 0
  %11163 = vmatprep.subr.bf16.mxu0 0
  %11164 = vmatpush2.bf16.msra.mxu0 0
  %11165 = vmatprep.subr.bf16.mxu0 0
  %11166 = vmatpush2.bf16.msra.mxu0 0
  %11167 = vmatprep.subr.bf16.mxu0 0
  %11168 = vmatpush2.bf16.msra.mxu0 0
  %11169 = vmatprep.subr.bf16.mxu0 0
  %11170 = vmatpush2.bf16.msra.mxu0 0
  %11171 = vmatprep.subr.bf16.mxu0 0
  %11172 = vmatpush2.bf16.msra.mxu0 0
  %11173 = vmatprep.subr.bf16.mxu0 0
  %11174 = vmatpush2.bf16.msra.mxu0 0
  %11175 = vmatprep.mubr.bf16.mxu0 0
  %11176 = vmatmul.mubr.bf16.gmra.mxu0 %v11139
  %v11177 = vpop.f32.mrf.mxu0
  %v11178 = vadd.f32 0.0, %v11177
  %v11179 = vpop.f32.mrf.mxu0
  %v11180 = vpop.f32.mrf.mxu0
  %v11181 = vadd.f32 0.0, %v11180
  %v11182 = vpop.f32.mrf.mxu0
  %11183 = vmatprep.mubr.bf16.mxu0 0
  %11184 = vmatmul.mubr.bf16.gmra.mxu0 %v11140
  %v11185 = vpop.f32.mrf.mxu0
  %v11186 = vadd.f32 0.0, %v11185
  %v11187 = vpop.f32.mrf.mxu0
  %v11188 = vpop.f32.mrf.mxu0
  %v11189 = vadd.f32 0.0, %v11188
  %v11190 = vpop.f32.mrf.mxu0
  %11191 = vdwg.mxu0
  %v11192 = vpack.c.bf16 %v11181, %v11178
  %v11193 = vpack.c.bf16 %v11189, %v11186
  %s11194 = scalar_lea.vmem %s8, 256
  %v11195 = vld [vmem:[%s11194] sm:$0xf]
  %v11196 = vld [vmem:[%s11194 + $0x4] sm:$0xf]
  %v11197 = vld [vmem:[%s11194 + $0x8] sm:$0xf]
  %v11198 = vld [vmem:[%s11194 + $0xc] sm:$0xf]
  %v11199 = vld [vmem:[%s11194 + $0x10] sm:$0xf]
  %v11200 = vld [vmem:[%s11194 + $0x14] sm:$0xf]
  %v11201 = vld [vmem:[%s11194 + $0x18] sm:$0xf]
  %v11202 = vld [vmem:[%s11194 + $0x1c] sm:$0xf]
  %v11211 = vunpack.c.l.b16 %v11195
  %v11212 = vunpack.c.l.b16 %v11196
  %v11213 = vunpack.c.l.b16 %v11197
  %v11214 = vunpack.c.l.b16 %v11198
  %v11215 = vunpack.c.l.b16 %v11199
  %v11216 = vunpack.c.l.b16 %v11200
  %v11217 = vunpack.c.l.b16 %v11201
  %v11218 = vunpack.c.l.b16 %v11202
  %v11219 = vpack.c.b16 %v11212, %v11211
  %v11220 = vpack.c.b16 %v11214, %v11213
  %v11221 = vpack.c.b16 %v11216, %v11215
  %v11222 = vpack.c.b16 %v11218, %v11217
  %v11228 = vsel %vm9641, %v11192, 0
  %v11231 = vsel %vm9641, %v11193, 0
  %11233 = vmatprep.subr.bf16.mxu0 0
  %11234 = vmatpush1.bf16.msra.mxu0 0
  %11235 = vmatprep.subr.bf16.mxu0 0
  %11236 = vmatpush1.bf16.msra.mxu0 0
  %11237 = vmatprep.subr.bf16.mxu0 0
  %11238 = vmatpush1.bf16.msra.mxu0 0
  %11239 = vmatprep.subr.bf16.mxu0 0
  %11240 = vmatpush1.bf16.msra.mxu0 0
  %11241 = vmatprep.subr.bf16.mxu0 0
  %11242 = vmatpush1.bf16.msra.mxu0 %v11222
  %11243 = vmatprep.subr.bf16.mxu0 0
  %11244 = vmatpush1.bf16.msra.mxu0 %v11221
  %11245 = vmatprep.subr.bf16.mxu0 0
  %11246 = vmatpush1.bf16.msra.mxu0 %v11220
  %11247 = vmatprep.subr.bf16.mxu0 0
  %11248 = vmatpush1.bf16.msra.mxu0 %v11219
  %11249 = vmatprep.subr.bf16.mxu0 0
  %11250 = vmatpush2.bf16.msra.mxu0 0
  %11251 = vmatprep.subr.bf16.mxu0 0
  %11252 = vmatpush2.bf16.msra.mxu0 0
  %11253 = vmatprep.subr.bf16.mxu0 0
  %11254 = vmatpush2.bf16.msra.mxu0 0
  %11255 = vmatprep.subr.bf16.mxu0 0
  %11256 = vmatpush2.bf16.msra.mxu0 0
  %11257 = vmatprep.subr.bf16.mxu0 0
  %11258 = vmatpush2.bf16.msra.mxu0 0
  %11259 = vmatprep.subr.bf16.mxu0 0
  %11260 = vmatpush2.bf16.msra.mxu0 0
  %11261 = vmatprep.subr.bf16.mxu0 0
  %11262 = vmatpush2.bf16.msra.mxu0 0
  %11263 = vmatprep.subr.bf16.mxu0 0
  %11264 = vmatpush2.bf16.msra.mxu0 0
  %11265 = vmatprep.mubr.bf16.mxu0 0
  %11266 = vmatmul.mubr.bf16.gmra.mxu0 %v11228
  %v11267 = vpop.f32.mrf.mxu0
  %v11268 = vadd.f32 0.0, %v11267
  %v11269 = vpop.f32.mrf.mxu0
  %v11270 = vpop.f32.mrf.mxu0
  %v11271 = vadd.f32 0.0, %v11270
  %v11272 = vpop.f32.mrf.mxu0
  %11273 = vmatprep.mubr.bf16.mxu0 0
  %11274 = vmatmul.mubr.bf16.gmra.mxu0 %v11231
  %v11275 = vpop.f32.mrf.mxu0
  %v11276 = vadd.f32 0.0, %v11275
  %v11277 = vpop.f32.mrf.mxu0
  %v11278 = vpop.f32.mrf.mxu0
  %v11279 = vadd.f32 0.0, %v11278
  %v11280 = vpop.f32.mrf.mxu0
  %11281 = vdwg.mxu0
  %v11282 = vadd.f32 %v11122, %v11268
  %v11283 = vadd.f32 %v11123, %v11271
  %v11284 = vadd.f32 %v11124, %v11276
  %v11285 = vadd.f32 %v11125, %v11279
  %s11286 = scalar_lea.vmem %s7, 144
  %v11287 = vld [vmem:[%s11286] sm:$0xf]
  %v11288 = vld [vmem:[%s11286 + $0x4] sm:$0xf]
  %v11289 = vld [vmem:[%s11286 + $0x8] sm:$0xf]
  %v11290 = vld [vmem:[%s11286 + $0xc] sm:$0xf]
  %v11295 = vunpack.c.l.b16 %v11287
  %v11296 = vunpack.c.l.b16 %v11288
  %v11297 = vunpack.c.l.b16 %v11289
  %v11298 = vunpack.c.l.b16 %v11290
  %v11299 = vpack.c.b16 %v11296, %v11295
  %v11300 = vpack.c.b16 %v11298, %v11297
  %11303 = vmatprep.subr.bf16.mxu0 0
  %11304 = vmatpush1.bf16.msra.mxu0 %v9855
  %11305 = vmatprep.subr.bf16.mxu0 0
  %11306 = vmatpush1.bf16.msra.mxu0 %v9854
  %11307 = vmatprep.subr.bf16.mxu0 0
  %11308 = vmatpush1.bf16.msra.mxu0 %v9853
  %11309 = vmatprep.subr.bf16.mxu0 0
  %11310 = vmatpush1.bf16.msra.mxu0 %v9852
  %11311 = vmatprep.subr.bf16.mxu0 0
  %11312 = vmatpush1.bf16.msra.mxu0 %v9851
  %11313 = vmatprep.subr.bf16.mxu0 0
  %11314 = vmatpush1.bf16.msra.mxu0 %v9850
  %11315 = vmatprep.subr.bf16.mxu0 0
  %11316 = vmatpush1.bf16.msra.mxu0 %v9849
  %11317 = vmatprep.subr.bf16.mxu0 0
  %11318 = vmatpush1.bf16.msra.mxu0 %v9848
  %11319 = vmatprep.subr.bf16.mxu0 0
  %11320 = vmatpush2.bf16.msra.mxu0 0
  %11321 = vmatprep.subr.bf16.mxu0 0
  %11322 = vmatpush2.bf16.msra.mxu0 0
  %11323 = vmatprep.subr.bf16.mxu0 0
  %11324 = vmatpush2.bf16.msra.mxu0 0
  %11325 = vmatprep.subr.bf16.mxu0 0
  %11326 = vmatpush2.bf16.msra.mxu0 0
  %11327 = vmatprep.subr.bf16.mxu0 0
  %11328 = vmatpush2.bf16.msra.mxu0 0
  %11329 = vmatprep.subr.bf16.mxu0 0
  %11330 = vmatpush2.bf16.msra.mxu0 0
  %11331 = vmatprep.subr.bf16.mxu0 0
  %11332 = vmatpush2.bf16.msra.mxu0 0
  %11333 = vmatprep.subr.bf16.mxu0 0
  %11334 = vmatpush2.bf16.msra.mxu0 0
  %11335 = vmatprep.mubr.bf16.mxu0 0
  %11336 = vmatmul.mubr.bf16.gmra.mxu0 %v11299
  %v11337 = vpop.f32.mrf.mxu0
  %v11338 = vadd.f32 0.0, %v11337
  %v11339 = vpop.f32.mrf.mxu0
  %v11340 = vpop.f32.mrf.mxu0
  %v11341 = vadd.f32 0.0, %v11340
  %v11342 = vpop.f32.mrf.mxu0
  %11343 = vmatprep.mubr.bf16.mxu0 0
  %11344 = vmatmul.mubr.bf16.gmra.mxu0 %v11300
  %v11345 = vpop.f32.mrf.mxu0
  %v11346 = vadd.f32 0.0, %v11345
  %v11347 = vpop.f32.mrf.mxu0
  %v11348 = vpop.f32.mrf.mxu0
  %v11349 = vadd.f32 0.0, %v11348
  %v11350 = vpop.f32.mrf.mxu0
  %11351 = vdwg.mxu0
  %v11352 = vpack.c.bf16 %v11341, %v11338
  %v11353 = vpack.c.bf16 %v11349, %v11346
  %s11354 = scalar_lea.vmem %s8, 288
  %v11355 = vld [vmem:[%s11354] sm:$0xf]
  %v11356 = vld [vmem:[%s11354 + $0x4] sm:$0xf]
  %v11357 = vld [vmem:[%s11354 + $0x8] sm:$0xf]
  %v11358 = vld [vmem:[%s11354 + $0xc] sm:$0xf]
  %v11359 = vld [vmem:[%s11354 + $0x10] sm:$0xf]
  %v11360 = vld [vmem:[%s11354 + $0x14] sm:$0xf]
  %v11361 = vld [vmem:[%s11354 + $0x18] sm:$0xf]
  %v11362 = vld [vmem:[%s11354 + $0x1c] sm:$0xf]
  %v11371 = vunpack.c.l.b16 %v11355
  %v11372 = vunpack.c.l.b16 %v11356
  %v11373 = vunpack.c.l.b16 %v11357
  %v11374 = vunpack.c.l.b16 %v11358
  %v11375 = vunpack.c.l.b16 %v11359
  %v11376 = vunpack.c.l.b16 %v11360
  %v11377 = vunpack.c.l.b16 %v11361
  %v11378 = vunpack.c.l.b16 %v11362
  %v11379 = vpack.c.b16 %v11372, %v11371
  %v11380 = vpack.c.b16 %v11374, %v11373
  %v11381 = vpack.c.b16 %v11376, %v11375
  %v11382 = vpack.c.b16 %v11378, %v11377
  %v11388 = vsel %vm9641, %v11352, 0
  %v11391 = vsel %vm9641, %v11353, 0
  %11393 = vmatprep.subr.bf16.mxu0 0
  %11394 = vmatpush1.bf16.msra.mxu0 0
  %11395 = vmatprep.subr.bf16.mxu0 0
  %11396 = vmatpush1.bf16.msra.mxu0 0
  %11397 = vmatprep.subr.bf16.mxu0 0
  %11398 = vmatpush1.bf16.msra.mxu0 0
  %11399 = vmatprep.subr.bf16.mxu0 0
  %11400 = vmatpush1.bf16.msra.mxu0 0
  %11401 = vmatprep.subr.bf16.mxu0 0
  %11402 = vmatpush1.bf16.msra.mxu0 %v11382
  %11403 = vmatprep.subr.bf16.mxu0 0
  %11404 = vmatpush1.bf16.msra.mxu0 %v11381
  %11405 = vmatprep.subr.bf16.mxu0 0
  %11406 = vmatpush1.bf16.msra.mxu0 %v11380
  %11407 = vmatprep.subr.bf16.mxu0 0
  %11408 = vmatpush1.bf16.msra.mxu0 %v11379
  %11409 = vmatprep.subr.bf16.mxu0 0
  %11410 = vmatpush2.bf16.msra.mxu0 0
  %11411 = vmatprep.subr.bf16.mxu0 0
  %11412 = vmatpush2.bf16.msra.mxu0 0
  %11413 = vmatprep.subr.bf16.mxu0 0
  %11414 = vmatpush2.bf16.msra.mxu0 0
  %11415 = vmatprep.subr.bf16.mxu0 0
  %11416 = vmatpush2.bf16.msra.mxu0 0
  %11417 = vmatprep.subr.bf16.mxu0 0
  %11418 = vmatpush2.bf16.msra.mxu0 0
  %11419 = vmatprep.subr.bf16.mxu0 0
  %11420 = vmatpush2.bf16.msra.mxu0 0
  %11421 = vmatprep.subr.bf16.mxu0 0
  %11422 = vmatpush2.bf16.msra.mxu0 0
  %11423 = vmatprep.subr.bf16.mxu0 0
  %11424 = vmatpush2.bf16.msra.mxu0 0
  %11425 = vmatprep.mubr.bf16.mxu0 0
  %11426 = vmatmul.mubr.bf16.gmra.mxu0 %v11388
  %v11427 = vpop.f32.mrf.mxu0
  %v11428 = vadd.f32 0.0, %v11427
  %v11429 = vpop.f32.mrf.mxu0
  %v11430 = vpop.f32.mrf.mxu0
  %v11431 = vadd.f32 0.0, %v11430
  %v11432 = vpop.f32.mrf.mxu0
  %11433 = vmatprep.mubr.bf16.mxu0 0
  %11434 = vmatmul.mubr.bf16.gmra.mxu0 %v11391
  %v11435 = vpop.f32.mrf.mxu0
  %v11436 = vadd.f32 0.0, %v11435
  %v11437 = vpop.f32.mrf.mxu0
  %v11438 = vpop.f32.mrf.mxu0
  %v11439 = vadd.f32 0.0, %v11438
  %v11440 = vpop.f32.mrf.mxu0
  %11441 = vdwg.mxu0
  %v11442 = vadd.f32 %v11282, %v11428
  %v11443 = vadd.f32 %v11283, %v11431
  %v11444 = vadd.f32 %v11284, %v11436
  %v11445 = vadd.f32 %v11285, %v11439
  %s11446 = scalar_lea.vmem %s7, 160
  %v11447 = vld [vmem:[%s11446] sm:$0xf]
  %v11448 = vld [vmem:[%s11446 + $0x4] sm:$0xf]
  %v11449 = vld [vmem:[%s11446 + $0x8] sm:$0xf]
  %v11450 = vld [vmem:[%s11446 + $0xc] sm:$0xf]
  %v11455 = vunpack.c.l.b16 %v11447
  %v11456 = vunpack.c.l.b16 %v11448
  %v11457 = vunpack.c.l.b16 %v11449
  %v11458 = vunpack.c.l.b16 %v11450
  %v11459 = vpack.c.b16 %v11456, %v11455
  %v11460 = vpack.c.b16 %v11458, %v11457
  %11463 = vmatprep.subr.bf16.mxu0 0
  %11464 = vmatpush1.bf16.msra.mxu0 %v9855
  %11465 = vmatprep.subr.bf16.mxu0 0
  %11466 = vmatpush1.bf16.msra.mxu0 %v9854
  %11467 = vmatprep.subr.bf16.mxu0 0
  %11468 = vmatpush1.bf16.msra.mxu0 %v9853
  %11469 = vmatprep.subr.bf16.mxu0 0
  %11470 = vmatpush1.bf16.msra.mxu0 %v9852
  %11471 = vmatprep.subr.bf16.mxu0 0
  %11472 = vmatpush1.bf16.msra.mxu0 %v9851
  %11473 = vmatprep.subr.bf16.mxu0 0
  %11474 = vmatpush1.bf16.msra.mxu0 %v9850
  %11475 = vmatprep.subr.bf16.mxu0 0
  %11476 = vmatpush1.bf16.msra.mxu0 %v9849
  %11477 = vmatprep.subr.bf16.mxu0 0
  %11478 = vmatpush1.bf16.msra.mxu0 %v9848
  %11479 = vmatprep.subr.bf16.mxu0 0
  %11480 = vmatpush2.bf16.msra.mxu0 0
  %11481 = vmatprep.subr.bf16.mxu0 0
  %11482 = vmatpush2.bf16.msra.mxu0 0
  %11483 = vmatprep.subr.bf16.mxu0 0
  %11484 = vmatpush2.bf16.msra.mxu0 0
  %11485 = vmatprep.subr.bf16.mxu0 0
  %11486 = vmatpush2.bf16.msra.mxu0 0
  %11487 = vmatprep.subr.bf16.mxu0 0
  %11488 = vmatpush2.bf16.msra.mxu0 0
  %11489 = vmatprep.subr.bf16.mxu0 0
  %11490 = vmatpush2.bf16.msra.mxu0 0
  %11491 = vmatprep.subr.bf16.mxu0 0
  %11492 = vmatpush2.bf16.msra.mxu0 0
  %11493 = vmatprep.subr.bf16.mxu0 0
  %11494 = vmatpush2.bf16.msra.mxu0 0
  %11495 = vmatprep.mubr.bf16.mxu0 0
  %11496 = vmatmul.mubr.bf16.gmra.mxu0 %v11459
  %v11497 = vpop.f32.mrf.mxu0
  %v11498 = vadd.f32 0.0, %v11497
  %v11499 = vpop.f32.mrf.mxu0
  %v11500 = vpop.f32.mrf.mxu0
  %v11501 = vadd.f32 0.0, %v11500
  %v11502 = vpop.f32.mrf.mxu0
  %11503 = vmatprep.mubr.bf16.mxu0 0
  %11504 = vmatmul.mubr.bf16.gmra.mxu0 %v11460
  %v11505 = vpop.f32.mrf.mxu0
  %v11506 = vadd.f32 0.0, %v11505
  %v11507 = vpop.f32.mrf.mxu0
  %v11508 = vpop.f32.mrf.mxu0
  %v11509 = vadd.f32 0.0, %v11508
  %v11510 = vpop.f32.mrf.mxu0
  %11511 = vdwg.mxu0
  %v11512 = vpack.c.bf16 %v11501, %v11498
  %v11513 = vpack.c.bf16 %v11509, %v11506
  %s11514 = scalar_lea.vmem %s8, 320
  %v11515 = vld [vmem:[%s11514] sm:$0xf]
  %v11516 = vld [vmem:[%s11514 + $0x4] sm:$0xf]
  %v11517 = vld [vmem:[%s11514 + $0x8] sm:$0xf]
  %v11518 = vld [vmem:[%s11514 + $0xc] sm:$0xf]
  %v11519 = vld [vmem:[%s11514 + $0x10] sm:$0xf]
  %v11520 = vld [vmem:[%s11514 + $0x14] sm:$0xf]
  %v11521 = vld [vmem:[%s11514 + $0x18] sm:$0xf]
  %v11522 = vld [vmem:[%s11514 + $0x1c] sm:$0xf]
  %v11531 = vunpack.c.l.b16 %v11515
  %v11532 = vunpack.c.l.b16 %v11516
  %v11533 = vunpack.c.l.b16 %v11517
  %v11534 = vunpack.c.l.b16 %v11518
  %v11535 = vunpack.c.l.b16 %v11519
  %v11536 = vunpack.c.l.b16 %v11520
  %v11537 = vunpack.c.l.b16 %v11521
  %v11538 = vunpack.c.l.b16 %v11522
  %v11539 = vpack.c.b16 %v11532, %v11531
  %v11540 = vpack.c.b16 %v11534, %v11533
  %v11541 = vpack.c.b16 %v11536, %v11535
  %v11542 = vpack.c.b16 %v11538, %v11537
  %v11548 = vsel %vm9641, %v11512, 0
  %v11551 = vsel %vm9641, %v11513, 0
  %11553 = vmatprep.subr.bf16.mxu0 0
  %11554 = vmatpush1.bf16.msra.mxu0 0
  %11555 = vmatprep.subr.bf16.mxu0 0
  %11556 = vmatpush1.bf16.msra.mxu0 0
  %11557 = vmatprep.subr.bf16.mxu0 0
  %11558 = vmatpush1.bf16.msra.mxu0 0
  %11559 = vmatprep.subr.bf16.mxu0 0
  %11560 = vmatpush1.bf16.msra.mxu0 0
  %11561 = vmatprep.subr.bf16.mxu0 0
  %11562 = vmatpush1.bf16.msra.mxu0 %v11542
  %11563 = vmatprep.subr.bf16.mxu0 0
  %11564 = vmatpush1.bf16.msra.mxu0 %v11541
  %11565 = vmatprep.subr.bf16.mxu0 0
  %11566 = vmatpush1.bf16.msra.mxu0 %v11540
  %11567 = vmatprep.subr.bf16.mxu0 0
  %11568 = vmatpush1.bf16.msra.mxu0 %v11539
  %11569 = vmatprep.subr.bf16.mxu0 0
  %11570 = vmatpush2.bf16.msra.mxu0 0
  %11571 = vmatprep.subr.bf16.mxu0 0
  %11572 = vmatpush2.bf16.msra.mxu0 0
  %11573 = vmatprep.subr.bf16.mxu0 0
  %11574 = vmatpush2.bf16.msra.mxu0 0
  %11575 = vmatprep.subr.bf16.mxu0 0
  %11576 = vmatpush2.bf16.msra.mxu0 0
  %11577 = vmatprep.subr.bf16.mxu0 0
  %11578 = vmatpush2.bf16.msra.mxu0 0
  %11579 = vmatprep.subr.bf16.mxu0 0
  %11580 = vmatpush2.bf16.msra.mxu0 0
  %11581 = vmatprep.subr.bf16.mxu0 0
  %11582 = vmatpush2.bf16.msra.mxu0 0
  %11583 = vmatprep.subr.bf16.mxu0 0
  %11584 = vmatpush2.bf16.msra.mxu0 0
  %11585 = vmatprep.mubr.bf16.mxu0 0
  %11586 = vmatmul.mubr.bf16.gmra.mxu0 %v11548
  %v11587 = vpop.f32.mrf.mxu0
  %v11588 = vadd.f32 0.0, %v11587
  %v11589 = vpop.f32.mrf.mxu0
  %v11590 = vpop.f32.mrf.mxu0
  %v11591 = vadd.f32 0.0, %v11590
  %v11592 = vpop.f32.mrf.mxu0
  %11593 = vmatprep.mubr.bf16.mxu0 0
  %11594 = vmatmul.mubr.bf16.gmra.mxu0 %v11551
  %v11595 = vpop.f32.mrf.mxu0
  %v11596 = vadd.f32 0.0, %v11595
  %v11597 = vpop.f32.mrf.mxu0
  %v11598 = vpop.f32.mrf.mxu0
  %v11599 = vadd.f32 0.0, %v11598
  %v11600 = vpop.f32.mrf.mxu0
  %11601 = vdwg.mxu0
  %v11602 = vadd.f32 %v11442, %v11588
  %v11603 = vadd.f32 %v11443, %v11591
  %v11604 = vadd.f32 %v11444, %v11596
  %v11605 = vadd.f32 %v11445, %v11599
  %s11606 = scalar_lea.vmem %s7, 176
  %v11607 = vld [vmem:[%s11606] sm:$0xf]
  %v11608 = vld [vmem:[%s11606 + $0x4] sm:$0xf]
  %v11609 = vld [vmem:[%s11606 + $0x8] sm:$0xf]
  %v11610 = vld [vmem:[%s11606 + $0xc] sm:$0xf]
  %v11615 = vunpack.c.l.b16 %v11607
  %v11616 = vunpack.c.l.b16 %v11608
  %v11617 = vunpack.c.l.b16 %v11609
  %v11618 = vunpack.c.l.b16 %v11610
  %v11619 = vpack.c.b16 %v11616, %v11615
  %v11620 = vpack.c.b16 %v11618, %v11617
  %11623 = vmatprep.subr.bf16.mxu0 0
  %11624 = vmatpush1.bf16.msra.mxu0 %v9855
  %11625 = vmatprep.subr.bf16.mxu0 0
  %11626 = vmatpush1.bf16.msra.mxu0 %v9854
  %11627 = vmatprep.subr.bf16.mxu0 0
  %11628 = vmatpush1.bf16.msra.mxu0 %v9853
  %11629 = vmatprep.subr.bf16.mxu0 0
  %11630 = vmatpush1.bf16.msra.mxu0 %v9852
  %11631 = vmatprep.subr.bf16.mxu0 0
  %11632 = vmatpush1.bf16.msra.mxu0 %v9851
  %11633 = vmatprep.subr.bf16.mxu0 0
  %11634 = vmatpush1.bf16.msra.mxu0 %v9850
  %11635 = vmatprep.subr.bf16.mxu0 0
  %11636 = vmatpush1.bf16.msra.mxu0 %v9849
  %11637 = vmatprep.subr.bf16.mxu0 0
  %11638 = vmatpush1.bf16.msra.mxu0 %v9848
  %11639 = vmatprep.subr.bf16.mxu0 0
  %11640 = vmatpush2.bf16.msra.mxu0 0
  %11641 = vmatprep.subr.bf16.mxu0 0
  %11642 = vmatpush2.bf16.msra.mxu0 0
  %11643 = vmatprep.subr.bf16.mxu0 0
  %11644 = vmatpush2.bf16.msra.mxu0 0
  %11645 = vmatprep.subr.bf16.mxu0 0
  %11646 = vmatpush2.bf16.msra.mxu0 0
  %11647 = vmatprep.subr.bf16.mxu0 0
  %11648 = vmatpush2.bf16.msra.mxu0 0
  %11649 = vmatprep.subr.bf16.mxu0 0
  %11650 = vmatpush2.bf16.msra.mxu0 0
  %11651 = vmatprep.subr.bf16.mxu0 0
  %11652 = vmatpush2.bf16.msra.mxu0 0
  %11653 = vmatprep.subr.bf16.mxu0 0
  %11654 = vmatpush2.bf16.msra.mxu0 0
  %11655 = vmatprep.mubr.bf16.mxu0 0
  %11656 = vmatmul.mubr.bf16.gmra.mxu0 %v11619
  %v11657 = vpop.f32.mrf.mxu0
  %v11658 = vadd.f32 0.0, %v11657
  %v11659 = vpop.f32.mrf.mxu0
  %v11660 = vpop.f32.mrf.mxu0
  %v11661 = vadd.f32 0.0, %v11660
  %v11662 = vpop.f32.mrf.mxu0
  %11663 = vmatprep.mubr.bf16.mxu0 0
  %11664 = vmatmul.mubr.bf16.gmra.mxu0 %v11620
  %v11665 = vpop.f32.mrf.mxu0
  %v11666 = vadd.f32 0.0, %v11665
  %v11667 = vpop.f32.mrf.mxu0
  %v11668 = vpop.f32.mrf.mxu0
  %v11669 = vadd.f32 0.0, %v11668
  %v11670 = vpop.f32.mrf.mxu0
  %11671 = vdwg.mxu0
  %v11672 = vpack.c.bf16 %v11661, %v11658
  %v11673 = vpack.c.bf16 %v11669, %v11666
  %s11674 = scalar_lea.vmem %s8, 352
  %v11675 = vld [vmem:[%s11674] sm:$0xf]
  %v11676 = vld [vmem:[%s11674 + $0x4] sm:$0xf]
  %v11677 = vld [vmem:[%s11674 + $0x8] sm:$0xf]
  %v11678 = vld [vmem:[%s11674 + $0xc] sm:$0xf]
  %v11679 = vld [vmem:[%s11674 + $0x10] sm:$0xf]
  %v11680 = vld [vmem:[%s11674 + $0x14] sm:$0xf]
  %v11681 = vld [vmem:[%s11674 + $0x18] sm:$0xf]
  %v11682 = vld [vmem:[%s11674 + $0x1c] sm:$0xf]
  %v11691 = vunpack.c.l.b16 %v11675
  %v11692 = vunpack.c.l.b16 %v11676
  %v11693 = vunpack.c.l.b16 %v11677
  %v11694 = vunpack.c.l.b16 %v11678
  %v11695 = vunpack.c.l.b16 %v11679
  %v11696 = vunpack.c.l.b16 %v11680
  %v11697 = vunpack.c.l.b16 %v11681
  %v11698 = vunpack.c.l.b16 %v11682
  %v11699 = vpack.c.b16 %v11692, %v11691
  %v11700 = vpack.c.b16 %v11694, %v11693
  %v11701 = vpack.c.b16 %v11696, %v11695
  %v11702 = vpack.c.b16 %v11698, %v11697
  %v11708 = vsel %vm9641, %v11672, 0
  %v11711 = vsel %vm9641, %v11673, 0
  %11713 = vmatprep.subr.bf16.mxu0 0
  %11714 = vmatpush1.bf16.msra.mxu0 0
  %11715 = vmatprep.subr.bf16.mxu0 0
  %11716 = vmatpush1.bf16.msra.mxu0 0
  %11717 = vmatprep.subr.bf16.mxu0 0
  %11718 = vmatpush1.bf16.msra.mxu0 0
  %11719 = vmatprep.subr.bf16.mxu0 0
  %11720 = vmatpush1.bf16.msra.mxu0 0
  %11721 = vmatprep.subr.bf16.mxu0 0
  %11722 = vmatpush1.bf16.msra.mxu0 %v11702
  %11723 = vmatprep.subr.bf16.mxu0 0
  %11724 = vmatpush1.bf16.msra.mxu0 %v11701
  %11725 = vmatprep.subr.bf16.mxu0 0
  %11726 = vmatpush1.bf16.msra.mxu0 %v11700
  %11727 = vmatprep.subr.bf16.mxu0 0
  %11728 = vmatpush1.bf16.msra.mxu0 %v11699
  %11729 = vmatprep.subr.bf16.mxu0 0
  %11730 = vmatpush2.bf16.msra.mxu0 0
  %11731 = vmatprep.subr.bf16.mxu0 0
  %11732 = vmatpush2.bf16.msra.mxu0 0
  %11733 = vmatprep.subr.bf16.mxu0 0
  %11734 = vmatpush2.bf16.msra.mxu0 0
  %11735 = vmatprep.subr.bf16.mxu0 0
  %11736 = vmatpush2.bf16.msra.mxu0 0
  %11737 = vmatprep.subr.bf16.mxu0 0
  %11738 = vmatpush2.bf16.msra.mxu0 0
  %11739 = vmatprep.subr.bf16.mxu0 0
  %11740 = vmatpush2.bf16.msra.mxu0 0
  %11741 = vmatprep.subr.bf16.mxu0 0
  %11742 = vmatpush2.bf16.msra.mxu0 0
  %11743 = vmatprep.subr.bf16.mxu0 0
  %11744 = vmatpush2.bf16.msra.mxu0 0
  %11745 = vmatprep.mubr.bf16.mxu0 0
  %11746 = vmatmul.mubr.bf16.gmra.mxu0 %v11708
  %v11747 = vpop.f32.mrf.mxu0
  %v11748 = vadd.f32 0.0, %v11747
  %v11749 = vpop.f32.mrf.mxu0
  %v11750 = vpop.f32.mrf.mxu0
  %v11751 = vadd.f32 0.0, %v11750
  %v11752 = vpop.f32.mrf.mxu0
  %11753 = vmatprep.mubr.bf16.mxu0 0
  %11754 = vmatmul.mubr.bf16.gmra.mxu0 %v11711
  %v11755 = vpop.f32.mrf.mxu0
  %v11756 = vadd.f32 0.0, %v11755
  %v11757 = vpop.f32.mrf.mxu0
  %v11758 = vpop.f32.mrf.mxu0
  %v11759 = vadd.f32 0.0, %v11758
  %v11760 = vpop.f32.mrf.mxu0
  %11761 = vdwg.mxu0
  %v11762 = vadd.f32 %v11602, %v11748
  %v11763 = vadd.f32 %v11603, %v11751
  %v11764 = vadd.f32 %v11604, %v11756
  %v11765 = vadd.f32 %v11605, %v11759
  %s11766 = scalar_lea.vmem %s7, 192
  %v11767 = vld [vmem:[%s11766] sm:$0xf]
  %v11768 = vld [vmem:[%s11766 + $0x4] sm:$0xf]
  %v11769 = vld [vmem:[%s11766 + $0x8] sm:$0xf]
  %v11770 = vld [vmem:[%s11766 + $0xc] sm:$0xf]
  %v11775 = vunpack.c.l.b16 %v11767
  %v11776 = vunpack.c.l.b16 %v11768
  %v11777 = vunpack.c.l.b16 %v11769
  %v11778 = vunpack.c.l.b16 %v11770
  %v11779 = vpack.c.b16 %v11776, %v11775
  %v11780 = vpack.c.b16 %v11778, %v11777
  %11783 = vmatprep.subr.bf16.mxu0 0
  %11784 = vmatpush1.bf16.msra.mxu0 %v9855
  %11785 = vmatprep.subr.bf16.mxu0 0
  %11786 = vmatpush1.bf16.msra.mxu0 %v9854
  %11787 = vmatprep.subr.bf16.mxu0 0
  %11788 = vmatpush1.bf16.msra.mxu0 %v9853
  %11789 = vmatprep.subr.bf16.mxu0 0
  %11790 = vmatpush1.bf16.msra.mxu0 %v9852
  %11791 = vmatprep.subr.bf16.mxu0 0
  %11792 = vmatpush1.bf16.msra.mxu0 %v9851
  %11793 = vmatprep.subr.bf16.mxu0 0
  %11794 = vmatpush1.bf16.msra.mxu0 %v9850
  %11795 = vmatprep.subr.bf16.mxu0 0
  %11796 = vmatpush1.bf16.msra.mxu0 %v9849
  %11797 = vmatprep.subr.bf16.mxu0 0
  %11798 = vmatpush1.bf16.msra.mxu0 %v9848
  %11799 = vmatprep.subr.bf16.mxu0 0
  %11800 = vmatpush2.bf16.msra.mxu0 0
  %11801 = vmatprep.subr.bf16.mxu0 0
  %11802 = vmatpush2.bf16.msra.mxu0 0
  %11803 = vmatprep.subr.bf16.mxu0 0
  %11804 = vmatpush2.bf16.msra.mxu0 0
  %11805 = vmatprep.subr.bf16.mxu0 0
  %11806 = vmatpush2.bf16.msra.mxu0 0
  %11807 = vmatprep.subr.bf16.mxu0 0
  %11808 = vmatpush2.bf16.msra.mxu0 0
  %11809 = vmatprep.subr.bf16.mxu0 0
  %11810 = vmatpush2.bf16.msra.mxu0 0
  %11811 = vmatprep.subr.bf16.mxu0 0
  %11812 = vmatpush2.bf16.msra.mxu0 0
  %11813 = vmatprep.subr.bf16.mxu0 0
  %11814 = vmatpush2.bf16.msra.mxu0 0
  %11815 = vmatprep.mubr.bf16.mxu0 0
  %11816 = vmatmul.mubr.bf16.gmra.mxu0 %v11779
  %v11817 = vpop.f32.mrf.mxu0
  %v11818 = vadd.f32 0.0, %v11817
  %v11819 = vpop.f32.mrf.mxu0
  %v11820 = vpop.f32.mrf.mxu0
  %v11821 = vadd.f32 0.0, %v11820
  %v11822 = vpop.f32.mrf.mxu0
  %11823 = vmatprep.mubr.bf16.mxu0 0
  %11824 = vmatmul.mubr.bf16.gmra.mxu0 %v11780
  %v11825 = vpop.f32.mrf.mxu0
  %v11826 = vadd.f32 0.0, %v11825
  %v11827 = vpop.f32.mrf.mxu0
  %v11828 = vpop.f32.mrf.mxu0
  %v11829 = vadd.f32 0.0, %v11828
  %v11830 = vpop.f32.mrf.mxu0
  %11831 = vdwg.mxu0
  %v11832 = vpack.c.bf16 %v11821, %v11818
  %v11833 = vpack.c.bf16 %v11829, %v11826
  %s11834 = scalar_lea.vmem %s8, 384
  %v11835 = vld [vmem:[%s11834] sm:$0xf]
  %v11836 = vld [vmem:[%s11834 + $0x4] sm:$0xf]
  %v11837 = vld [vmem:[%s11834 + $0x8] sm:$0xf]
  %v11838 = vld [vmem:[%s11834 + $0xc] sm:$0xf]
  %v11839 = vld [vmem:[%s11834 + $0x10] sm:$0xf]
  %v11840 = vld [vmem:[%s11834 + $0x14] sm:$0xf]
  %v11841 = vld [vmem:[%s11834 + $0x18] sm:$0xf]
  %v11842 = vld [vmem:[%s11834 + $0x1c] sm:$0xf]
  %v11851 = vunpack.c.l.b16 %v11835
  %v11852 = vunpack.c.l.b16 %v11836
  %v11853 = vunpack.c.l.b16 %v11837
  %v11854 = vunpack.c.l.b16 %v11838
  %v11855 = vunpack.c.l.b16 %v11839
  %v11856 = vunpack.c.l.b16 %v11840
  %v11857 = vunpack.c.l.b16 %v11841
  %v11858 = vunpack.c.l.b16 %v11842
  %v11859 = vpack.c.b16 %v11852, %v11851
  %v11860 = vpack.c.b16 %v11854, %v11853
  %v11861 = vpack.c.b16 %v11856, %v11855
  %v11862 = vpack.c.b16 %v11858, %v11857
  %v11868 = vsel %vm9641, %v11832, 0
  %v11871 = vsel %vm9641, %v11833, 0
  %11873 = vmatprep.subr.bf16.mxu0 0
  %11874 = vmatpush1.bf16.msra.mxu0 0
  %11875 = vmatprep.subr.bf16.mxu0 0
  %11876 = vmatpush1.bf16.msra.mxu0 0
  %11877 = vmatprep.subr.bf16.mxu0 0
  %11878 = vmatpush1.bf16.msra.mxu0 0
  %11879 = vmatprep.subr.bf16.mxu0 0
  %11880 = vmatpush1.bf16.msra.mxu0 0
  %11881 = vmatprep.subr.bf16.mxu0 0
  %11882 = vmatpush1.bf16.msra.mxu0 %v11862
  %11883 = vmatprep.subr.bf16.mxu0 0
  %11884 = vmatpush1.bf16.msra.mxu0 %v11861
  %11885 = vmatprep.subr.bf16.mxu0 0
  %11886 = vmatpush1.bf16.msra.mxu0 %v11860
  %11887 = vmatprep.subr.bf16.mxu0 0
  %11888 = vmatpush1.bf16.msra.mxu0 %v11859
  %11889 = vmatprep.subr.bf16.mxu0 0
  %11890 = vmatpush2.bf16.msra.mxu0 0
  %11891 = vmatprep.subr.bf16.mxu0 0
  %11892 = vmatpush2.bf16.msra.mxu0 0
  %11893 = vmatprep.subr.bf16.mxu0 0
  %11894 = vmatpush2.bf16.msra.mxu0 0
  %11895 = vmatprep.subr.bf16.mxu0 0
  %11896 = vmatpush2.bf16.msra.mxu0 0
  %11897 = vmatprep.subr.bf16.mxu0 0
  %11898 = vmatpush2.bf16.msra.mxu0 0
  %11899 = vmatprep.subr.bf16.mxu0 0
  %11900 = vmatpush2.bf16.msra.mxu0 0
  %11901 = vmatprep.subr.bf16.mxu0 0
  %11902 = vmatpush2.bf16.msra.mxu0 0
  %11903 = vmatprep.subr.bf16.mxu0 0
  %11904 = vmatpush2.bf16.msra.mxu0 0
  %11905 = vmatprep.mubr.bf16.mxu0 0
  %11906 = vmatmul.mubr.bf16.gmra.mxu0 %v11868
  %v11907 = vpop.f32.mrf.mxu0
  %v11908 = vadd.f32 0.0, %v11907
  %v11909 = vpop.f32.mrf.mxu0
  %v11910 = vpop.f32.mrf.mxu0
  %v11911 = vadd.f32 0.0, %v11910
  %v11912 = vpop.f32.mrf.mxu0
  %11913 = vmatprep.mubr.bf16.mxu0 0
  %11914 = vmatmul.mubr.bf16.gmra.mxu0 %v11871
  %v11915 = vpop.f32.mrf.mxu0
  %v11916 = vadd.f32 0.0, %v11915
  %v11917 = vpop.f32.mrf.mxu0
  %v11918 = vpop.f32.mrf.mxu0
  %v11919 = vadd.f32 0.0, %v11918
  %v11920 = vpop.f32.mrf.mxu0
  %11921 = vdwg.mxu0
  %v11922 = vadd.f32 %v11762, %v11908
  %v11923 = vadd.f32 %v11763, %v11911
  %v11924 = vadd.f32 %v11764, %v11916
  %v11925 = vadd.f32 %v11765, %v11919
  %s11926 = scalar_lea.vmem %s7, 208
  %v11927 = vld [vmem:[%s11926] sm:$0xf]
  %v11928 = vld [vmem:[%s11926 + $0x4] sm:$0xf]
  %v11929 = vld [vmem:[%s11926 + $0x8] sm:$0xf]
  %v11930 = vld [vmem:[%s11926 + $0xc] sm:$0xf]
  %v11935 = vunpack.c.l.b16 %v11927
  %v11936 = vunpack.c.l.b16 %v11928
  %v11937 = vunpack.c.l.b16 %v11929
  %v11938 = vunpack.c.l.b16 %v11930
  %v11939 = vpack.c.b16 %v11936, %v11935
  %v11940 = vpack.c.b16 %v11938, %v11937
  %11943 = vmatprep.subr.bf16.mxu0 0
  %11944 = vmatpush1.bf16.msra.mxu0 %v9855
  %11945 = vmatprep.subr.bf16.mxu0 0
  %11946 = vmatpush1.bf16.msra.mxu0 %v9854
  %11947 = vmatprep.subr.bf16.mxu0 0
  %11948 = vmatpush1.bf16.msra.mxu0 %v9853
  %11949 = vmatprep.subr.bf16.mxu0 0
  %11950 = vmatpush1.bf16.msra.mxu0 %v9852
  %11951 = vmatprep.subr.bf16.mxu0 0
  %11952 = vmatpush1.bf16.msra.mxu0 %v9851
  %11953 = vmatprep.subr.bf16.mxu0 0
  %11954 = vmatpush1.bf16.msra.mxu0 %v9850
  %11955 = vmatprep.subr.bf16.mxu0 0
  %11956 = vmatpush1.bf16.msra.mxu0 %v9849
  %11957 = vmatprep.subr.bf16.mxu0 0
  %11958 = vmatpush1.bf16.msra.mxu0 %v9848
  %11959 = vmatprep.subr.bf16.mxu0 0
  %11960 = vmatpush2.bf16.msra.mxu0 0
  %11961 = vmatprep.subr.bf16.mxu0 0
  %11962 = vmatpush2.bf16.msra.mxu0 0
  %11963 = vmatprep.subr.bf16.mxu0 0
  %11964 = vmatpush2.bf16.msra.mxu0 0
  %11965 = vmatprep.subr.bf16.mxu0 0
  %11966 = vmatpush2.bf16.msra.mxu0 0
  %11967 = vmatprep.subr.bf16.mxu0 0
  %11968 = vmatpush2.bf16.msra.mxu0 0
  %11969 = vmatprep.subr.bf16.mxu0 0
  %11970 = vmatpush2.bf16.msra.mxu0 0
  %11971 = vmatprep.subr.bf16.mxu0 0
  %11972 = vmatpush2.bf16.msra.mxu0 0
  %11973 = vmatprep.subr.bf16.mxu0 0
  %11974 = vmatpush2.bf16.msra.mxu0 0
  %11975 = vmatprep.mubr.bf16.mxu0 0
  %11976 = vmatmul.mubr.bf16.gmra.mxu0 %v11939
  %v11977 = vpop.f32.mrf.mxu0
  %v11978 = vadd.f32 0.0, %v11977
  %v11979 = vpop.f32.mrf.mxu0
  %v11980 = vpop.f32.mrf.mxu0
  %v11981 = vadd.f32 0.0, %v11980
  %v11982 = vpop.f32.mrf.mxu0
  %11983 = vmatprep.mubr.bf16.mxu0 0
  %11984 = vmatmul.mubr.bf16.gmra.mxu0 %v11940
  %v11985 = vpop.f32.mrf.mxu0
  %v11986 = vadd.f32 0.0, %v11985
  %v11987 = vpop.f32.mrf.mxu0
  %v11988 = vpop.f32.mrf.mxu0
  %v11989 = vadd.f32 0.0, %v11988
  %v11990 = vpop.f32.mrf.mxu0
  %11991 = vdwg.mxu0
  %v11992 = vpack.c.bf16 %v11981, %v11978
  %v11993 = vpack.c.bf16 %v11989, %v11986
  %s11994 = scalar_lea.vmem %s8, 416
  %v11995 = vld [vmem:[%s11994] sm:$0xf]
  %v11996 = vld [vmem:[%s11994 + $0x4] sm:$0xf]
  %v11997 = vld [vmem:[%s11994 + $0x8] sm:$0xf]
  %v11998 = vld [vmem:[%s11994 + $0xc] sm:$0xf]
  %v11999 = vld [vmem:[%s11994 + $0x10] sm:$0xf]
  %v12000 = vld [vmem:[%s11994 + $0x14] sm:$0xf]
  %v12001 = vld [vmem:[%s11994 + $0x18] sm:$0xf]
  %v12002 = vld [vmem:[%s11994 + $0x1c] sm:$0xf]
  %v12011 = vunpack.c.l.b16 %v11995
  %v12012 = vunpack.c.l.b16 %v11996
  %v12013 = vunpack.c.l.b16 %v11997
  %v12014 = vunpack.c.l.b16 %v11998
  %v12015 = vunpack.c.l.b16 %v11999
  %v12016 = vunpack.c.l.b16 %v12000
  %v12017 = vunpack.c.l.b16 %v12001
  %v12018 = vunpack.c.l.b16 %v12002
  %v12019 = vpack.c.b16 %v12012, %v12011
  %v12020 = vpack.c.b16 %v12014, %v12013
  %v12021 = vpack.c.b16 %v12016, %v12015
  %v12022 = vpack.c.b16 %v12018, %v12017
  %v12028 = vsel %vm9641, %v11992, 0
  %v12031 = vsel %vm9641, %v11993, 0
  %12033 = vmatprep.subr.bf16.mxu0 0
  %12034 = vmatpush1.bf16.msra.mxu0 0
  %12035 = vmatprep.subr.bf16.mxu0 0
  %12036 = vmatpush1.bf16.msra.mxu0 0
  %12037 = vmatprep.subr.bf16.mxu0 0
  %12038 = vmatpush1.bf16.msra.mxu0 0
  %12039 = vmatprep.subr.bf16.mxu0 0
  %12040 = vmatpush1.bf16.msra.mxu0 0
  %12041 = vmatprep.subr.bf16.mxu0 0
  %12042 = vmatpush1.bf16.msra.mxu0 %v12022
  %12043 = vmatprep.subr.bf16.mxu0 0
  %12044 = vmatpush1.bf16.msra.mxu0 %v12021
  %12045 = vmatprep.subr.bf16.mxu0 0
  %12046 = vmatpush1.bf16.msra.mxu0 %v12020
  %12047 = vmatprep.subr.bf16.mxu0 0
  %12048 = vmatpush1.bf16.msra.mxu0 %v12019
  %12049 = vmatprep.subr.bf16.mxu0 0
  %12050 = vmatpush2.bf16.msra.mxu0 0
  %12051 = vmatprep.subr.bf16.mxu0 0
  %12052 = vmatpush2.bf16.msra.mxu0 0
  %12053 = vmatprep.subr.bf16.mxu0 0
  %12054 = vmatpush2.bf16.msra.mxu0 0
  %12055 = vmatprep.subr.bf16.mxu0 0
  %12056 = vmatpush2.bf16.msra.mxu0 0
  %12057 = vmatprep.subr.bf16.mxu0 0
  %12058 = vmatpush2.bf16.msra.mxu0 0
  %12059 = vmatprep.subr.bf16.mxu0 0
  %12060 = vmatpush2.bf16.msra.mxu0 0
  %12061 = vmatprep.subr.bf16.mxu0 0
  %12062 = vmatpush2.bf16.msra.mxu0 0
  %12063 = vmatprep.subr.bf16.mxu0 0
  %12064 = vmatpush2.bf16.msra.mxu0 0
  %12065 = vmatprep.mubr.bf16.mxu0 0
  %12066 = vmatmul.mubr.bf16.gmra.mxu0 %v12028
  %v12067 = vpop.f32.mrf.mxu0
  %v12068 = vadd.f32 0.0, %v12067
  %v12069 = vpop.f32.mrf.mxu0
  %v12070 = vpop.f32.mrf.mxu0
  %v12071 = vadd.f32 0.0, %v12070
  %v12072 = vpop.f32.mrf.mxu0
  %12073 = vmatprep.mubr.bf16.mxu0 0
  %12074 = vmatmul.mubr.bf16.gmra.mxu0 %v12031
  %v12075 = vpop.f32.mrf.mxu0
  %v12076 = vadd.f32 0.0, %v12075
  %v12077 = vpop.f32.mrf.mxu0
  %v12078 = vpop.f32.mrf.mxu0
  %v12079 = vadd.f32 0.0, %v12078
  %v12080 = vpop.f32.mrf.mxu0
  %12081 = vdwg.mxu0
  %v12082 = vadd.f32 %v11922, %v12068
  %v12083 = vadd.f32 %v11923, %v12071
  %v12084 = vadd.f32 %v11924, %v12076
  %v12085 = vadd.f32 %v11925, %v12079
  %s12086 = scalar_lea.vmem %s7, 224
  %v12087 = vld [vmem:[%s12086] sm:$0xf]
  %v12088 = vld [vmem:[%s12086 + $0x4] sm:$0xf]
  %v12089 = vld [vmem:[%s12086 + $0x8] sm:$0xf]
  %v12090 = vld [vmem:[%s12086 + $0xc] sm:$0xf]
  %v12095 = vunpack.c.l.b16 %v12087
  %v12096 = vunpack.c.l.b16 %v12088
  %v12097 = vunpack.c.l.b16 %v12089
  %v12098 = vunpack.c.l.b16 %v12090
  %v12099 = vpack.c.b16 %v12096, %v12095
  %v12100 = vpack.c.b16 %v12098, %v12097
  %12103 = vmatprep.subr.bf16.mxu0 0
  %12104 = vmatpush1.bf16.msra.mxu0 %v9855
  %12105 = vmatprep.subr.bf16.mxu0 0
  %12106 = vmatpush1.bf16.msra.mxu0 %v9854
  %12107 = vmatprep.subr.bf16.mxu0 0
  %12108 = vmatpush1.bf16.msra.mxu0 %v9853
  %12109 = vmatprep.subr.bf16.mxu0 0
  %12110 = vmatpush1.bf16.msra.mxu0 %v9852
  %12111 = vmatprep.subr.bf16.mxu0 0
  %12112 = vmatpush1.bf16.msra.mxu0 %v9851
  %12113 = vmatprep.subr.bf16.mxu0 0
  %12114 = vmatpush1.bf16.msra.mxu0 %v9850
  %12115 = vmatprep.subr.bf16.mxu0 0
  %12116 = vmatpush1.bf16.msra.mxu0 %v9849
  %12117 = vmatprep.subr.bf16.mxu0 0
  %12118 = vmatpush1.bf16.msra.mxu0 %v9848
  %12119 = vmatprep.subr.bf16.mxu0 0
  %12120 = vmatpush2.bf16.msra.mxu0 0
  %12121 = vmatprep.subr.bf16.mxu0 0
  %12122 = vmatpush2.bf16.msra.mxu0 0
  %12123 = vmatprep.subr.bf16.mxu0 0
  %12124 = vmatpush2.bf16.msra.mxu0 0
  %12125 = vmatprep.subr.bf16.mxu0 0
  %12126 = vmatpush2.bf16.msra.mxu0 0
  %12127 = vmatprep.subr.bf16.mxu0 0
  %12128 = vmatpush2.bf16.msra.mxu0 0
  %12129 = vmatprep.subr.bf16.mxu0 0
  %12130 = vmatpush2.bf16.msra.mxu0 0
  %12131 = vmatprep.subr.bf16.mxu0 0
  %12132 = vmatpush2.bf16.msra.mxu0 0
  %12133 = vmatprep.subr.bf16.mxu0 0
  %12134 = vmatpush2.bf16.msra.mxu0 0
  %12135 = vmatprep.mubr.bf16.mxu0 0
  %12136 = vmatmul.mubr.bf16.gmra.mxu0 %v12099
  %v12137 = vpop.f32.mrf.mxu0
  %v12138 = vadd.f32 0.0, %v12137
  %v12139 = vpop.f32.mrf.mxu0
  %v12140 = vpop.f32.mrf.mxu0
  %v12141 = vadd.f32 0.0, %v12140
  %v12142 = vpop.f32.mrf.mxu0
  %12143 = vmatprep.mubr.bf16.mxu0 0
  %12144 = vmatmul.mubr.bf16.gmra.mxu0 %v12100
  %v12145 = vpop.f32.mrf.mxu0
  %v12146 = vadd.f32 0.0, %v12145
  %v12147 = vpop.f32.mrf.mxu0
  %v12148 = vpop.f32.mrf.mxu0
  %v12149 = vadd.f32 0.0, %v12148
  %v12150 = vpop.f32.mrf.mxu0
  %12151 = vdwg.mxu0
  %v12152 = vpack.c.bf16 %v12141, %v12138
  %v12153 = vpack.c.bf16 %v12149, %v12146
  %s12154 = scalar_lea.vmem %s8, 448
  %v12155 = vld [vmem:[%s12154] sm:$0xf]
  %v12156 = vld [vmem:[%s12154 + $0x4] sm:$0xf]
  %v12157 = vld [vmem:[%s12154 + $0x8] sm:$0xf]
  %v12158 = vld [vmem:[%s12154 + $0xc] sm:$0xf]
  %v12159 = vld [vmem:[%s12154 + $0x10] sm:$0xf]
  %v12160 = vld [vmem:[%s12154 + $0x14] sm:$0xf]
  %v12161 = vld [vmem:[%s12154 + $0x18] sm:$0xf]
  %v12162 = vld [vmem:[%s12154 + $0x1c] sm:$0xf]
  %v12171 = vunpack.c.l.b16 %v12155
  %v12172 = vunpack.c.l.b16 %v12156
  %v12173 = vunpack.c.l.b16 %v12157
  %v12174 = vunpack.c.l.b16 %v12158
  %v12175 = vunpack.c.l.b16 %v12159
  %v12176 = vunpack.c.l.b16 %v12160
  %v12177 = vunpack.c.l.b16 %v12161
  %v12178 = vunpack.c.l.b16 %v12162
  %v12179 = vpack.c.b16 %v12172, %v12171
  %v12180 = vpack.c.b16 %v12174, %v12173
  %v12181 = vpack.c.b16 %v12176, %v12175
  %v12182 = vpack.c.b16 %v12178, %v12177
  %v12188 = vsel %vm9641, %v12152, 0
  %v12191 = vsel %vm9641, %v12153, 0
  %12193 = vmatprep.subr.bf16.mxu0 0
  %12194 = vmatpush1.bf16.msra.mxu0 0
  %12195 = vmatprep.subr.bf16.mxu0 0
  %12196 = vmatpush1.bf16.msra.mxu0 0
  %12197 = vmatprep.subr.bf16.mxu0 0
  %12198 = vmatpush1.bf16.msra.mxu0 0
  %12199 = vmatprep.subr.bf16.mxu0 0
  %12200 = vmatpush1.bf16.msra.mxu0 0
  %12201 = vmatprep.subr.bf16.mxu0 0
  %12202 = vmatpush1.bf16.msra.mxu0 %v12182
  %12203 = vmatprep.subr.bf16.mxu0 0
  %12204 = vmatpush1.bf16.msra.mxu0 %v12181
  %12205 = vmatprep.subr.bf16.mxu0 0
  %12206 = vmatpush1.bf16.msra.mxu0 %v12180
  %12207 = vmatprep.subr.bf16.mxu0 0
  %12208 = vmatpush1.bf16.msra.mxu0 %v12179
  %12209 = vmatprep.subr.bf16.mxu0 0
  %12210 = vmatpush2.bf16.msra.mxu0 0
  %12211 = vmatprep.subr.bf16.mxu0 0
  %12212 = vmatpush2.bf16.msra.mxu0 0
  %12213 = vmatprep.subr.bf16.mxu0 0
  %12214 = vmatpush2.bf16.msra.mxu0 0
  %12215 = vmatprep.subr.bf16.mxu0 0
  %12216 = vmatpush2.bf16.msra.mxu0 0
  %12217 = vmatprep.subr.bf16.mxu0 0
  %12218 = vmatpush2.bf16.msra.mxu0 0
  %12219 = vmatprep.subr.bf16.mxu0 0
  %12220 = vmatpush2.bf16.msra.mxu0 0
  %12221 = vmatprep.subr.bf16.mxu0 0
  %12222 = vmatpush2.bf16.msra.mxu0 0
  %12223 = vmatprep.subr.bf16.mxu0 0
  %12224 = vmatpush2.bf16.msra.mxu0 0
  %12225 = vmatprep.mubr.bf16.mxu0 0
  %12226 = vmatmul.mubr.bf16.gmra.mxu0 %v12188
  %v12227 = vpop.f32.mrf.mxu0
  %v12228 = vadd.f32 0.0, %v12227
  %v12229 = vpop.f32.mrf.mxu0
  %v12230 = vpop.f32.mrf.mxu0
  %v12231 = vadd.f32 0.0, %v12230
  %v12232 = vpop.f32.mrf.mxu0
  %12233 = vmatprep.mubr.bf16.mxu0 0
  %12234 = vmatmul.mubr.bf16.gmra.mxu0 %v12191
  %v12235 = vpop.f32.mrf.mxu0
  %v12236 = vadd.f32 0.0, %v12235
  %v12237 = vpop.f32.mrf.mxu0
  %v12238 = vpop.f32.mrf.mxu0
  %v12239 = vadd.f32 0.0, %v12238
  %v12240 = vpop.f32.mrf.mxu0
  %12241 = vdwg.mxu0
  %v12242 = vadd.f32 %v12082, %v12228
  %v12243 = vadd.f32 %v12083, %v12231
  %v12244 = vadd.f32 %v12084, %v12236
  %v12245 = vadd.f32 %v12085, %v12239
  %s12246 = scalar_lea.vmem %s7, 240
  %v12247 = vld [vmem:[%s12246] sm:$0xf]
  %v12248 = vld [vmem:[%s12246 + $0x4] sm:$0xf]
  %v12249 = vld [vmem:[%s12246 + $0x8] sm:$0xf]
  %v12250 = vld [vmem:[%s12246 + $0xc] sm:$0xf]
  %v12255 = vunpack.c.l.b16 %v12247
  %v12256 = vunpack.c.l.b16 %v12248
  %v12257 = vunpack.c.l.b16 %v12249
  %v12258 = vunpack.c.l.b16 %v12250
  %v12259 = vpack.c.b16 %v12256, %v12255
  %v12260 = vpack.c.b16 %v12258, %v12257
  %12263 = vmatprep.subr.bf16.mxu0 0
  %12264 = vmatpush1.bf16.msra.mxu0 %v9855
  %12265 = vmatprep.subr.bf16.mxu0 0
  %12266 = vmatpush1.bf16.msra.mxu0 %v9854
  %12267 = vmatprep.subr.bf16.mxu0 0
  %12268 = vmatpush1.bf16.msra.mxu0 %v9853
  %12269 = vmatprep.subr.bf16.mxu0 0
  %12270 = vmatpush1.bf16.msra.mxu0 %v9852
  %12271 = vmatprep.subr.bf16.mxu0 0
  %12272 = vmatpush1.bf16.msra.mxu0 %v9851
  %12273 = vmatprep.subr.bf16.mxu0 0
  %12274 = vmatpush1.bf16.msra.mxu0 %v9850
  %12275 = vmatprep.subr.bf16.mxu0 0
  %12276 = vmatpush1.bf16.msra.mxu0 %v9849
  %12277 = vmatprep.subr.bf16.mxu0 0
  %12278 = vmatpush1.bf16.msra.mxu0 %v9848
  %12279 = vmatprep.subr.bf16.mxu0 0
  %12280 = vmatpush2.bf16.msra.mxu0 0
  %12281 = vmatprep.subr.bf16.mxu0 0
  %12282 = vmatpush2.bf16.msra.mxu0 0
  %12283 = vmatprep.subr.bf16.mxu0 0
  %12284 = vmatpush2.bf16.msra.mxu0 0
  %12285 = vmatprep.subr.bf16.mxu0 0
  %12286 = vmatpush2.bf16.msra.mxu0 0
  %12287 = vmatprep.subr.bf16.mxu0 0
  %12288 = vmatpush2.bf16.msra.mxu0 0
  %12289 = vmatprep.subr.bf16.mxu0 0
  %12290 = vmatpush2.bf16.msra.mxu0 0
  %12291 = vmatprep.subr.bf16.mxu0 0
  %12292 = vmatpush2.bf16.msra.mxu0 0
  %12293 = vmatprep.subr.bf16.mxu0 0
  %12294 = vmatpush2.bf16.msra.mxu0 0
  %12295 = vmatprep.mubr.bf16.mxu0 0
  %12296 = vmatmul.mubr.bf16.gmra.mxu0 %v12259
  %v12297 = vpop.f32.mrf.mxu0
  %v12298 = vadd.f32 0.0, %v12297
  %v12299 = vpop.f32.mrf.mxu0
  %v12300 = vpop.f32.mrf.mxu0
  %v12301 = vadd.f32 0.0, %v12300
  %v12302 = vpop.f32.mrf.mxu0
  %12303 = vmatprep.mubr.bf16.mxu0 0
  %12304 = vmatmul.mubr.bf16.gmra.mxu0 %v12260
  %v12305 = vpop.f32.mrf.mxu0
  %v12306 = vadd.f32 0.0, %v12305
  %v12307 = vpop.f32.mrf.mxu0
  %v12308 = vpop.f32.mrf.mxu0
  %v12309 = vadd.f32 0.0, %v12308
  %v12310 = vpop.f32.mrf.mxu0
  %12311 = vdwg.mxu0
  %v12312 = vpack.c.bf16 %v12301, %v12298
  %v12313 = vpack.c.bf16 %v12309, %v12306
  %s12314 = scalar_lea.vmem %s8, 480
  %v12315 = vld [vmem:[%s12314] sm:$0xf]
  %v12316 = vld [vmem:[%s12314 + $0x4] sm:$0xf]
  %v12317 = vld [vmem:[%s12314 + $0x8] sm:$0xf]
  %v12318 = vld [vmem:[%s12314 + $0xc] sm:$0xf]
  %v12319 = vld [vmem:[%s12314 + $0x10] sm:$0xf]
  %v12320 = vld [vmem:[%s12314 + $0x14] sm:$0xf]
  %v12321 = vld [vmem:[%s12314 + $0x18] sm:$0xf]
  %v12322 = vld [vmem:[%s12314 + $0x1c] sm:$0xf]
  %v12331 = vunpack.c.l.b16 %v12315
  %v12332 = vunpack.c.l.b16 %v12316
  %v12333 = vunpack.c.l.b16 %v12317
  %v12334 = vunpack.c.l.b16 %v12318
  %v12335 = vunpack.c.l.b16 %v12319
  %v12336 = vunpack.c.l.b16 %v12320
  %v12337 = vunpack.c.l.b16 %v12321
  %v12338 = vunpack.c.l.b16 %v12322
  %v12339 = vpack.c.b16 %v12332, %v12331
  %v12340 = vpack.c.b16 %v12334, %v12333
  %v12341 = vpack.c.b16 %v12336, %v12335
  %v12342 = vpack.c.b16 %v12338, %v12337
  %v12348 = vsel %vm9641, %v12312, 0
  %v12351 = vsel %vm9641, %v12313, 0
  %12353 = vmatprep.subr.bf16.mxu0 0
  %12354 = vmatpush1.bf16.msra.mxu0 0
  %12355 = vmatprep.subr.bf16.mxu0 0
  %12356 = vmatpush1.bf16.msra.mxu0 0
  %12357 = vmatprep.subr.bf16.mxu0 0
  %12358 = vmatpush1.bf16.msra.mxu0 0
  %12359 = vmatprep.subr.bf16.mxu0 0
  %12360 = vmatpush1.bf16.msra.mxu0 0
  %12361 = vmatprep.subr.bf16.mxu0 0
  %12362 = vmatpush1.bf16.msra.mxu0 %v12342
  %12363 = vmatprep.subr.bf16.mxu0 0
  %12364 = vmatpush1.bf16.msra.mxu0 %v12341
  %12365 = vmatprep.subr.bf16.mxu0 0
  %12366 = vmatpush1.bf16.msra.mxu0 %v12340
  %12367 = vmatprep.subr.bf16.mxu0 0
  %12368 = vmatpush1.bf16.msra.mxu0 %v12339
  %12369 = vmatprep.subr.bf16.mxu0 0
  %12370 = vmatpush2.bf16.msra.mxu0 0
  %12371 = vmatprep.subr.bf16.mxu0 0
  %12372 = vmatpush2.bf16.msra.mxu0 0
  %12373 = vmatprep.subr.bf16.mxu0 0
  %12374 = vmatpush2.bf16.msra.mxu0 0
  %12375 = vmatprep.subr.bf16.mxu0 0
  %12376 = vmatpush2.bf16.msra.mxu0 0
  %12377 = vmatprep.subr.bf16.mxu0 0
  %12378 = vmatpush2.bf16.msra.mxu0 0
  %12379 = vmatprep.subr.bf16.mxu0 0
  %12380 = vmatpush2.bf16.msra.mxu0 0
  %12381 = vmatprep.subr.bf16.mxu0 0
  %12382 = vmatpush2.bf16.msra.mxu0 0
  %12383 = vmatprep.subr.bf16.mxu0 0
  %12384 = vmatpush2.bf16.msra.mxu0 0
  %12385 = vmatprep.mubr.bf16.mxu0 0
  %12386 = vmatmul.mubr.bf16.gmra.mxu0 %v12348
  %v12387 = vpop.f32.mrf.mxu0
  %v12388 = vadd.f32 0.0, %v12387
  %v12389 = vpop.f32.mrf.mxu0
  %v12390 = vpop.f32.mrf.mxu0
  %v12391 = vadd.f32 0.0, %v12390
  %v12392 = vpop.f32.mrf.mxu0
  %12393 = vmatprep.mubr.bf16.mxu0 0
  %12394 = vmatmul.mubr.bf16.gmra.mxu0 %v12351
  %v12395 = vpop.f32.mrf.mxu0
  %v12396 = vadd.f32 0.0, %v12395
  %v12397 = vpop.f32.mrf.mxu0
  %v12398 = vpop.f32.mrf.mxu0
  %v12399 = vadd.f32 0.0, %v12398
  %v12400 = vpop.f32.mrf.mxu0
  %12401 = vdwg.mxu0
  %v12402 = vadd.f32 %v12242, %v12388
  %v12403 = vadd.f32 %v12243, %v12391
  %v12404 = vadd.f32 %v12244, %v12396
  %v12405 = vadd.f32 %v12245, %v12399
  %v12406 = vadd.f32 %v12402, %v12403
  %v12407 = vadd.f32 %v12406, %v12404
  %v12408 = vadd.f32 %v12407, %v12405
  %v12409 = vrot.slane %v12408, 4
  %v12410 = vadd.f32 %v12408, %v12409
  %v12411 = vrot.slane %v12410, 2
  %v12412 = vadd.f32 %v12410, %v12411
  %v12413 = vrot.slane %v12412, 1
  %v12414 = vadd.f32 %v12412, %v12413
  %v12415 = vmul.f32 %v12414, 0.03125
  %v12416 = vmul.f32 %v12402, %v12402
  %v12417 = vmul.f32 %v12403, %v12403
  %v12418 = vmul.f32 %v12404, %v12404
  %v12419 = vmul.f32 %v12405, %v12405
  %v12420 = vadd.f32 %v12416, %v12417
  %v12421 = vadd.f32 %v12420, %v12418
  %v12422 = vadd.f32 %v12421, %v12419
  %v12423 = vrot.slane %v12422, 4
  %v12424 = vadd.f32 %v12422, %v12423
  %v12425 = vrot.slane %v12424, 2
  %v12426 = vadd.f32 %v12424, %v12425
  %v12427 = vrot.slane %v12426, 1
  %v12428 = vadd.f32 %v12426, %v12427
  %v12429 = vmul.f32 %v12428, 0.03125
  %v12430 = vmul.f32 %v12415, %v12415
  %v12431 = vsub.f32 %v12429, %v12430
  %v12432 = vmax.f32 %v12431, 0.0
  %v12433 = vsub.f32 %v12402, %v12415
  %v12434 = vsub.f32 %v12403, %v12415
  %v12435 = vsub.f32 %v12404, %v12415
  %v12436 = vsub.f32 %v12405, %v12415
  %v12437 = vadd.f32 %v12432, 1e-05
  %v12438 = vrsqrt.pop %v12437
  %v12439 = vld [vmem:[%s9] sm:$0x1]
  %v12440 = vmul.f32 %v12438, %v12439
  %v12441 = vlaneseq
  %v12442 = vshrl.u32 %v12441, 7
  %v12443 = vsub.s32 0, %v12442
  %v12444 = vrot.slane %v12440, %v12443
  %v12445 = vmul.f32 %v12433, %v12444
  %v12446 = vmul.f32 %v12434, %v12444
  %v12447 = vmul.f32 %v12435, %v12444
  %v12448 = vmul.f32 %v12436, %v12444
  %v12449 = vld [vmem:[%s10] sm:$0x1]
  %v12451 = vlaneseq
  %v12452 = vshrl.u32 %v12451, 7
  %v12453 = vsub.s32 0, %v12452
  %v12454 = vrot.slane %v12449, %v12453
  %v12456 = vadd.f32 %v12445, %v12454
  %v12457 = vadd.f32 %v12446, %v12454
  %v12458 = vadd.f32 %v12447, %v12454
  %v12459 = vadd.f32 %v12448, %v12454
  %vm12460 = vcmp.gt.f32.partialorder %v12456, 0.0
  %vm12461 = vcmp.gt.f32.partialorder %v12457, 0.0
  %vm12462 = vcmp.gt.f32.partialorder %v12458, 0.0
  %vm12463 = vcmp.gt.f32.partialorder %v12459, 0.0
  %v12464 = vmul.f32 %v12456, 0.2
  %v12465 = vmul.f32 %v12457, 0.2
  %v12466 = vmul.f32 %v12458, 0.2
  %v12467 = vmul.f32 %v12459, 0.2
  %v12468 = vsel %vm12460, %v12456, %v12464
  %v12469 = vsel %vm12461, %v12457, %v12465
  %v12470 = vsel %vm12462, %v12458, %v12466
  %v12471 = vsel %vm12463, %v12459, %v12467
  %v12472 = vld [vmem:[%s11] sm:$0xff]
  %v12473 = vld [vmem:[%s11 + $0x8] sm:$0xff]
  %v12474 = vld [vmem:[%s11 + $0x10] sm:$0xff]
  %v12475 = vld [vmem:[%s11 + $0x18] sm:$0xff]
  %v12476 = vmul.f32 %v12468, %v12472
  %v12477 = vmul.f32 %v12469, %v12473
  %v12478 = vmul.f32 %v12470, %v12474
  %v12479 = vmul.f32 %v12471, %v12475
  %v12480 = vld [vmem:[%s12] sm:$0x3]
  %v12482 = vsel %vm1700, %v12480, 0
  %12484 = vmatprep.subr.mxu0 0.0
  %12485 = vmatpush1.msra.mxu0 0.0
  %12486 = vmatprep.subr.mxu0 0.0
  %12487 = vmatpush1.msra.mxu0 0.0
  %12488 = vmatprep.subr.mxu0 0.0
  %12489 = vmatpush1.msra.mxu0 0.0
  %12490 = vmatprep.subr.mxu0 0.0
  %12491 = vmatpush1.msra.mxu0 0.0
  %12492 = vmatprep.subr.mxu0 0.0
  %12493 = vmatpush1.msra.mxu0 0.0
  %12494 = vmatprep.subr.mxu0 0.0
  %12495 = vmatpush1.msra.mxu0 0.0
  %12496 = vmatprep.subr.mxu0 0.0
  %12497 = vmatpush1.msra.mxu0 0.0
  %12498 = vmatprep.subr.mxu0 0.0
  %12499 = vmatpush1.msra.mxu0 0.0
  %12500 = vmatprep.subr.mxu0 0.0
  %12501 = vmatpush1.msra.mxu0 0.0
  %12502 = vmatprep.subr.mxu0 0.0
  %12503 = vmatpush1.msra.mxu0 0.0
  %12504 = vmatprep.subr.mxu0 0.0
  %12505 = vmatpush1.msra.mxu0 0.0
  %12506 = vmatprep.subr.mxu0 0.0
  %12507 = vmatpush1.msra.mxu0 0.0
  %12508 = vmatprep.subr.mxu0 0.0
  %12509 = vmatpush1.msra.mxu0 %v12479
  %12510 = vmatprep.subr.mxu0 0.0
  %12511 = vmatpush1.msra.mxu0 %v12478
  %12512 = vmatprep.subr.mxu0 0.0
  %12513 = vmatpush1.msra.mxu0 %v12477
  %12514 = vmatprep.subr.mxu0 0.0
  %12515 = vmatpush1.msra.mxu0 %v12476
  %12516 = vmatprep.subr.mxu0 0.0
  %12517 = vmatpush2.msra.mxu0 0.0
  %12518 = vmatprep.subr.mxu0 0.0
  %12519 = vmatpush2.msra.mxu0 0.0
  %12520 = vmatprep.subr.mxu0 0.0
  %12521 = vmatpush2.msra.mxu0 0.0
  %12522 = vmatprep.subr.mxu0 0.0
  %12523 = vmatpush2.msra.mxu0 0.0
  %12524 = vmatprep.subr.mxu0 0.0
  %12525 = vmatpush2.msra.mxu0 0.0
  %12526 = vmatprep.subr.mxu0 0.0
  %12527 = vmatpush2.msra.mxu0 0.0
  %12528 = vmatprep.subr.mxu0 0.0
  %12529 = vmatpush2.msra.mxu0 0.0
  %12530 = vmatprep.subr.mxu0 0.0
  %12531 = vmatpush2.msra.mxu0 0.0
  %12532 = vmatprep.subr.mxu0 0.0
  %12533 = vmatpush2.msra.mxu0 0.0
  %12534 = vmatprep.subr.mxu0 0.0
  %12535 = vmatpush2.msra.mxu0 0.0
  %12536 = vmatprep.subr.mxu0 0.0
  %12537 = vmatpush2.msra.mxu0 0.0
  %12538 = vmatprep.subr.mxu0 0.0
  %12539 = vmatpush2.msra.mxu0 0.0
  %12540 = vmatprep.subr.mxu0 0.0
  %12541 = vmatpush2.msra.mxu0 0.0
  %12542 = vmatprep.subr.mxu0 0.0
  %12543 = vmatpush2.msra.mxu0 0.0
  %12544 = vmatprep.subr.mxu0 0.0
  %12545 = vmatpush2.msra.mxu0 0.0
  %12546 = vmatprep.subr.mxu0 0.0
  %12547 = vmatpush2.msra.mxu0 0.0
  %12548 = vmatprep.mubr.f32.mxu0 0.0
  %12549 = vmatmul.mubr.f32.gmra.mxu0 %v12482
  %v12550 = vpop.f32.mrf.mxu0
  %v12551 = vadd.f32 0.0, %v12550
  %v12552 = vpop.f32.mrf.mxu0
  %12553 = vdwg.mxu0
  %vm12554 = vcmask 1041408
  %v12555 = vsel %vm12554, %v12551, 0.0
  %12556 = vadd.xlane.f32.xlu0 %v12555
  %v12557 = vpop.xlane.xlu0 %12556
  %v12558 = vld [vmem:[#allocation2] sm:$0x1]
  %v12560 = vlaneseq
  %v12561 = vshrl.u32 %v12560, 7
  %v12562 = vsub.s32 0, %v12561
  %v12563 = vrot.slane %v12558, %v12562
  %v12565 = vadd.f32 %v12557, %v12563
  %v12566 = vxor.u32 %v12565, 2147483648
  %v12567 = vmul.f32 %v12566, 1.442695
  %v12568 = vpow.pop %v12567
  %v12569 = vadd.f32 %v12568, 1.0
  %v12570 = vrcp.pop %v12569
  %v12571 = vmul.f32 1.0, %v12570
  %vm12572 = vcmask 1024
  %12573 = vst.msk [vmem:[%s14] sm:$0x3] %vm12572, %v12571
  // Predicated region
  $region58: #{discriminator_forward.1} parent=0 // pred_check
    _
  $region59: #{discriminator_forward.1} parent=0 // pred_check_branch
    %12575 = sbr.rel (0) target = $region61
  $region60: #{discriminator_forward.1} parent=0 // pred_region
    _
  $region61: #{discriminator_forward.1} parent=0 // pred_fallthru
    _
  // Predicated region
  $region62: #{discriminator_forward.1} parent=0 // pred_check
    _
  $region63: #{discriminator_forward.1} parent=0 // pred_check_branch
    %12577 = sbr.rel (0) target = $region65
  $region64: #{discriminator_forward.1} parent=0 // pred_region
    _
  $region65: #{discriminator_forward.1} parent=0 // pred_fallthru
    _

</llo_original>
